<compile_context>
chip_gen: v7x
topology: tpu7x:2x2x1
jax: 0.10.0
libtpu: 0.0.40
codegen_flags: <defaults>
</compile_context>

<pallas_src>
import jax
import jax.numpy as jnp
from jax import lax
from jax.experimental import pallas as pl
from jax.experimental.pallas import tpu as pltpu

# ----------------------------- sizes -----------------------------------------
T = 8        # sequence length (src.size(0) == max_len when trg is None)
B = 4        # batch (src.size(1))
E = 32       # embedding size
H = 32       # hidden size
V_SRC = 16   # source vocab
V_OUT = 16   # decoder output vocab (decoder.output_size)
N_LAYERS = 1 # decoder.n_layers


# ----------------------------- fused kernel ----------------------------------
def seq2seq_kernel(src_ref,
                   enc_emb_ref, enc_wi_ref, enc_wh_ref, enc_bi_ref, enc_bh_ref,
                   att_wh_ref, att_we_ref, att_b_ref, att_v_ref,
                   dec_emb_ref, dec_wi_ref, dec_wh_ref, dec_bi_ref, dec_bh_ref,
                   dec_wo_ref, dec_bo_ref,
                   out_ref, eo_scr):
    f32 = jnp.float32
    Tt, Bb = src_ref.shape
    Vs, Ee = enc_emb_ref.shape
    Hh = att_wh_ref.shape[0]
    Vo = dec_bo_ref.shape[1]

    def dot(a, b):
        return jnp.dot(a, b, preferred_element_type=f32)

    def gru_cell(gi, h, wh, bh):
        # gi = x @ W_i + b_i, gates fused as [r | z | n] on the lane axis.
        gh = dot(h, wh) + bh
        r = jax.nn.sigmoid(gi[:, 0 * Hh:1 * Hh] + gh[:, 0 * Hh:1 * Hh])
        z = jax.nn.sigmoid(gi[:, 1 * Hh:2 * Hh] + gh[:, 1 * Hh:2 * Hh])
        n = jnp.tanh(gi[:, 2 * Hh:3 * Hh] + r * gh[:, 2 * Hh:3 * Hh])
        return (1.0 - z) * n + z * h

    # ---- encoder -------------------------------------------------------------
    # Embedding via one-hot matmul (no gather); input-gate projection batched
    # over ALL timesteps in one MXU matmul.  Only the cheap (B,H)x(H,3H)
    # hidden-gate matmul stays inside the unrolled recurrence.
    src = src_ref[...]                                                  # (T,B) i32
    src_oh = (src[:, :, None] ==
              lax.broadcasted_iota(jnp.int32, (Tt, Bb, Vs), 2)).astype(f32)
    src_emb = dot(src_oh.reshape(Tt * Bb, Vs), enc_emb_ref[...])        # (T*B, E)
    gi_all = dot(src_emb, enc_wi_ref[...]) + enc_bi_ref[...]            # (T*B,3H)

    enc_wh = enc_wh_ref[...]
    enc_bh = enc_bh_ref[...]
    h = jnp.zeros((Bb, Hh), f32)
    for t in range(Tt):                       # tiny recurrence, fully unrolled
        h = gru_cell(gi_all[t * Bb:(t + 1) * Bb, :], h, enc_wh, enc_bh)  # (B,H)
        eo_scr[t] = h                          # encoder outputs stay in VMEM

    eo3 = eo_scr[...]                                                   # (T,B,H)
    eo_flat = eo3.reshape(Tt * Bb, Hh)                                  # (T*B,H)

    # ---- Bahdanau precompute (hoisted out of the decode loop) ----------------
    eproj3 = (dot(eo_flat, att_we_ref[...]) + att_b_ref[...]).reshape(Tt, Bb, Hh)
    v_pad = jnp.broadcast_to(att_v_ref[...], (Hh, 8))  # lane-pad v for MXU dot

    # ---- hoist all decoder weights/biases out of the unrolled loop -----------
    att_wh = att_wh_ref[...]
    dec_emb = dec_emb_ref[...]
    dec_wi_e = dec_wi_ref[0:Ee, :]          # fused (E+H,3H): embedded rows
    dec_wi_c = dec_wi_ref[Ee:Ee + Hh, :]    #                 context rows
    dec_wh = dec_wh_ref[...]
    dec_bi = dec_bi_ref[...]
    dec_bh = dec_bh_ref[...]
    dec_wo_h = dec_wo_ref[0:Hh, :]          # fused (2H,V): gru_out rows
    dec_wo_c = dec_wo_ref[Hh:2 * Hh, :]     #               context rows
    dec_bo = dec_bo_ref[...]

    # ---- greedy decode (unrolled; hidden/token stay in vregs) ----------------
    out_ref[0] = jnp.zeros((Bb, Vo), f32)            # outputs[0] stays zero
    col = lax.broadcasted_iota(jnp.int32, (Bb, Vo), 1)                  # (B, Vo)
    tok_oh = (col == 0).astype(f32)                  # initial <sos> token = 0

    for t in range(1, Tt):
        # embedding lookup of the current tokens (one-hot matmul, no gather)
        emb = dot(tok_oh, dec_emb)                                      # (B, E)

        # ---- attention: score reduction on the MXU, softmax over time -------
        hproj = dot(h, att_wh)                                          # (B, H)
        energy = jax.nn.relu(hproj[None, :, :] + eproj3)                # (T,B,H)
        score = dot(energy.reshape(Tt * Bb, Hh), v_pad)                 # (T*B, 8)
        score = score.reshape(Tt, Bb, 8)[:, :, 0:1]                     # (T,B,1)
        score = score - jnp.max(score, axis=0, keepdims=True)
        w = jnp.exp(score)
        w = w / jnp.sum(w, axis=0, keepdims=True)                       # (T,B,1)
        ctx = jnp.sum(w * eo3, axis=0)                                  # (B, H)

        # ---- decoder GRU on [embedded ; context] (fused weights, row blocks) -
        gi = dot(emb, dec_wi_e) + dot(ctx, dec_wi_c) + dec_bi           # (B, 3H)
        h = gru_cell(gi, h, dec_wh, dec_bh)                             # (B, H)

        # ---- output projection on [gru_out ; context] + log_softmax ---------
        logits = dot(h, dec_wo_h) + dot(ctx, dec_wo_c) + dec_bo         # (B, Vo)
        s = logits - jnp.max(logits, axis=1, keepdims=True)
        logp = s - jnp.log(jnp.sum(jnp.exp(s), axis=1, keepdims=True))
        out_ref[t] = logp                      # VMEM store; HBM writeback once

        # ---- greedy top-1 -> one-hot next-token (ties -> first index) -------
        mx = jnp.max(logp, axis=1, keepdims=True)
        first = jnp.min(jnp.where(logp == mx, col, Vo), axis=1, keepdims=True)
        tok_oh = (col == first).astype(f32)
        # TODO(synk): teacher forcing uses host-side random.random(); with
        # trg=None the module always takes the greedy branch (implemented).


# ----------------------------- wrapper ----------------------------------------
@jax.jit
def seq2seq_forward(src, params):
    """Mirrors Seq2Seq.forward with trg=None (single fused pallas_call)."""
    Tt, Bb = src.shape
    vmem = pl.BlockSpec(memory_space=pltpu.MemorySpace.VMEM)
    return pl.pallas_call(
        seq2seq_kernel,
        out_shape=jax.ShapeDtypeStruct((Tt, Bb, V_OUT), jnp.float32),
        in_specs=[vmem] * 17,
        out_specs=vmem,
        scratch_shapes=[pltpu.VMEM((Tt, Bb, H), jnp.float32)],
    )(src,
      params["enc_embed"], params["enc_wi"], params["enc_wh"],
      params["enc_bi"], params["enc_bh"],
      params["att_wh"], params["att_we"], params["att_b"], params["att_v"],
      params["dec_embed"], params["dec_wi"], params["dec_wh"],
      params["dec_bi"], params["dec_bh"], params["dec_wo"], params["dec_bo"])


# ----------------------------- parameter init ---------------------------------
def init_params(key):
    ks = iter(jax.random.split(key, 20))

    def mat(shape, fan_in):
        return jax.random.normal(next(ks), shape, jnp.float32) / jnp.sqrt(fan_in)

    p = {}
    p["enc_embed"] = mat((V_SRC, E), E)
    p["dec_embed"] = mat((V_OUT, E), E)

    # encoder GRU: per-gate weights fused as [r|z|n] along the output axis
    p["enc_wi"] = mat((E, 3 * H), E)
    p["enc_wh"] = mat((H, 3 * H), H)
    p["enc_bi"] = mat((1, 3 * H), H)
    p["enc_bh"] = mat((1, 3 * H), H)

    # Bahdanau attention: Linear(2H->H) split into hidden / encoder parts, plus v
    p["att_wh"] = mat((H, H), 2 * H)
    p["att_we"] = mat((H, H), 2 * H)
    p["att_b"] = mat((1, H), H)
    p["att_v"] = mat((H, 1), H)

    # decoder GRU over [embedded ; context]: fused (E+H, 3H), (H, 3H)
    p["dec_wi"] = mat((E + H, 3 * H), E + H)
    p["dec_wh"] = mat((H, 3 * H), H)
    p["dec_bi"] = mat((1, 3 * H), H)
    p["dec_bh"] = mat((1, 3 * H), H)

    # output Linear(2H -> V) fused over [gru_out ; context]
    p["dec_wo"] = mat((2 * H, V_OUT), 2 * H)
    p["dec_bo"] = mat((1, V_OUT), 2 * H)
    return p


# ----------------------------- main -------------------------------------------
if __name__ == "__main__":
    key = jax.random.PRNGKey(0)
    k_param, k_src = jax.random.split(key)
    params = init_params(k_param)
    src = jax.random.randint(k_src, (T, B), 0, V_SRC, dtype=jnp.int32)

    out = seq2seq_forward(src, params)
    out = jax.block_until_ready(out)

    assert out.shape == (T, B, V_OUT)
    assert bool(jnp.all(jnp.isfinite(out)))
    assert bool(jnp.all(out[0] == 0.0))                       # outputs[0] = 0
    # rows 1..T-1 are log-softmax distributions
    probs = jnp.sum(jnp.exp(out[1:]), axis=-1)
    assert bool(jnp.all(jnp.abs(probs - 1.0) < 1e-3))
    print("KERNEL_OK")
</pallas_src>

<mosaic_0001>
module attributes {stable_mosaic.version = 11 : i64} {
  func.func @seq2seq_kernel(%arg0: memref<8x4xi32, #tpu.memory_space<vmem>>, %arg1: memref<16x32xf32, #tpu.memory_space<vmem>>, %arg2: memref<32x96xf32, #tpu.memory_space<vmem>>, %arg3: memref<32x96xf32, #tpu.memory_space<vmem>>, %arg4: memref<1x96xf32, #tpu.memory_space<vmem>>, %arg5: memref<1x96xf32, #tpu.memory_space<vmem>>, %arg6: memref<32x32xf32, #tpu.memory_space<vmem>>, %arg7: memref<32x32xf32, #tpu.memory_space<vmem>>, %arg8: memref<1x32xf32, #tpu.memory_space<vmem>>, %arg9: memref<32x1xf32, #tpu.memory_space<vmem>>, %arg10: memref<16x32xf32, #tpu.memory_space<vmem>>, %arg11: memref<64x96xf32, #tpu.memory_space<vmem>>, %arg12: memref<32x96xf32, #tpu.memory_space<vmem>>, %arg13: memref<1x96xf32, #tpu.memory_space<vmem>>, %arg14: memref<1x96xf32, #tpu.memory_space<vmem>>, %arg15: memref<64x16xf32, #tpu.memory_space<vmem>>, %arg16: memref<1x16xf32, #tpu.memory_space<vmem>>, %arg17: memref<8x4x16xf32, #tpu.memory_space<vmem>>, %arg18: memref<8x4x32xf32, #tpu.memory_space<vmem>>) attributes {dimension_semantics = [], scalar_prefetch = 0 : i64, scratch_operands = 1 : i64, tpu.core_type = #tpu.core_type<tc>} {
    %c0 = arith.constant 0 : index
    %c0_0 = arith.constant 0 : index
    %0 = vector.load %arg0[%c0, %c0_0] : memref<8x4xi32, #tpu.memory_space<vmem>>, vector<8x4xi32>
    %1 = vector.shape_cast %0 : vector<8x4xi32> to vector<8x4x1xi32>
    %2 = tpu.iota {dimensions = array<i32: 2>} : vector<8x4x16xi32>
    %3 = vector.broadcast %1 : vector<8x4x1xi32> to vector<8x4x16xi32>
    %4 = arith.cmpi eq, %3, %2 : vector<8x4x16xi32>
    %5 = arith.extui %4 : vector<8x4x16xi1> to vector<8x4x16xi32>
    %6 = arith.sitofp %5 : vector<8x4x16xi32> to vector<8x4x16xf32>
    %7 = vector.shape_cast %6 : vector<8x4x16xf32> to vector<32x16xf32>
    %c0_1 = arith.constant 0 : index
    %c0_2 = arith.constant 0 : index
    %8 = vector.load %arg1[%c0_1, %c0_2] : memref<16x32xf32, #tpu.memory_space<vmem>>, vector<16x32xf32>
    %cst = arith.constant dense<0.000000e+00> : vector<32x32xf32>
    %9 = tpu.matmul %7, %8, %cst {dimension_numbers = #tpu.dot_dimension_numbers<[1], [0], [0], [1], [0, 0, 1, 1], [], []>} : vector<32x16xf32>, vector<16x32xf32>, vector<32x32xf32> -> vector<32x32xf32>
    %c0_3 = arith.constant 0 : index
    %c0_4 = arith.constant 0 : index
    %10 = vector.load %arg2[%c0_3, %c0_4] : memref<32x96xf32, #tpu.memory_space<vmem>>, vector<32x96xf32>
    %cst_5 = arith.constant dense<0.000000e+00> : vector<32x96xf32>
    %11 = tpu.matmul %9, %10, %cst_5 {dimension_numbers = #tpu.dot_dimension_numbers<[1], [0], [0], [1], [0, 0, 1, 1], [], []>} : vector<32x32xf32>, vector<32x96xf32>, vector<32x96xf32> -> vector<32x96xf32>
    %c0_6 = arith.constant 0 : index
    %c0_7 = arith.constant 0 : index
    %12 = vector.load %arg4[%c0_6, %c0_7] : memref<1x96xf32, #tpu.memory_space<vmem>>, vector<1x96xf32>
    %13 = vector.broadcast %12 : vector<1x96xf32> to vector<32x96xf32>
    %14 = arith.addf %11, %13 : vector<32x96xf32>
    %c0_8 = arith.constant 0 : index
    %c0_9 = arith.constant 0 : index
    %15 = vector.load %arg3[%c0_8, %c0_9] : memref<32x96xf32, #tpu.memory_space<vmem>>, vector<32x96xf32>
    %c0_10 = arith.constant 0 : index
    %c0_11 = arith.constant 0 : index
    %16 = vector.load %arg5[%c0_10, %c0_11] : memref<1x96xf32, #tpu.memory_space<vmem>>, vector<1x96xf32>
    %cst_12 = arith.constant 0.000000e+00 : f32
    %17 = vector.broadcast %cst_12 : f32 to vector<4x32xf32>
    %18 = vector.extract_strided_slice %14 {offsets = [0, 0], sizes = [4, 96], strides = [1, 1]} : vector<32x96xf32> to vector<4x96xf32>
    %cst_13 = arith.constant dense<0.000000e+00> : vector<4x96xf32>
    %19 = tpu.matmul %17, %15, %cst_13 {dimension_numbers = #tpu.dot_dimension_numbers<[1], [0], [0], [1], [0, 0, 1, 1], [], []>} : vector<4x32xf32>, vector<32x96xf32>, vector<4x96xf32> -> vector<4x96xf32>
    %20 = vector.broadcast %16 : vector<1x96xf32> to vector<4x96xf32>
    %21 = arith.addf %19, %20 : vector<4x96xf32>
    %22 = vector.extract_strided_slice %18 {offsets = [0, 0], sizes = [4, 32], strides = [1, 1]} : vector<4x96xf32> to vector<4x32xf32>
    %23 = vector.extract_strided_slice %21 {offsets = [0, 0], sizes = [4, 32], strides = [1, 1]} : vector<4x96xf32> to vector<4x32xf32>
    %24 = arith.addf %22, %23 : vector<4x32xf32>
    %25 = arith.negf %24 : vector<4x32xf32>
    %26 = math.exp %25 : vector<4x32xf32>
    %cst_14 = arith.constant 1.000000e+00 : f32
    %27 = vector.broadcast %cst_14 : f32 to vector<4x32xf32>
    %28 = arith.addf %27, %26 : vector<4x32xf32>
    %29 = arith.divf %27, %28 : vector<4x32xf32>
    %30 = vector.extract_strided_slice %18 {offsets = [0, 32], sizes = [4, 32], strides = [1, 1]} : vector<4x96xf32> to vector<4x32xf32>
    %31 = vector.extract_strided_slice %21 {offsets = [0, 32], sizes = [4, 32], strides = [1, 1]} : vector<4x96xf32> to vector<4x32xf32>
    %32 = arith.addf %30, %31 : vector<4x32xf32>
    %33 = arith.negf %32 : vector<4x32xf32>
    %34 = math.exp %33 : vector<4x32xf32>
    %cst_15 = arith.constant 1.000000e+00 : f32
    %35 = vector.broadcast %cst_15 : f32 to vector<4x32xf32>
    %36 = arith.addf %35, %34 : vector<4x32xf32>
    %37 = arith.divf %35, %36 : vector<4x32xf32>
    %38 = vector.extract_strided_slice %18 {offsets = [0, 64], sizes = [4, 32], strides = [1, 1]} : vector<4x96xf32> to vector<4x32xf32>
    %39 = vector.extract_strided_slice %21 {offsets = [0, 64], sizes = [4, 32], strides = [1, 1]} : vector<4x96xf32> to vector<4x32xf32>
    %40 = arith.mulf %29, %39 : vector<4x32xf32>
    %41 = arith.addf %38, %40 : vector<4x32xf32>
    %42 = math.tanh %41 : vector<4x32xf32>
    %cst_16 = arith.constant 1.000000e+00 : f32
    %43 = vector.broadcast %cst_16 : f32 to vector<4x32xf32>
    %44 = arith.subf %43, %37 : vector<4x32xf32>
    %45 = arith.mulf %44, %42 : vector<4x32xf32>
    %46 = arith.mulf %37, %17 : vector<4x32xf32>
    %47 = arith.addf %45, %46 : vector<4x32xf32>
    %c0_17 = arith.constant 0 : index
    %c0_18 = arith.constant 0 : index
    %c0_19 = arith.constant 0 : index
    %48 = vector.load %arg18[%c0_17, %c0_18, %c0_19] : memref<8x4x32xf32, #tpu.memory_space<vmem>>, vector<1x4x32xf32>
    %49 = vector.shape_cast %48 : vector<1x4x32xf32> to vector<4x32xf32>
    %50 = vector.shape_cast %47 : vector<4x32xf32> to vector<1x4x32xf32>
    tpu.vector_store %arg18[%c0_17, %c0_18, %c0_19], %50 {strides = array<i32>} : memref<8x4x32xf32, #tpu.memory_space<vmem>>, vector<1x4x32xf32>,
    %51 = vector.extract_strided_slice %14 {offsets = [4, 0], sizes = [4, 96], strides = [1, 1]} : vector<32x96xf32> to vector<4x96xf32>
    %cst_20 = arith.constant dense<0.000000e+00> : vector<4x96xf32>
    %52 = tpu.matmul %47, %15, %cst_20 {dimension_numbers = #tpu.dot_dimension_numbers<[1], [0], [0], [1], [0, 0, 1, 1], [], []>} : vector<4x32xf32>, vector<32x96xf32>, vector<4x96xf32> -> vector<4x96xf32>
    %53 = vector.broadcast %16 : vector<1x96xf32> to vector<4x96xf32>
    %54 = arith.addf %52, %53 : vector<4x96xf32>
    %55 = vector.extract_strided_slice %51 {offsets = [0, 0], sizes = [4, 32], strides = [1, 1]} : vector<4x96xf32> to vector<4x32xf32>
    %56 = vector.extract_strided_slice %54 {offsets = [0, 0], sizes = [4, 32], strides = [1, 1]} : vector<4x96xf32> to vector<4x32xf32>
    %57 = arith.addf %55, %56 : vector<4x32xf32>
    %58 = arith.negf %57 : vector<4x32xf32>
    %59 = math.exp %58 : vector<4x32xf32>
    %cst_21 = arith.constant 1.000000e+00 : f32
    %60 = vector.broadcast %cst_21 : f32 to vector<4x32xf32>
    %61 = arith.addf %60, %59 : vector<4x32xf32>
    %62 = arith.divf %60, %61 : vector<4x32xf32>
    %63 = vector.extract_strided_slice %51 {offsets = [0, 32], sizes = [4, 32], strides = [1, 1]} : vector<4x96xf32> to vector<4x32xf32>
    %64 = vector.extract_strided_slice %54 {offsets = [0, 32], sizes = [4, 32], strides = [1, 1]} : vector<4x96xf32> to vector<4x32xf32>
    %65 = arith.addf %63, %64 : vector<4x32xf32>
    %66 = arith.negf %65 : vector<4x32xf32>
    %67 = math.exp %66 : vector<4x32xf32>
    %cst_22 = arith.constant 1.000000e+00 : f32
    %68 = vector.broadcast %cst_22 : f32 to vector<4x32xf32>
    %69 = arith.addf %68, %67 : vector<4x32xf32>
    %70 = arith.divf %68, %69 : vector<4x32xf32>
    %71 = vector.extract_strided_slice %51 {offsets = [0, 64], sizes = [4, 32], strides = [1, 1]} : vector<4x96xf32> to vector<4x32xf32>
    %72 = vector.extract_strided_slice %54 {offsets = [0, 64], sizes = [4, 32], strides = [1, 1]} : vector<4x96xf32> to vector<4x32xf32>
    %73 = arith.mulf %62, %72 : vector<4x32xf32>
    %74 = arith.addf %71, %73 : vector<4x32xf32>
    %75 = math.tanh %74 : vector<4x32xf32>
    %cst_23 = arith.constant 1.000000e+00 : f32
    %76 = vector.broadcast %cst_23 : f32 to vector<4x32xf32>
    %77 = arith.subf %76, %70 : vector<4x32xf32>
    %78 = arith.mulf %77, %75 : vector<4x32xf32>
    %79 = arith.mulf %70, %47 : vector<4x32xf32>
    %80 = arith.addf %78, %79 : vector<4x32xf32>
    %c1 = arith.constant 1 : index
    %c0_24 = arith.constant 0 : index
    %c0_25 = arith.constant 0 : index
    %81 = vector.load %arg18[%c1, %c0_24, %c0_25] : memref<8x4x32xf32, #tpu.memory_space<vmem>>, vector<1x4x32xf32>
    %82 = vector.shape_cast %81 : vector<1x4x32xf32> to vector<4x32xf32>
    %83 = vector.shape_cast %80 : vector<4x32xf32> to vector<1x4x32xf32>
    tpu.vector_store %arg18[%c1, %c0_24, %c0_25], %83 {strides = array<i32>} : memref<8x4x32xf32, #tpu.memory_space<vmem>>, vector<1x4x32xf32>,
    %84 = vector.extract_strided_slice %14 {offsets = [8, 0], sizes = [4, 96], strides = [1, 1]} : vector<32x96xf32> to vector<4x96xf32>
    %cst_26 = arith.constant dense<0.000000e+00> : vector<4x96xf32>
    %85 = tpu.matmul %80, %15, %cst_26 {dimension_numbers = #tpu.dot_dimension_numbers<[1], [0], [0], [1], [0, 0, 1, 1], [], []>} : vector<4x32xf32>, vector<32x96xf32>, vector<4x96xf32> -> vector<4x96xf32>
    %86 = vector.broadcast %16 : vector<1x96xf32> to vector<4x96xf32>
    %87 = arith.addf %85, %86 : vector<4x96xf32>
    %88 = vector.extract_strided_slice %84 {offsets = [0, 0], sizes = [4, 32], strides = [1, 1]} : vector<4x96xf32> to vector<4x32xf32>
    %89 = vector.extract_strided_slice %87 {offsets = [0, 0], sizes = [4, 32], strides = [1, 1]} : vector<4x96xf32> to vector<4x32xf32>
    %90 = arith.addf %88, %89 : vector<4x32xf32>
    %91 = arith.negf %90 : vector<4x32xf32>
    %92 = math.exp %91 : vector<4x32xf32>
    %cst_27 = arith.constant 1.000000e+00 : f32
    %93 = vector.broadcast %cst_27 : f32 to vector<4x32xf32>
    %94 = arith.addf %93, %92 : vector<4x32xf32>
    %95 = arith.divf %93, %94 : vector<4x32xf32>
    %96 = vector.extract_strided_slice %84 {offsets = [0, 32], sizes = [4, 32], strides = [1, 1]} : vector<4x96xf32> to vector<4x32xf32>
    %97 = vector.extract_strided_slice %87 {offsets = [0, 32], sizes = [4, 32], strides = [1, 1]} : vector<4x96xf32> to vector<4x32xf32>
    %98 = arith.addf %96, %97 : vector<4x32xf32>
    %99 = arith.negf %98 : vector<4x32xf32>
    %100 = math.exp %99 : vector<4x32xf32>
    %cst_28 = arith.constant 1.000000e+00 : f32
    %101 = vector.broadcast %cst_28 : f32 to vector<4x32xf32>
    %102 = arith.addf %101, %100 : vector<4x32xf32>
    %103 = arith.divf %101, %102 : vector<4x32xf32>
    %104 = vector.extract_strided_slice %84 {offsets = [0, 64], sizes = [4, 32], strides = [1, 1]} : vector<4x96xf32> to vector<4x32xf32>
    %105 = vector.extract_strided_slice %87 {offsets = [0, 64], sizes = [4, 32], strides = [1, 1]} : vector<4x96xf32> to vector<4x32xf32>
    %106 = arith.mulf %95, %105 : vector<4x32xf32>
    %107 = arith.addf %104, %106 : vector<4x32xf32>
    %108 = math.tanh %107 : vector<4x32xf32>
    %cst_29 = arith.constant 1.000000e+00 : f32
    %109 = vector.broadcast %cst_29 : f32 to vector<4x32xf32>
    %110 = arith.subf %109, %103 : vector<4x32xf32>
    %111 = arith.mulf %110, %108 : vector<4x32xf32>
    %112 = arith.mulf %103, %80 : vector<4x32xf32>
    %113 = arith.addf %111, %112 : vector<4x32xf32>
    %c2 = arith.constant 2 : index
    %c0_30 = arith.constant 0 : index
    %c0_31 = arith.constant 0 : index
    %114 = vector.load %arg18[%c2, %c0_30, %c0_31] : memref<8x4x32xf32, #tpu.memory_space<vmem>>, vector<1x4x32xf32>
    %115 = vector.shape_cast %114 : vector<1x4x32xf32> to vector<4x32xf32>
    %116 = vector.shape_cast %113 : vector<4x32xf32> to vector<1x4x32xf32>
    tpu.vector_store %arg18[%c2, %c0_30, %c0_31], %116 {strides = array<i32>} : memref<8x4x32xf32, #tpu.memory_space<vmem>>, vector<1x4x32xf32>,
    %117 = vector.extract_strided_slice %14 {offsets = [12, 0], sizes = [4, 96], strides = [1, 1]} : vector<32x96xf32> to vector<4x96xf32>
    %cst_32 = arith.constant dense<0.000000e+00> : vector<4x96xf32>
    %118 = tpu.matmul %113, %15, %cst_32 {dimension_numbers = #tpu.dot_dimension_numbers<[1], [0], [0], [1], [0, 0, 1, 1], [], []>} : vector<4x32xf32>, vector<32x96xf32>, vector<4x96xf32> -> vector<4x96xf32>
    %119 = vector.broadcast %16 : vector<1x96xf32> to vector<4x96xf32>
    %120 = arith.addf %118, %119 : vector<4x96xf32>
    %121 = vector.extract_strided_slice %117 {offsets = [0, 0], sizes = [4, 32], strides = [1, 1]} : vector<4x96xf32> to vector<4x32xf32>
    %122 = vector.extract_strided_slice %120 {offsets = [0, 0], sizes = [4, 32], strides = [1, 1]} : vector<4x96xf32> to vector<4x32xf32>
    %123 = arith.addf %121, %122 : vector<4x32xf32>
    %124 = arith.negf %123 : vector<4x32xf32>
    %125 = math.exp %124 : vector<4x32xf32>
    %cst_33 = arith.constant 1.000000e+00 : f32
    %126 = vector.broadcast %cst_33 : f32 to vector<4x32xf32>
    %127 = arith.addf %126, %125 : vector<4x32xf32>
    %128 = arith.divf %126, %127 : vector<4x32xf32>
    %129 = vector.extract_strided_slice %117 {offsets = [0, 32], sizes = [4, 32], strides = [1, 1]} : vector<4x96xf32> to vector<4x32xf32>
    %130 = vector.extract_strided_slice %120 {offsets = [0, 32], sizes = [4, 32], strides = [1, 1]} : vector<4x96xf32> to vector<4x32xf32>
    %131 = arith.addf %129, %130 : vector<4x32xf32>
    %132 = arith.negf %131 : vector<4x32xf32>
    %133 = math.exp %132 : vector<4x32xf32>
    %cst_34 = arith.constant 1.000000e+00 : f32
    %134 = vector.broadcast %cst_34 : f32 to vector<4x32xf32>
    %135 = arith.addf %134, %133 : vector<4x32xf32>
    %136 = arith.divf %134, %135 : vector<4x32xf32>
    %137 = vector.extract_strided_slice %117 {offsets = [0, 64], sizes = [4, 32], strides = [1, 1]} : vector<4x96xf32> to vector<4x32xf32>
    %138 = vector.extract_strided_slice %120 {offsets = [0, 64], sizes = [4, 32], strides = [1, 1]} : vector<4x96xf32> to vector<4x32xf32>
    %139 = arith.mulf %128, %138 : vector<4x32xf32>
    %140 = arith.addf %137, %139 : vector<4x32xf32>
    %141 = math.tanh %140 : vector<4x32xf32>
    %cst_35 = arith.constant 1.000000e+00 : f32
    %142 = vector.broadcast %cst_35 : f32 to vector<4x32xf32>
    %143 = arith.subf %142, %136 : vector<4x32xf32>
    %144 = arith.mulf %143, %141 : vector<4x32xf32>
    %145 = arith.mulf %136, %113 : vector<4x32xf32>
    %146 = arith.addf %144, %145 : vector<4x32xf32>
    %c3 = arith.constant 3 : index
    %c0_36 = arith.constant 0 : index
    %c0_37 = arith.constant 0 : index
    %147 = vector.load %arg18[%c3, %c0_36, %c0_37] : memref<8x4x32xf32, #tpu.memory_space<vmem>>, vector<1x4x32xf32>
    %148 = vector.shape_cast %147 : vector<1x4x32xf32> to vector<4x32xf32>
    %149 = vector.shape_cast %146 : vector<4x32xf32> to vector<1x4x32xf32>
    tpu.vector_store %arg18[%c3, %c0_36, %c0_37], %149 {strides = array<i32>} : memref<8x4x32xf32, #tpu.memory_space<vmem>>, vector<1x4x32xf32>,
    %150 = vector.extract_strided_slice %14 {offsets = [16, 0], sizes = [4, 96], strides = [1, 1]} : vector<32x96xf32> to vector<4x96xf32>
    %cst_38 = arith.constant dense<0.000000e+00> : vector<4x96xf32>
    %151 = tpu.matmul %146, %15, %cst_38 {dimension_numbers = #tpu.dot_dimension_numbers<[1], [0], [0], [1], [0, 0, 1, 1], [], []>} : vector<4x32xf32>, vector<32x96xf32>, vector<4x96xf32> -> vector<4x96xf32>
    %152 = vector.broadcast %16 : vector<1x96xf32> to vector<4x96xf32>
    %153 = arith.addf %151, %152 : vector<4x96xf32>
    %154 = vector.extract_strided_slice %150 {offsets = [0, 0], sizes = [4, 32], strides = [1, 1]} : vector<4x96xf32> to vector<4x32xf32>
    %155 = vector.extract_strided_slice %153 {offsets = [0, 0], sizes = [4, 32], strides = [1, 1]} : vector<4x96xf32> to vector<4x32xf32>
    %156 = arith.addf %154, %155 : vector<4x32xf32>
    %157 = arith.negf %156 : vector<4x32xf32>
    %158 = math.exp %157 : vector<4x32xf32>
    %cst_39 = arith.constant 1.000000e+00 : f32
    %159 = vector.broadcast %cst_39 : f32 to vector<4x32xf32>
    %160 = arith.addf %159, %158 : vector<4x32xf32>
    %161 = arith.divf %159, %160 : vector<4x32xf32>
    %162 = vector.extract_strided_slice %150 {offsets = [0, 32], sizes = [4, 32], strides = [1, 1]} : vector<4x96xf32> to vector<4x32xf32>
    %163 = vector.extract_strided_slice %153 {offsets = [0, 32], sizes = [4, 32], strides = [1, 1]} : vector<4x96xf32> to vector<4x32xf32>
    %164 = arith.addf %162, %163 : vector<4x32xf32>
    %165 = arith.negf %164 : vector<4x32xf32>
    %166 = math.exp %165 : vector<4x32xf32>
    %cst_40 = arith.constant 1.000000e+00 : f32
    %167 = vector.broadcast %cst_40 : f32 to vector<4x32xf32>
    %168 = arith.addf %167, %166 : vector<4x32xf32>
    %169 = arith.divf %167, %168 : vector<4x32xf32>
    %170 = vector.extract_strided_slice %150 {offsets = [0, 64], sizes = [4, 32], strides = [1, 1]} : vector<4x96xf32> to vector<4x32xf32>
    %171 = vector.extract_strided_slice %153 {offsets = [0, 64], sizes = [4, 32], strides = [1, 1]} : vector<4x96xf32> to vector<4x32xf32>
    %172 = arith.mulf %161, %171 : vector<4x32xf32>
    %173 = arith.addf %170, %172 : vector<4x32xf32>
    %174 = math.tanh %173 : vector<4x32xf32>
    %cst_41 = arith.constant 1.000000e+00 : f32
    %175 = vector.broadcast %cst_41 : f32 to vector<4x32xf32>
    %176 = arith.subf %175, %169 : vector<4x32xf32>
    %177 = arith.mulf %176, %174 : vector<4x32xf32>
    %178 = arith.mulf %169, %146 : vector<4x32xf32>
    %179 = arith.addf %177, %178 : vector<4x32xf32>
    %c4 = arith.constant 4 : index
    %c0_42 = arith.constant 0 : index
    %c0_43 = arith.constant 0 : index
    %180 = vector.load %arg18[%c4, %c0_42, %c0_43] : memref<8x4x32xf32, #tpu.memory_space<vmem>>, vector<1x4x32xf32>
    %181 = vector.shape_cast %180 : vector<1x4x32xf32> to vector<4x32xf32>
    %182 = vector.shape_cast %179 : vector<4x32xf32> to vector<1x4x32xf32>
    tpu.vector_store %arg18[%c4, %c0_42, %c0_43], %182 {strides = array<i32>} : memref<8x4x32xf32, #tpu.memory_space<vmem>>, vector<1x4x32xf32>,
    %183 = vector.extract_strided_slice %14 {offsets = [20, 0], sizes = [4, 96], strides = [1, 1]} : vector<32x96xf32> to vector<4x96xf32>
    %cst_44 = arith.constant dense<0.000000e+00> : vector<4x96xf32>
    %184 = tpu.matmul %179, %15, %cst_44 {dimension_numbers = #tpu.dot_dimension_numbers<[1], [0], [0], [1], [0, 0, 1, 1], [], []>} : vector<4x32xf32>, vector<32x96xf32>, vector<4x96xf32> -> vector<4x96xf32>
    %185 = vector.broadcast %16 : vector<1x96xf32> to vector<4x96xf32>
    %186 = arith.addf %184, %185 : vector<4x96xf32>
    %187 = vector.extract_strided_slice %183 {offsets = [0, 0], sizes = [4, 32], strides = [1, 1]} : vector<4x96xf32> to vector<4x32xf32>
    %188 = vector.extract_strided_slice %186 {offsets = [0, 0], sizes = [4, 32], strides = [1, 1]} : vector<4x96xf32> to vector<4x32xf32>
    %189 = arith.addf %187, %188 : vector<4x32xf32>
    %190 = arith.negf %189 : vector<4x32xf32>
    %191 = math.exp %190 : vector<4x32xf32>
    %cst_45 = arith.constant 1.000000e+00 : f32
    %192 = vector.broadcast %cst_45 : f32 to vector<4x32xf32>
    %193 = arith.addf %192, %191 : vector<4x32xf32>
    %194 = arith.divf %192, %193 : vector<4x32xf32>
    %195 = vector.extract_strided_slice %183 {offsets = [0, 32], sizes = [4, 32], strides = [1, 1]} : vector<4x96xf32> to vector<4x32xf32>
    %196 = vector.extract_strided_slice %186 {offsets = [0, 32], sizes = [4, 32], strides = [1, 1]} : vector<4x96xf32> to vector<4x32xf32>
    %197 = arith.addf %195, %196 : vector<4x32xf32>
    %198 = arith.negf %197 : vector<4x32xf32>
    %199 = math.exp %198 : vector<4x32xf32>
    %cst_46 = arith.constant 1.000000e+00 : f32
    %200 = vector.broadcast %cst_46 : f32 to vector<4x32xf32>
    %201 = arith.addf %200, %199 : vector<4x32xf32>
    %202 = arith.divf %200, %201 : vector<4x32xf32>
    %203 = vector.extract_strided_slice %183 {offsets = [0, 64], sizes = [4, 32], strides = [1, 1]} : vector<4x96xf32> to vector<4x32xf32>
    %204 = vector.extract_strided_slice %186 {offsets = [0, 64], sizes = [4, 32], strides = [1, 1]} : vector<4x96xf32> to vector<4x32xf32>
    %205 = arith.mulf %194, %204 : vector<4x32xf32>
    %206 = arith.addf %203, %205 : vector<4x32xf32>
    %207 = math.tanh %206 : vector<4x32xf32>
    %cst_47 = arith.constant 1.000000e+00 : f32
    %208 = vector.broadcast %cst_47 : f32 to vector<4x32xf32>
    %209 = arith.subf %208, %202 : vector<4x32xf32>
    %210 = arith.mulf %209, %207 : vector<4x32xf32>
    %211 = arith.mulf %202, %179 : vector<4x32xf32>
    %212 = arith.addf %210, %211 : vector<4x32xf32>
    %c5 = arith.constant 5 : index
    %c0_48 = arith.constant 0 : index
    %c0_49 = arith.constant 0 : index
    %213 = vector.load %arg18[%c5, %c0_48, %c0_49] : memref<8x4x32xf32, #tpu.memory_space<vmem>>, vector<1x4x32xf32>
    %214 = vector.shape_cast %213 : vector<1x4x32xf32> to vector<4x32xf32>
    %215 = vector.shape_cast %212 : vector<4x32xf32> to vector<1x4x32xf32>
    tpu.vector_store %arg18[%c5, %c0_48, %c0_49], %215 {strides = array<i32>} : memref<8x4x32xf32, #tpu.memory_space<vmem>>, vector<1x4x32xf32>,
    %216 = vector.extract_strided_slice %14 {offsets = [24, 0], sizes = [4, 96], strides = [1, 1]} : vector<32x96xf32> to vector<4x96xf32>
    %cst_50 = arith.constant dense<0.000000e+00> : vector<4x96xf32>
    %217 = tpu.matmul %212, %15, %cst_50 {dimension_numbers = #tpu.dot_dimension_numbers<[1], [0], [0], [1], [0, 0, 1, 1], [], []>} : vector<4x32xf32>, vector<32x96xf32>, vector<4x96xf32> -> vector<4x96xf32>
    %218 = vector.broadcast %16 : vector<1x96xf32> to vector<4x96xf32>
    %219 = arith.addf %217, %218 : vector<4x96xf32>
    %220 = vector.extract_strided_slice %216 {offsets = [0, 0], sizes = [4, 32], strides = [1, 1]} : vector<4x96xf32> to vector<4x32xf32>
    %221 = vector.extract_strided_slice %219 {offsets = [0, 0], sizes = [4, 32], strides = [1, 1]} : vector<4x96xf32> to vector<4x32xf32>
    %222 = arith.addf %220, %221 : vector<4x32xf32>
    %223 = arith.negf %222 : vector<4x32xf32>
    %224 = math.exp %223 : vector<4x32xf32>
    %cst_51 = arith.constant 1.000000e+00 : f32
    %225 = vector.broadcast %cst_51 : f32 to vector<4x32xf32>
    %226 = arith.addf %225, %224 : vector<4x32xf32>
    %227 = arith.divf %225, %226 : vector<4x32xf32>
    %228 = vector.extract_strided_slice %216 {offsets = [0, 32], sizes = [4, 32], strides = [1, 1]} : vector<4x96xf32> to vector<4x32xf32>
    %229 = vector.extract_strided_slice %219 {offsets = [0, 32], sizes = [4, 32], strides = [1, 1]} : vector<4x96xf32> to vector<4x32xf32>
    %230 = arith.addf %228, %229 : vector<4x32xf32>
    %231 = arith.negf %230 : vector<4x32xf32>
    %232 = math.exp %231 : vector<4x32xf32>
    %cst_52 = arith.constant 1.000000e+00 : f32
    %233 = vector.broadcast %cst_52 : f32 to vector<4x32xf32>
    %234 = arith.addf %233, %232 : vector<4x32xf32>
    %235 = arith.divf %233, %234 : vector<4x32xf32>
    %236 = vector.extract_strided_slice %216 {offsets = [0, 64], sizes = [4, 32], strides = [1, 1]} : vector<4x96xf32> to vector<4x32xf32>
    %237 = vector.extract_strided_slice %219 {offsets = [0, 64], sizes = [4, 32], strides = [1, 1]} : vector<4x96xf32> to vector<4x32xf32>
    %238 = arith.mulf %227, %237 : vector<4x32xf32>
    %239 = arith.addf %236, %238 : vector<4x32xf32>
    %240 = math.tanh %239 : vector<4x32xf32>
    %cst_53 = arith.constant 1.000000e+00 : f32
    %241 = vector.broadcast %cst_53 : f32 to vector<4x32xf32>
    %242 = arith.subf %241, %235 : vector<4x32xf32>
    %243 = arith.mulf %242, %240 : vector<4x32xf32>
    %244 = arith.mulf %235, %212 : vector<4x32xf32>
    %245 = arith.addf %243, %244 : vector<4x32xf32>
    %c6 = arith.constant 6 : index
    %c0_54 = arith.constant 0 : index
    %c0_55 = arith.constant 0 : index
    %246 = vector.load %arg18[%c6, %c0_54, %c0_55] : memref<8x4x32xf32, #tpu.memory_space<vmem>>, vector<1x4x32xf32>
    %247 = vector.shape_cast %246 : vector<1x4x32xf32> to vector<4x32xf32>
    %248 = vector.shape_cast %245 : vector<4x32xf32> to vector<1x4x32xf32>
    tpu.vector_store %arg18[%c6, %c0_54, %c0_55], %248 {strides = array<i32>} : memref<8x4x32xf32, #tpu.memory_space<vmem>>, vector<1x4x32xf32>,
    %249 = vector.extract_strided_slice %14 {offsets = [28, 0], sizes = [4, 96], strides = [1, 1]} : vector<32x96xf32> to vector<4x96xf32>
    %cst_56 = arith.constant dense<0.000000e+00> : vector<4x96xf32>
    %250 = tpu.matmul %245, %15, %cst_56 {dimension_numbers = #tpu.dot_dimension_numbers<[1], [0], [0], [1], [0, 0, 1, 1], [], []>} : vector<4x32xf32>, vector<32x96xf32>, vector<4x96xf32> -> vector<4x96xf32>
    %251 = vector.broadcast %16 : vector<1x96xf32> to vector<4x96xf32>
    %252 = arith.addf %250, %251 : vector<4x96xf32>
    %253 = vector.extract_strided_slice %249 {offsets = [0, 0], sizes = [4, 32], strides = [1, 1]} : vector<4x96xf32> to vector<4x32xf32>
    %254 = vector.extract_strided_slice %252 {offsets = [0, 0], sizes = [4, 32], strides = [1, 1]} : vector<4x96xf32> to vector<4x32xf32>
    %255 = arith.addf %253, %254 : vector<4x32xf32>
    %256 = arith.negf %255 : vector<4x32xf32>
    %257 = math.exp %256 : vector<4x32xf32>
    %cst_57 = arith.constant 1.000000e+00 : f32
    %258 = vector.broadcast %cst_57 : f32 to vector<4x32xf32>
    %259 = arith.addf %258, %257 : vector<4x32xf32>
    %260 = arith.divf %258, %259 : vector<4x32xf32>
    %261 = vector.extract_strided_slice %249 {offsets = [0, 32], sizes = [4, 32], strides = [1, 1]} : vector<4x96xf32> to vector<4x32xf32>
    %262 = vector.extract_strided_slice %252 {offsets = [0, 32], sizes = [4, 32], strides = [1, 1]} : vector<4x96xf32> to vector<4x32xf32>
    %263 = arith.addf %261, %262 : vector<4x32xf32>
    %264 = arith.negf %263 : vector<4x32xf32>
    %265 = math.exp %264 : vector<4x32xf32>
    %cst_58 = arith.constant 1.000000e+00 : f32
    %266 = vector.broadcast %cst_58 : f32 to vector<4x32xf32>
    %267 = arith.addf %266, %265 : vector<4x32xf32>
    %268 = arith.divf %266, %267 : vector<4x32xf32>
    %269 = vector.extract_strided_slice %249 {offsets = [0, 64], sizes = [4, 32], strides = [1, 1]} : vector<4x96xf32> to vector<4x32xf32>
    %270 = vector.extract_strided_slice %252 {offsets = [0, 64], sizes = [4, 32], strides = [1, 1]} : vector<4x96xf32> to vector<4x32xf32>
    %271 = arith.mulf %260, %270 : vector<4x32xf32>
    %272 = arith.addf %269, %271 : vector<4x32xf32>
    %273 = math.tanh %272 : vector<4x32xf32>
    %cst_59 = arith.constant 1.000000e+00 : f32
    %274 = vector.broadcast %cst_59 : f32 to vector<4x32xf32>
    %275 = arith.subf %274, %268 : vector<4x32xf32>
    %276 = arith.mulf %275, %273 : vector<4x32xf32>
    %277 = arith.mulf %268, %245 : vector<4x32xf32>
    %278 = arith.addf %276, %277 : vector<4x32xf32>
    %c7 = arith.constant 7 : index
    %c0_60 = arith.constant 0 : index
    %c0_61 = arith.constant 0 : index
    %279 = vector.load %arg18[%c7, %c0_60, %c0_61] : memref<8x4x32xf32, #tpu.memory_space<vmem>>, vector<1x4x32xf32>
    %280 = vector.shape_cast %279 : vector<1x4x32xf32> to vector<4x32xf32>
    %281 = vector.shape_cast %278 : vector<4x32xf32> to vector<1x4x32xf32>
    tpu.vector_store %arg18[%c7, %c0_60, %c0_61], %281 {strides = array<i32>} : memref<8x4x32xf32, #tpu.memory_space<vmem>>, vector<1x4x32xf32>,
    %c0_62 = arith.constant 0 : index
    %c0_63 = arith.constant 0 : index
    %c0_64 = arith.constant 0 : index
    %282 = vector.load %arg18[%c0_62, %c0_63, %c0_64] : memref<8x4x32xf32, #tpu.memory_space<vmem>>, vector<8x4x32xf32>
    %283 = vector.shape_cast %282 : vector<8x4x32xf32> to vector<32x32xf32>
    %c0_65 = arith.constant 0 : index
    %c0_66 = arith.constant 0 : index
    %284 = vector.load %arg7[%c0_65, %c0_66] : memref<32x32xf32, #tpu.memory_space<vmem>>, vector<32x32xf32>
    %cst_67 = arith.constant dense<0.000000e+00> : vector<32x32xf32>
    %285 = tpu.matmul %283, %284, %cst_67 {dimension_numbers = #tpu.dot_dimension_numbers<[1], [0], [0], [1], [0, 0, 1, 1], [], []>} : vector<32x32xf32>, vector<32x32xf32>, vector<32x32xf32> -> vector<32x32xf32>
    %c0_68 = arith.constant 0 : index
    %c0_69 = arith.constant 0 : index
    %286 = vector.load %arg8[%c0_68, %c0_69] : memref<1x32xf32, #tpu.memory_space<vmem>>, vector<1x32xf32>
    %287 = vector.broadcast %286 : vector<1x32xf32> to vector<32x32xf32>
    %288 = arith.addf %285, %287 : vector<32x32xf32>
    %289 = vector.shape_cast %288 : vector<32x32xf32> to vector<8x4x32xf32>
    %c0_70 = arith.constant 0 : index
    %c0_71 = arith.constant 0 : index
    %290 = vector.load %arg9[%c0_70, %c0_71] : memref<32x1xf32, #tpu.memory_space<vmem>>, vector<32x1xf32>
    %291 = vector.shape_cast %290 : vector<32x1xf32> to vector<32x1xf32>
    %292 = vector.broadcast %291 : vector<32x1xf32> to vector<32x8xf32>
    %c0_72 = arith.constant 0 : index
    %c0_73 = arith.constant 0 : index
    %293 = vector.load %arg6[%c0_72, %c0_73] : memref<32x32xf32, #tpu.memory_space<vmem>>, vector<32x32xf32>
    %c0_74 = arith.constant 0 : index
    %c0_75 = arith.constant 0 : index
    %294 = vector.load %arg10[%c0_74, %c0_75] : memref<16x32xf32, #tpu.memory_space<vmem>>, vector<16x32xf32>
    %c0_76 = arith.constant 0 : index
    %c0_77 = arith.constant 0 : index
    %295 = vector.load %arg11[%c0_76, %c0_77] : memref<64x96xf32, #tpu.memory_space<vmem>>, vector<32x96xf32>
    %c32 = arith.constant 32 : index
    %c0_78 = arith.constant 0 : index
    %296 = vector.load %arg11[%c32, %c0_78] : memref<64x96xf32, #tpu.memory_space<vmem>>, vector<32x96xf32>
    %c0_79 = arith.constant 0 : index
    %c0_80 = arith.constant 0 : index
    %297 = vector.load %arg12[%c0_79, %c0_80] : memref<32x96xf32, #tpu.memory_space<vmem>>, vector<32x96xf32>
    %c0_81 = arith.constant 0 : index
    %c0_82 = arith.constant 0 : index
    %298 = vector.load %arg13[%c0_81, %c0_82] : memref<1x96xf32, #tpu.memory_space<vmem>>, vector<1x96xf32>
    %c0_83 = arith.constant 0 : index
    %c0_84 = arith.constant 0 : index
    %299 = vector.load %arg14[%c0_83, %c0_84] : memref<1x96xf32, #tpu.memory_space<vmem>>, vector<1x96xf32>
    %c0_85 = arith.constant 0 : index
    %c0_86 = arith.constant 0 : index
    %300 = vector.load %arg15[%c0_85, %c0_86] : memref<64x16xf32, #tpu.memory_space<vmem>>, vector<32x16xf32>
    %c32_87 = arith.constant 32 : index
    %c0_88 = arith.constant 0 : index
    %301 = vector.load %arg15[%c32_87, %c0_88] : memref<64x16xf32, #tpu.memory_space<vmem>>, vector<32x16xf32>
    %c0_89 = arith.constant 0 : index
    %c0_90 = arith.constant 0 : index
    %302 = vector.load %arg16[%c0_89, %c0_90] : memref<1x16xf32, #tpu.memory_space<vmem>>, vector<1x16xf32>
    %cst_91 = arith.constant 0.000000e+00 : f32
    %303 = vector.broadcast %cst_91 : f32 to vector<4x16xf32>
    %c0_92 = arith.constant 0 : index
    %c0_93 = arith.constant 0 : index
    %c0_94 = arith.constant 0 : index
    %304 = vector.load %arg17[%c0_92, %c0_93, %c0_94] : memref<8x4x16xf32, #tpu.memory_space<vmem>>, vector<1x4x16xf32>
    %305 = vector.shape_cast %304 : vector<1x4x16xf32> to vector<4x16xf32>
    %306 = vector.shape_cast %303 : vector<4x16xf32> to vector<1x4x16xf32>
    tpu.vector_store %arg17[%c0_92, %c0_93, %c0_94], %306 {strides = array<i32>} : memref<8x4x16xf32, #tpu.memory_space<vmem>>, vector<1x4x16xf32>,
    %307 = tpu.iota {dimensions = array<i32: 1>} : vector<4x16xi32>
    %c0_i32 = arith.constant 0 : i32
    %308 = vector.broadcast %c0_i32 : i32 to vector<4x16xi32>
    %309 = arith.cmpi eq, %307, %308 : vector<4x16xi32>
    %310 = arith.extui %309 : vector<4x16xi1> to vector<4x16xi32>
    %311 = arith.sitofp %310 : vector<4x16xi32> to vector<4x16xf32>
    %cst_95 = arith.constant dense<0.000000e+00> : vector<4x32xf32>
    %312 = tpu.matmul %311, %294, %cst_95 {dimension_numbers = #tpu.dot_dimension_numbers<[1], [0], [0], [1], [0, 0, 1, 1], [], []>} : vector<4x16xf32>, vector<16x32xf32>, vector<4x32xf32> -> vector<4x32xf32>
    %cst_96 = arith.constant dense<0.000000e+00> : vector<4x32xf32>
    %313 = tpu.matmul %278, %293, %cst_96 {dimension_numbers = #tpu.dot_dimension_numbers<[1], [0], [0], [1], [0, 0, 1, 1], [], []>} : vector<4x32xf32>, vector<32x32xf32>, vector<4x32xf32> -> vector<4x32xf32>
    %314 = vector.shape_cast %313 : vector<4x32xf32> to vector<1x4x32xf32>
    %315 = vector.broadcast %314 : vector<1x4x32xf32> to vector<8x4x32xf32>
    %316 = arith.addf %315, %289 : vector<8x4x32xf32>
    %cst_97 = arith.constant 0.000000e+00 : f32
    %317 = vector.broadcast %cst_97 : f32 to vector<8x4x32xf32>
    %318 = arith.maximumf %316, %317 : vector<8x4x32xf32>
    %319 = vector.shape_cast %318 : vector<8x4x32xf32> to vector<32x32xf32>
    %cst_98 = arith.constant dense<0.000000e+00> : vector<32x8xf32>
    %320 = tpu.matmul %319, %292, %cst_98 {dimension_numbers = #tpu.dot_dimension_numbers<[1], [0], [0], [1], [0, 0, 1, 1], [], []>} : vector<32x32xf32>, vector<32x8xf32>, vector<32x8xf32> -> vector<32x8xf32>
    %321 = vector.shape_cast %320 : vector<32x8xf32> to vector<8x4x8xf32>
    %322 = vector.extract_strided_slice %321 {offsets = [0, 0, 0], sizes = [8, 4, 1], strides = [1, 1, 1]} : vector<8x4x8xf32> to vector<8x4x1xf32>
    %cst_99 = arith.constant dense<0xFF800000> : vector<4x1xf32>
    %323 = vector.multi_reduction <maximumf>, %322, %cst_99 [0] : vector<8x4x1xf32> to vector<4x1xf32>
    %324 = vector.shape_cast %323 : vector<4x1xf32> to vector<1x4x1xf32>
    %325 = vector.broadcast %324 : vector<1x4x1xf32> to vector<8x4x1xf32>
    %326 = arith.subf %322, %325 : vector<8x4x1xf32>
    %327 = math.exp %326 : vector<8x4x1xf32>
    %cst_100 = arith.constant dense<0.000000e+00> : vector<4x1xf32>
    %328 = vector.multi_reduction <add>, %327, %cst_100 [0] : vector<8x4x1xf32> to vector<4x1xf32>
    %329 = vector.shape_cast %328 : vector<4x1xf32> to vector<1x4x1xf32>
    %330 = vector.broadcast %329 : vector<1x4x1xf32> to vector<8x4x1xf32>
    %331 = arith.divf %327, %330 : vector<8x4x1xf32>
    %332 = vector.broadcast %331 : vector<8x4x1xf32> to vector<8x4x32xf32>
    %333 = arith.mulf %332, %282 : vector<8x4x32xf32>
    %cst_101 = arith.constant dense<0.000000e+00> : vector<4x32xf32>
    %334 = vector.multi_reduction <add>, %333, %cst_101 [0] : vector<8x4x32xf32> to vector<4x32xf32>
    %cst_102 = arith.constant dense<0.000000e+00> : vector<4x96xf32>
    %335 = tpu.matmul %312, %295, %cst_102 {dimension_numbers = #tpu.dot_dimension_numbers<[1], [0], [0], [1], [0, 0, 1, 1], [], []>} : vector<4x32xf32>, vector<32x96xf32>, vector<4x96xf32> -> vector<4x96xf32>
    %cst_103 = arith.constant dense<0.000000e+00> : vector<4x96xf32>
    %336 = tpu.matmul %334, %296, %cst_103 {dimension_numbers = #tpu.dot_dimension_numbers<[1], [0], [0], [1], [0, 0, 1, 1], [], []>} : vector<4x32xf32>, vector<32x96xf32>, vector<4x96xf32> -> vector<4x96xf32>
    %337 = arith.addf %335, %336 : vector<4x96xf32>
    %338 = vector.broadcast %298 : vector<1x96xf32> to vector<4x96xf32>
    %339 = arith.addf %337, %338 : vector<4x96xf32>
    %cst_104 = arith.constant dense<0.000000e+00> : vector<4x96xf32>
    %340 = tpu.matmul %278, %297, %cst_104 {dimension_numbers = #tpu.dot_dimension_numbers<[1], [0], [0], [1], [0, 0, 1, 1], [], []>} : vector<4x32xf32>, vector<32x96xf32>, vector<4x96xf32> -> vector<4x96xf32>
    %341 = vector.broadcast %299 : vector<1x96xf32> to vector<4x96xf32>
    %342 = arith.addf %340, %341 : vector<4x96xf32>
    %343 = vector.extract_strided_slice %339 {offsets = [0, 0], sizes = [4, 32], strides = [1, 1]} : vector<4x96xf32> to vector<4x32xf32>
    %344 = vector.extract_strided_slice %342 {offsets = [0, 0], sizes = [4, 32], strides = [1, 1]} : vector<4x96xf32> to vector<4x32xf32>
    %345 = arith.addf %343, %344 : vector<4x32xf32>
    %346 = arith.negf %345 : vector<4x32xf32>
    %347 = math.exp %346 : vector<4x32xf32>
    %cst_105 = arith.constant 1.000000e+00 : f32
    %348 = vector.broadcast %cst_105 : f32 to vector<4x32xf32>
    %349 = arith.addf %348, %347 : vector<4x32xf32>
    %350 = arith.divf %348, %349 : vector<4x32xf32>
    %351 = vector.extract_strided_slice %339 {offsets = [0, 32], sizes = [4, 32], strides = [1, 1]} : vector<4x96xf32> to vector<4x32xf32>
    %352 = vector.extract_strided_slice %342 {offsets = [0, 32], sizes = [4, 32], strides = [1, 1]} : vector<4x96xf32> to vector<4x32xf32>
    %353 = arith.addf %351, %352 : vector<4x32xf32>
    %354 = arith.negf %353 : vector<4x32xf32>
    %355 = math.exp %354 : vector<4x32xf32>
    %cst_106 = arith.constant 1.000000e+00 : f32
    %356 = vector.broadcast %cst_106 : f32 to vector<4x32xf32>
    %357 = arith.addf %356, %355 : vector<4x32xf32>
    %358 = arith.divf %356, %357 : vector<4x32xf32>
    %359 = vector.extract_strided_slice %339 {offsets = [0, 64], sizes = [4, 32], strides = [1, 1]} : vector<4x96xf32> to vector<4x32xf32>
    %360 = vector.extract_strided_slice %342 {offsets = [0, 64], sizes = [4, 32], strides = [1, 1]} : vector<4x96xf32> to vector<4x32xf32>
    %361 = arith.mulf %350, %360 : vector<4x32xf32>
    %362 = arith.addf %359, %361 : vector<4x32xf32>
    %363 = math.tanh %362 : vector<4x32xf32>
    %cst_107 = arith.constant 1.000000e+00 : f32
    %364 = vector.broadcast %cst_107 : f32 to vector<4x32xf32>
    %365 = arith.subf %364, %358 : vector<4x32xf32>
    %366 = arith.mulf %365, %363 : vector<4x32xf32>
    %367 = arith.mulf %358, %278 : vector<4x32xf32>
    %368 = arith.addf %366, %367 : vector<4x32xf32>
    %cst_108 = arith.constant dense<0.000000e+00> : vector<4x16xf32>
    %369 = tpu.matmul %368, %300, %cst_108 {dimension_numbers = #tpu.dot_dimension_numbers<[1], [0], [0], [1], [0, 0, 1, 1], [], []>} : vector<4x32xf32>, vector<32x16xf32>, vector<4x16xf32> -> vector<4x16xf32>
    %cst_109 = arith.constant dense<0.000000e+00> : vector<4x16xf32>
    %370 = tpu.matmul %334, %301, %cst_109 {dimension_numbers = #tpu.dot_dimension_numbers<[1], [0], [0], [1], [0, 0, 1, 1], [], []>} : vector<4x32xf32>, vector<32x16xf32>, vector<4x16xf32> -> vector<4x16xf32>
    %371 = arith.addf %369, %370 : vector<4x16xf32>
    %372 = vector.broadcast %302 : vector<1x16xf32> to vector<4x16xf32>
    %373 = arith.addf %371, %372 : vector<4x16xf32>
    %cst_110 = arith.constant dense<0xFF800000> : vector<4xf32>
    %374 = vector.multi_reduction <maximumf>, %373, %cst_110 [1] : vector<4x16xf32> to vector<4xf32>
    %375 = vector.shape_cast %374 : vector<4xf32> to vector<4x1xf32>
    %376 = vector.broadcast %375 : vector<4x1xf32> to vector<4x16xf32>
    %377 = arith.subf %373, %376 : vector<4x16xf32>
    %378 = math.exp %377 : vector<4x16xf32>
    %cst_111 = arith.constant dense<0.000000e+00> : vector<4xf32>
    %379 = vector.multi_reduction <add>, %378, %cst_111 [1] : vector<4x16xf32> to vector<4xf32>
    %380 = vector.shape_cast %379 : vector<4xf32> to vector<4x1xf32>
    %381 = math.log %380 : vector<4x1xf32>
    %382 = vector.broadcast %381 : vector<4x1xf32> to vector<4x16xf32>
    %383 = arith.subf %377, %382 : vector<4x16xf32>
    %c1_112 = arith.constant 1 : index
    %c0_113 = arith.constant 0 : index
    %c0_114 = arith.constant 0 : index
    %384 = vector.load %arg17[%c1_112, %c0_113, %c0_114] : memref<8x4x16xf32, #tpu.memory_space<vmem>>, vector<1x4x16xf32>
    %385 = vector.shape_cast %384 : vector<1x4x16xf32> to vector<4x16xf32>
    %386 = vector.shape_cast %383 : vector<4x16xf32> to vector<1x4x16xf32>
    tpu.vector_store %arg17[%c1_112, %c0_113, %c0_114], %386 {strides = array<i32>} : memref<8x4x16xf32, #tpu.memory_space<vmem>>, vector<1x4x16xf32>,
    %cst_115 = arith.constant dense<0xFF800000> : vector<4xf32>
    %387 = vector.multi_reduction <maximumf>, %383, %cst_115 [1] : vector<4x16xf32> to vector<4xf32>
    %388 = vector.shape_cast %387 : vector<4xf32> to vector<4x1xf32>
    %389 = vector.broadcast %388 : vector<4x1xf32> to vector<4x16xf32>
    %390 = arith.cmpf oeq, %383, %389 : vector<4x16xf32>
    %c16_i32 = arith.constant 16 : i32
    %391 = vector.broadcast %c16_i32 : i32 to vector<4x16xi32>
    %392 = arith.select %390, %307, %391 : vector<4x16xi1>, vector<4x16xi32>
    %cst_116 = arith.constant dense<2147483647> : vector<4xi32>
    %393 = vector.multi_reduction <minsi>, %392, %cst_116 [1] : vector<4x16xi32> to vector<4xi32>
    %394 = vector.shape_cast %393 : vector<4xi32> to vector<4x1xi32>
    %395 = vector.broadcast %394 : vector<4x1xi32> to vector<4x16xi32>
    %396 = arith.cmpi eq, %307, %395 : vector<4x16xi32>
    %397 = arith.extui %396 : vector<4x16xi1> to vector<4x16xi32>
    %398 = arith.sitofp %397 : vector<4x16xi32> to vector<4x16xf32>
    %cst_117 = arith.constant dense<0.000000e+00> : vector<4x32xf32>
    %399 = tpu.matmul %398, %294, %cst_117 {dimension_numbers = #tpu.dot_dimension_numbers<[1], [0], [0], [1], [0, 0, 1, 1], [], []>} : vector<4x16xf32>, vector<16x32xf32>, vector<4x32xf32> -> vector<4x32xf32>
    %cst_118 = arith.constant dense<0.000000e+00> : vector<4x32xf32>
    %400 = tpu.matmul %368, %293, %cst_118 {dimension_numbers = #tpu.dot_dimension_numbers<[1], [0], [0], [1], [0, 0, 1, 1], [], []>} : vector<4x32xf32>, vector<32x32xf32>, vector<4x32xf32> -> vector<4x32xf32>
    %401 = vector.shape_cast %400 : vector<4x32xf32> to vector<1x4x32xf32>
    %402 = vector.broadcast %401 : vector<1x4x32xf32> to vector<8x4x32xf32>
    %403 = arith.addf %402, %289 : vector<8x4x32xf32>
    %cst_119 = arith.constant 0.000000e+00 : f32
    %404 = vector.broadcast %cst_119 : f32 to vector<8x4x32xf32>
    %405 = arith.maximumf %403, %404 : vector<8x4x32xf32>
    %406 = vector.shape_cast %405 : vector<8x4x32xf32> to vector<32x32xf32>
    %cst_120 = arith.constant dense<0.000000e+00> : vector<32x8xf32>
    %407 = tpu.matmul %406, %292, %cst_120 {dimension_numbers = #tpu.dot_dimension_numbers<[1], [0], [0], [1], [0, 0, 1, 1], [], []>} : vector<32x32xf32>, vector<32x8xf32>, vector<32x8xf32> -> vector<32x8xf32>
    %408 = vector.shape_cast %407 : vector<32x8xf32> to vector<8x4x8xf32>
    %409 = vector.extract_strided_slice %408 {offsets = [0, 0, 0], sizes = [8, 4, 1], strides = [1, 1, 1]} : vector<8x4x8xf32> to vector<8x4x1xf32>
    %cst_121 = arith.constant dense<0xFF800000> : vector<4x1xf32>
    %410 = vector.multi_reduction <maximumf>, %409, %cst_121 [0] : vector<8x4x1xf32> to vector<4x1xf32>
    %411 = vector.shape_cast %410 : vector<4x1xf32> to vector<1x4x1xf32>
    %412 = vector.broadcast %411 : vector<1x4x1xf32> to vector<8x4x1xf32>
    %413 = arith.subf %409, %412 : vector<8x4x1xf32>
    %414 = math.exp %413 : vector<8x4x1xf32>
    %cst_122 = arith.constant dense<0.000000e+00> : vector<4x1xf32>
    %415 = vector.multi_reduction <add>, %414, %cst_122 [0] : vector<8x4x1xf32> to vector<4x1xf32>
    %416 = vector.shape_cast %415 : vector<4x1xf32> to vector<1x4x1xf32>
    %417 = vector.broadcast %416 : vector<1x4x1xf32> to vector<8x4x1xf32>
    %418 = arith.divf %414, %417 : vector<8x4x1xf32>
    %419 = vector.broadcast %418 : vector<8x4x1xf32> to vector<8x4x32xf32>
    %420 = arith.mulf %419, %282 : vector<8x4x32xf32>
    %cst_123 = arith.constant dense<0.000000e+00> : vector<4x32xf32>
    %421 = vector.multi_reduction <add>, %420, %cst_123 [0] : vector<8x4x32xf32> to vector<4x32xf32>
    %cst_124 = arith.constant dense<0.000000e+00> : vector<4x96xf32>
    %422 = tpu.matmul %399, %295, %cst_124 {dimension_numbers = #tpu.dot_dimension_numbers<[1], [0], [0], [1], [0, 0, 1, 1], [], []>} : vector<4x32xf32>, vector<32x96xf32>, vector<4x96xf32> -> vector<4x96xf32>
    %cst_125 = arith.constant dense<0.000000e+00> : vector<4x96xf32>
    %423 = tpu.matmul %421, %296, %cst_125 {dimension_numbers = #tpu.dot_dimension_numbers<[1], [0], [0], [1], [0, 0, 1, 1], [], []>} : vector<4x32xf32>, vector<32x96xf32>, vector<4x96xf32> -> vector<4x96xf32>
    %424 = arith.addf %422, %423 : vector<4x96xf32>
    %425 = vector.broadcast %298 : vector<1x96xf32> to vector<4x96xf32>
    %426 = arith.addf %424, %425 : vector<4x96xf32>
    %cst_126 = arith.constant dense<0.000000e+00> : vector<4x96xf32>
    %427 = tpu.matmul %368, %297, %cst_126 {dimension_numbers = #tpu.dot_dimension_numbers<[1], [0], [0], [1], [0, 0, 1, 1], [], []>} : vector<4x32xf32>, vector<32x96xf32>, vector<4x96xf32> -> vector<4x96xf32>
    %428 = vector.broadcast %299 : vector<1x96xf32> to vector<4x96xf32>
    %429 = arith.addf %427, %428 : vector<4x96xf32>
    %430 = vector.extract_strided_slice %426 {offsets = [0, 0], sizes = [4, 32], strides = [1, 1]} : vector<4x96xf32> to vector<4x32xf32>
    %431 = vector.extract_strided_slice %429 {offsets = [0, 0], sizes = [4, 32], strides = [1, 1]} : vector<4x96xf32> to vector<4x32xf32>
    %432 = arith.addf %430, %431 : vector<4x32xf32>
    %433 = arith.negf %432 : vector<4x32xf32>
    %434 = math.exp %433 : vector<4x32xf32>
    %cst_127 = arith.constant 1.000000e+00 : f32
    %435 = vector.broadcast %cst_127 : f32 to vector<4x32xf32>
    %436 = arith.addf %435, %434 : vector<4x32xf32>
    %437 = arith.divf %435, %436 : vector<4x32xf32>
    %438 = vector.extract_strided_slice %426 {offsets = [0, 32], sizes = [4, 32], strides = [1, 1]} : vector<4x96xf32> to vector<4x32xf32>
    %439 = vector.extract_strided_slice %429 {offsets = [0, 32], sizes = [4, 32], strides = [1, 1]} : vector<4x96xf32> to vector<4x32xf32>
    %440 = arith.addf %438, %439 : vector<4x32xf32>
    %441 = arith.negf %440 : vector<4x32xf32>
    %442 = math.exp %441 : vector<4x32xf32>
    %cst_128 = arith.constant 1.000000e+00 : f32
    %443 = vector.broadcast %cst_128 : f32 to vector<4x32xf32>
    %444 = arith.addf %443, %442 : vector<4x32xf32>
    %445 = arith.divf %443, %444 : vector<4x32xf32>
    %446 = vector.extract_strided_slice %426 {offsets = [0, 64], sizes = [4, 32], strides = [1, 1]} : vector<4x96xf32> to vector<4x32xf32>
    %447 = vector.extract_strided_slice %429 {offsets = [0, 64], sizes = [4, 32], strides = [1, 1]} : vector<4x96xf32> to vector<4x32xf32>
    %448 = arith.mulf %437, %447 : vector<4x32xf32>
    %449 = arith.addf %446, %448 : vector<4x32xf32>
    %450 = math.tanh %449 : vector<4x32xf32>
    %cst_129 = arith.constant 1.000000e+00 : f32
    %451 = vector.broadcast %cst_129 : f32 to vector<4x32xf32>
    %452 = arith.subf %451, %445 : vector<4x32xf32>
    %453 = arith.mulf %452, %450 : vector<4x32xf32>
    %454 = arith.mulf %445, %368 : vector<4x32xf32>
    %455 = arith.addf %453, %454 : vector<4x32xf32>
    %cst_130 = arith.constant dense<0.000000e+00> : vector<4x16xf32>
    %456 = tpu.matmul %455, %300, %cst_130 {dimension_numbers = #tpu.dot_dimension_numbers<[1], [0], [0], [1], [0, 0, 1, 1], [], []>} : vector<4x32xf32>, vector<32x16xf32>, vector<4x16xf32> -> vector<4x16xf32>
    %cst_131 = arith.constant dense<0.000000e+00> : vector<4x16xf32>
    %457 = tpu.matmul %421, %301, %cst_131 {dimension_numbers = #tpu.dot_dimension_numbers<[1], [0], [0], [1], [0, 0, 1, 1], [], []>} : vector<4x32xf32>, vector<32x16xf32>, vector<4x16xf32> -> vector<4x16xf32>
    %458 = arith.addf %456, %457 : vector<4x16xf32>
    %459 = vector.broadcast %302 : vector<1x16xf32> to vector<4x16xf32>
    %460 = arith.addf %458, %459 : vector<4x16xf32>
    %cst_132 = arith.constant dense<0xFF800000> : vector<4xf32>
    %461 = vector.multi_reduction <maximumf>, %460, %cst_132 [1] : vector<4x16xf32> to vector<4xf32>
    %462 = vector.shape_cast %461 : vector<4xf32> to vector<4x1xf32>
    %463 = vector.broadcast %462 : vector<4x1xf32> to vector<4x16xf32>
    %464 = arith.subf %460, %463 : vector<4x16xf32>
    %465 = math.exp %464 : vector<4x16xf32>
    %cst_133 = arith.constant dense<0.000000e+00> : vector<4xf32>
    %466 = vector.multi_reduction <add>, %465, %cst_133 [1] : vector<4x16xf32> to vector<4xf32>
    %467 = vector.shape_cast %466 : vector<4xf32> to vector<4x1xf32>
    %468 = math.log %467 : vector<4x1xf32>
    %469 = vector.broadcast %468 : vector<4x1xf32> to vector<4x16xf32>
    %470 = arith.subf %464, %469 : vector<4x16xf32>
    %c2_134 = arith.constant 2 : index
    %c0_135 = arith.constant 0 : index
    %c0_136 = arith.constant 0 : index
    %471 = vector.load %arg17[%c2_134, %c0_135, %c0_136] : memref<8x4x16xf32, #tpu.memory_space<vmem>>, vector<1x4x16xf32>
    %472 = vector.shape_cast %471 : vector<1x4x16xf32> to vector<4x16xf32>
    %473 = vector.shape_cast %470 : vector<4x16xf32> to vector<1x4x16xf32>
    tpu.vector_store %arg17[%c2_134, %c0_135, %c0_136], %473 {strides = array<i32>} : memref<8x4x16xf32, #tpu.memory_space<vmem>>, vector<1x4x16xf32>,
    %cst_137 = arith.constant dense<0xFF800000> : vector<4xf32>
    %474 = vector.multi_reduction <maximumf>, %470, %cst_137 [1] : vector<4x16xf32> to vector<4xf32>
    %475 = vector.shape_cast %474 : vector<4xf32> to vector<4x1xf32>
    %476 = vector.broadcast %475 : vector<4x1xf32> to vector<4x16xf32>
    %477 = arith.cmpf oeq, %470, %476 : vector<4x16xf32>
    %c16_i32_138 = arith.constant 16 : i32
    %478 = vector.broadcast %c16_i32_138 : i32 to vector<4x16xi32>
    %479 = arith.select %477, %307, %478 : vector<4x16xi1>, vector<4x16xi32>
    %cst_139 = arith.constant dense<2147483647> : vector<4xi32>
    %480 = vector.multi_reduction <minsi>, %479, %cst_139 [1] : vector<4x16xi32> to vector<4xi32>
    %481 = vector.shape_cast %480 : vector<4xi32> to vector<4x1xi32>
    %482 = vector.broadcast %481 : vector<4x1xi32> to vector<4x16xi32>
    %483 = arith.cmpi eq, %307, %482 : vector<4x16xi32>
    %484 = arith.extui %483 : vector<4x16xi1> to vector<4x16xi32>
    %485 = arith.sitofp %484 : vector<4x16xi32> to vector<4x16xf32>
    %cst_140 = arith.constant dense<0.000000e+00> : vector<4x32xf32>
    %486 = tpu.matmul %485, %294, %cst_140 {dimension_numbers = #tpu.dot_dimension_numbers<[1], [0], [0], [1], [0, 0, 1, 1], [], []>} : vector<4x16xf32>, vector<16x32xf32>, vector<4x32xf32> -> vector<4x32xf32>
    %cst_141 = arith.constant dense<0.000000e+00> : vector<4x32xf32>
    %487 = tpu.matmul %455, %293, %cst_141 {dimension_numbers = #tpu.dot_dimension_numbers<[1], [0], [0], [1], [0, 0, 1, 1], [], []>} : vector<4x32xf32>, vector<32x32xf32>, vector<4x32xf32> -> vector<4x32xf32>
    %488 = vector.shape_cast %487 : vector<4x32xf32> to vector<1x4x32xf32>
    %489 = vector.broadcast %488 : vector<1x4x32xf32> to vector<8x4x32xf32>
    %490 = arith.addf %489, %289 : vector<8x4x32xf32>
    %cst_142 = arith.constant 0.000000e+00 : f32
    %491 = vector.broadcast %cst_142 : f32 to vector<8x4x32xf32>
    %492 = arith.maximumf %490, %491 : vector<8x4x32xf32>
    %493 = vector.shape_cast %492 : vector<8x4x32xf32> to vector<32x32xf32>
    %cst_143 = arith.constant dense<0.000000e+00> : vector<32x8xf32>
    %494 = tpu.matmul %493, %292, %cst_143 {dimension_numbers = #tpu.dot_dimension_numbers<[1], [0], [0], [1], [0, 0, 1, 1], [], []>} : vector<32x32xf32>, vector<32x8xf32>, vector<32x8xf32> -> vector<32x8xf32>
    %495 = vector.shape_cast %494 : vector<32x8xf32> to vector<8x4x8xf32>
    %496 = vector.extract_strided_slice %495 {offsets = [0, 0, 0], sizes = [8, 4, 1], strides = [1, 1, 1]} : vector<8x4x8xf32> to vector<8x4x1xf32>
    %cst_144 = arith.constant dense<0xFF800000> : vector<4x1xf32>
    %497 = vector.multi_reduction <maximumf>, %496, %cst_144 [0] : vector<8x4x1xf32> to vector<4x1xf32>
    %498 = vector.shape_cast %497 : vector<4x1xf32> to vector<1x4x1xf32>
    %499 = vector.broadcast %498 : vector<1x4x1xf32> to vector<8x4x1xf32>
    %500 = arith.subf %496, %499 : vector<8x4x1xf32>
    %501 = math.exp %500 : vector<8x4x1xf32>
    %cst_145 = arith.constant dense<0.000000e+00> : vector<4x1xf32>
    %502 = vector.multi_reduction <add>, %501, %cst_145 [0] : vector<8x4x1xf32> to vector<4x1xf32>
    %503 = vector.shape_cast %502 : vector<4x1xf32> to vector<1x4x1xf32>
    %504 = vector.broadcast %503 : vector<1x4x1xf32> to vector<8x4x1xf32>
    %505 = arith.divf %501, %504 : vector<8x4x1xf32>
    %506 = vector.broadcast %505 : vector<8x4x1xf32> to vector<8x4x32xf32>
    %507 = arith.mulf %506, %282 : vector<8x4x32xf32>
    %cst_146 = arith.constant dense<0.000000e+00> : vector<4x32xf32>
    %508 = vector.multi_reduction <add>, %507, %cst_146 [0] : vector<8x4x32xf32> to vector<4x32xf32>
    %cst_147 = arith.constant dense<0.000000e+00> : vector<4x96xf32>
    %509 = tpu.matmul %486, %295, %cst_147 {dimension_numbers = #tpu.dot_dimension_numbers<[1], [0], [0], [1], [0, 0, 1, 1], [], []>} : vector<4x32xf32>, vector<32x96xf32>, vector<4x96xf32> -> vector<4x96xf32>
    %cst_148 = arith.constant dense<0.000000e+00> : vector<4x96xf32>
    %510 = tpu.matmul %508, %296, %cst_148 {dimension_numbers = #tpu.dot_dimension_numbers<[1], [0], [0], [1], [0, 0, 1, 1], [], []>} : vector<4x32xf32>, vector<32x96xf32>, vector<4x96xf32> -> vector<4x96xf32>
    %511 = arith.addf %509, %510 : vector<4x96xf32>
    %512 = vector.broadcast %298 : vector<1x96xf32> to vector<4x96xf32>
    %513 = arith.addf %511, %512 : vector<4x96xf32>
    %cst_149 = arith.constant dense<0.000000e+00> : vector<4x96xf32>
    %514 = tpu.matmul %455, %297, %cst_149 {dimension_numbers = #tpu.dot_dimension_numbers<[1], [0], [0], [1], [0, 0, 1, 1], [], []>} : vector<4x32xf32>, vector<32x96xf32>, vector<4x96xf32> -> vector<4x96xf32>
    %515 = vector.broadcast %299 : vector<1x96xf32> to vector<4x96xf32>
    %516 = arith.addf %514, %515 : vector<4x96xf32>
    %517 = vector.extract_strided_slice %513 {offsets = [0, 0], sizes = [4, 32], strides = [1, 1]} : vector<4x96xf32> to vector<4x32xf32>
    %518 = vector.extract_strided_slice %516 {offsets = [0, 0], sizes = [4, 32], strides = [1, 1]} : vector<4x96xf32> to vector<4x32xf32>
    %519 = arith.addf %517, %518 : vector<4x32xf32>
    %520 = arith.negf %519 : vector<4x32xf32>
    %521 = math.exp %520 : vector<4x32xf32>
    %cst_150 = arith.constant 1.000000e+00 : f32
    %522 = vector.broadcast %cst_150 : f32 to vector<4x32xf32>
    %523 = arith.addf %522, %521 : vector<4x32xf32>
    %524 = arith.divf %522, %523 : vector<4x32xf32>
    %525 = vector.extract_strided_slice %513 {offsets = [0, 32], sizes = [4, 32], strides = [1, 1]} : vector<4x96xf32> to vector<4x32xf32>
    %526 = vector.extract_strided_slice %516 {offsets = [0, 32], sizes = [4, 32], strides = [1, 1]} : vector<4x96xf32> to vector<4x32xf32>
    %527 = arith.addf %525, %526 : vector<4x32xf32>
    %528 = arith.negf %527 : vector<4x32xf32>
    %529 = math.exp %528 : vector<4x32xf32>
    %cst_151 = arith.constant 1.000000e+00 : f32
    %530 = vector.broadcast %cst_151 : f32 to vector<4x32xf32>
    %531 = arith.addf %530, %529 : vector<4x32xf32>
    %532 = arith.divf %530, %531 : vector<4x32xf32>
    %533 = vector.extract_strided_slice %513 {offsets = [0, 64], sizes = [4, 32], strides = [1, 1]} : vector<4x96xf32> to vector<4x32xf32>
    %534 = vector.extract_strided_slice %516 {offsets = [0, 64], sizes = [4, 32], strides = [1, 1]} : vector<4x96xf32> to vector<4x32xf32>
    %535 = arith.mulf %524, %534 : vector<4x32xf32>
    %536 = arith.addf %533, %535 : vector<4x32xf32>
    %537 = math.tanh %536 : vector<4x32xf32>
    %cst_152 = arith.constant 1.000000e+00 : f32
    %538 = vector.broadcast %cst_152 : f32 to vector<4x32xf32>
    %539 = arith.subf %538, %532 : vector<4x32xf32>
    %540 = arith.mulf %539, %537 : vector<4x32xf32>
    %541 = arith.mulf %532, %455 : vector<4x32xf32>
    %542 = arith.addf %540, %541 : vector<4x32xf32>
    %cst_153 = arith.constant dense<0.000000e+00> : vector<4x16xf32>
    %543 = tpu.matmul %542, %300, %cst_153 {dimension_numbers = #tpu.dot_dimension_numbers<[1], [0], [0], [1], [0, 0, 1, 1], [], []>} : vector<4x32xf32>, vector<32x16xf32>, vector<4x16xf32> -> vector<4x16xf32>
    %cst_154 = arith.constant dense<0.000000e+00> : vector<4x16xf32>
    %544 = tpu.matmul %508, %301, %cst_154 {dimension_numbers = #tpu.dot_dimension_numbers<[1], [0], [0], [1], [0, 0, 1, 1], [], []>} : vector<4x32xf32>, vector<32x16xf32>, vector<4x16xf32> -> vector<4x16xf32>
    %545 = arith.addf %543, %544 : vector<4x16xf32>
    %546 = vector.broadcast %302 : vector<1x16xf32> to vector<4x16xf32>
    %547 = arith.addf %545, %546 : vector<4x16xf32>
    %cst_155 = arith.constant dense<0xFF800000> : vector<4xf32>
    %548 = vector.multi_reduction <maximumf>, %547, %cst_155 [1] : vector<4x16xf32> to vector<4xf32>
    %549 = vector.shape_cast %548 : vector<4xf32> to vector<4x1xf32>
    %550 = vector.broadcast %549 : vector<4x1xf32> to vector<4x16xf32>
    %551 = arith.subf %547, %550 : vector<4x16xf32>
    %552 = math.exp %551 : vector<4x16xf32>
    %cst_156 = arith.constant dense<0.000000e+00> : vector<4xf32>
    %553 = vector.multi_reduction <add>, %552, %cst_156 [1] : vector<4x16xf32> to vector<4xf32>
    %554 = vector.shape_cast %553 : vector<4xf32> to vector<4x1xf32>
    %555 = math.log %554 : vector<4x1xf32>
    %556 = vector.broadcast %555 : vector<4x1xf32> to vector<4x16xf32>
    %557 = arith.subf %551, %556 : vector<4x16xf32>
    %c3_157 = arith.constant 3 : index
    %c0_158 = arith.constant 0 : index
    %c0_159 = arith.constant 0 : index
    %558 = vector.load %arg17[%c3_157, %c0_158, %c0_159] : memref<8x4x16xf32, #tpu.memory_space<vmem>>, vector<1x4x16xf32>
    %559 = vector.shape_cast %558 : vector<1x4x16xf32> to vector<4x16xf32>
    %560 = vector.shape_cast %557 : vector<4x16xf32> to vector<1x4x16xf32>
    tpu.vector_store %arg17[%c3_157, %c0_158, %c0_159], %560 {strides = array<i32>} : memref<8x4x16xf32, #tpu.memory_space<vmem>>, vector<1x4x16xf32>,
    %cst_160 = arith.constant dense<0xFF800000> : vector<4xf32>
    %561 = vector.multi_reduction <maximumf>, %557, %cst_160 [1] : vector<4x16xf32> to vector<4xf32>
    %562 = vector.shape_cast %561 : vector<4xf32> to vector<4x1xf32>
    %563 = vector.broadcast %562 : vector<4x1xf32> to vector<4x16xf32>
    %564 = arith.cmpf oeq, %557, %563 : vector<4x16xf32>
    %c16_i32_161 = arith.constant 16 : i32
    %565 = vector.broadcast %c16_i32_161 : i32 to vector<4x16xi32>
    %566 = arith.select %564, %307, %565 : vector<4x16xi1>, vector<4x16xi32>
    %cst_162 = arith.constant dense<2147483647> : vector<4xi32>
    %567 = vector.multi_reduction <minsi>, %566, %cst_162 [1] : vector<4x16xi32> to vector<4xi32>
    %568 = vector.shape_cast %567 : vector<4xi32> to vector<4x1xi32>
    %569 = vector.broadcast %568 : vector<4x1xi32> to vector<4x16xi32>
    %570 = arith.cmpi eq, %307, %569 : vector<4x16xi32>
    %571 = arith.extui %570 : vector<4x16xi1> to vector<4x16xi32>
    %572 = arith.sitofp %571 : vector<4x16xi32> to vector<4x16xf32>
    %cst_163 = arith.constant dense<0.000000e+00> : vector<4x32xf32>
    %573 = tpu.matmul %572, %294, %cst_163 {dimension_numbers = #tpu.dot_dimension_numbers<[1], [0], [0], [1], [0, 0, 1, 1], [], []>} : vector<4x16xf32>, vector<16x32xf32>, vector<4x32xf32> -> vector<4x32xf32>
    %cst_164 = arith.constant dense<0.000000e+00> : vector<4x32xf32>
    %574 = tpu.matmul %542, %293, %cst_164 {dimension_numbers = #tpu.dot_dimension_numbers<[1], [0], [0], [1], [0, 0, 1, 1], [], []>} : vector<4x32xf32>, vector<32x32xf32>, vector<4x32xf32> -> vector<4x32xf32>
    %575 = vector.shape_cast %574 : vector<4x32xf32> to vector<1x4x32xf32>
    %576 = vector.broadcast %575 : vector<1x4x32xf32> to vector<8x4x32xf32>
    %577 = arith.addf %576, %289 : vector<8x4x32xf32>
    %cst_165 = arith.constant 0.000000e+00 : f32
    %578 = vector.broadcast %cst_165 : f32 to vector<8x4x32xf32>
    %579 = arith.maximumf %577, %578 : vector<8x4x32xf32>
    %580 = vector.shape_cast %579 : vector<8x4x32xf32> to vector<32x32xf32>
    %cst_166 = arith.constant dense<0.000000e+00> : vector<32x8xf32>
    %581 = tpu.matmul %580, %292, %cst_166 {dimension_numbers = #tpu.dot_dimension_numbers<[1], [0], [0], [1], [0, 0, 1, 1], [], []>} : vector<32x32xf32>, vector<32x8xf32>, vector<32x8xf32> -> vector<32x8xf32>
    %582 = vector.shape_cast %581 : vector<32x8xf32> to vector<8x4x8xf32>
    %583 = vector.extract_strided_slice %582 {offsets = [0, 0, 0], sizes = [8, 4, 1], strides = [1, 1, 1]} : vector<8x4x8xf32> to vector<8x4x1xf32>
    %cst_167 = arith.constant dense<0xFF800000> : vector<4x1xf32>
    %584 = vector.multi_reduction <maximumf>, %583, %cst_167 [0] : vector<8x4x1xf32> to vector<4x1xf32>
    %585 = vector.shape_cast %584 : vector<4x1xf32> to vector<1x4x1xf32>
    %586 = vector.broadcast %585 : vector<1x4x1xf32> to vector<8x4x1xf32>
    %587 = arith.subf %583, %586 : vector<8x4x1xf32>
    %588 = math.exp %587 : vector<8x4x1xf32>
    %cst_168 = arith.constant dense<0.000000e+00> : vector<4x1xf32>
    %589 = vector.multi_reduction <add>, %588, %cst_168 [0] : vector<8x4x1xf32> to vector<4x1xf32>
    %590 = vector.shape_cast %589 : vector<4x1xf32> to vector<1x4x1xf32>
    %591 = vector.broadcast %590 : vector<1x4x1xf32> to vector<8x4x1xf32>
    %592 = arith.divf %588, %591 : vector<8x4x1xf32>
    %593 = vector.broadcast %592 : vector<8x4x1xf32> to vector<8x4x32xf32>
    %594 = arith.mulf %593, %282 : vector<8x4x32xf32>
    %cst_169 = arith.constant dense<0.000000e+00> : vector<4x32xf32>
    %595 = vector.multi_reduction <add>, %594, %cst_169 [0] : vector<8x4x32xf32> to vector<4x32xf32>
    %cst_170 = arith.constant dense<0.000000e+00> : vector<4x96xf32>
    %596 = tpu.matmul %573, %295, %cst_170 {dimension_numbers = #tpu.dot_dimension_numbers<[1], [0], [0], [1], [0, 0, 1, 1], [], []>} : vector<4x32xf32>, vector<32x96xf32>, vector<4x96xf32> -> vector<4x96xf32>
    %cst_171 = arith.constant dense<0.000000e+00> : vector<4x96xf32>
    %597 = tpu.matmul %595, %296, %cst_171 {dimension_numbers = #tpu.dot_dimension_numbers<[1], [0], [0], [1], [0, 0, 1, 1], [], []>} : vector<4x32xf32>, vector<32x96xf32>, vector<4x96xf32> -> vector<4x96xf32>
    %598 = arith.addf %596, %597 : vector<4x96xf32>
    %599 = vector.broadcast %298 : vector<1x96xf32> to vector<4x96xf32>
    %600 = arith.addf %598, %599 : vector<4x96xf32>
    %cst_172 = arith.constant dense<0.000000e+00> : vector<4x96xf32>
    %601 = tpu.matmul %542, %297, %cst_172 {dimension_numbers = #tpu.dot_dimension_numbers<[1], [0], [0], [1], [0, 0, 1, 1], [], []>} : vector<4x32xf32>, vector<32x96xf32>, vector<4x96xf32> -> vector<4x96xf32>
    %602 = vector.broadcast %299 : vector<1x96xf32> to vector<4x96xf32>
    %603 = arith.addf %601, %602 : vector<4x96xf32>
    %604 = vector.extract_strided_slice %600 {offsets = [0, 0], sizes = [4, 32], strides = [1, 1]} : vector<4x96xf32> to vector<4x32xf32>
    %605 = vector.extract_strided_slice %603 {offsets = [0, 0], sizes = [4, 32], strides = [1, 1]} : vector<4x96xf32> to vector<4x32xf32>
    %606 = arith.addf %604, %605 : vector<4x32xf32>
    %607 = arith.negf %606 : vector<4x32xf32>
    %608 = math.exp %607 : vector<4x32xf32>
    %cst_173 = arith.constant 1.000000e+00 : f32
    %609 = vector.broadcast %cst_173 : f32 to vector<4x32xf32>
    %610 = arith.addf %609, %608 : vector<4x32xf32>
    %611 = arith.divf %609, %610 : vector<4x32xf32>
    %612 = vector.extract_strided_slice %600 {offsets = [0, 32], sizes = [4, 32], strides = [1, 1]} : vector<4x96xf32> to vector<4x32xf32>
    %613 = vector.extract_strided_slice %603 {offsets = [0, 32], sizes = [4, 32], strides = [1, 1]} : vector<4x96xf32> to vector<4x32xf32>
    %614 = arith.addf %612, %613 : vector<4x32xf32>
    %615 = arith.negf %614 : vector<4x32xf32>
    %616 = math.exp %615 : vector<4x32xf32>
    %cst_174 = arith.constant 1.000000e+00 : f32
    %617 = vector.broadcast %cst_174 : f32 to vector<4x32xf32>
    %618 = arith.addf %617, %616 : vector<4x32xf32>
    %619 = arith.divf %617, %618 : vector<4x32xf32>
    %620 = vector.extract_strided_slice %600 {offsets = [0, 64], sizes = [4, 32], strides = [1, 1]} : vector<4x96xf32> to vector<4x32xf32>
    %621 = vector.extract_strided_slice %603 {offsets = [0, 64], sizes = [4, 32], strides = [1, 1]} : vector<4x96xf32> to vector<4x32xf32>
    %622 = arith.mulf %611, %621 : vector<4x32xf32>
    %623 = arith.addf %620, %622 : vector<4x32xf32>
    %624 = math.tanh %623 : vector<4x32xf32>
    %cst_175 = arith.constant 1.000000e+00 : f32
    %625 = vector.broadcast %cst_175 : f32 to vector<4x32xf32>
    %626 = arith.subf %625, %619 : vector<4x32xf32>
    %627 = arith.mulf %626, %624 : vector<4x32xf32>
    %628 = arith.mulf %619, %542 : vector<4x32xf32>
    %629 = arith.addf %627, %628 : vector<4x32xf32>
    %cst_176 = arith.constant dense<0.000000e+00> : vector<4x16xf32>
    %630 = tpu.matmul %629, %300, %cst_176 {dimension_numbers = #tpu.dot_dimension_numbers<[1], [0], [0], [1], [0, 0, 1, 1], [], []>} : vector<4x32xf32>, vector<32x16xf32>, vector<4x16xf32> -> vector<4x16xf32>
    %cst_177 = arith.constant dense<0.000000e+00> : vector<4x16xf32>
    %631 = tpu.matmul %595, %301, %cst_177 {dimension_numbers = #tpu.dot_dimension_numbers<[1], [0], [0], [1], [0, 0, 1, 1], [], []>} : vector<4x32xf32>, vector<32x16xf32>, vector<4x16xf32> -> vector<4x16xf32>
    %632 = arith.addf %630, %631 : vector<4x16xf32>
    %633 = vector.broadcast %302 : vector<1x16xf32> to vector<4x16xf32>
    %634 = arith.addf %632, %633 : vector<4x16xf32>
    %cst_178 = arith.constant dense<0xFF800000> : vector<4xf32>
    %635 = vector.multi_reduction <maximumf>, %634, %cst_178 [1] : vector<4x16xf32> to vector<4xf32>
    %636 = vector.shape_cast %635 : vector<4xf32> to vector<4x1xf32>
    %637 = vector.broadcast %636 : vector<4x1xf32> to vector<4x16xf32>
    %638 = arith.subf %634, %637 : vector<4x16xf32>
    %639 = math.exp %638 : vector<4x16xf32>
    %cst_179 = arith.constant dense<0.000000e+00> : vector<4xf32>
    %640 = vector.multi_reduction <add>, %639, %cst_179 [1] : vector<4x16xf32> to vector<4xf32>
    %641 = vector.shape_cast %640 : vector<4xf32> to vector<4x1xf32>
    %642 = math.log %641 : vector<4x1xf32>
    %643 = vector.broadcast %642 : vector<4x1xf32> to vector<4x16xf32>
    %644 = arith.subf %638, %643 : vector<4x16xf32>
    %c4_180 = arith.constant 4 : index
    %c0_181 = arith.constant 0 : index
    %c0_182 = arith.constant 0 : index
    %645 = vector.load %arg17[%c4_180, %c0_181, %c0_182] : memref<8x4x16xf32, #tpu.memory_space<vmem>>, vector<1x4x16xf32>
    %646 = vector.shape_cast %645 : vector<1x4x16xf32> to vector<4x16xf32>
    %647 = vector.shape_cast %644 : vector<4x16xf32> to vector<1x4x16xf32>
    tpu.vector_store %arg17[%c4_180, %c0_181, %c0_182], %647 {strides = array<i32>} : memref<8x4x16xf32, #tpu.memory_space<vmem>>, vector<1x4x16xf32>,
    %cst_183 = arith.constant dense<0xFF800000> : vector<4xf32>
    %648 = vector.multi_reduction <maximumf>, %644, %cst_183 [1] : vector<4x16xf32> to vector<4xf32>
    %649 = vector.shape_cast %648 : vector<4xf32> to vector<4x1xf32>
    %650 = vector.broadcast %649 : vector<4x1xf32> to vector<4x16xf32>
    %651 = arith.cmpf oeq, %644, %650 : vector<4x16xf32>
    %c16_i32_184 = arith.constant 16 : i32
    %652 = vector.broadcast %c16_i32_184 : i32 to vector<4x16xi32>
    %653 = arith.select %651, %307, %652 : vector<4x16xi1>, vector<4x16xi32>
    %cst_185 = arith.constant dense<2147483647> : vector<4xi32>
    %654 = vector.multi_reduction <minsi>, %653, %cst_185 [1] : vector<4x16xi32> to vector<4xi32>
    %655 = vector.shape_cast %654 : vector<4xi32> to vector<4x1xi32>
    %656 = vector.broadcast %655 : vector<4x1xi32> to vector<4x16xi32>
    %657 = arith.cmpi eq, %307, %656 : vector<4x16xi32>
    %658 = arith.extui %657 : vector<4x16xi1> to vector<4x16xi32>
    %659 = arith.sitofp %658 : vector<4x16xi32> to vector<4x16xf32>
    %cst_186 = arith.constant dense<0.000000e+00> : vector<4x32xf32>
    %660 = tpu.matmul %659, %294, %cst_186 {dimension_numbers = #tpu.dot_dimension_numbers<[1], [0], [0], [1], [0, 0, 1, 1], [], []>} : vector<4x16xf32>, vector<16x32xf32>, vector<4x32xf32> -> vector<4x32xf32>
    %cst_187 = arith.constant dense<0.000000e+00> : vector<4x32xf32>
    %661 = tpu.matmul %629, %293, %cst_187 {dimension_numbers = #tpu.dot_dimension_numbers<[1], [0], [0], [1], [0, 0, 1, 1], [], []>} : vector<4x32xf32>, vector<32x32xf32>, vector<4x32xf32> -> vector<4x32xf32>
    %662 = vector.shape_cast %661 : vector<4x32xf32> to vector<1x4x32xf32>
    %663 = vector.broadcast %662 : vector<1x4x32xf32> to vector<8x4x32xf32>
    %664 = arith.addf %663, %289 : vector<8x4x32xf32>
    %cst_188 = arith.constant 0.000000e+00 : f32
    %665 = vector.broadcast %cst_188 : f32 to vector<8x4x32xf32>
    %666 = arith.maximumf %664, %665 : vector<8x4x32xf32>
    %667 = vector.shape_cast %666 : vector<8x4x32xf32> to vector<32x32xf32>
    %cst_189 = arith.constant dense<0.000000e+00> : vector<32x8xf32>
    %668 = tpu.matmul %667, %292, %cst_189 {dimension_numbers = #tpu.dot_dimension_numbers<[1], [0], [0], [1], [0, 0, 1, 1], [], []>} : vector<32x32xf32>, vector<32x8xf32>, vector<32x8xf32> -> vector<32x8xf32>
    %669 = vector.shape_cast %668 : vector<32x8xf32> to vector<8x4x8xf32>
    %670 = vector.extract_strided_slice %669 {offsets = [0, 0, 0], sizes = [8, 4, 1], strides = [1, 1, 1]} : vector<8x4x8xf32> to vector<8x4x1xf32>
    %cst_190 = arith.constant dense<0xFF800000> : vector<4x1xf32>
    %671 = vector.multi_reduction <maximumf>, %670, %cst_190 [0] : vector<8x4x1xf32> to vector<4x1xf32>
    %672 = vector.shape_cast %671 : vector<4x1xf32> to vector<1x4x1xf32>
    %673 = vector.broadcast %672 : vector<1x4x1xf32> to vector<8x4x1xf32>
    %674 = arith.subf %670, %673 : vector<8x4x1xf32>
    %675 = math.exp %674 : vector<8x4x1xf32>
    %cst_191 = arith.constant dense<0.000000e+00> : vector<4x1xf32>
    %676 = vector.multi_reduction <add>, %675, %cst_191 [0] : vector<8x4x1xf32> to vector<4x1xf32>
    %677 = vector.shape_cast %676 : vector<4x1xf32> to vector<1x4x1xf32>
    %678 = vector.broadcast %677 : vector<1x4x1xf32> to vector<8x4x1xf32>
    %679 = arith.divf %675, %678 : vector<8x4x1xf32>
    %680 = vector.broadcast %679 : vector<8x4x1xf32> to vector<8x4x32xf32>
    %681 = arith.mulf %680, %282 : vector<8x4x32xf32>
    %cst_192 = arith.constant dense<0.000000e+00> : vector<4x32xf32>
    %682 = vector.multi_reduction <add>, %681, %cst_192 [0] : vector<8x4x32xf32> to vector<4x32xf32>
    %cst_193 = arith.constant dense<0.000000e+00> : vector<4x96xf32>
    %683 = tpu.matmul %660, %295, %cst_193 {dimension_numbers = #tpu.dot_dimension_numbers<[1], [0], [0], [1], [0, 0, 1, 1], [], []>} : vector<4x32xf32>, vector<32x96xf32>, vector<4x96xf32> -> vector<4x96xf32>
    %cst_194 = arith.constant dense<0.000000e+00> : vector<4x96xf32>
    %684 = tpu.matmul %682, %296, %cst_194 {dimension_numbers = #tpu.dot_dimension_numbers<[1], [0], [0], [1], [0, 0, 1, 1], [], []>} : vector<4x32xf32>, vector<32x96xf32>, vector<4x96xf32> -> vector<4x96xf32>
    %685 = arith.addf %683, %684 : vector<4x96xf32>
    %686 = vector.broadcast %298 : vector<1x96xf32> to vector<4x96xf32>
    %687 = arith.addf %685, %686 : vector<4x96xf32>
    %cst_195 = arith.constant dense<0.000000e+00> : vector<4x96xf32>
    %688 = tpu.matmul %629, %297, %cst_195 {dimension_numbers = #tpu.dot_dimension_numbers<[1], [0], [0], [1], [0, 0, 1, 1], [], []>} : vector<4x32xf32>, vector<32x96xf32>, vector<4x96xf32> -> vector<4x96xf32>
    %689 = vector.broadcast %299 : vector<1x96xf32> to vector<4x96xf32>
    %690 = arith.addf %688, %689 : vector<4x96xf32>
    %691 = vector.extract_strided_slice %687 {offsets = [0, 0], sizes = [4, 32], strides = [1, 1]} : vector<4x96xf32> to vector<4x32xf32>
    %692 = vector.extract_strided_slice %690 {offsets = [0, 0], sizes = [4, 32], strides = [1, 1]} : vector<4x96xf32> to vector<4x32xf32>
    %693 = arith.addf %691, %692 : vector<4x32xf32>
    %694 = arith.negf %693 : vector<4x32xf32>
    %695 = math.exp %694 : vector<4x32xf32>
    %cst_196 = arith.constant 1.000000e+00 : f32
    %696 = vector.broadcast %cst_196 : f32 to vector<4x32xf32>
    %697 = arith.addf %696, %695 : vector<4x32xf32>
    %698 = arith.divf %696, %697 : vector<4x32xf32>
    %699 = vector.extract_strided_slice %687 {offsets = [0, 32], sizes = [4, 32], strides = [1, 1]} : vector<4x96xf32> to vector<4x32xf32>
    %700 = vector.extract_strided_slice %690 {offsets = [0, 32], sizes = [4, 32], strides = [1, 1]} : vector<4x96xf32> to vector<4x32xf32>
    %701 = arith.addf %699, %700 : vector<4x32xf32>
    %702 = arith.negf %701 : vector<4x32xf32>
    %703 = math.exp %702 : vector<4x32xf32>
    %cst_197 = arith.constant 1.000000e+00 : f32
    %704 = vector.broadcast %cst_197 : f32 to vector<4x32xf32>
    %705 = arith.addf %704, %703 : vector<4x32xf32>
    %706 = arith.divf %704, %705 : vector<4x32xf32>
    %707 = vector.extract_strided_slice %687 {offsets = [0, 64], sizes = [4, 32], strides = [1, 1]} : vector<4x96xf32> to vector<4x32xf32>
    %708 = vector.extract_strided_slice %690 {offsets = [0, 64], sizes = [4, 32], strides = [1, 1]} : vector<4x96xf32> to vector<4x32xf32>
    %709 = arith.mulf %698, %708 : vector<4x32xf32>
    %710 = arith.addf %707, %709 : vector<4x32xf32>
    %711 = math.tanh %710 : vector<4x32xf32>
    %cst_198 = arith.constant 1.000000e+00 : f32
    %712 = vector.broadcast %cst_198 : f32 to vector<4x32xf32>
    %713 = arith.subf %712, %706 : vector<4x32xf32>
    %714 = arith.mulf %713, %711 : vector<4x32xf32>
    %715 = arith.mulf %706, %629 : vector<4x32xf32>
    %716 = arith.addf %714, %715 : vector<4x32xf32>
    %cst_199 = arith.constant dense<0.000000e+00> : vector<4x16xf32>
    %717 = tpu.matmul %716, %300, %cst_199 {dimension_numbers = #tpu.dot_dimension_numbers<[1], [0], [0], [1], [0, 0, 1, 1], [], []>} : vector<4x32xf32>, vector<32x16xf32>, vector<4x16xf32> -> vector<4x16xf32>
    %cst_200 = arith.constant dense<0.000000e+00> : vector<4x16xf32>
    %718 = tpu.matmul %682, %301, %cst_200 {dimension_numbers = #tpu.dot_dimension_numbers<[1], [0], [0], [1], [0, 0, 1, 1], [], []>} : vector<4x32xf32>, vector<32x16xf32>, vector<4x16xf32> -> vector<4x16xf32>
    %719 = arith.addf %717, %718 : vector<4x16xf32>
    %720 = vector.broadcast %302 : vector<1x16xf32> to vector<4x16xf32>
    %721 = arith.addf %719, %720 : vector<4x16xf32>
    %cst_201 = arith.constant dense<0xFF800000> : vector<4xf32>
    %722 = vector.multi_reduction <maximumf>, %721, %cst_201 [1] : vector<4x16xf32> to vector<4xf32>
    %723 = vector.shape_cast %722 : vector<4xf32> to vector<4x1xf32>
    %724 = vector.broadcast %723 : vector<4x1xf32> to vector<4x16xf32>
    %725 = arith.subf %721, %724 : vector<4x16xf32>
    %726 = math.exp %725 : vector<4x16xf32>
    %cst_202 = arith.constant dense<0.000000e+00> : vector<4xf32>
    %727 = vector.multi_reduction <add>, %726, %cst_202 [1] : vector<4x16xf32> to vector<4xf32>
    %728 = vector.shape_cast %727 : vector<4xf32> to vector<4x1xf32>
    %729 = math.log %728 : vector<4x1xf32>
    %730 = vector.broadcast %729 : vector<4x1xf32> to vector<4x16xf32>
    %731 = arith.subf %725, %730 : vector<4x16xf32>
    %c5_203 = arith.constant 5 : index
    %c0_204 = arith.constant 0 : index
    %c0_205 = arith.constant 0 : index
    %732 = vector.load %arg17[%c5_203, %c0_204, %c0_205] : memref<8x4x16xf32, #tpu.memory_space<vmem>>, vector<1x4x16xf32>
    %733 = vector.shape_cast %732 : vector<1x4x16xf32> to vector<4x16xf32>
    %734 = vector.shape_cast %731 : vector<4x16xf32> to vector<1x4x16xf32>
    tpu.vector_store %arg17[%c5_203, %c0_204, %c0_205], %734 {strides = array<i32>} : memref<8x4x16xf32, #tpu.memory_space<vmem>>, vector<1x4x16xf32>,
    %cst_206 = arith.constant dense<0xFF800000> : vector<4xf32>
    %735 = vector.multi_reduction <maximumf>, %731, %cst_206 [1] : vector<4x16xf32> to vector<4xf32>
    %736 = vector.shape_cast %735 : vector<4xf32> to vector<4x1xf32>
    %737 = vector.broadcast %736 : vector<4x1xf32> to vector<4x16xf32>
    %738 = arith.cmpf oeq, %731, %737 : vector<4x16xf32>
    %c16_i32_207 = arith.constant 16 : i32
    %739 = vector.broadcast %c16_i32_207 : i32 to vector<4x16xi32>
    %740 = arith.select %738, %307, %739 : vector<4x16xi1>, vector<4x16xi32>
    %cst_208 = arith.constant dense<2147483647> : vector<4xi32>
    %741 = vector.multi_reduction <minsi>, %740, %cst_208 [1] : vector<4x16xi32> to vector<4xi32>
    %742 = vector.shape_cast %741 : vector<4xi32> to vector<4x1xi32>
    %743 = vector.broadcast %742 : vector<4x1xi32> to vector<4x16xi32>
    %744 = arith.cmpi eq, %307, %743 : vector<4x16xi32>
    %745 = arith.extui %744 : vector<4x16xi1> to vector<4x16xi32>
    %746 = arith.sitofp %745 : vector<4x16xi32> to vector<4x16xf32>
    %cst_209 = arith.constant dense<0.000000e+00> : vector<4x32xf32>
    %747 = tpu.matmul %746, %294, %cst_209 {dimension_numbers = #tpu.dot_dimension_numbers<[1], [0], [0], [1], [0, 0, 1, 1], [], []>} : vector<4x16xf32>, vector<16x32xf32>, vector<4x32xf32> -> vector<4x32xf32>
    %cst_210 = arith.constant dense<0.000000e+00> : vector<4x32xf32>
    %748 = tpu.matmul %716, %293, %cst_210 {dimension_numbers = #tpu.dot_dimension_numbers<[1], [0], [0], [1], [0, 0, 1, 1], [], []>} : vector<4x32xf32>, vector<32x32xf32>, vector<4x32xf32> -> vector<4x32xf32>
    %749 = vector.shape_cast %748 : vector<4x32xf32> to vector<1x4x32xf32>
    %750 = vector.broadcast %749 : vector<1x4x32xf32> to vector<8x4x32xf32>
    %751 = arith.addf %750, %289 : vector<8x4x32xf32>
    %cst_211 = arith.constant 0.000000e+00 : f32
    %752 = vector.broadcast %cst_211 : f32 to vector<8x4x32xf32>
    %753 = arith.maximumf %751, %752 : vector<8x4x32xf32>
    %754 = vector.shape_cast %753 : vector<8x4x32xf32> to vector<32x32xf32>
    %cst_212 = arith.constant dense<0.000000e+00> : vector<32x8xf32>
    %755 = tpu.matmul %754, %292, %cst_212 {dimension_numbers = #tpu.dot_dimension_numbers<[1], [0], [0], [1], [0, 0, 1, 1], [], []>} : vector<32x32xf32>, vector<32x8xf32>, vector<32x8xf32> -> vector<32x8xf32>
    %756 = vector.shape_cast %755 : vector<32x8xf32> to vector<8x4x8xf32>
    %757 = vector.extract_strided_slice %756 {offsets = [0, 0, 0], sizes = [8, 4, 1], strides = [1, 1, 1]} : vector<8x4x8xf32> to vector<8x4x1xf32>
    %cst_213 = arith.constant dense<0xFF800000> : vector<4x1xf32>
    %758 = vector.multi_reduction <maximumf>, %757, %cst_213 [0] : vector<8x4x1xf32> to vector<4x1xf32>
    %759 = vector.shape_cast %758 : vector<4x1xf32> to vector<1x4x1xf32>
    %760 = vector.broadcast %759 : vector<1x4x1xf32> to vector<8x4x1xf32>
    %761 = arith.subf %757, %760 : vector<8x4x1xf32>
    %762 = math.exp %761 : vector<8x4x1xf32>
    %cst_214 = arith.constant dense<0.000000e+00> : vector<4x1xf32>
    %763 = vector.multi_reduction <add>, %762, %cst_214 [0] : vector<8x4x1xf32> to vector<4x1xf32>
    %764 = vector.shape_cast %763 : vector<4x1xf32> to vector<1x4x1xf32>
    %765 = vector.broadcast %764 : vector<1x4x1xf32> to vector<8x4x1xf32>
    %766 = arith.divf %762, %765 : vector<8x4x1xf32>
    %767 = vector.broadcast %766 : vector<8x4x1xf32> to vector<8x4x32xf32>
    %768 = arith.mulf %767, %282 : vector<8x4x32xf32>
    %cst_215 = arith.constant dense<0.000000e+00> : vector<4x32xf32>
    %769 = vector.multi_reduction <add>, %768, %cst_215 [0] : vector<8x4x32xf32> to vector<4x32xf32>
    %cst_216 = arith.constant dense<0.000000e+00> : vector<4x96xf32>
    %770 = tpu.matmul %747, %295, %cst_216 {dimension_numbers = #tpu.dot_dimension_numbers<[1], [0], [0], [1], [0, 0, 1, 1], [], []>} : vector<4x32xf32>, vector<32x96xf32>, vector<4x96xf32> -> vector<4x96xf32>
    %cst_217 = arith.constant dense<0.000000e+00> : vector<4x96xf32>
    %771 = tpu.matmul %769, %296, %cst_217 {dimension_numbers = #tpu.dot_dimension_numbers<[1], [0], [0], [1], [0, 0, 1, 1], [], []>} : vector<4x32xf32>, vector<32x96xf32>, vector<4x96xf32> -> vector<4x96xf32>
    %772 = arith.addf %770, %771 : vector<4x96xf32>
    %773 = vector.broadcast %298 : vector<1x96xf32> to vector<4x96xf32>
    %774 = arith.addf %772, %773 : vector<4x96xf32>
    %cst_218 = arith.constant dense<0.000000e+00> : vector<4x96xf32>
    %775 = tpu.matmul %716, %297, %cst_218 {dimension_numbers = #tpu.dot_dimension_numbers<[1], [0], [0], [1], [0, 0, 1, 1], [], []>} : vector<4x32xf32>, vector<32x96xf32>, vector<4x96xf32> -> vector<4x96xf32>
    %776 = vector.broadcast %299 : vector<1x96xf32> to vector<4x96xf32>
    %777 = arith.addf %775, %776 : vector<4x96xf32>
    %778 = vector.extract_strided_slice %774 {offsets = [0, 0], sizes = [4, 32], strides = [1, 1]} : vector<4x96xf32> to vector<4x32xf32>
    %779 = vector.extract_strided_slice %777 {offsets = [0, 0], sizes = [4, 32], strides = [1, 1]} : vector<4x96xf32> to vector<4x32xf32>
    %780 = arith.addf %778, %779 : vector<4x32xf32>
    %781 = arith.negf %780 : vector<4x32xf32>
    %782 = math.exp %781 : vector<4x32xf32>
    %cst_219 = arith.constant 1.000000e+00 : f32
    %783 = vector.broadcast %cst_219 : f32 to vector<4x32xf32>
    %784 = arith.addf %783, %782 : vector<4x32xf32>
    %785 = arith.divf %783, %784 : vector<4x32xf32>
    %786 = vector.extract_strided_slice %774 {offsets = [0, 32], sizes = [4, 32], strides = [1, 1]} : vector<4x96xf32> to vector<4x32xf32>
    %787 = vector.extract_strided_slice %777 {offsets = [0, 32], sizes = [4, 32], strides = [1, 1]} : vector<4x96xf32> to vector<4x32xf32>
    %788 = arith.addf %786, %787 : vector<4x32xf32>
    %789 = arith.negf %788 : vector<4x32xf32>
    %790 = math.exp %789 : vector<4x32xf32>
    %cst_220 = arith.constant 1.000000e+00 : f32
    %791 = vector.broadcast %cst_220 : f32 to vector<4x32xf32>
    %792 = arith.addf %791, %790 : vector<4x32xf32>
    %793 = arith.divf %791, %792 : vector<4x32xf32>
    %794 = vector.extract_strided_slice %774 {offsets = [0, 64], sizes = [4, 32], strides = [1, 1]} : vector<4x96xf32> to vector<4x32xf32>
    %795 = vector.extract_strided_slice %777 {offsets = [0, 64], sizes = [4, 32], strides = [1, 1]} : vector<4x96xf32> to vector<4x32xf32>
    %796 = arith.mulf %785, %795 : vector<4x32xf32>
    %797 = arith.addf %794, %796 : vector<4x32xf32>
    %798 = math.tanh %797 : vector<4x32xf32>
    %cst_221 = arith.constant 1.000000e+00 : f32
    %799 = vector.broadcast %cst_221 : f32 to vector<4x32xf32>
    %800 = arith.subf %799, %793 : vector<4x32xf32>
    %801 = arith.mulf %800, %798 : vector<4x32xf32>
    %802 = arith.mulf %793, %716 : vector<4x32xf32>
    %803 = arith.addf %801, %802 : vector<4x32xf32>
    %cst_222 = arith.constant dense<0.000000e+00> : vector<4x16xf32>
    %804 = tpu.matmul %803, %300, %cst_222 {dimension_numbers = #tpu.dot_dimension_numbers<[1], [0], [0], [1], [0, 0, 1, 1], [], []>} : vector<4x32xf32>, vector<32x16xf32>, vector<4x16xf32> -> vector<4x16xf32>
    %cst_223 = arith.constant dense<0.000000e+00> : vector<4x16xf32>
    %805 = tpu.matmul %769, %301, %cst_223 {dimension_numbers = #tpu.dot_dimension_numbers<[1], [0], [0], [1], [0, 0, 1, 1], [], []>} : vector<4x32xf32>, vector<32x16xf32>, vector<4x16xf32> -> vector<4x16xf32>
    %806 = arith.addf %804, %805 : vector<4x16xf32>
    %807 = vector.broadcast %302 : vector<1x16xf32> to vector<4x16xf32>
    %808 = arith.addf %806, %807 : vector<4x16xf32>
    %cst_224 = arith.constant dense<0xFF800000> : vector<4xf32>
    %809 = vector.multi_reduction <maximumf>, %808, %cst_224 [1] : vector<4x16xf32> to vector<4xf32>
    %810 = vector.shape_cast %809 : vector<4xf32> to vector<4x1xf32>
    %811 = vector.broadcast %810 : vector<4x1xf32> to vector<4x16xf32>
    %812 = arith.subf %808, %811 : vector<4x16xf32>
    %813 = math.exp %812 : vector<4x16xf32>
    %cst_225 = arith.constant dense<0.000000e+00> : vector<4xf32>
    %814 = vector.multi_reduction <add>, %813, %cst_225 [1] : vector<4x16xf32> to vector<4xf32>
    %815 = vector.shape_cast %814 : vector<4xf32> to vector<4x1xf32>
    %816 = math.log %815 : vector<4x1xf32>
    %817 = vector.broadcast %816 : vector<4x1xf32> to vector<4x16xf32>
    %818 = arith.subf %812, %817 : vector<4x16xf32>
    %c6_226 = arith.constant 6 : index
    %c0_227 = arith.constant 0 : index
    %c0_228 = arith.constant 0 : index
    %819 = vector.load %arg17[%c6_226, %c0_227, %c0_228] : memref<8x4x16xf32, #tpu.memory_space<vmem>>, vector<1x4x16xf32>
    %820 = vector.shape_cast %819 : vector<1x4x16xf32> to vector<4x16xf32>
    %821 = vector.shape_cast %818 : vector<4x16xf32> to vector<1x4x16xf32>
    tpu.vector_store %arg17[%c6_226, %c0_227, %c0_228], %821 {strides = array<i32>} : memref<8x4x16xf32, #tpu.memory_space<vmem>>, vector<1x4x16xf32>,
    %cst_229 = arith.constant dense<0xFF800000> : vector<4xf32>
    %822 = vector.multi_reduction <maximumf>, %818, %cst_229 [1] : vector<4x16xf32> to vector<4xf32>
    %823 = vector.shape_cast %822 : vector<4xf32> to vector<4x1xf32>
    %824 = vector.broadcast %823 : vector<4x1xf32> to vector<4x16xf32>
    %825 = arith.cmpf oeq, %818, %824 : vector<4x16xf32>
    %c16_i32_230 = arith.constant 16 : i32
    %826 = vector.broadcast %c16_i32_230 : i32 to vector<4x16xi32>
    %827 = arith.select %825, %307, %826 : vector<4x16xi1>, vector<4x16xi32>
    %cst_231 = arith.constant dense<2147483647> : vector<4xi32>
    %828 = vector.multi_reduction <minsi>, %827, %cst_231 [1] : vector<4x16xi32> to vector<4xi32>
    %829 = vector.shape_cast %828 : vector<4xi32> to vector<4x1xi32>
    %830 = vector.broadcast %829 : vector<4x1xi32> to vector<4x16xi32>
    %831 = arith.cmpi eq, %307, %830 : vector<4x16xi32>
    %832 = arith.extui %831 : vector<4x16xi1> to vector<4x16xi32>
    %833 = arith.sitofp %832 : vector<4x16xi32> to vector<4x16xf32>
    %cst_232 = arith.constant dense<0.000000e+00> : vector<4x32xf32>
    %834 = tpu.matmul %833, %294, %cst_232 {dimension_numbers = #tpu.dot_dimension_numbers<[1], [0], [0], [1], [0, 0, 1, 1], [], []>} : vector<4x16xf32>, vector<16x32xf32>, vector<4x32xf32> -> vector<4x32xf32>
    %cst_233 = arith.constant dense<0.000000e+00> : vector<4x32xf32>
    %835 = tpu.matmul %803, %293, %cst_233 {dimension_numbers = #tpu.dot_dimension_numbers<[1], [0], [0], [1], [0, 0, 1, 1], [], []>} : vector<4x32xf32>, vector<32x32xf32>, vector<4x32xf32> -> vector<4x32xf32>
    %836 = vector.shape_cast %835 : vector<4x32xf32> to vector<1x4x32xf32>
    %837 = vector.broadcast %836 : vector<1x4x32xf32> to vector<8x4x32xf32>
    %838 = arith.addf %837, %289 : vector<8x4x32xf32>
    %cst_234 = arith.constant 0.000000e+00 : f32
    %839 = vector.broadcast %cst_234 : f32 to vector<8x4x32xf32>
    %840 = arith.maximumf %838, %839 : vector<8x4x32xf32>
    %841 = vector.shape_cast %840 : vector<8x4x32xf32> to vector<32x32xf32>
    %cst_235 = arith.constant dense<0.000000e+00> : vector<32x8xf32>
    %842 = tpu.matmul %841, %292, %cst_235 {dimension_numbers = #tpu.dot_dimension_numbers<[1], [0], [0], [1], [0, 0, 1, 1], [], []>} : vector<32x32xf32>, vector<32x8xf32>, vector<32x8xf32> -> vector<32x8xf32>
    %843 = vector.shape_cast %842 : vector<32x8xf32> to vector<8x4x8xf32>
    %844 = vector.extract_strided_slice %843 {offsets = [0, 0, 0], sizes = [8, 4, 1], strides = [1, 1, 1]} : vector<8x4x8xf32> to vector<8x4x1xf32>
    %cst_236 = arith.constant dense<0xFF800000> : vector<4x1xf32>
    %845 = vector.multi_reduction <maximumf>, %844, %cst_236 [0] : vector<8x4x1xf32> to vector<4x1xf32>
    %846 = vector.shape_cast %845 : vector<4x1xf32> to vector<1x4x1xf32>
    %847 = vector.broadcast %846 : vector<1x4x1xf32> to vector<8x4x1xf32>
    %848 = arith.subf %844, %847 : vector<8x4x1xf32>
    %849 = math.exp %848 : vector<8x4x1xf32>
    %cst_237 = arith.constant dense<0.000000e+00> : vector<4x1xf32>
    %850 = vector.multi_reduction <add>, %849, %cst_237 [0] : vector<8x4x1xf32> to vector<4x1xf32>
    %851 = vector.shape_cast %850 : vector<4x1xf32> to vector<1x4x1xf32>
    %852 = vector.broadcast %851 : vector<1x4x1xf32> to vector<8x4x1xf32>
    %853 = arith.divf %849, %852 : vector<8x4x1xf32>
    %854 = vector.broadcast %853 : vector<8x4x1xf32> to vector<8x4x32xf32>
    %855 = arith.mulf %854, %282 : vector<8x4x32xf32>
    %cst_238 = arith.constant dense<0.000000e+00> : vector<4x32xf32>
    %856 = vector.multi_reduction <add>, %855, %cst_238 [0] : vector<8x4x32xf32> to vector<4x32xf32>
    %cst_239 = arith.constant dense<0.000000e+00> : vector<4x96xf32>
    %857 = tpu.matmul %834, %295, %cst_239 {dimension_numbers = #tpu.dot_dimension_numbers<[1], [0], [0], [1], [0, 0, 1, 1], [], []>} : vector<4x32xf32>, vector<32x96xf32>, vector<4x96xf32> -> vector<4x96xf32>
    %cst_240 = arith.constant dense<0.000000e+00> : vector<4x96xf32>
    %858 = tpu.matmul %856, %296, %cst_240 {dimension_numbers = #tpu.dot_dimension_numbers<[1], [0], [0], [1], [0, 0, 1, 1], [], []>} : vector<4x32xf32>, vector<32x96xf32>, vector<4x96xf32> -> vector<4x96xf32>
    %859 = arith.addf %857, %858 : vector<4x96xf32>
    %860 = vector.broadcast %298 : vector<1x96xf32> to vector<4x96xf32>
    %861 = arith.addf %859, %860 : vector<4x96xf32>
    %cst_241 = arith.constant dense<0.000000e+00> : vector<4x96xf32>
    %862 = tpu.matmul %803, %297, %cst_241 {dimension_numbers = #tpu.dot_dimension_numbers<[1], [0], [0], [1], [0, 0, 1, 1], [], []>} : vector<4x32xf32>, vector<32x96xf32>, vector<4x96xf32> -> vector<4x96xf32>
    %863 = vector.broadcast %299 : vector<1x96xf32> to vector<4x96xf32>
    %864 = arith.addf %862, %863 : vector<4x96xf32>
    %865 = vector.extract_strided_slice %861 {offsets = [0, 0], sizes = [4, 32], strides = [1, 1]} : vector<4x96xf32> to vector<4x32xf32>
    %866 = vector.extract_strided_slice %864 {offsets = [0, 0], sizes = [4, 32], strides = [1, 1]} : vector<4x96xf32> to vector<4x32xf32>
    %867 = arith.addf %865, %866 : vector<4x32xf32>
    %868 = arith.negf %867 : vector<4x32xf32>
    %869 = math.exp %868 : vector<4x32xf32>
    %cst_242 = arith.constant 1.000000e+00 : f32
    %870 = vector.broadcast %cst_242 : f32 to vector<4x32xf32>
    %871 = arith.addf %870, %869 : vector<4x32xf32>
    %872 = arith.divf %870, %871 : vector<4x32xf32>
    %873 = vector.extract_strided_slice %861 {offsets = [0, 32], sizes = [4, 32], strides = [1, 1]} : vector<4x96xf32> to vector<4x32xf32>
    %874 = vector.extract_strided_slice %864 {offsets = [0, 32], sizes = [4, 32], strides = [1, 1]} : vector<4x96xf32> to vector<4x32xf32>
    %875 = arith.addf %873, %874 : vector<4x32xf32>
    %876 = arith.negf %875 : vector<4x32xf32>
    %877 = math.exp %876 : vector<4x32xf32>
    %cst_243 = arith.constant 1.000000e+00 : f32
    %878 = vector.broadcast %cst_243 : f32 to vector<4x32xf32>
    %879 = arith.addf %878, %877 : vector<4x32xf32>
    %880 = arith.divf %878, %879 : vector<4x32xf32>
    %881 = vector.extract_strided_slice %861 {offsets = [0, 64], sizes = [4, 32], strides = [1, 1]} : vector<4x96xf32> to vector<4x32xf32>
    %882 = vector.extract_strided_slice %864 {offsets = [0, 64], sizes = [4, 32], strides = [1, 1]} : vector<4x96xf32> to vector<4x32xf32>
    %883 = arith.mulf %872, %882 : vector<4x32xf32>
    %884 = arith.addf %881, %883 : vector<4x32xf32>
    %885 = math.tanh %884 : vector<4x32xf32>
    %cst_244 = arith.constant 1.000000e+00 : f32
    %886 = vector.broadcast %cst_244 : f32 to vector<4x32xf32>
    %887 = arith.subf %886, %880 : vector<4x32xf32>
    %888 = arith.mulf %887, %885 : vector<4x32xf32>
    %889 = arith.mulf %880, %803 : vector<4x32xf32>
    %890 = arith.addf %888, %889 : vector<4x32xf32>
    %cst_245 = arith.constant dense<0.000000e+00> : vector<4x16xf32>
    %891 = tpu.matmul %890, %300, %cst_245 {dimension_numbers = #tpu.dot_dimension_numbers<[1], [0], [0], [1], [0, 0, 1, 1], [], []>} : vector<4x32xf32>, vector<32x16xf32>, vector<4x16xf32> -> vector<4x16xf32>
    %cst_246 = arith.constant dense<0.000000e+00> : vector<4x16xf32>
    %892 = tpu.matmul %856, %301, %cst_246 {dimension_numbers = #tpu.dot_dimension_numbers<[1], [0], [0], [1], [0, 0, 1, 1], [], []>} : vector<4x32xf32>, vector<32x16xf32>, vector<4x16xf32> -> vector<4x16xf32>
    %893 = arith.addf %891, %892 : vector<4x16xf32>
    %894 = vector.broadcast %302 : vector<1x16xf32> to vector<4x16xf32>
    %895 = arith.addf %893, %894 : vector<4x16xf32>
    %cst_247 = arith.constant dense<0xFF800000> : vector<4xf32>
    %896 = vector.multi_reduction <maximumf>, %895, %cst_247 [1] : vector<4x16xf32> to vector<4xf32>
    %897 = vector.shape_cast %896 : vector<4xf32> to vector<4x1xf32>
    %898 = vector.broadcast %897 : vector<4x1xf32> to vector<4x16xf32>
    %899 = arith.subf %895, %898 : vector<4x16xf32>
    %900 = math.exp %899 : vector<4x16xf32>
    %cst_248 = arith.constant dense<0.000000e+00> : vector<4xf32>
    %901 = vector.multi_reduction <add>, %900, %cst_248 [1] : vector<4x16xf32> to vector<4xf32>
    %902 = vector.shape_cast %901 : vector<4xf32> to vector<4x1xf32>
    %903 = math.log %902 : vector<4x1xf32>
    %904 = vector.broadcast %903 : vector<4x1xf32> to vector<4x16xf32>
    %905 = arith.subf %899, %904 : vector<4x16xf32>
    %c7_249 = arith.constant 7 : index
    %c0_250 = arith.constant 0 : index
    %c0_251 = arith.constant 0 : index
    %906 = vector.load %arg17[%c7_249, %c0_250, %c0_251] : memref<8x4x16xf32, #tpu.memory_space<vmem>>, vector<1x4x16xf32>
    %907 = vector.shape_cast %906 : vector<1x4x16xf32> to vector<4x16xf32>
    %908 = vector.shape_cast %905 : vector<4x16xf32> to vector<1x4x16xf32>
    tpu.vector_store %arg17[%c7_249, %c0_250, %c0_251], %908 {strides = array<i32>} : memref<8x4x16xf32, #tpu.memory_space<vmem>>, vector<1x4x16xf32>,
    return
  }
}

</mosaic_0001>

<llo_original>
// kernel: seq2seq_forward.1
$region0: #{seq2seq_forward.1}
  #allocation0 [shape = 'u32[]', space=smem, size = 0x4, offset = 0x4, fixed_abs, tag = 'smem constant byte address 0x4 - core index']
  #allocation1 [shape = 'u32[144,128]{1,0:T(1,128)}', space=vmem, size = 0x12000, scoped, tag = 'internal scratch']
  #allocation2 [shape = 'f32[8,4,32]{2,1,0:T(4,128)}', space=vmem, size = 0x4000, scoped, tag = 'scratch operand']
  %s0 = inlined_call_operand.vmem [shape: s32[8,4], index: 0, kind: input, shape index: {}]
  %s1 = inlined_call_operand.vmem [shape: f32[16,32], index: 1, kind: input, shape index: {}]
  %s2 = inlined_call_operand.vmem [shape: f32[32,96], index: 2, kind: input, shape index: {}]
  %s3 = inlined_call_operand.vmem [shape: f32[32,96], index: 3, kind: input, shape index: {}]
  %s4 = inlined_call_operand.vmem [shape: f32[1,96], index: 4, kind: input, shape index: {}]
  %s5 = inlined_call_operand.vmem [shape: f32[1,96], index: 5, kind: input, shape index: {}]
  %s6 = inlined_call_operand.hbm [shape: f32[32,32], index: 6, kind: input, shape index: {}]
  %s7 = inlined_call_operand.hbm [shape: f32[32,32], index: 7, kind: input, shape index: {}]
  %s8 = inlined_call_operand.hbm [shape: f32[1,32], index: 8, kind: input, shape index: {}]
  %s9 = inlined_call_operand.vmem [shape: f32[32,1], index: 9, kind: input, shape index: {}]
  %s10 = inlined_call_operand.hbm [shape: f32[16,32], index: 10, kind: input, shape index: {}]
  %s11 = inlined_call_operand.vmem [shape: f32[64,96], index: 11, kind: input, shape index: {}]
  %s12 = inlined_call_operand.hbm [shape: f32[32,96], index: 12, kind: input, shape index: {}]
  %s13 = inlined_call_operand.hbm [shape: f32[1,96], index: 13, kind: input, shape index: {}]
  %s14 = inlined_call_operand.hbm [shape: f32[1,96], index: 14, kind: input, shape index: {}]
  %s15 = inlined_call_operand.vmem [shape: f32[64,16], index: 15, kind: input, shape index: {}]
  %s16 = inlined_call_operand.hbm [shape: f32[1,16], index: 16, kind: input, shape index: {}]
  %s17 = inlined_call_operand.hbm [shape: f32[8,4,16], index: 17, kind: output, shape index: {}]
  %s18 = sld [smem:[#allocation0]]
  $region110: #{seq2seq_forward.1} parent=0
    _
  %s20 = ssub.s32 1, %s18
  %s21 = scalar_select 0, %s20, %s18
  $region1: #{seq2seq_forward.1} parent=0
    #allocation3 [shape = 'u8[16384]{0}', space=vmem, size = 0x4000, scoped, tag = 'input window, operand 6, single buffered']
    #allocation4 [shape = 's32[1]{0}', space=sflag, size = 0x4, scoped, tag = 'scoped memory for seq2seq_forward.1']
    #allocation5 [shape = 's32[1]{0}', space=sflag, size = 0x4, scoped, tag = 'scoped memory for seq2seq_forward.1']
    #allocation6 [shape = 'u8[16384]{0}', space=vmem, size = 0x4000, scoped, tag = 'input window, operand 7, single buffered']
    #allocation7 [shape = 's32[1]{0}', space=sflag, size = 0x4, scoped, tag = 'scoped memory for seq2seq_forward.1']
    #allocation8 [shape = 'u8[512]{0}', space=vmem, size = 0x400, scoped, tag = 'input window, operand 8, single buffered']
    #allocation9 [shape = 'u8[8192]{0}', space=vmem, size = 0x2000, scoped, tag = 'input window, operand 10, single buffered']
    #allocation10 [shape = 's32[1]{0}', space=sflag, size = 0x4, scoped, tag = 'scoped memory for seq2seq_forward.1']
    #allocation11 [shape = 'u8[16384]{0}', space=vmem, size = 0x4000, scoped, tag = 'input window, operand 12, single buffered']
    #allocation12 [shape = 'u8[512]{0}', space=vmem, size = 0x400, scoped, tag = 'input window, operand 13, single buffered']
    #allocation13 [shape = 's32[1]{0}', space=sflag, size = 0x4, scoped, tag = 'scoped memory for seq2seq_forward.1']
    #allocation14 [shape = 'u8[512]{0}', space=vmem, size = 0x400, scoped, tag = 'input window, operand 14, single buffered']
    #allocation15 [shape = 'u8[512]{0}', space=vmem, size = 0x400, scoped, tag = 'input window, operand 16, single buffered']
    #allocation16 [shape = 's32[1]{0}', space=sflag, size = 0x4, scoped, tag = 'scoped memory for seq2seq_forward.1']
    #allocation17 [shape = 'u8[16384]{0}', space=vmem, size = 0x4000, scoped, tag = 'output window, operand 0, single buffered']
    %22 = vsyncpa [#allocation4], 0
    %23 = vsyncpa [#allocation7], 0
    %24 = vsyncpa [#allocation10], 0
    %25 = vsyncpa [#allocation13], 0
    %26 = vsyncpa [#allocation16], 0
    %27 = vsyncpa [#allocation5], 0
    // Predicated region
    $region2: #{seq2seq_forward.1} parent=1 // pred_check
      _
    $region3: #{seq2seq_forward.1} parent=1 // pred_check_branch
      %29 = sbr.rel (0) target = $region5
    $region4: #{seq2seq_forward.1} parent=1 // pred_region
      _
    $region5: #{seq2seq_forward.1} parent=1 // pred_fallthru
      _
    // Predicated region
    $region6: #{seq2seq_forward.1} parent=1 // pred_check
      _
    $region7: #{seq2seq_forward.1} parent=1 // pred_check_branch
      %31 = sbr.rel (0) target = $region9
    $region8: #{seq2seq_forward.1} parent=1 // pred_region
      _
    $region9: #{seq2seq_forward.1} parent=1 // pred_fallthru
      _
    // Predicated region
    $region10: #{seq2seq_forward.1} parent=1 // pred_check
      _
    $region11: #{seq2seq_forward.1} parent=1 // pred_check_branch
      %33 = sbr.rel (0) target = $region13
    $region12: #{seq2seq_forward.1} parent=1 // pred_region
      _
    $region13: #{seq2seq_forward.1} parent=1 // pred_fallthru
      _
    // Predicated region
    $region14: #{seq2seq_forward.1} parent=1 // pred_check
      _
    $region15: #{seq2seq_forward.1} parent=1 // pred_check_branch
      %35 = sbr.rel (0) target = $region17
    $region16: #{seq2seq_forward.1} parent=1 // pred_region
      _
    $region17: #{seq2seq_forward.1} parent=1 // pred_fallthru
      _
    // Predicated region
    $region18: #{seq2seq_forward.1} parent=1 // pred_check
      _
    $region19: #{seq2seq_forward.1} parent=1 // pred_check_branch
      %37 = sbr.rel (0) target = $region21
    $region20: #{seq2seq_forward.1} parent=1 // pred_region
      _
    $region21: #{seq2seq_forward.1} parent=1 // pred_fallthru
      _
    // Predicated region
    $region22: #{seq2seq_forward.1} parent=1 // pred_check
      _
    $region23: #{seq2seq_forward.1} parent=1 // pred_check_branch
      %39 = sbr.rel (0) target = $region25
    $region24: #{seq2seq_forward.1} parent=1 // pred_region
      _
    $region25: #{seq2seq_forward.1} parent=1 // pred_fallthru
      _
    // Predicated region
    $region26: #{seq2seq_forward.1} parent=1 // pred_check
      _
    $region27: #{seq2seq_forward.1} parent=1 // pred_check_branch
      %41 = sbr.rel (0) target = $region29
    $region28: #{seq2seq_forward.1} parent=1 // pred_region
      %s43 = ssub.s32 512, 512
      %44 = vsyncadd [#allocation4], %s43
      %s45 = sshll.u32 [#allocation3], 4
      %s46 = int_to_ptr.vmem [resolvable:$true] %s45
      %51 = dma.hbm_to_vmem [thread:$0]  %s6, 512, %s46, [#allocation4], 128, 128, 8
    $region29: #{seq2seq_forward.1} parent=1 // pred_fallthru
      _
    // Predicated region
    $region30: #{seq2seq_forward.1} parent=1 // pred_check
      _
    $region31: #{seq2seq_forward.1} parent=1 // pred_check_branch
      %53 = sbr.rel (0) target = $region33
    $region32: #{seq2seq_forward.1} parent=1 // pred_region
      %s55 = ssub.s32 512, 512
      %56 = vsyncadd [#allocation7], %s55
      %s57 = sshll.u32 [#allocation6], 4
      %s58 = int_to_ptr.vmem [resolvable:$true] %s57
      %63 = dma.hbm_to_vmem [thread:$0]  %s7, 512, %s58, [#allocation7], 128, 128, 8
    $region33: #{seq2seq_forward.1} parent=1 // pred_fallthru
      _
    // Predicated region
    $region34: #{seq2seq_forward.1} parent=1 // pred_check
      _
    $region35: #{seq2seq_forward.1} parent=1 // pred_check_branch
      %65 = sbr.rel (0) target = $region37
    $region36: #{seq2seq_forward.1} parent=1 // pred_region
      %s67 = ssub.s32 16, 16
      %68 = vsyncadd [#allocation7], %s67
      %s70 = sshll.u32 [#allocation8], 4
      %s71 = int_to_ptr.vmem [resolvable:$true] %s70
      %73 = dma.hbm_to_vmem [thread:$0]  %s8, 16, %s71, [#allocation7]
    $region37: #{seq2seq_forward.1} parent=1 // pred_fallthru
      _
    // Predicated region
    $region38: #{seq2seq_forward.1} parent=1 // pred_check
      _
    $region39: #{seq2seq_forward.1} parent=1 // pred_check_branch
      %75 = sbr.rel (0) target = $region41
    $region40: #{seq2seq_forward.1} parent=1 // pred_region
      _
    $region41: #{seq2seq_forward.1} parent=1 // pred_fallthru
      _
    // Predicated region
    $region42: #{seq2seq_forward.1} parent=1 // pred_check
      _
    $region43: #{seq2seq_forward.1} parent=1 // pred_check_branch
      %77 = sbr.rel (0) target = $region45
    $region44: #{seq2seq_forward.1} parent=1 // pred_region
      %s79 = ssub.s32 256, 256
      %80 = vsyncadd [#allocation10], %s79
      %s81 = sshll.u32 [#allocation9], 4
      %s82 = int_to_ptr.vmem [resolvable:$true] %s81
      %87 = dma.hbm_to_vmem [thread:$0]  %s10, 256, %s82, [#allocation10], 128, 128, 8
    $region45: #{seq2seq_forward.1} parent=1 // pred_fallthru
      _
    // Predicated region
    $region46: #{seq2seq_forward.1} parent=1 // pred_check
      _
    $region47: #{seq2seq_forward.1} parent=1 // pred_check_branch
      %89 = sbr.rel (0) target = $region49
    $region48: #{seq2seq_forward.1} parent=1 // pred_region
      _
    $region49: #{seq2seq_forward.1} parent=1 // pred_fallthru
      _
    // Predicated region
    $region50: #{seq2seq_forward.1} parent=1 // pred_check
      _
    $region51: #{seq2seq_forward.1} parent=1 // pred_check_branch
      %91 = sbr.rel (0) target = $region53
    $region52: #{seq2seq_forward.1} parent=1 // pred_region
      %s93 = ssub.s32 512, 512
      %94 = vsyncadd [#allocation10], %s93
      %s95 = sshll.u32 [#allocation11], 4
      %s96 = int_to_ptr.vmem [resolvable:$true] %s95
      %101 = dma.hbm_to_vmem [thread:$0]  %s12, 512, %s96, [#allocation10], 128, 128, 8
    $region53: #{seq2seq_forward.1} parent=1 // pred_fallthru
      _
    // Predicated region
    $region54: #{seq2seq_forward.1} parent=1 // pred_check
      _
    $region55: #{seq2seq_forward.1} parent=1 // pred_check_branch
      %103 = sbr.rel (0) target = $region57
    $region56: #{seq2seq_forward.1} parent=1 // pred_region
      %s105 = ssub.s32 16, 16
      %106 = vsyncadd [#allocation13], %s105
      %s108 = sshll.u32 [#allocation12], 4
      %s109 = int_to_ptr.vmem [resolvable:$true] %s108
      %111 = dma.hbm_to_vmem [thread:$0]  %s13, 16, %s109, [#allocation13]
    $region57: #{seq2seq_forward.1} parent=1 // pred_fallthru
      _
    // Predicated region
    $region58: #{seq2seq_forward.1} parent=1 // pred_check
      _
    $region59: #{seq2seq_forward.1} parent=1 // pred_check_branch
      %113 = sbr.rel (0) target = $region61
    $region60: #{seq2seq_forward.1} parent=1 // pred_region
      %s115 = ssub.s32 16, 16
      %116 = vsyncadd [#allocation13], %s115
      %s118 = sshll.u32 [#allocation14], 4
      %s119 = int_to_ptr.vmem [resolvable:$true] %s118
      %121 = dma.hbm_to_vmem [thread:$0]  %s14, 16, %s119, [#allocation13]
    $region61: #{seq2seq_forward.1} parent=1 // pred_fallthru
      _
    // Predicated region
    $region62: #{seq2seq_forward.1} parent=1 // pred_check
      _
    $region63: #{seq2seq_forward.1} parent=1 // pred_check_branch
      %123 = sbr.rel (0) target = $region65
    $region64: #{seq2seq_forward.1} parent=1 // pred_region
      _
    $region65: #{seq2seq_forward.1} parent=1 // pred_fallthru
      _
    // Predicated region
    $region66: #{seq2seq_forward.1} parent=1 // pred_check
      _
    $region67: #{seq2seq_forward.1} parent=1 // pred_check_branch
      %125 = sbr.rel (0) target = $region69
    $region68: #{seq2seq_forward.1} parent=1 // pred_region
      %s127 = ssub.s32 16, 16
      %128 = vsyncadd [#allocation16], %s127
      %s130 = sshll.u32 [#allocation15], 4
      %s131 = int_to_ptr.vmem [resolvable:$true] %s130
      %133 = dma.hbm_to_vmem [thread:$0]  %s16, 16, %s131, [#allocation16]
    $region69: #{seq2seq_forward.1} parent=1 // pred_fallthru
      _
    // Predicated region
    $region70: #{seq2seq_forward.1} parent=1 // pred_check
      _
    $region71: #{seq2seq_forward.1} parent=1 // pred_check_branch
      %135 = sbr.rel (0) target = $region73
    $region72: #{seq2seq_forward.1} parent=1 // pred_region
      %136 = dma.done [#allocation4], 512
    $region73: #{seq2seq_forward.1} parent=1 // pred_fallthru
      _
    // Predicated region
    $region74: #{seq2seq_forward.1} parent=1 // pred_check
      _
    $region75: #{seq2seq_forward.1} parent=1 // pred_check_branch
      %138 = sbr.rel (0) target = $region77
    $region76: #{seq2seq_forward.1} parent=1 // pred_region
      %139 = dma.done [#allocation7], 512
    $region77: #{seq2seq_forward.1} parent=1 // pred_fallthru
      _
    // Predicated region
    $region78: #{seq2seq_forward.1} parent=1 // pred_check
      _
    $region79: #{seq2seq_forward.1} parent=1 // pred_check_branch
      %141 = sbr.rel (0) target = $region81
    $region80: #{seq2seq_forward.1} parent=1 // pred_region
      %142 = dma.done [#allocation7], 16
    $region81: #{seq2seq_forward.1} parent=1 // pred_fallthru
      _
    // Predicated region
    $region82: #{seq2seq_forward.1} parent=1 // pred_check
      _
    $region83: #{seq2seq_forward.1} parent=1 // pred_check_branch
      %144 = sbr.rel (0) target = $region85
    $region84: #{seq2seq_forward.1} parent=1 // pred_region
      %145 = dma.done [#allocation10], 256
    $region85: #{seq2seq_forward.1} parent=1 // pred_fallthru
      _
    // Predicated region
    $region86: #{seq2seq_forward.1} parent=1 // pred_check
      _
    $region87: #{seq2seq_forward.1} parent=1 // pred_check_branch
      %147 = sbr.rel (0) target = $region89
    $region88: #{seq2seq_forward.1} parent=1 // pred_region
      %148 = dma.done [#allocation10], 512
    $region89: #{seq2seq_forward.1} parent=1 // pred_fallthru
      _
    // Predicated region
    $region90: #{seq2seq_forward.1} parent=1 // pred_check
      _
    $region91: #{seq2seq_forward.1} parent=1 // pred_check_branch
      %150 = sbr.rel (0) target = $region93
    $region92: #{seq2seq_forward.1} parent=1 // pred_region
      %151 = dma.done [#allocation13], 16
    $region93: #{seq2seq_forward.1} parent=1 // pred_fallthru
      _
    // Predicated region
    $region94: #{seq2seq_forward.1} parent=1 // pred_check
      _
    $region95: #{seq2seq_forward.1} parent=1 // pred_check_branch
      %153 = sbr.rel (0) target = $region97
    $region96: #{seq2seq_forward.1} parent=1 // pred_region
      %154 = dma.done [#allocation13], 16
    $region97: #{seq2seq_forward.1} parent=1 // pred_fallthru
      _
    // Predicated region
    $region98: #{seq2seq_forward.1} parent=1 // pred_check
      _
    $region99: #{seq2seq_forward.1} parent=1 // pred_check_branch
      %156 = sbr.rel (0) target = $region101
    $region100: #{seq2seq_forward.1} parent=1 // pred_region
      %157 = dma.done [#allocation16], 16
    $region101: #{seq2seq_forward.1} parent=1 // pred_fallthru
      _
    %v158 = vld [vmem:[%s0] sm:$0xff]
    %v159 = vlaneseq
    %v160 = vshrl.u32 %v159, 7
    %v161 = vsub.s32 0, %v160
    %v162 = vrot.slane %v158, %v161
    %164 = vbcast.lane.b32.xlu0 %v162, 256
    %v165 = vpop.permute.xlu0 %164
    %v166 = vlaneseq
    %v167 = vshrl.u32 %v166, 7
    %v168 = vsub.s32 1, %v167
    %v169 = vrot.slane %v158, %v168
    %171 = vbcast.lane.b32.xlu0 %v169, 256
    %v172 = vpop.permute.xlu0 %171
    %v173 = vlaneseq
    %v174 = vshrl.u32 %v173, 7
    %v175 = vsub.s32 2, %v174
    %v176 = vrot.slane %v158, %v175
    %178 = vbcast.lane.b32.xlu0 %v176, 256
    %v179 = vpop.permute.xlu0 %178
    %v180 = vlaneseq
    %v181 = vshrl.u32 %v180, 7
    %v182 = vsub.s32 3, %v181
    %v183 = vrot.slane %v158, %v182
    %185 = vbcast.lane.b32.xlu0 %v183, 256
    %v186 = vpop.permute.xlu0 %185
    %v187 = vlaneseq
    %v188 = vshrl.u32 %v187, 7
    %v189 = vsub.s32 4, %v188
    %v190 = vrot.slane %v158, %v189
    %192 = vbcast.lane.b32.xlu0 %v190, 256
    %v193 = vpop.permute.xlu0 %192
    %v194 = vlaneseq
    %v195 = vshrl.u32 %v194, 7
    %v196 = vsub.s32 5, %v195
    %v197 = vrot.slane %v158, %v196
    %199 = vbcast.lane.b32.xlu0 %v197, 256
    %v200 = vpop.permute.xlu0 %199
    %v201 = vlaneseq
    %v202 = vshrl.u32 %v201, 7
    %v203 = vsub.s32 6, %v202
    %v204 = vrot.slane %v158, %v203
    %206 = vbcast.lane.b32.xlu0 %v204, 256
    %v207 = vpop.permute.xlu0 %206
    %v208 = vlaneseq
    %v209 = vshrl.u32 %v208, 7
    %v210 = vsub.s32 7, %v209
    %v211 = vrot.slane %v158, %v210
    %213 = vbcast.lane.b32.xlu0 %v211, 256
    %v214 = vpop.permute.xlu0 %213
    %v215 = vlaneseq
    %v216 = vand.u32 %v215, 127
    %vm217 = vcmp.eq.s32.totalorder %v165, %v216
    %vm218 = vcmp.eq.s32.totalorder %v172, %v216
    %vm219 = vcmp.eq.s32.totalorder %v179, %v216
    %vm220 = vcmp.eq.s32.totalorder %v186, %v216
    %vm221 = vcmp.eq.s32.totalorder %v193, %v216
    %vm222 = vcmp.eq.s32.totalorder %v200, %v216
    %vm223 = vcmp.eq.s32.totalorder %v207, %v216
    %vm224 = vcmp.eq.s32.totalorder %v214, %v216
    %v225 = vsel %vm217, 1, 0
    %v226 = vsel %vm218, 1, 0
    %v227 = vsel %vm219, 1, 0
    %v228 = vsel %vm220, 1, 0
    %v229 = vsel %vm221, 1, 0
    %v230 = vsel %vm222, 1, 0
    %v231 = vsel %vm223, 1, 0
    %v232 = vsel %vm224, 1, 0
    %v233 = vcvt.s32.f32 %v225
    %v234 = vcvt.s32.f32 %v226
    %v235 = vcvt.s32.f32 %v227
    %v236 = vcvt.s32.f32 %v228
    %v237 = vcvt.s32.f32 %v229
    %v238 = vcvt.s32.f32 %v230
    %v239 = vcvt.s32.f32 %v231
    %v240 = vcvt.s32.f32 %v232
    %v241 = vld [vmem:[%s1] sm:$0xff]
    %v242 = vld [vmem:[%s1 + $0x8] sm:$0xff]
    %v251 = vcombine.low %v233, %v234
    %v252 = vcombine.low %v235, %v236
    %v253 = vcombine.low %v237, %v238
    %v254 = vcombine.low %v239, %v240
    %vm255 = vcmask 130048
    %v256 = vsel %vm255, %v251, 0
    %v258 = vsel %vm255, %v252, 0
    %v260 = vsel %vm255, %v253, 0
    %v262 = vsel %vm255, %v254, 0
    %264 = vmatprep.subr.mxu0 0.0
    %265 = vmatpush1.msra.mxu0 %v241
    %266 = vmatprep.subr.mxu0 0.0
    %267 = vmatpush1.msra.mxu0 %v242
    %268 = vmatprep.subr.mxu0 0.0
    %269 = vmatpush1.msra.mxu0 0.0
    %270 = vmatprep.subr.mxu0 0.0
    %271 = vmatpush1.msra.mxu0 0.0
    %272 = vmatprep.subr.mxu0 0.0
    %273 = vmatpush1.msra.mxu0 0.0
    %274 = vmatprep.subr.mxu0 0.0
    %275 = vmatpush1.msra.mxu0 0.0
    %276 = vmatprep.subr.mxu0 0.0
    %277 = vmatpush1.msra.mxu0 0.0
    %278 = vmatprep.subr.mxu0 0.0
    %279 = vmatpush1.msra.mxu0 0.0
    %280 = vmatprep.subr.mxu0 0.0
    %281 = vmatpush1.msra.mxu0 0.0
    %282 = vmatprep.subr.mxu0 0.0
    %283 = vmatpush1.msra.mxu0 0.0
    %284 = vmatprep.subr.mxu0 0.0
    %285 = vmatpush1.msra.mxu0 0.0
    %286 = vmatprep.subr.mxu0 0.0
    %287 = vmatpush1.msra.mxu0 0.0
    %288 = vmatprep.subr.mxu0 0.0
    %289 = vmatpush1.msra.mxu0 0.0
    %290 = vmatprep.subr.mxu0 0.0
    %291 = vmatpush1.msra.mxu0 0.0
    %292 = vmatprep.subr.mxu0 0.0
    %293 = vmatpush1.msra.mxu0 0.0
    %294 = vmatprep.subr.mxu0 0.0
    %295 = vmatpush1.msra.mxu0 0.0
    %296 = vmatprep.subr.mxu0 0.0
    %297 = vmatpush1.msra.mxu0 0.0
    %298 = vmatprep.subr.mxu0 0.0
    %299 = vmatpush1.msra.mxu0 0.0
    %300 = vmatprep.subr.mxu0 0.0
    %301 = vmatpush1.msra.mxu0 0.0
    %302 = vmatprep.subr.mxu0 0.0
    %303 = vmatpush1.msra.mxu0 0.0
    %304 = vmatprep.subr.mxu0 0.0
    %305 = vmatpush1.msra.mxu0 0.0
    %306 = vmatprep.subr.mxu0 0.0
    %307 = vmatpush1.msra.mxu0 0.0
    %308 = vmatprep.subr.mxu0 0.0
    %309 = vmatpush1.msra.mxu0 0.0
    %310 = vmatprep.subr.mxu0 0.0
    %311 = vmatpush1.msra.mxu0 0.0
    %312 = vmatprep.subr.mxu0 0.0
    %313 = vmatpush1.msra.mxu0 0.0
    %314 = vmatprep.subr.mxu0 0.0
    %315 = vmatpush1.msra.mxu0 0.0
    %316 = vmatprep.subr.mxu0 0.0
    %317 = vmatpush1.msra.mxu0 0.0
    %318 = vmatprep.subr.mxu0 0.0
    %319 = vmatpush1.msra.mxu0 0.0
    %320 = vmatprep.subr.mxu0 0.0
    %321 = vmatpush1.msra.mxu0 0.0
    %322 = vmatprep.subr.mxu0 0.0
    %323 = vmatpush1.msra.mxu0 0.0
    %324 = vmatprep.subr.mxu0 0.0
    %325 = vmatpush1.msra.mxu0 0.0
    %326 = vmatprep.subr.mxu0 0.0
    %327 = vmatpush1.msra.mxu0 0.0
    %328 = vmatprep.mubr.f32.mxu0 0.0
    %329 = vmatmul.mubr.f32.gmra.mrb[0].mxu0 %v256
    %v330 = vpop.f32.mrb[0].mxu0
    %v331 = vadd.f32 0.0, %v330
    %v332 = vpop.f32.mrb[0].mxu0
    %333 = vmatprep.mubr.f32.mxu0 0.0
    %334 = vmatmul.mubr.f32.gmra.mrb[0].mxu0 %v258
    %v335 = vpop.f32.mrb[0].mxu0
    %v336 = vadd.f32 0.0, %v335
    %v337 = vpop.f32.mrb[0].mxu0
    %338 = vmatprep.mubr.f32.mxu0 0.0
    %339 = vmatmul.mubr.f32.gmra.mrb[0].mxu0 %v260
    %v340 = vpop.f32.mrb[0].mxu0
    %v341 = vadd.f32 0.0, %v340
    %v342 = vpop.f32.mrb[0].mxu0
    %343 = vmatprep.mubr.f32.mxu0 0.0
    %344 = vmatmul.mubr.f32.gmra.mrb[0].mxu0 %v262
    %v345 = vpop.f32.mrb[0].mxu0
    %v346 = vadd.f32 0.0, %v345
    %v347 = vpop.f32.mrb[0].mxu0
    %348 = vdwg.mxu0
    %v349 = vld [vmem:[%s2] sm:$0xff]
    %v350 = vld [vmem:[%s2 + $0x8] sm:$0xff]
    %v351 = vld [vmem:[%s2 + $0x10] sm:$0xff]
    %v352 = vld [vmem:[%s2 + $0x18] sm:$0xff]
    %v353 = vld [vmem:[%s4] sm:$0x1]
    %v355 = vlaneseq
    %v356 = vshrl.u32 %v355, 7
    %v357 = vsub.s32 0, %v356
    %v358 = vrot.slane %v353, %v357
    %vm360 = vcmask 261120
    %v362 = vsel %vm360, %v331, 0
    %v365 = vsel %vm360, %v336, 0
    %v368 = vsel %vm360, %v341, 0
    %v371 = vsel %vm360, %v346, 0
    %373 = vmatprep.subr.mxu0 0.0
    %374 = vmatpush1.msra.mxu0 %v349
    %375 = vmatprep.subr.mxu0 0.0
    %376 = vmatpush1.msra.mxu0 %v350
    %377 = vmatprep.subr.mxu0 0.0
    %378 = vmatpush1.msra.mxu0 %v351
    %379 = vmatprep.subr.mxu0 0.0
    %380 = vmatpush1.msra.mxu0 %v352
    %381 = vmatprep.subr.mxu0 0.0
    %382 = vmatpush1.msra.mxu0 0.0
    %383 = vmatprep.subr.mxu0 0.0
    %384 = vmatpush1.msra.mxu0 0.0
    %385 = vmatprep.subr.mxu0 0.0
    %386 = vmatpush1.msra.mxu0 0.0
    %387 = vmatprep.subr.mxu0 0.0
    %388 = vmatpush1.msra.mxu0 0.0
    %389 = vmatprep.subr.mxu0 0.0
    %390 = vmatpush1.msra.mxu0 0.0
    %391 = vmatprep.subr.mxu0 0.0
    %392 = vmatpush1.msra.mxu0 0.0
    %393 = vmatprep.subr.mxu0 0.0
    %394 = vmatpush1.msra.mxu0 0.0
    %395 = vmatprep.subr.mxu0 0.0
    %396 = vmatpush1.msra.mxu0 0.0
    %397 = vmatprep.subr.mxu0 0.0
    %398 = vmatpush1.msra.mxu0 0.0
    %399 = vmatprep.subr.mxu0 0.0
    %400 = vmatpush1.msra.mxu0 0.0
    %401 = vmatprep.subr.mxu0 0.0
    %402 = vmatpush1.msra.mxu0 0.0
    %403 = vmatprep.subr.mxu0 0.0
    %404 = vmatpush1.msra.mxu0 0.0
    %405 = vmatprep.subr.mxu0 0.0
    %406 = vmatpush1.msra.mxu0 0.0
    %407 = vmatprep.subr.mxu0 0.0
    %408 = vmatpush1.msra.mxu0 0.0
    %409 = vmatprep.subr.mxu0 0.0
    %410 = vmatpush1.msra.mxu0 0.0
    %411 = vmatprep.subr.mxu0 0.0
    %412 = vmatpush1.msra.mxu0 0.0
    %413 = vmatprep.subr.mxu0 0.0
    %414 = vmatpush1.msra.mxu0 0.0
    %415 = vmatprep.subr.mxu0 0.0
    %416 = vmatpush1.msra.mxu0 0.0
    %417 = vmatprep.subr.mxu0 0.0
    %418 = vmatpush1.msra.mxu0 0.0
    %419 = vmatprep.subr.mxu0 0.0
    %420 = vmatpush1.msra.mxu0 0.0
    %421 = vmatprep.subr.mxu0 0.0
    %422 = vmatpush1.msra.mxu0 0.0
    %423 = vmatprep.subr.mxu0 0.0
    %424 = vmatpush1.msra.mxu0 0.0
    %425 = vmatprep.subr.mxu0 0.0
    %426 = vmatpush1.msra.mxu0 0.0
    %427 = vmatprep.subr.mxu0 0.0
    %428 = vmatpush1.msra.mxu0 0.0
    %429 = vmatprep.subr.mxu0 0.0
    %430 = vmatpush1.msra.mxu0 0.0
    %431 = vmatprep.subr.mxu0 0.0
    %432 = vmatpush1.msra.mxu0 0.0
    %433 = vmatprep.subr.mxu0 0.0
    %434 = vmatpush1.msra.mxu0 0.0
    %435 = vmatprep.subr.mxu0 0.0
    %436 = vmatpush1.msra.mxu0 0.0
    %437 = vmatprep.mubr.f32.mxu0 0.0
    %438 = vmatmul.mubr.f32.gmra.mrb[0].mxu0 %v362
    %v439 = vpop.f32.mrb[0].mxu0
    %v440 = vadd.f32 %v358, %v439
    %v441 = vpop.f32.mrb[0].mxu0
    %442 = vmatprep.mubr.f32.mxu0 0.0
    %443 = vmatmul.mubr.f32.gmra.mrb[0].mxu0 %v365
    %v444 = vpop.f32.mrb[0].mxu0
    %v445 = vadd.f32 %v358, %v444
    %v446 = vpop.f32.mrb[0].mxu0
    %447 = vmatprep.mubr.f32.mxu0 0.0
    %448 = vmatmul.mubr.f32.gmra.mrb[0].mxu0 %v368
    %v449 = vpop.f32.mrb[0].mxu0
    %v450 = vadd.f32 %v358, %v449
    %v451 = vpop.f32.mrb[0].mxu0
    %452 = vmatprep.mubr.f32.mxu0 0.0
    %453 = vmatmul.mubr.f32.gmra.mrb[0].mxu0 %v371
    %v454 = vpop.f32.mrb[0].mxu0
    %v455 = vadd.f32 %v358, %v454
    %v456 = vpop.f32.mrb[0].mxu0
    %457 = vdwg.mxu0
    %v458 = vld [vmem:[%s3] sm:$0xff]
    %v459 = vld [vmem:[%s3 + $0x8] sm:$0xff]
    %v460 = vld [vmem:[%s3 + $0x10] sm:$0xff]
    %v461 = vld [vmem:[%s3 + $0x18] sm:$0xff]
    %v462 = vld [vmem:[%s5] sm:$0x1]
    %v464 = vlaneseq
    %v465 = vshrl.u32 %v464, 7
    %v466 = vsub.s32 0, %v465
    %v467 = vrot.slane %v462, %v466
    %v470 = vsel %vm360, 0.0, 0
    %472 = vmatprep.subr.mxu0 0.0
    %473 = vmatpush1.msra.mxu0 %v458
    %474 = vmatprep.subr.mxu0 0.0
    %475 = vmatpush1.msra.mxu0 %v459
    %476 = vmatprep.subr.mxu0 0.0
    %477 = vmatpush1.msra.mxu0 %v460
    %478 = vmatprep.subr.mxu0 0.0
    %479 = vmatpush1.msra.mxu0 %v461
    %480 = vmatprep.subr.mxu0 0.0
    %481 = vmatpush1.msra.mxu0 0.0
    %482 = vmatprep.subr.mxu0 0.0
    %483 = vmatpush1.msra.mxu0 0.0
    %484 = vmatprep.subr.mxu0 0.0
    %485 = vmatpush1.msra.mxu0 0.0
    %486 = vmatprep.subr.mxu0 0.0
    %487 = vmatpush1.msra.mxu0 0.0
    %488 = vmatprep.subr.mxu0 0.0
    %489 = vmatpush1.msra.mxu0 0.0
    %490 = vmatprep.subr.mxu0 0.0
    %491 = vmatpush1.msra.mxu0 0.0
    %492 = vmatprep.subr.mxu0 0.0
    %493 = vmatpush1.msra.mxu0 0.0
    %494 = vmatprep.subr.mxu0 0.0
    %495 = vmatpush1.msra.mxu0 0.0
    %496 = vmatprep.subr.mxu0 0.0
    %497 = vmatpush1.msra.mxu0 0.0
    %498 = vmatprep.subr.mxu0 0.0
    %499 = vmatpush1.msra.mxu0 0.0
    %500 = vmatprep.subr.mxu0 0.0
    %501 = vmatpush1.msra.mxu0 0.0
    %502 = vmatprep.subr.mxu0 0.0
    %503 = vmatpush1.msra.mxu0 0.0
    %504 = vmatprep.subr.mxu0 0.0
    %505 = vmatpush1.msra.mxu0 0.0
    %506 = vmatprep.subr.mxu0 0.0
    %507 = vmatpush1.msra.mxu0 0.0
    %508 = vmatprep.subr.mxu0 0.0
    %509 = vmatpush1.msra.mxu0 0.0
    %510 = vmatprep.subr.mxu0 0.0
    %511 = vmatpush1.msra.mxu0 0.0
    %512 = vmatprep.subr.mxu0 0.0
    %513 = vmatpush1.msra.mxu0 0.0
    %514 = vmatprep.subr.mxu0 0.0
    %515 = vmatpush1.msra.mxu0 0.0
    %516 = vmatprep.subr.mxu0 0.0
    %517 = vmatpush1.msra.mxu0 0.0
    %518 = vmatprep.subr.mxu0 0.0
    %519 = vmatpush1.msra.mxu0 0.0
    %520 = vmatprep.subr.mxu0 0.0
    %521 = vmatpush1.msra.mxu0 0.0
    %522 = vmatprep.subr.mxu0 0.0
    %523 = vmatpush1.msra.mxu0 0.0
    %524 = vmatprep.subr.mxu0 0.0
    %525 = vmatpush1.msra.mxu0 0.0
    %526 = vmatprep.subr.mxu0 0.0
    %527 = vmatpush1.msra.mxu0 0.0
    %528 = vmatprep.subr.mxu0 0.0
    %529 = vmatpush1.msra.mxu0 0.0
    %530 = vmatprep.subr.mxu0 0.0
    %531 = vmatpush1.msra.mxu0 0.0
    %532 = vmatprep.subr.mxu0 0.0
    %533 = vmatpush1.msra.mxu0 0.0
    %534 = vmatprep.subr.mxu0 0.0
    %535 = vmatpush1.msra.mxu0 0.0
    %536 = vmatprep.mubr.f32.mxu0 0.0
    %537 = vmatmul.mubr.f32.gmra.mrb[0].mxu0 %v470
    %v538 = vpop.f32.mrb[0].mxu0
    %v539 = vadd.f32 %v467, %v538
    %v540 = vpop.f32.mrb[0].mxu0
    %541 = vdwg.mxu0
    %v542 = vadd.f32 %v440, %v539
    %v543 = vxor.u32 %v542, 2147483648
    %v544 = vmul.f32 %v543, 1.442695
    %v545 = vpow.pop %v544
    %v546 = vadd.f32 %v545, 1.0
    %v547 = vrcp.pop %v546
    %v548 = vmul.f32 1.0, %v547
    %550 = vrot.lane.b32.xlu0 %v539, 64
    %v551 = vpop.permute.xlu0 %550
    %v553 = vmul.f32 %v548, %v551
    %555 = vrot.lane.b32.xlu0 %v553, 64
    %v556 = vpop.permute.xlu0 %555
    %v558 = vadd.f32 %v440, %v556
    %v559 = vtanh.pop %v558
    %v560 = vsub.f32 1.0, %v548
    %562 = vrot.lane.b32.xlu0 %v559, 96
    %v563 = vpop.permute.xlu0 %562
    %v565 = vmul.f32 %v560, %v563
    %v566 = vmul.f32 %v548, 0.0
    %v567 = vadd.f32 %v565, %v566
    %569 = vrot.lane.b32.xlu0 %v567, 96
    %v570 = vpop.permute.xlu0 %569
    %vm572 = vcmask 257024
    %573 = vst.msk [vmem:[#allocation2] sm:$0xf] %vm572, %v570
    %v574 = vsel %vm360, %v570, 0
    %576 = vmatprep.subr.mxu0 0.0
    %577 = vmatpush1.msra.mxu0 %v458
    %578 = vmatprep.subr.mxu0 0.0
    %579 = vmatpush1.msra.mxu0 %v459
    %580 = vmatprep.subr.mxu0 0.0
    %581 = vmatpush1.msra.mxu0 %v460
    %582 = vmatprep.subr.mxu0 0.0
    %583 = vmatpush1.msra.mxu0 %v461
    %584 = vmatprep.subr.mxu0 0.0
    %585 = vmatpush1.msra.mxu0 0.0
    %586 = vmatprep.subr.mxu0 0.0
    %587 = vmatpush1.msra.mxu0 0.0
    %588 = vmatprep.subr.mxu0 0.0
    %589 = vmatpush1.msra.mxu0 0.0
    %590 = vmatprep.subr.mxu0 0.0
    %591 = vmatpush1.msra.mxu0 0.0
    %592 = vmatprep.subr.mxu0 0.0
    %593 = vmatpush1.msra.mxu0 0.0
    %594 = vmatprep.subr.mxu0 0.0
    %595 = vmatpush1.msra.mxu0 0.0
    %596 = vmatprep.subr.mxu0 0.0
    %597 = vmatpush1.msra.mxu0 0.0
    %598 = vmatprep.subr.mxu0 0.0
    %599 = vmatpush1.msra.mxu0 0.0
    %600 = vmatprep.subr.mxu0 0.0
    %601 = vmatpush1.msra.mxu0 0.0
    %602 = vmatprep.subr.mxu0 0.0
    %603 = vmatpush1.msra.mxu0 0.0
    %604 = vmatprep.subr.mxu0 0.0
    %605 = vmatpush1.msra.mxu0 0.0
    %606 = vmatprep.subr.mxu0 0.0
    %607 = vmatpush1.msra.mxu0 0.0
    %608 = vmatprep.subr.mxu0 0.0
    %609 = vmatpush1.msra.mxu0 0.0
    %610 = vmatprep.subr.mxu0 0.0
    %611 = vmatpush1.msra.mxu0 0.0
    %612 = vmatprep.subr.mxu0 0.0
    %613 = vmatpush1.msra.mxu0 0.0
    %614 = vmatprep.subr.mxu0 0.0
    %615 = vmatpush1.msra.mxu0 0.0
    %616 = vmatprep.subr.mxu0 0.0
    %617 = vmatpush1.msra.mxu0 0.0
    %618 = vmatprep.subr.mxu0 0.0
    %619 = vmatpush1.msra.mxu0 0.0
    %620 = vmatprep.subr.mxu0 0.0
    %621 = vmatpush1.msra.mxu0 0.0
    %622 = vmatprep.subr.mxu0 0.0
    %623 = vmatpush1.msra.mxu0 0.0
    %624 = vmatprep.subr.mxu0 0.0
    %625 = vmatpush1.msra.mxu0 0.0
    %626 = vmatprep.subr.mxu0 0.0
    %627 = vmatpush1.msra.mxu0 0.0
    %628 = vmatprep.subr.mxu0 0.0
    %629 = vmatpush1.msra.mxu0 0.0
    %630 = vmatprep.subr.mxu0 0.0
    %631 = vmatpush1.msra.mxu0 0.0
    %632 = vmatprep.subr.mxu0 0.0
    %633 = vmatpush1.msra.mxu0 0.0
    %634 = vmatprep.subr.mxu0 0.0
    %635 = vmatpush1.msra.mxu0 0.0
    %636 = vmatprep.subr.mxu0 0.0
    %637 = vmatpush1.msra.mxu0 0.0
    %638 = vmatprep.subr.mxu0 0.0
    %639 = vmatpush1.msra.mxu0 0.0
    %640 = vmatprep.mubr.f32.mxu0 0.0
    %641 = vmatmul.mubr.f32.gmra.mrb[0].mxu0 %v574
    %v642 = vpop.f32.mrb[0].mxu0
    %v643 = vadd.f32 %v467, %v642
    %v644 = vpop.f32.mrb[0].mxu0
    %645 = vdwg.mxu0
    %v647 = vrot.slane %v643, 4
    %v649 = vadd.f32 %v440, %v647
    %v650 = vxor.u32 %v649, 2147483648
    %v651 = vmul.f32 %v650, 1.442695
    %v652 = vpow.pop %v651
    %v653 = vadd.f32 %v652, 1.0
    %v654 = vrcp.pop %v653
    %v655 = vmul.f32 1.0, %v654
    %656 = vrot.lane.b32.xlu0 %v647, 64
    %v657 = vpop.permute.xlu0 %656
    %v659 = vmul.f32 %v655, %v657
    %661 = vrot.lane.b32.xlu0 %v659, 64
    %v662 = vpop.permute.xlu0 %661
    %v664 = vadd.f32 %v440, %v662
    %v665 = vtanh.pop %v664
    %v666 = vsub.f32 1.0, %v655
    %668 = vrot.lane.b32.xlu0 %v665, 96
    %v669 = vpop.permute.xlu0 %668
    %v671 = vmul.f32 %v666, %v669
    %v672 = vrot.slane %v567, 4
    %v674 = vmul.f32 %v655, %v672
    %v675 = vadd.f32 %v671, %v674
    %677 = vrot.lane.b32.xlu0 %v675, 96
    %v678 = vpop.permute.xlu0 %677
    %s680 = scalar_lea.vmem [#allocation2], 4
    %vm681 = vcmask 261124
    %682 = vst.msk [vmem:[%s680 - $0x4] sm:$0xf0] %vm681, %v678
    %v683 = vrot.slane %v675, 4
    %684 = vrot.lane.b32.xlu0 %v683, 96
    %v685 = vpop.permute.xlu0 %684
    %v686 = vsel %vm360, %v685, 0
    %688 = vmatprep.subr.mxu0 0.0
    %689 = vmatpush1.msra.mxu0 %v458
    %690 = vmatprep.subr.mxu0 0.0
    %691 = vmatpush1.msra.mxu0 %v459
    %692 = vmatprep.subr.mxu0 0.0
    %693 = vmatpush1.msra.mxu0 %v460
    %694 = vmatprep.subr.mxu0 0.0
    %695 = vmatpush1.msra.mxu0 %v461
    %696 = vmatprep.subr.mxu0 0.0
    %697 = vmatpush1.msra.mxu0 0.0
    %698 = vmatprep.subr.mxu0 0.0
    %699 = vmatpush1.msra.mxu0 0.0
    %700 = vmatprep.subr.mxu0 0.0
    %701 = vmatpush1.msra.mxu0 0.0
    %702 = vmatprep.subr.mxu0 0.0
    %703 = vmatpush1.msra.mxu0 0.0
    %704 = vmatprep.subr.mxu0 0.0
    %705 = vmatpush1.msra.mxu0 0.0
    %706 = vmatprep.subr.mxu0 0.0
    %707 = vmatpush1.msra.mxu0 0.0
    %708 = vmatprep.subr.mxu0 0.0
    %709 = vmatpush1.msra.mxu0 0.0
    %710 = vmatprep.subr.mxu0 0.0
    %711 = vmatpush1.msra.mxu0 0.0
    %712 = vmatprep.subr.mxu0 0.0
    %713 = vmatpush1.msra.mxu0 0.0
    %714 = vmatprep.subr.mxu0 0.0
    %715 = vmatpush1.msra.mxu0 0.0
    %716 = vmatprep.subr.mxu0 0.0
    %717 = vmatpush1.msra.mxu0 0.0
    %718 = vmatprep.subr.mxu0 0.0
    %719 = vmatpush1.msra.mxu0 0.0
    %720 = vmatprep.subr.mxu0 0.0
    %721 = vmatpush1.msra.mxu0 0.0
    %722 = vmatprep.subr.mxu0 0.0
    %723 = vmatpush1.msra.mxu0 0.0
    %724 = vmatprep.subr.mxu0 0.0
    %725 = vmatpush1.msra.mxu0 0.0
    %726 = vmatprep.subr.mxu0 0.0
    %727 = vmatpush1.msra.mxu0 0.0
    %728 = vmatprep.subr.mxu0 0.0
    %729 = vmatpush1.msra.mxu0 0.0
    %730 = vmatprep.subr.mxu0 0.0
    %731 = vmatpush1.msra.mxu0 0.0
    %732 = vmatprep.subr.mxu0 0.0
    %733 = vmatpush1.msra.mxu0 0.0
    %734 = vmatprep.subr.mxu0 0.0
    %735 = vmatpush1.msra.mxu0 0.0
    %736 = vmatprep.subr.mxu0 0.0
    %737 = vmatpush1.msra.mxu0 0.0
    %738 = vmatprep.subr.mxu0 0.0
    %739 = vmatpush1.msra.mxu0 0.0
    %740 = vmatprep.subr.mxu0 0.0
    %741 = vmatpush1.msra.mxu0 0.0
    %742 = vmatprep.subr.mxu0 0.0
    %743 = vmatpush1.msra.mxu0 0.0
    %744 = vmatprep.subr.mxu0 0.0
    %745 = vmatpush1.msra.mxu0 0.0
    %746 = vmatprep.subr.mxu0 0.0
    %747 = vmatpush1.msra.mxu0 0.0
    %748 = vmatprep.subr.mxu0 0.0
    %749 = vmatpush1.msra.mxu0 0.0
    %750 = vmatprep.subr.mxu0 0.0
    %751 = vmatpush1.msra.mxu0 0.0
    %752 = vmatprep.mubr.f32.mxu0 0.0
    %753 = vmatmul.mubr.f32.gmra.mrb[0].mxu0 %v686
    %v754 = vpop.f32.mrb[0].mxu0
    %v755 = vadd.f32 %v467, %v754
    %v756 = vpop.f32.mrb[0].mxu0
    %757 = vdwg.mxu0
    %v758 = vadd.f32 %v445, %v755
    %v759 = vxor.u32 %v758, 2147483648
    %v760 = vmul.f32 %v759, 1.442695
    %v761 = vpow.pop %v760
    %v762 = vadd.f32 %v761, 1.0
    %v763 = vrcp.pop %v762
    %v764 = vmul.f32 1.0, %v763
    %766 = vrot.lane.b32.xlu0 %v755, 64
    %v767 = vpop.permute.xlu0 %766
    %v769 = vmul.f32 %v764, %v767
    %771 = vrot.lane.b32.xlu0 %v769, 64
    %v772 = vpop.permute.xlu0 %771
    %v774 = vadd.f32 %v445, %v772
    %v775 = vtanh.pop %v774
    %v776 = vsub.f32 1.0, %v764
    %778 = vrot.lane.b32.xlu0 %v775, 96
    %v779 = vpop.permute.xlu0 %778
    %v781 = vmul.f32 %v776, %v779
    %v783 = vmul.f32 %v764, %v683
    %v784 = vadd.f32 %v781, %v783
    %786 = vrot.lane.b32.xlu0 %v784, 96
    %v787 = vpop.permute.xlu0 %786
    %s789 = scalar_lea.vmem [#allocation2], 8
    %790 = vst.msk [vmem:[%s789] sm:$0xf] %vm572, %v787
    %v791 = vsel %vm360, %v787, 0
    %793 = vmatprep.subr.mxu0 0.0
    %794 = vmatpush1.msra.mxu0 %v458
    %795 = vmatprep.subr.mxu0 0.0
    %796 = vmatpush1.msra.mxu0 %v459
    %797 = vmatprep.subr.mxu0 0.0
    %798 = vmatpush1.msra.mxu0 %v460
    %799 = vmatprep.subr.mxu0 0.0
    %800 = vmatpush1.msra.mxu0 %v461
    %801 = vmatprep.subr.mxu0 0.0
    %802 = vmatpush1.msra.mxu0 0.0
    %803 = vmatprep.subr.mxu0 0.0
    %804 = vmatpush1.msra.mxu0 0.0
    %805 = vmatprep.subr.mxu0 0.0
    %806 = vmatpush1.msra.mxu0 0.0
    %807 = vmatprep.subr.mxu0 0.0
    %808 = vmatpush1.msra.mxu0 0.0
    %809 = vmatprep.subr.mxu0 0.0
    %810 = vmatpush1.msra.mxu0 0.0
    %811 = vmatprep.subr.mxu0 0.0
    %812 = vmatpush1.msra.mxu0 0.0
    %813 = vmatprep.subr.mxu0 0.0
    %814 = vmatpush1.msra.mxu0 0.0
    %815 = vmatprep.subr.mxu0 0.0
    %816 = vmatpush1.msra.mxu0 0.0
    %817 = vmatprep.subr.mxu0 0.0
    %818 = vmatpush1.msra.mxu0 0.0
    %819 = vmatprep.subr.mxu0 0.0
    %820 = vmatpush1.msra.mxu0 0.0
    %821 = vmatprep.subr.mxu0 0.0
    %822 = vmatpush1.msra.mxu0 0.0
    %823 = vmatprep.subr.mxu0 0.0
    %824 = vmatpush1.msra.mxu0 0.0
    %825 = vmatprep.subr.mxu0 0.0
    %826 = vmatpush1.msra.mxu0 0.0
    %827 = vmatprep.subr.mxu0 0.0
    %828 = vmatpush1.msra.mxu0 0.0
    %829 = vmatprep.subr.mxu0 0.0
    %830 = vmatpush1.msra.mxu0 0.0
    %831 = vmatprep.subr.mxu0 0.0
    %832 = vmatpush1.msra.mxu0 0.0
    %833 = vmatprep.subr.mxu0 0.0
    %834 = vmatpush1.msra.mxu0 0.0
    %835 = vmatprep.subr.mxu0 0.0
    %836 = vmatpush1.msra.mxu0 0.0
    %837 = vmatprep.subr.mxu0 0.0
    %838 = vmatpush1.msra.mxu0 0.0
    %839 = vmatprep.subr.mxu0 0.0
    %840 = vmatpush1.msra.mxu0 0.0
    %841 = vmatprep.subr.mxu0 0.0
    %842 = vmatpush1.msra.mxu0 0.0
    %843 = vmatprep.subr.mxu0 0.0
    %844 = vmatpush1.msra.mxu0 0.0
    %845 = vmatprep.subr.mxu0 0.0
    %846 = vmatpush1.msra.mxu0 0.0
    %847 = vmatprep.subr.mxu0 0.0
    %848 = vmatpush1.msra.mxu0 0.0
    %849 = vmatprep.subr.mxu0 0.0
    %850 = vmatpush1.msra.mxu0 0.0
    %851 = vmatprep.subr.mxu0 0.0
    %852 = vmatpush1.msra.mxu0 0.0
    %853 = vmatprep.subr.mxu0 0.0
    %854 = vmatpush1.msra.mxu0 0.0
    %855 = vmatprep.subr.mxu0 0.0
    %856 = vmatpush1.msra.mxu0 0.0
    %857 = vmatprep.mubr.f32.mxu0 0.0
    %858 = vmatmul.mubr.f32.gmra.mrb[0].mxu0 %v791
    %v859 = vpop.f32.mrb[0].mxu0
    %v860 = vadd.f32 %v467, %v859
    %v861 = vpop.f32.mrb[0].mxu0
    %862 = vdwg.mxu0
    %v864 = vrot.slane %v860, 4
    %v866 = vadd.f32 %v445, %v864
    %v867 = vxor.u32 %v866, 2147483648
    %v868 = vmul.f32 %v867, 1.442695
    %v869 = vpow.pop %v868
    %v870 = vadd.f32 %v869, 1.0
    %v871 = vrcp.pop %v870
    %v872 = vmul.f32 1.0, %v871
    %873 = vrot.lane.b32.xlu0 %v864, 64
    %v874 = vpop.permute.xlu0 %873
    %v876 = vmul.f32 %v872, %v874
    %878 = vrot.lane.b32.xlu0 %v876, 64
    %v879 = vpop.permute.xlu0 %878
    %v881 = vadd.f32 %v445, %v879
    %v882 = vtanh.pop %v881
    %v883 = vsub.f32 1.0, %v872
    %885 = vrot.lane.b32.xlu0 %v882, 96
    %v886 = vpop.permute.xlu0 %885
    %v888 = vmul.f32 %v883, %v886
    %v889 = vrot.slane %v784, 4
    %v891 = vmul.f32 %v872, %v889
    %v892 = vadd.f32 %v888, %v891
    %894 = vrot.lane.b32.xlu0 %v892, 96
    %v895 = vpop.permute.xlu0 %894
    %s897 = scalar_lea.vmem [#allocation2], 12
    %898 = vst.msk [vmem:[%s897 - $0x4] sm:$0xf0] %vm681, %v895
    %v899 = vrot.slane %v892, 4
    %900 = vrot.lane.b32.xlu0 %v899, 96
    %v901 = vpop.permute.xlu0 %900
    %v902 = vsel %vm360, %v901, 0
    %904 = vmatprep.subr.mxu0 0.0
    %905 = vmatpush1.msra.mxu0 %v458
    %906 = vmatprep.subr.mxu0 0.0
    %907 = vmatpush1.msra.mxu0 %v459
    %908 = vmatprep.subr.mxu0 0.0
    %909 = vmatpush1.msra.mxu0 %v460
    %910 = vmatprep.subr.mxu0 0.0
    %911 = vmatpush1.msra.mxu0 %v461
    %912 = vmatprep.subr.mxu0 0.0
    %913 = vmatpush1.msra.mxu0 0.0
    %914 = vmatprep.subr.mxu0 0.0
    %915 = vmatpush1.msra.mxu0 0.0
    %916 = vmatprep.subr.mxu0 0.0
    %917 = vmatpush1.msra.mxu0 0.0
    %918 = vmatprep.subr.mxu0 0.0
    %919 = vmatpush1.msra.mxu0 0.0
    %920 = vmatprep.subr.mxu0 0.0
    %921 = vmatpush1.msra.mxu0 0.0
    %922 = vmatprep.subr.mxu0 0.0
    %923 = vmatpush1.msra.mxu0 0.0
    %924 = vmatprep.subr.mxu0 0.0
    %925 = vmatpush1.msra.mxu0 0.0
    %926 = vmatprep.subr.mxu0 0.0
    %927 = vmatpush1.msra.mxu0 0.0
    %928 = vmatprep.subr.mxu0 0.0
    %929 = vmatpush1.msra.mxu0 0.0
    %930 = vmatprep.subr.mxu0 0.0
    %931 = vmatpush1.msra.mxu0 0.0
    %932 = vmatprep.subr.mxu0 0.0
    %933 = vmatpush1.msra.mxu0 0.0
    %934 = vmatprep.subr.mxu0 0.0
    %935 = vmatpush1.msra.mxu0 0.0
    %936 = vmatprep.subr.mxu0 0.0
    %937 = vmatpush1.msra.mxu0 0.0
    %938 = vmatprep.subr.mxu0 0.0
    %939 = vmatpush1.msra.mxu0 0.0
    %940 = vmatprep.subr.mxu0 0.0
    %941 = vmatpush1.msra.mxu0 0.0
    %942 = vmatprep.subr.mxu0 0.0
    %943 = vmatpush1.msra.mxu0 0.0
    %944 = vmatprep.subr.mxu0 0.0
    %945 = vmatpush1.msra.mxu0 0.0
    %946 = vmatprep.subr.mxu0 0.0
    %947 = vmatpush1.msra.mxu0 0.0
    %948 = vmatprep.subr.mxu0 0.0
    %949 = vmatpush1.msra.mxu0 0.0
    %950 = vmatprep.subr.mxu0 0.0
    %951 = vmatpush1.msra.mxu0 0.0
    %952 = vmatprep.subr.mxu0 0.0
    %953 = vmatpush1.msra.mxu0 0.0
    %954 = vmatprep.subr.mxu0 0.0
    %955 = vmatpush1.msra.mxu0 0.0
    %956 = vmatprep.subr.mxu0 0.0
    %957 = vmatpush1.msra.mxu0 0.0
    %958 = vmatprep.subr.mxu0 0.0
    %959 = vmatpush1.msra.mxu0 0.0
    %960 = vmatprep.subr.mxu0 0.0
    %961 = vmatpush1.msra.mxu0 0.0
    %962 = vmatprep.subr.mxu0 0.0
    %963 = vmatpush1.msra.mxu0 0.0
    %964 = vmatprep.subr.mxu0 0.0
    %965 = vmatpush1.msra.mxu0 0.0
    %966 = vmatprep.subr.mxu0 0.0
    %967 = vmatpush1.msra.mxu0 0.0
    %968 = vmatprep.mubr.f32.mxu0 0.0
    %969 = vmatmul.mubr.f32.gmra.mrb[0].mxu0 %v902
    %v970 = vpop.f32.mrb[0].mxu0
    %v971 = vadd.f32 %v467, %v970
    %v972 = vpop.f32.mrb[0].mxu0
    %973 = vdwg.mxu0
    %v974 = vadd.f32 %v450, %v971
    %v975 = vxor.u32 %v974, 2147483648
    %v976 = vmul.f32 %v975, 1.442695
    %v977 = vpow.pop %v976
    %v978 = vadd.f32 %v977, 1.0
    %v979 = vrcp.pop %v978
    %v980 = vmul.f32 1.0, %v979
    %982 = vrot.lane.b32.xlu0 %v971, 64
    %v983 = vpop.permute.xlu0 %982
    %v985 = vmul.f32 %v980, %v983
    %987 = vrot.lane.b32.xlu0 %v985, 64
    %v988 = vpop.permute.xlu0 %987
    %v990 = vadd.f32 %v450, %v988
    %v991 = vtanh.pop %v990
    %v992 = vsub.f32 1.0, %v980
    %994 = vrot.lane.b32.xlu0 %v991, 96
    %v995 = vpop.permute.xlu0 %994
    %v997 = vmul.f32 %v992, %v995
    %v999 = vmul.f32 %v980, %v899
    %v1000 = vadd.f32 %v997, %v999
    %1002 = vrot.lane.b32.xlu0 %v1000, 96
    %v1003 = vpop.permute.xlu0 %1002
    %s1005 = scalar_lea.vmem [#allocation2], 16
    %1006 = vst.msk [vmem:[%s1005] sm:$0xf] %vm572, %v1003
    %v1007 = vsel %vm360, %v1003, 0
    %1009 = vmatprep.subr.mxu0 0.0
    %1010 = vmatpush1.msra.mxu0 %v458
    %1011 = vmatprep.subr.mxu0 0.0
    %1012 = vmatpush1.msra.mxu0 %v459
    %1013 = vmatprep.subr.mxu0 0.0
    %1014 = vmatpush1.msra.mxu0 %v460
    %1015 = vmatprep.subr.mxu0 0.0
    %1016 = vmatpush1.msra.mxu0 %v461
    %1017 = vmatprep.subr.mxu0 0.0
    %1018 = vmatpush1.msra.mxu0 0.0
    %1019 = vmatprep.subr.mxu0 0.0
    %1020 = vmatpush1.msra.mxu0 0.0
    %1021 = vmatprep.subr.mxu0 0.0
    %1022 = vmatpush1.msra.mxu0 0.0
    %1023 = vmatprep.subr.mxu0 0.0
    %1024 = vmatpush1.msra.mxu0 0.0
    %1025 = vmatprep.subr.mxu0 0.0
    %1026 = vmatpush1.msra.mxu0 0.0
    %1027 = vmatprep.subr.mxu0 0.0
    %1028 = vmatpush1.msra.mxu0 0.0
    %1029 = vmatprep.subr.mxu0 0.0
    %1030 = vmatpush1.msra.mxu0 0.0
    %1031 = vmatprep.subr.mxu0 0.0
    %1032 = vmatpush1.msra.mxu0 0.0
    %1033 = vmatprep.subr.mxu0 0.0
    %1034 = vmatpush1.msra.mxu0 0.0
    %1035 = vmatprep.subr.mxu0 0.0
    %1036 = vmatpush1.msra.mxu0 0.0
    %1037 = vmatprep.subr.mxu0 0.0
    %1038 = vmatpush1.msra.mxu0 0.0
    %1039 = vmatprep.subr.mxu0 0.0
    %1040 = vmatpush1.msra.mxu0 0.0
    %1041 = vmatprep.subr.mxu0 0.0
    %1042 = vmatpush1.msra.mxu0 0.0
    %1043 = vmatprep.subr.mxu0 0.0
    %1044 = vmatpush1.msra.mxu0 0.0
    %1045 = vmatprep.subr.mxu0 0.0
    %1046 = vmatpush1.msra.mxu0 0.0
    %1047 = vmatprep.subr.mxu0 0.0
    %1048 = vmatpush1.msra.mxu0 0.0
    %1049 = vmatprep.subr.mxu0 0.0
    %1050 = vmatpush1.msra.mxu0 0.0
    %1051 = vmatprep.subr.mxu0 0.0
    %1052 = vmatpush1.msra.mxu0 0.0
    %1053 = vmatprep.subr.mxu0 0.0
    %1054 = vmatpush1.msra.mxu0 0.0
    %1055 = vmatprep.subr.mxu0 0.0
    %1056 = vmatpush1.msra.mxu0 0.0
    %1057 = vmatprep.subr.mxu0 0.0
    %1058 = vmatpush1.msra.mxu0 0.0
    %1059 = vmatprep.subr.mxu0 0.0
    %1060 = vmatpush1.msra.mxu0 0.0
    %1061 = vmatprep.subr.mxu0 0.0
    %1062 = vmatpush1.msra.mxu0 0.0
    %1063 = vmatprep.subr.mxu0 0.0
    %1064 = vmatpush1.msra.mxu0 0.0
    %1065 = vmatprep.subr.mxu0 0.0
    %1066 = vmatpush1.msra.mxu0 0.0
    %1067 = vmatprep.subr.mxu0 0.0
    %1068 = vmatpush1.msra.mxu0 0.0
    %1069 = vmatprep.subr.mxu0 0.0
    %1070 = vmatpush1.msra.mxu0 0.0
    %1071 = vmatprep.subr.mxu0 0.0
    %1072 = vmatpush1.msra.mxu0 0.0
    %1073 = vmatprep.mubr.f32.mxu0 0.0
    %1074 = vmatmul.mubr.f32.gmra.mrb[0].mxu0 %v1007
    %v1075 = vpop.f32.mrb[0].mxu0
    %v1076 = vadd.f32 %v467, %v1075
    %v1077 = vpop.f32.mrb[0].mxu0
    %1078 = vdwg.mxu0
    %v1080 = vrot.slane %v1076, 4
    %v1082 = vadd.f32 %v450, %v1080
    %v1083 = vxor.u32 %v1082, 2147483648
    %v1084 = vmul.f32 %v1083, 1.442695
    %v1085 = vpow.pop %v1084
    %v1086 = vadd.f32 %v1085, 1.0
    %v1087 = vrcp.pop %v1086
    %v1088 = vmul.f32 1.0, %v1087
    %1089 = vrot.lane.b32.xlu0 %v1080, 64
    %v1090 = vpop.permute.xlu0 %1089
    %v1092 = vmul.f32 %v1088, %v1090
    %1094 = vrot.lane.b32.xlu0 %v1092, 64
    %v1095 = vpop.permute.xlu0 %1094
    %v1097 = vadd.f32 %v450, %v1095
    %v1098 = vtanh.pop %v1097
    %v1099 = vsub.f32 1.0, %v1088
    %1101 = vrot.lane.b32.xlu0 %v1098, 96
    %v1102 = vpop.permute.xlu0 %1101
    %v1104 = vmul.f32 %v1099, %v1102
    %v1105 = vrot.slane %v1000, 4
    %v1107 = vmul.f32 %v1088, %v1105
    %v1108 = vadd.f32 %v1104, %v1107
    %1110 = vrot.lane.b32.xlu0 %v1108, 96
    %v1111 = vpop.permute.xlu0 %1110
    %s1113 = scalar_lea.vmem [#allocation2], 20
    %1114 = vst.msk [vmem:[%s1113 - $0x4] sm:$0xf0] %vm681, %v1111
    %v1115 = vrot.slane %v1108, 4
    %1116 = vrot.lane.b32.xlu0 %v1115, 96
    %v1117 = vpop.permute.xlu0 %1116
    %v1118 = vsel %vm360, %v1117, 0
    %1120 = vmatprep.subr.mxu0 0.0
    %1121 = vmatpush1.msra.mxu0 %v458
    %1122 = vmatprep.subr.mxu0 0.0
    %1123 = vmatpush1.msra.mxu0 %v459
    %1124 = vmatprep.subr.mxu0 0.0
    %1125 = vmatpush1.msra.mxu0 %v460
    %1126 = vmatprep.subr.mxu0 0.0
    %1127 = vmatpush1.msra.mxu0 %v461
    %1128 = vmatprep.subr.mxu0 0.0
    %1129 = vmatpush1.msra.mxu0 0.0
    %1130 = vmatprep.subr.mxu0 0.0
    %1131 = vmatpush1.msra.mxu0 0.0
    %1132 = vmatprep.subr.mxu0 0.0
    %1133 = vmatpush1.msra.mxu0 0.0
    %1134 = vmatprep.subr.mxu0 0.0
    %1135 = vmatpush1.msra.mxu0 0.0
    %1136 = vmatprep.subr.mxu0 0.0
    %1137 = vmatpush1.msra.mxu0 0.0
    %1138 = vmatprep.subr.mxu0 0.0
    %1139 = vmatpush1.msra.mxu0 0.0
    %1140 = vmatprep.subr.mxu0 0.0
    %1141 = vmatpush1.msra.mxu0 0.0
    %1142 = vmatprep.subr.mxu0 0.0
    %1143 = vmatpush1.msra.mxu0 0.0
    %1144 = vmatprep.subr.mxu0 0.0
    %1145 = vmatpush1.msra.mxu0 0.0
    %1146 = vmatprep.subr.mxu0 0.0
    %1147 = vmatpush1.msra.mxu0 0.0
    %1148 = vmatprep.subr.mxu0 0.0
    %1149 = vmatpush1.msra.mxu0 0.0
    %1150 = vmatprep.subr.mxu0 0.0
    %1151 = vmatpush1.msra.mxu0 0.0
    %1152 = vmatprep.subr.mxu0 0.0
    %1153 = vmatpush1.msra.mxu0 0.0
    %1154 = vmatprep.subr.mxu0 0.0
    %1155 = vmatpush1.msra.mxu0 0.0
    %1156 = vmatprep.subr.mxu0 0.0
    %1157 = vmatpush1.msra.mxu0 0.0
    %1158 = vmatprep.subr.mxu0 0.0
    %1159 = vmatpush1.msra.mxu0 0.0
    %1160 = vmatprep.subr.mxu0 0.0
    %1161 = vmatpush1.msra.mxu0 0.0
    %1162 = vmatprep.subr.mxu0 0.0
    %1163 = vmatpush1.msra.mxu0 0.0
    %1164 = vmatprep.subr.mxu0 0.0
    %1165 = vmatpush1.msra.mxu0 0.0
    %1166 = vmatprep.subr.mxu0 0.0
    %1167 = vmatpush1.msra.mxu0 0.0
    %1168 = vmatprep.subr.mxu0 0.0
    %1169 = vmatpush1.msra.mxu0 0.0
    %1170 = vmatprep.subr.mxu0 0.0
    %1171 = vmatpush1.msra.mxu0 0.0
    %1172 = vmatprep.subr.mxu0 0.0
    %1173 = vmatpush1.msra.mxu0 0.0
    %1174 = vmatprep.subr.mxu0 0.0
    %1175 = vmatpush1.msra.mxu0 0.0
    %1176 = vmatprep.subr.mxu0 0.0
    %1177 = vmatpush1.msra.mxu0 0.0
    %1178 = vmatprep.subr.mxu0 0.0
    %1179 = vmatpush1.msra.mxu0 0.0
    %1180 = vmatprep.subr.mxu0 0.0
    %1181 = vmatpush1.msra.mxu0 0.0
    %1182 = vmatprep.subr.mxu0 0.0
    %1183 = vmatpush1.msra.mxu0 0.0
    %1184 = vmatprep.mubr.f32.mxu0 0.0
    %1185 = vmatmul.mubr.f32.gmra.mrb[0].mxu0 %v1118
    %v1186 = vpop.f32.mrb[0].mxu0
    %v1187 = vadd.f32 %v467, %v1186
    %v1188 = vpop.f32.mrb[0].mxu0
    %1189 = vdwg.mxu0
    %v1190 = vadd.f32 %v455, %v1187
    %v1191 = vxor.u32 %v1190, 2147483648
    %v1192 = vmul.f32 %v1191, 1.442695
    %v1193 = vpow.pop %v1192
    %v1194 = vadd.f32 %v1193, 1.0
    %v1195 = vrcp.pop %v1194
    %v1196 = vmul.f32 1.0, %v1195
    %1198 = vrot.lane.b32.xlu0 %v1187, 64
    %v1199 = vpop.permute.xlu0 %1198
    %v1201 = vmul.f32 %v1196, %v1199
    %1203 = vrot.lane.b32.xlu0 %v1201, 64
    %v1204 = vpop.permute.xlu0 %1203
    %v1206 = vadd.f32 %v455, %v1204
    %v1207 = vtanh.pop %v1206
    %v1208 = vsub.f32 1.0, %v1196
    %1210 = vrot.lane.b32.xlu0 %v1207, 96
    %v1211 = vpop.permute.xlu0 %1210
    %v1213 = vmul.f32 %v1208, %v1211
    %v1215 = vmul.f32 %v1196, %v1115
    %v1216 = vadd.f32 %v1213, %v1215
    %1218 = vrot.lane.b32.xlu0 %v1216, 96
    %v1219 = vpop.permute.xlu0 %1218
    %s1221 = scalar_lea.vmem [#allocation2], 24
    %1222 = vst.msk [vmem:[%s1221] sm:$0xf] %vm572, %v1219
    %v1223 = vsel %vm360, %v1219, 0
    %1225 = vmatprep.subr.mxu0 0.0
    %1226 = vmatpush1.msra.mxu0 %v458
    %1227 = vmatprep.subr.mxu0 0.0
    %1228 = vmatpush1.msra.mxu0 %v459
    %1229 = vmatprep.subr.mxu0 0.0
    %1230 = vmatpush1.msra.mxu0 %v460
    %1231 = vmatprep.subr.mxu0 0.0
    %1232 = vmatpush1.msra.mxu0 %v461
    %1233 = vmatprep.subr.mxu0 0.0
    %1234 = vmatpush1.msra.mxu0 0.0
    %1235 = vmatprep.subr.mxu0 0.0
    %1236 = vmatpush1.msra.mxu0 0.0
    %1237 = vmatprep.subr.mxu0 0.0
    %1238 = vmatpush1.msra.mxu0 0.0
    %1239 = vmatprep.subr.mxu0 0.0
    %1240 = vmatpush1.msra.mxu0 0.0
    %1241 = vmatprep.subr.mxu0 0.0
    %1242 = vmatpush1.msra.mxu0 0.0
    %1243 = vmatprep.subr.mxu0 0.0
    %1244 = vmatpush1.msra.mxu0 0.0
    %1245 = vmatprep.subr.mxu0 0.0
    %1246 = vmatpush1.msra.mxu0 0.0
    %1247 = vmatprep.subr.mxu0 0.0
    %1248 = vmatpush1.msra.mxu0 0.0
    %1249 = vmatprep.subr.mxu0 0.0
    %1250 = vmatpush1.msra.mxu0 0.0
    %1251 = vmatprep.subr.mxu0 0.0
    %1252 = vmatpush1.msra.mxu0 0.0
    %1253 = vmatprep.subr.mxu0 0.0
    %1254 = vmatpush1.msra.mxu0 0.0
    %1255 = vmatprep.subr.mxu0 0.0
    %1256 = vmatpush1.msra.mxu0 0.0
    %1257 = vmatprep.subr.mxu0 0.0
    %1258 = vmatpush1.msra.mxu0 0.0
    %1259 = vmatprep.subr.mxu0 0.0
    %1260 = vmatpush1.msra.mxu0 0.0
    %1261 = vmatprep.subr.mxu0 0.0
    %1262 = vmatpush1.msra.mxu0 0.0
    %1263 = vmatprep.subr.mxu0 0.0
    %1264 = vmatpush1.msra.mxu0 0.0
    %1265 = vmatprep.subr.mxu0 0.0
    %1266 = vmatpush1.msra.mxu0 0.0
    %1267 = vmatprep.subr.mxu0 0.0
    %1268 = vmatpush1.msra.mxu0 0.0
    %1269 = vmatprep.subr.mxu0 0.0
    %1270 = vmatpush1.msra.mxu0 0.0
    %1271 = vmatprep.subr.mxu0 0.0
    %1272 = vmatpush1.msra.mxu0 0.0
    %1273 = vmatprep.subr.mxu0 0.0
    %1274 = vmatpush1.msra.mxu0 0.0
    %1275 = vmatprep.subr.mxu0 0.0
    %1276 = vmatpush1.msra.mxu0 0.0
    %1277 = vmatprep.subr.mxu0 0.0
    %1278 = vmatpush1.msra.mxu0 0.0
    %1279 = vmatprep.subr.mxu0 0.0
    %1280 = vmatpush1.msra.mxu0 0.0
    %1281 = vmatprep.subr.mxu0 0.0
    %1282 = vmatpush1.msra.mxu0 0.0
    %1283 = vmatprep.subr.mxu0 0.0
    %1284 = vmatpush1.msra.mxu0 0.0
    %1285 = vmatprep.subr.mxu0 0.0
    %1286 = vmatpush1.msra.mxu0 0.0
    %1287 = vmatprep.subr.mxu0 0.0
    %1288 = vmatpush1.msra.mxu0 0.0
    %1289 = vmatprep.mubr.f32.mxu0 0.0
    %1290 = vmatmul.mubr.f32.gmra.mrb[0].mxu0 %v1223
    %v1291 = vpop.f32.mrb[0].mxu0
    %v1292 = vadd.f32 %v467, %v1291
    %v1293 = vpop.f32.mrb[0].mxu0
    %1294 = vdwg.mxu0
    %v1296 = vrot.slane %v1292, 4
    %v1298 = vadd.f32 %v455, %v1296
    %v1299 = vxor.u32 %v1298, 2147483648
    %v1300 = vmul.f32 %v1299, 1.442695
    %v1301 = vpow.pop %v1300
    %v1302 = vadd.f32 %v1301, 1.0
    %v1303 = vrcp.pop %v1302
    %v1304 = vmul.f32 1.0, %v1303
    %1305 = vrot.lane.b32.xlu0 %v1296, 64
    %v1306 = vpop.permute.xlu0 %1305
    %v1308 = vmul.f32 %v1304, %v1306
    %1310 = vrot.lane.b32.xlu0 %v1308, 64
    %v1311 = vpop.permute.xlu0 %1310
    %v1313 = vadd.f32 %v455, %v1311
    %v1314 = vtanh.pop %v1313
    %v1315 = vsub.f32 1.0, %v1304
    %1317 = vrot.lane.b32.xlu0 %v1314, 96
    %v1318 = vpop.permute.xlu0 %1317
    %v1320 = vmul.f32 %v1315, %v1318
    %v1321 = vrot.slane %v1216, 4
    %v1323 = vmul.f32 %v1304, %v1321
    %v1324 = vadd.f32 %v1320, %v1323
    %1326 = vrot.lane.b32.xlu0 %v1324, 96
    %v1327 = vpop.permute.xlu0 %1326
    %s1329 = scalar_lea.vmem [#allocation2], 28
    %1330 = vst.msk [vmem:[%s1329 - $0x4] sm:$0xf0] %vm681, %v1327
    %v1331 = vld [vmem:[#allocation2] sm:$0xf]
    %v1332 = vld [vmem:[#allocation2 + $0x4] sm:$0xf]
    %v1333 = vld [vmem:[#allocation2 + $0x8] sm:$0xf]
    %v1334 = vld [vmem:[#allocation2 + $0xc] sm:$0xf]
    %v1335 = vld [vmem:[#allocation2 + $0x10] sm:$0xf]
    %v1336 = vld [vmem:[#allocation2 + $0x14] sm:$0xf]
    %v1337 = vld [vmem:[#allocation2 + $0x18] sm:$0xf]
    %v1338 = vld [vmem:[#allocation2 + $0x1c] sm:$0xf]
    %v1339 = vld [vmem:[#allocation6] sm:$0xff]
    %v1340 = vld [vmem:[#allocation6 + $0x8] sm:$0xff]
    %v1341 = vld [vmem:[#allocation6 + $0x10] sm:$0xff]
    %v1342 = vld [vmem:[#allocation6 + $0x18] sm:$0xff]
    %v1343 = vld [vmem:[#allocation8] sm:$0x1]
    %v1345 = vlaneseq
    %v1346 = vshrl.u32 %v1345, 7
    %v1347 = vsub.s32 0, %v1346
    %v1348 = vrot.slane %v1343, %v1347
    %v1358 = vcombine.low %v1331, %v1332
    %v1359 = vcombine.low %v1333, %v1334
    %v1360 = vcombine.low %v1335, %v1336
    %v1361 = vcombine.low %v1337, %v1338
    %v1362 = vsel %vm360, %v1358, 0
    %v1364 = vsel %vm360, %v1359, 0
    %v1366 = vsel %vm360, %v1360, 0
    %v1368 = vsel %vm360, %v1361, 0
    %1370 = vmatprep.subr.mxu0 0.0
    %1371 = vmatpush1.msra.mxu0 %v1339
    %1372 = vmatprep.subr.mxu0 0.0
    %1373 = vmatpush1.msra.mxu0 %v1340
    %1374 = vmatprep.subr.mxu0 0.0
    %1375 = vmatpush1.msra.mxu0 %v1341
    %1376 = vmatprep.subr.mxu0 0.0
    %1377 = vmatpush1.msra.mxu0 %v1342
    %1378 = vmatprep.subr.mxu0 0.0
    %1379 = vmatpush1.msra.mxu0 0.0
    %1380 = vmatprep.subr.mxu0 0.0
    %1381 = vmatpush1.msra.mxu0 0.0
    %1382 = vmatprep.subr.mxu0 0.0
    %1383 = vmatpush1.msra.mxu0 0.0
    %1384 = vmatprep.subr.mxu0 0.0
    %1385 = vmatpush1.msra.mxu0 0.0
    %1386 = vmatprep.subr.mxu0 0.0
    %1387 = vmatpush1.msra.mxu0 0.0
    %1388 = vmatprep.subr.mxu0 0.0
    %1389 = vmatpush1.msra.mxu0 0.0
    %1390 = vmatprep.subr.mxu0 0.0
    %1391 = vmatpush1.msra.mxu0 0.0
    %1392 = vmatprep.subr.mxu0 0.0
    %1393 = vmatpush1.msra.mxu0 0.0
    %1394 = vmatprep.subr.mxu0 0.0
    %1395 = vmatpush1.msra.mxu0 0.0
    %1396 = vmatprep.subr.mxu0 0.0
    %1397 = vmatpush1.msra.mxu0 0.0
    %1398 = vmatprep.subr.mxu0 0.0
    %1399 = vmatpush1.msra.mxu0 0.0
    %1400 = vmatprep.subr.mxu0 0.0
    %1401 = vmatpush1.msra.mxu0 0.0
    %1402 = vmatprep.subr.mxu0 0.0
    %1403 = vmatpush1.msra.mxu0 0.0
    %1404 = vmatprep.subr.mxu0 0.0
    %1405 = vmatpush1.msra.mxu0 0.0
    %1406 = vmatprep.subr.mxu0 0.0
    %1407 = vmatpush1.msra.mxu0 0.0
    %1408 = vmatprep.subr.mxu0 0.0
    %1409 = vmatpush1.msra.mxu0 0.0
    %1410 = vmatprep.subr.mxu0 0.0
    %1411 = vmatpush1.msra.mxu0 0.0
    %1412 = vmatprep.subr.mxu0 0.0
    %1413 = vmatpush1.msra.mxu0 0.0
    %1414 = vmatprep.subr.mxu0 0.0
    %1415 = vmatpush1.msra.mxu0 0.0
    %1416 = vmatprep.subr.mxu0 0.0
    %1417 = vmatpush1.msra.mxu0 0.0
    %1418 = vmatprep.subr.mxu0 0.0
    %1419 = vmatpush1.msra.mxu0 0.0
    %1420 = vmatprep.subr.mxu0 0.0
    %1421 = vmatpush1.msra.mxu0 0.0
    %1422 = vmatprep.subr.mxu0 0.0
    %1423 = vmatpush1.msra.mxu0 0.0
    %1424 = vmatprep.subr.mxu0 0.0
    %1425 = vmatpush1.msra.mxu0 0.0
    %1426 = vmatprep.subr.mxu0 0.0
    %1427 = vmatpush1.msra.mxu0 0.0
    %1428 = vmatprep.subr.mxu0 0.0
    %1429 = vmatpush1.msra.mxu0 0.0
    %1430 = vmatprep.subr.mxu0 0.0
    %1431 = vmatpush1.msra.mxu0 0.0
    %1432 = vmatprep.subr.mxu0 0.0
    %1433 = vmatpush1.msra.mxu0 0.0
    %1434 = vmatprep.mubr.f32.mxu0 0.0
    %1435 = vmatmul.mubr.f32.gmra.mrb[0].mxu0 %v1362
    %v1436 = vpop.f32.mrb[0].mxu0
    %v1437 = vadd.f32 %v1348, %v1436
    %v1438 = vpop.f32.mrb[0].mxu0
    %1439 = vmatprep.mubr.f32.mxu0 0.0
    %1440 = vmatmul.mubr.f32.gmra.mrb[0].mxu0 %v1364
    %v1441 = vpop.f32.mrb[0].mxu0
    %v1442 = vadd.f32 %v1348, %v1441
    %v1443 = vpop.f32.mrb[0].mxu0
    %1444 = vmatprep.mubr.f32.mxu0 0.0
    %1445 = vmatmul.mubr.f32.gmra.mrb[0].mxu0 %v1366
    %v1446 = vpop.f32.mrb[0].mxu0
    %v1447 = vadd.f32 %v1348, %v1446
    %v1448 = vpop.f32.mrb[0].mxu0
    %1449 = vmatprep.mubr.f32.mxu0 0.0
    %1450 = vmatmul.mubr.f32.gmra.mrb[0].mxu0 %v1368
    %v1451 = vpop.f32.mrb[0].mxu0
    %v1452 = vadd.f32 %v1348, %v1451
    %v1453 = vpop.f32.mrb[0].mxu0
    %1454 = vdwg.mxu0
    %v1459 = vcombine.high %v1437, %v1437
    %v1460 = vcombine.high %v1442, %v1442
    %v1461 = vcombine.high %v1447, %v1447
    %v1462 = vcombine.high %v1452, %v1452
    %v1467 = vld [vmem:[%s9] sm:$0xff]
    %v1468 = vld [vmem:[%s9 + $0x8] sm:$0xff]
    %v1469 = vld [vmem:[%s9 + $0x10] sm:$0xff]
    %v1470 = vld [vmem:[%s9 + $0x18] sm:$0xff]
    %1472 = vset.pattern.permute.xlu0 0
    %1473 = vperm.xlu0 %1472, %v1467
    %v1474 = vpop.permute.xlu0 %1473
    %1477 = vset.pattern.permute.xlu0 0
    %1478 = vperm.xlu0 %1477, %v1468
    %v1479 = vpop.permute.xlu0 %1478
    %1482 = vset.pattern.permute.xlu0 0
    %1483 = vperm.xlu0 %1482, %v1469
    %v1484 = vpop.permute.xlu0 %1483
    %1487 = vset.pattern.permute.xlu0 0
    %1488 = vperm.xlu0 %1487, %v1470
    %v1489 = vpop.permute.xlu0 %1488
    %v1491 = vld [vmem:[#allocation3] sm:$0xff]
    %v1492 = vld [vmem:[#allocation3 + $0x8] sm:$0xff]
    %v1493 = vld [vmem:[#allocation3 + $0x10] sm:$0xff]
    %v1494 = vld [vmem:[#allocation3 + $0x18] sm:$0xff]
    %v1495 = vld [vmem:[#allocation9] sm:$0xff]
    %v1496 = vld [vmem:[#allocation9 + $0x8] sm:$0xff]
    %v1497 = vld [vmem:[%s11] sm:$0xff]
    %v1498 = vld [vmem:[%s11 + $0x8] sm:$0xff]
    %v1499 = vld [vmem:[%s11 + $0x10] sm:$0xff]
    %v1500 = vld [vmem:[%s11 + $0x18] sm:$0xff]
    %v1501 = vld [vmem:[%s11 + $0x20] sm:$0xff]
    %v1502 = vld [vmem:[%s11 + $0x28] sm:$0xff]
    %v1503 = vld [vmem:[%s11 + $0x30] sm:$0xff]
    %v1504 = vld [vmem:[%s11 + $0x38] sm:$0xff]
    %v1505 = vld [vmem:[#allocation11] sm:$0xff]
    %v1506 = vld [vmem:[#allocation11 + $0x8] sm:$0xff]
    %v1507 = vld [vmem:[#allocation11 + $0x10] sm:$0xff]
    %v1508 = vld [vmem:[#allocation11 + $0x18] sm:$0xff]
    %v1509 = vld [vmem:[#allocation12] sm:$0x1]
    %v1510 = vld [vmem:[#allocation14] sm:$0x1]
    %v1511 = vld [vmem:[%s15] sm:$0xff]
    %v1512 = vld [vmem:[%s15 + $0x8] sm:$0xff]
    %v1513 = vld [vmem:[%s15 + $0x10] sm:$0xff]
    %v1514 = vld [vmem:[%s15 + $0x18] sm:$0xff]
    %v1515 = vld [vmem:[%s15 + $0x20] sm:$0xff]
    %v1516 = vld [vmem:[%s15 + $0x28] sm:$0xff]
    %v1517 = vld [vmem:[%s15 + $0x30] sm:$0xff]
    %v1518 = vld [vmem:[%s15 + $0x38] sm:$0xff]
    %v1519 = vld [vmem:[#allocation15] sm:$0x1]
    %vm1520 = vcmask 125952
    %1521 = vst.msk [vmem:[#allocation17] sm:$0xf] %vm1520, 0.0
    %vm1522 = vcmp.eq.s32.totalorder %v216, 0
    %v1523 = vsel %vm1522, 1, 0
    %v1524 = vcvt.s32.f32 %v1523
    %v1526 = vsel %vm255, %v1524, 0
    %1528 = vmatprep.subr.mxu0 0.0
    %1529 = vmatpush1.msra.mxu0 %v1495
    %1530 = vmatprep.subr.mxu0 0.0
    %1531 = vmatpush1.msra.mxu0 %v1496
    %1532 = vmatprep.subr.mxu0 0.0
    %1533 = vmatpush1.msra.mxu0 0.0
    %1534 = vmatprep.subr.mxu0 0.0
    %1535 = vmatpush1.msra.mxu0 0.0
    %1536 = vmatprep.subr.mxu0 0.0
    %1537 = vmatpush1.msra.mxu0 0.0
    %1538 = vmatprep.subr.mxu0 0.0
    %1539 = vmatpush1.msra.mxu0 0.0
    %1540 = vmatprep.subr.mxu0 0.0
    %1541 = vmatpush1.msra.mxu0 0.0
    %1542 = vmatprep.subr.mxu0 0.0
    %1543 = vmatpush1.msra.mxu0 0.0
    %1544 = vmatprep.subr.mxu0 0.0
    %1545 = vmatpush1.msra.mxu0 0.0
    %1546 = vmatprep.subr.mxu0 0.0
    %1547 = vmatpush1.msra.mxu0 0.0
    %1548 = vmatprep.subr.mxu0 0.0
    %1549 = vmatpush1.msra.mxu0 0.0
    %1550 = vmatprep.subr.mxu0 0.0
    %1551 = vmatpush1.msra.mxu0 0.0
    %1552 = vmatprep.subr.mxu0 0.0
    %1553 = vmatpush1.msra.mxu0 0.0
    %1554 = vmatprep.subr.mxu0 0.0
    %1555 = vmatpush1.msra.mxu0 0.0
    %1556 = vmatprep.subr.mxu0 0.0
    %1557 = vmatpush1.msra.mxu0 0.0
    %1558 = vmatprep.subr.mxu0 0.0
    %1559 = vmatpush1.msra.mxu0 0.0
    %1560 = vmatprep.subr.mxu0 0.0
    %1561 = vmatpush1.msra.mxu0 0.0
    %1562 = vmatprep.subr.mxu0 0.0
    %1563 = vmatpush1.msra.mxu0 0.0
    %1564 = vmatprep.subr.mxu0 0.0
    %1565 = vmatpush1.msra.mxu0 0.0
    %1566 = vmatprep.subr.mxu0 0.0
    %1567 = vmatpush1.msra.mxu0 0.0
    %1568 = vmatprep.subr.mxu0 0.0
    %1569 = vmatpush1.msra.mxu0 0.0
    %1570 = vmatprep.subr.mxu0 0.0
    %1571 = vmatpush1.msra.mxu0 0.0
    %1572 = vmatprep.subr.mxu0 0.0
    %1573 = vmatpush1.msra.mxu0 0.0
    %1574 = vmatprep.subr.mxu0 0.0
    %1575 = vmatpush1.msra.mxu0 0.0
    %1576 = vmatprep.subr.mxu0 0.0
    %1577 = vmatpush1.msra.mxu0 0.0
    %1578 = vmatprep.subr.mxu0 0.0
    %1579 = vmatpush1.msra.mxu0 0.0
    %1580 = vmatprep.subr.mxu0 0.0
    %1581 = vmatpush1.msra.mxu0 0.0
    %1582 = vmatprep.subr.mxu0 0.0
    %1583 = vmatpush1.msra.mxu0 0.0
    %1584 = vmatprep.subr.mxu0 0.0
    %1585 = vmatpush1.msra.mxu0 0.0
    %1586 = vmatprep.subr.mxu0 0.0
    %1587 = vmatpush1.msra.mxu0 0.0
    %1588 = vmatprep.subr.mxu0 0.0
    %1589 = vmatpush1.msra.mxu0 0.0
    %1590 = vmatprep.subr.mxu0 0.0
    %1591 = vmatpush1.msra.mxu0 0.0
    %1592 = vmatprep.mubr.f32.mxu0 0.0
    %1593 = vmatmul.mubr.f32.gmra.mrb[0].mxu0 %v1526
    %v1594 = vpop.f32.mrb[0].mxu0
    %v1595 = vadd.f32 0.0, %v1594
    %v1596 = vpop.f32.mrb[0].mxu0
    %1597 = vdwg.mxu0
    %v1598 = vrot.slane %v1324, 4
    %1599 = vrot.lane.b32.xlu0 %v1598, 96
    %v1600 = vpop.permute.xlu0 %1599
    %v1601 = vsel %vm360, %v1600, 0
    %1603 = vmatprep.subr.mxu0 0.0
    %1604 = vmatpush1.msra.mxu0 %v1491
    %1605 = vmatprep.subr.mxu0 0.0
    %1606 = vmatpush1.msra.mxu0 %v1492
    %1607 = vmatprep.subr.mxu0 0.0
    %1608 = vmatpush1.msra.mxu0 %v1493
    %1609 = vmatprep.subr.mxu0 0.0
    %1610 = vmatpush1.msra.mxu0 %v1494
    %1611 = vmatprep.subr.mxu0 0.0
    %1612 = vmatpush1.msra.mxu0 0.0
    %1613 = vmatprep.subr.mxu0 0.0
    %1614 = vmatpush1.msra.mxu0 0.0
    %1615 = vmatprep.subr.mxu0 0.0
    %1616 = vmatpush1.msra.mxu0 0.0
    %1617 = vmatprep.subr.mxu0 0.0
    %1618 = vmatpush1.msra.mxu0 0.0
    %1619 = vmatprep.subr.mxu0 0.0
    %1620 = vmatpush1.msra.mxu0 0.0
    %1621 = vmatprep.subr.mxu0 0.0
    %1622 = vmatpush1.msra.mxu0 0.0
    %1623 = vmatprep.subr.mxu0 0.0
    %1624 = vmatpush1.msra.mxu0 0.0
    %1625 = vmatprep.subr.mxu0 0.0
    %1626 = vmatpush1.msra.mxu0 0.0
    %1627 = vmatprep.subr.mxu0 0.0
    %1628 = vmatpush1.msra.mxu0 0.0
    %1629 = vmatprep.subr.mxu0 0.0
    %1630 = vmatpush1.msra.mxu0 0.0
    %1631 = vmatprep.subr.mxu0 0.0
    %1632 = vmatpush1.msra.mxu0 0.0
    %1633 = vmatprep.subr.mxu0 0.0
    %1634 = vmatpush1.msra.mxu0 0.0
    %1635 = vmatprep.subr.mxu0 0.0
    %1636 = vmatpush1.msra.mxu0 0.0
    %1637 = vmatprep.subr.mxu0 0.0
    %1638 = vmatpush1.msra.mxu0 0.0
    %1639 = vmatprep.subr.mxu0 0.0
    %1640 = vmatpush1.msra.mxu0 0.0
    %1641 = vmatprep.subr.mxu0 0.0
    %1642 = vmatpush1.msra.mxu0 0.0
    %1643 = vmatprep.subr.mxu0 0.0
    %1644 = vmatpush1.msra.mxu0 0.0
    %1645 = vmatprep.subr.mxu0 0.0
    %1646 = vmatpush1.msra.mxu0 0.0
    %1647 = vmatprep.subr.mxu0 0.0
    %1648 = vmatpush1.msra.mxu0 0.0
    %1649 = vmatprep.subr.mxu0 0.0
    %1650 = vmatpush1.msra.mxu0 0.0
    %1651 = vmatprep.subr.mxu0 0.0
    %1652 = vmatpush1.msra.mxu0 0.0
    %1653 = vmatprep.subr.mxu0 0.0
    %1654 = vmatpush1.msra.mxu0 0.0
    %1655 = vmatprep.subr.mxu0 0.0
    %1656 = vmatpush1.msra.mxu0 0.0
    %1657 = vmatprep.subr.mxu0 0.0
    %1658 = vmatpush1.msra.mxu0 0.0
    %1659 = vmatprep.subr.mxu0 0.0
    %1660 = vmatpush1.msra.mxu0 0.0
    %1661 = vmatprep.subr.mxu0 0.0
    %1662 = vmatpush1.msra.mxu0 0.0
    %1663 = vmatprep.subr.mxu0 0.0
    %1664 = vmatpush1.msra.mxu0 0.0
    %1665 = vmatprep.subr.mxu0 0.0
    %1666 = vmatpush1.msra.mxu0 0.0
    %1667 = vmatprep.mubr.f32.mxu0 0.0
    %1668 = vmatmul.mubr.f32.gmra.mrb[0].mxu0 %v1601
    %v1669 = vpop.f32.mrb[0].mxu0
    %v1670 = vadd.f32 0.0, %v1669
    %v1671 = vpop.f32.mrb[0].mxu0
    %1672 = vdwg.mxu0
    %v1673 = vadd.f32 %v1670, %v1437
    %v1674 = vadd.f32 %v1670, %v1459
    %v1675 = vadd.f32 %v1670, %v1442
    %v1676 = vadd.f32 %v1670, %v1460
    %v1677 = vadd.f32 %v1670, %v1447
    %v1678 = vadd.f32 %v1670, %v1461
    %v1679 = vadd.f32 %v1670, %v1452
    %v1680 = vadd.f32 %v1670, %v1462
    %v1681 = vmax.f32 %v1673, 0.0
    %v1682 = vmax.f32 %v1674, 0.0
    %v1683 = vmax.f32 %v1675, 0.0
    %v1684 = vmax.f32 %v1676, 0.0
    %v1685 = vmax.f32 %v1677, 0.0
    %v1686 = vmax.f32 %v1678, 0.0
    %v1687 = vmax.f32 %v1679, 0.0
    %v1688 = vmax.f32 %v1680, 0.0
    %v1697 = vcombine.low %v1681, %v1682
    %v1698 = vcombine.low %v1683, %v1684
    %v1699 = vcombine.low %v1685, %v1686
    %v1700 = vcombine.low %v1687, %v1688
    %v1701 = vsel %vm360, %v1697, 0
    %v1703 = vsel %vm360, %v1698, 0
    %v1705 = vsel %vm360, %v1699, 0
    %v1707 = vsel %vm360, %v1700, 0
    %1709 = vmatprep.subr.mxu0 0.0
    %1710 = vmatpush1.msra.mxu0 %v1474
    %1711 = vmatprep.subr.mxu0 0.0
    %1712 = vmatpush1.msra.mxu0 %v1479
    %1713 = vmatprep.subr.mxu0 0.0
    %1714 = vmatpush1.msra.mxu0 %v1484
    %1715 = vmatprep.subr.mxu0 0.0
    %1716 = vmatpush1.msra.mxu0 %v1489
    %1717 = vmatprep.subr.mxu0 0.0
    %1718 = vmatpush1.msra.mxu0 0.0
    %1719 = vmatprep.subr.mxu0 0.0
    %1720 = vmatpush1.msra.mxu0 0.0
    %1721 = vmatprep.subr.mxu0 0.0
    %1722 = vmatpush1.msra.mxu0 0.0
    %1723 = vmatprep.subr.mxu0 0.0
    %1724 = vmatpush1.msra.mxu0 0.0
    %1725 = vmatprep.subr.mxu0 0.0
    %1726 = vmatpush1.msra.mxu0 0.0
    %1727 = vmatprep.subr.mxu0 0.0
    %1728 = vmatpush1.msra.mxu0 0.0
    %1729 = vmatprep.subr.mxu0 0.0
    %1730 = vmatpush1.msra.mxu0 0.0
    %1731 = vmatprep.subr.mxu0 0.0
    %1732 = vmatpush1.msra.mxu0 0.0
    %1733 = vmatprep.subr.mxu0 0.0
    %1734 = vmatpush1.msra.mxu0 0.0
    %1735 = vmatprep.subr.mxu0 0.0
    %1736 = vmatpush1.msra.mxu0 0.0
    %1737 = vmatprep.subr.mxu0 0.0
    %1738 = vmatpush1.msra.mxu0 0.0
    %1739 = vmatprep.subr.mxu0 0.0
    %1740 = vmatpush1.msra.mxu0 0.0
    %1741 = vmatprep.subr.mxu0 0.0
    %1742 = vmatpush1.msra.mxu0 0.0
    %1743 = vmatprep.subr.mxu0 0.0
    %1744 = vmatpush1.msra.mxu0 0.0
    %1745 = vmatprep.subr.mxu0 0.0
    %1746 = vmatpush1.msra.mxu0 0.0
    %1747 = vmatprep.subr.mxu0 0.0
    %1748 = vmatpush1.msra.mxu0 0.0
    %1749 = vmatprep.subr.mxu0 0.0
    %1750 = vmatpush1.msra.mxu0 0.0
    %1751 = vmatprep.subr.mxu0 0.0
    %1752 = vmatpush1.msra.mxu0 0.0
    %1753 = vmatprep.subr.mxu0 0.0
    %1754 = vmatpush1.msra.mxu0 0.0
    %1755 = vmatprep.subr.mxu0 0.0
    %1756 = vmatpush1.msra.mxu0 0.0
    %1757 = vmatprep.subr.mxu0 0.0
    %1758 = vmatpush1.msra.mxu0 0.0
    %1759 = vmatprep.subr.mxu0 0.0
    %1760 = vmatpush1.msra.mxu0 0.0
    %1761 = vmatprep.subr.mxu0 0.0
    %1762 = vmatpush1.msra.mxu0 0.0
    %1763 = vmatprep.subr.mxu0 0.0
    %1764 = vmatpush1.msra.mxu0 0.0
    %1765 = vmatprep.subr.mxu0 0.0
    %1766 = vmatpush1.msra.mxu0 0.0
    %1767 = vmatprep.subr.mxu0 0.0
    %1768 = vmatpush1.msra.mxu0 0.0
    %1769 = vmatprep.subr.mxu0 0.0
    %1770 = vmatpush1.msra.mxu0 0.0
    %1771 = vmatprep.subr.mxu0 0.0
    %1772 = vmatpush1.msra.mxu0 0.0
    %1773 = vmatprep.mubr.f32.mxu0 0.0
    %1774 = vmatmul.mubr.f32.gmra.mrb[0].mxu0 %v1701
    %v1775 = vpop.f32.mrb[0].mxu0
    %v1776 = vadd.f32 0.0, %v1775
    %v1777 = vpop.f32.mrb[0].mxu0
    %1778 = vmatprep.mubr.f32.mxu0 0.0
    %1779 = vmatmul.mubr.f32.gmra.mrb[0].mxu0 %v1703
    %v1780 = vpop.f32.mrb[0].mxu0
    %v1781 = vadd.f32 0.0, %v1780
    %v1782 = vpop.f32.mrb[0].mxu0
    %1783 = vmatprep.mubr.f32.mxu0 0.0
    %1784 = vmatmul.mubr.f32.gmra.mrb[0].mxu0 %v1705
    %v1785 = vpop.f32.mrb[0].mxu0
    %v1786 = vadd.f32 0.0, %v1785
    %v1787 = vpop.f32.mrb[0].mxu0
    %1788 = vmatprep.mubr.f32.mxu0 0.0
    %1789 = vmatmul.mubr.f32.gmra.mrb[0].mxu0 %v1707
    %v1790 = vpop.f32.mrb[0].mxu0
    %v1791 = vadd.f32 0.0, %v1790
    %v1792 = vpop.f32.mrb[0].mxu0
    %1793 = vdwg.mxu0
    %v1798 = vcombine.high %v1776, %v1776
    %v1799 = vcombine.high %v1781, %v1781
    %v1800 = vcombine.high %v1786, %v1786
    %v1801 = vcombine.high %v1791, %v1791
    %vm1806 = vcmask 3072
    %v1807 = vsel %vm1806, %v1776, -inf
    %v1808 = vsel %vm1806, %v1798, -inf
    %v1809 = vsel %vm1806, %v1781, -inf
    %v1810 = vsel %vm1806, %v1799, -inf
    %v1811 = vsel %vm1806, %v1786, -inf
    %v1812 = vmax.f32 %v1807, %v1811
    %v1813 = vsel %vm1806, %v1800, -inf
    %v1814 = vmax.f32 %v1808, %v1813
    %v1815 = vsel %vm1806, %v1791, -inf
    %v1816 = vmax.f32 %v1809, %v1815
    %v1817 = vsel %vm1806, %v1801, -inf
    %v1818 = vmax.f32 %v1810, %v1817
    %v1819 = vmax.f32 %v1812, %v1814
    %v1820 = vmax.f32 %v1816, %v1818
    %v1821 = vmax.f32 %v1819, %v1820
    %v1822 = vsub.f32 %v1776, %v1821
    %v1823 = vsub.f32 %v1798, %v1821
    %v1824 = vsub.f32 %v1781, %v1821
    %v1825 = vsub.f32 %v1799, %v1821
    %v1826 = vsub.f32 %v1786, %v1821
    %v1827 = vsub.f32 %v1800, %v1821
    %v1828 = vsub.f32 %v1791, %v1821
    %v1829 = vsub.f32 %v1801, %v1821
    %v1830 = vmul.f32 %v1822, 1.442695
    %v1831 = vpow.pop %v1830
    %v1832 = vmul.f32 %v1823, 1.442695
    %v1833 = vpow.pop %v1832
    %v1834 = vmul.f32 %v1824, 1.442695
    %v1835 = vpow.pop %v1834
    %v1836 = vmul.f32 %v1825, 1.442695
    %v1837 = vpow.pop %v1836
    %v1838 = vmul.f32 %v1826, 1.442695
    %v1839 = vpow.pop %v1838
    %v1840 = vmul.f32 %v1827, 1.442695
    %v1841 = vpow.pop %v1840
    %v1842 = vmul.f32 %v1828, 1.442695
    %v1843 = vpow.pop %v1842
    %v1844 = vmul.f32 %v1829, 1.442695
    %v1845 = vpow.pop %v1844
    %v1846 = vsel %vm1806, %v1831, 0.0
    %v1847 = vsel %vm1806, %v1833, 0.0
    %v1848 = vadd.f32 %v1846, %v1847
    %v1849 = vsel %vm1806, %v1835, 0.0
    %v1850 = vadd.f32 %v1848, %v1849
    %v1851 = vsel %vm1806, %v1837, 0.0
    %v1852 = vadd.f32 %v1850, %v1851
    %v1853 = vsel %vm1806, %v1839, 0.0
    %v1854 = vadd.f32 %v1852, %v1853
    %v1855 = vsel %vm1806, %v1841, 0.0
    %v1856 = vadd.f32 %v1854, %v1855
    %v1857 = vsel %vm1806, %v1843, 0.0
    %v1858 = vadd.f32 %v1856, %v1857
    %v1859 = vsel %vm1806, %v1845, 0.0
    %v1860 = vadd.f32 %v1858, %v1859
    %v1861 = vrcp.pop %v1860
    %v1862 = vmul.f32 %v1831, %v1861
    %v1863 = vmul.f32 %v1833, %v1861
    %v1864 = vmul.f32 %v1835, %v1861
    %v1865 = vmul.f32 %v1837, %v1861
    %v1866 = vmul.f32 %v1839, %v1861
    %v1867 = vmul.f32 %v1841, %v1861
    %v1868 = vmul.f32 %v1843, %v1861
    %v1869 = vmul.f32 %v1845, %v1861
    %1871 = vset.pattern.permute.xlu0 0
    %1872 = vperm.xlu0 %1871, %v1862
    %v1873 = vpop.permute.xlu0 %1872
    %v1876 = vunpack.c.l.s4 839922192
    %v1877 = vunpack.c.0.s8 %v1876
    %v1878 = vlaneseq
    %v1879 = vshrl.u32 %v1878, 7
    %v1880 = vsub.s32 %v1877, %v1879
    %v1881 = vrot.slane %v1873, %v1880
    %1883 = vset.pattern.permute.xlu0 0
    %1884 = vperm.xlu0 %1883, %v1863
    %v1885 = vpop.permute.xlu0 %1884
    %v1888 = vunpack.c.l.s4 839922192
    %v1889 = vunpack.c.0.s8 %v1888
    %v1890 = vlaneseq
    %v1891 = vshrl.u32 %v1890, 7
    %v1892 = vsub.s32 %v1889, %v1891
    %v1893 = vrot.slane %v1885, %v1892
    %1895 = vset.pattern.permute.xlu0 0
    %1896 = vperm.xlu0 %1895, %v1864
    %v1897 = vpop.permute.xlu0 %1896
    %v1900 = vunpack.c.l.s4 839922192
    %v1901 = vunpack.c.0.s8 %v1900
    %v1902 = vlaneseq
    %v1903 = vshrl.u32 %v1902, 7
    %v1904 = vsub.s32 %v1901, %v1903
    %v1905 = vrot.slane %v1897, %v1904
    %1907 = vset.pattern.permute.xlu0 0
    %1908 = vperm.xlu0 %1907, %v1865
    %v1909 = vpop.permute.xlu0 %1908
    %v1912 = vunpack.c.l.s4 839922192
    %v1913 = vunpack.c.0.s8 %v1912
    %v1914 = vlaneseq
    %v1915 = vshrl.u32 %v1914, 7
    %v1916 = vsub.s32 %v1913, %v1915
    %v1917 = vrot.slane %v1909, %v1916
    %1919 = vset.pattern.permute.xlu0 0
    %1920 = vperm.xlu0 %1919, %v1866
    %v1921 = vpop.permute.xlu0 %1920
    %v1924 = vunpack.c.l.s4 839922192
    %v1925 = vunpack.c.0.s8 %v1924
    %v1926 = vlaneseq
    %v1927 = vshrl.u32 %v1926, 7
    %v1928 = vsub.s32 %v1925, %v1927
    %v1929 = vrot.slane %v1921, %v1928
    %1931 = vset.pattern.permute.xlu0 0
    %1932 = vperm.xlu0 %1931, %v1867
    %v1933 = vpop.permute.xlu0 %1932
    %v1936 = vunpack.c.l.s4 839922192
    %v1937 = vunpack.c.0.s8 %v1936
    %v1938 = vlaneseq
    %v1939 = vshrl.u32 %v1938, 7
    %v1940 = vsub.s32 %v1937, %v1939
    %v1941 = vrot.slane %v1933, %v1940
    %1943 = vset.pattern.permute.xlu0 0
    %1944 = vperm.xlu0 %1943, %v1868
    %v1945 = vpop.permute.xlu0 %1944
    %v1948 = vunpack.c.l.s4 839922192
    %v1949 = vunpack.c.0.s8 %v1948
    %v1950 = vlaneseq
    %v1951 = vshrl.u32 %v1950, 7
    %v1952 = vsub.s32 %v1949, %v1951
    %v1953 = vrot.slane %v1945, %v1952
    %1955 = vset.pattern.permute.xlu0 0
    %1956 = vperm.xlu0 %1955, %v1869
    %v1957 = vpop.permute.xlu0 %1956
    %v1960 = vunpack.c.l.s4 839922192
    %v1961 = vunpack.c.0.s8 %v1960
    %v1962 = vlaneseq
    %v1963 = vshrl.u32 %v1962, 7
    %v1964 = vsub.s32 %v1961, %v1963
    %v1965 = vrot.slane %v1957, %v1964
    %v1966 = vmul.f32 %v1881, %v1331
    %v1967 = vmul.f32 %v1893, %v1332
    %v1968 = vmul.f32 %v1905, %v1333
    %v1969 = vmul.f32 %v1917, %v1334
    %v1970 = vmul.f32 %v1929, %v1335
    %v1971 = vmul.f32 %v1941, %v1336
    %v1972 = vmul.f32 %v1953, %v1337
    %v1973 = vmul.f32 %v1965, %v1338
    %v1974 = vsel %vm572, %v1966, 0.0
    %v1975 = vsel %vm572, %v1967, 0.0
    %v1976 = vadd.f32 %v1974, %v1975
    %v1977 = vsel %vm572, %v1968, 0.0
    %v1978 = vadd.f32 %v1976, %v1977
    %v1979 = vsel %vm572, %v1969, 0.0
    %v1980 = vadd.f32 %v1978, %v1979
    %v1981 = vsel %vm572, %v1970, 0.0
    %v1982 = vadd.f32 %v1980, %v1981
    %v1983 = vsel %vm572, %v1971, 0.0
    %v1984 = vadd.f32 %v1982, %v1983
    %v1985 = vsel %vm572, %v1972, 0.0
    %v1986 = vadd.f32 %v1984, %v1985
    %v1987 = vsel %vm572, %v1973, 0.0
    %v1988 = vadd.f32 %v1986, %v1987
    %v1990 = vsel %vm360, %v1988, 0
    %1992 = vmatprep.subr.mxu0 0.0
    %1993 = vmatpush1.msra.mxu0 %v1501
    %1994 = vmatprep.subr.mxu0 0.0
    %1995 = vmatpush1.msra.mxu0 %v1502
    %1996 = vmatprep.subr.mxu0 0.0
    %1997 = vmatpush1.msra.mxu0 %v1503
    %1998 = vmatprep.subr.mxu0 0.0
    %1999 = vmatpush1.msra.mxu0 %v1504
    %2000 = vmatprep.subr.mxu0 0.0
    %2001 = vmatpush1.msra.mxu0 0.0
    %2002 = vmatprep.subr.mxu0 0.0
    %2003 = vmatpush1.msra.mxu0 0.0
    %2004 = vmatprep.subr.mxu0 0.0
    %2005 = vmatpush1.msra.mxu0 0.0
    %2006 = vmatprep.subr.mxu0 0.0
    %2007 = vmatpush1.msra.mxu0 0.0
    %2008 = vmatprep.subr.mxu0 0.0
    %2009 = vmatpush1.msra.mxu0 0.0
    %2010 = vmatprep.subr.mxu0 0.0
    %2011 = vmatpush1.msra.mxu0 0.0
    %2012 = vmatprep.subr.mxu0 0.0
    %2013 = vmatpush1.msra.mxu0 0.0
    %2014 = vmatprep.subr.mxu0 0.0
    %2015 = vmatpush1.msra.mxu0 0.0
    %2016 = vmatprep.subr.mxu0 0.0
    %2017 = vmatpush1.msra.mxu0 0.0
    %2018 = vmatprep.subr.mxu0 0.0
    %2019 = vmatpush1.msra.mxu0 0.0
    %2020 = vmatprep.subr.mxu0 0.0
    %2021 = vmatpush1.msra.mxu0 0.0
    %2022 = vmatprep.subr.mxu0 0.0
    %2023 = vmatpush1.msra.mxu0 0.0
    %2024 = vmatprep.subr.mxu0 0.0
    %2025 = vmatpush1.msra.mxu0 0.0
    %2026 = vmatprep.subr.mxu0 0.0
    %2027 = vmatpush1.msra.mxu0 0.0
    %2028 = vmatprep.subr.mxu0 0.0
    %2029 = vmatpush1.msra.mxu0 0.0
    %2030 = vmatprep.subr.mxu0 0.0
    %2031 = vmatpush1.msra.mxu0 0.0
    %2032 = vmatprep.subr.mxu0 0.0
    %2033 = vmatpush1.msra.mxu0 0.0
    %2034 = vmatprep.subr.mxu0 0.0
    %2035 = vmatpush1.msra.mxu0 0.0
    %2036 = vmatprep.subr.mxu0 0.0
    %2037 = vmatpush1.msra.mxu0 0.0
    %2038 = vmatprep.subr.mxu0 0.0
    %2039 = vmatpush1.msra.mxu0 0.0
    %2040 = vmatprep.subr.mxu0 0.0
    %2041 = vmatpush1.msra.mxu0 0.0
    %2042 = vmatprep.subr.mxu0 0.0
    %2043 = vmatpush1.msra.mxu0 0.0
    %2044 = vmatprep.subr.mxu0 0.0
    %2045 = vmatpush1.msra.mxu0 0.0
    %2046 = vmatprep.subr.mxu0 0.0
    %2047 = vmatpush1.msra.mxu0 0.0
    %2048 = vmatprep.subr.mxu0 0.0
    %2049 = vmatpush1.msra.mxu0 0.0
    %2050 = vmatprep.subr.mxu0 0.0
    %2051 = vmatpush1.msra.mxu0 0.0
    %2052 = vmatprep.subr.mxu0 0.0
    %2053 = vmatpush1.msra.mxu0 0.0
    %2054 = vmatprep.subr.mxu0 0.0
    %2055 = vmatpush1.msra.mxu0 0.0
    %2056 = vmatprep.mubr.f32.mxu0 0.0
    %2057 = vmatmul.mubr.f32.gmra.mrb[0].mxu0 %v1990
    %v2058 = vpop.f32.mrb[0].mxu0
    %v2059 = vadd.f32 0.0, %v2058
    %v2060 = vpop.f32.mrb[0].mxu0
    %2061 = vdwg.mxu0
    %v2063 = vsel %vm360, %v1595, 0
    %2065 = vmatprep.subr.mxu0 0.0
    %2066 = vmatpush1.msra.mxu0 %v1497
    %2067 = vmatprep.subr.mxu0 0.0
    %2068 = vmatpush1.msra.mxu0 %v1498
    %2069 = vmatprep.subr.mxu0 0.0
    %2070 = vmatpush1.msra.mxu0 %v1499
    %2071 = vmatprep.subr.mxu0 0.0
    %2072 = vmatpush1.msra.mxu0 %v1500
    %2073 = vmatprep.subr.mxu0 0.0
    %2074 = vmatpush1.msra.mxu0 0.0
    %2075 = vmatprep.subr.mxu0 0.0
    %2076 = vmatpush1.msra.mxu0 0.0
    %2077 = vmatprep.subr.mxu0 0.0
    %2078 = vmatpush1.msra.mxu0 0.0
    %2079 = vmatprep.subr.mxu0 0.0
    %2080 = vmatpush1.msra.mxu0 0.0
    %2081 = vmatprep.subr.mxu0 0.0
    %2082 = vmatpush1.msra.mxu0 0.0
    %2083 = vmatprep.subr.mxu0 0.0
    %2084 = vmatpush1.msra.mxu0 0.0
    %2085 = vmatprep.subr.mxu0 0.0
    %2086 = vmatpush1.msra.mxu0 0.0
    %2087 = vmatprep.subr.mxu0 0.0
    %2088 = vmatpush1.msra.mxu0 0.0
    %2089 = vmatprep.subr.mxu0 0.0
    %2090 = vmatpush1.msra.mxu0 0.0
    %2091 = vmatprep.subr.mxu0 0.0
    %2092 = vmatpush1.msra.mxu0 0.0
    %2093 = vmatprep.subr.mxu0 0.0
    %2094 = vmatpush1.msra.mxu0 0.0
    %2095 = vmatprep.subr.mxu0 0.0
    %2096 = vmatpush1.msra.mxu0 0.0
    %2097 = vmatprep.subr.mxu0 0.0
    %2098 = vmatpush1.msra.mxu0 0.0
    %2099 = vmatprep.subr.mxu0 0.0
    %2100 = vmatpush1.msra.mxu0 0.0
    %2101 = vmatprep.subr.mxu0 0.0
    %2102 = vmatpush1.msra.mxu0 0.0
    %2103 = vmatprep.subr.mxu0 0.0
    %2104 = vmatpush1.msra.mxu0 0.0
    %2105 = vmatprep.subr.mxu0 0.0
    %2106 = vmatpush1.msra.mxu0 0.0
    %2107 = vmatprep.subr.mxu0 0.0
    %2108 = vmatpush1.msra.mxu0 0.0
    %2109 = vmatprep.subr.mxu0 0.0
    %2110 = vmatpush1.msra.mxu0 0.0
    %2111 = vmatprep.subr.mxu0 0.0
    %2112 = vmatpush1.msra.mxu0 0.0
    %2113 = vmatprep.subr.mxu0 0.0
    %2114 = vmatpush1.msra.mxu0 0.0
    %2115 = vmatprep.subr.mxu0 0.0
    %2116 = vmatpush1.msra.mxu0 0.0
    %2117 = vmatprep.subr.mxu0 0.0
    %2118 = vmatpush1.msra.mxu0 0.0
    %2119 = vmatprep.subr.mxu0 0.0
    %2120 = vmatpush1.msra.mxu0 0.0
    %2121 = vmatprep.subr.mxu0 0.0
    %2122 = vmatpush1.msra.mxu0 0.0
    %2123 = vmatprep.subr.mxu0 0.0
    %2124 = vmatpush1.msra.mxu0 0.0
    %2125 = vmatprep.subr.mxu0 0.0
    %2126 = vmatpush1.msra.mxu0 0.0
    %2127 = vmatprep.subr.mxu0 0.0
    %2128 = vmatpush1.msra.mxu0 0.0
    %2129 = vmatprep.mubr.f32.mxu0 0.0
    %2130 = vmatmul.mubr.f32.gmra.mrb[0].mxu0 %v2063
    %v2131 = vpop.f32.mrb[0].mxu0
    %v2132 = vadd.f32 %v2059, %v2131
    %v2133 = vpop.f32.mrb[0].mxu0
    %2134 = vdwg.mxu0
    %v2136 = vlaneseq
    %v2137 = vshrl.u32 %v2136, 7
    %v2138 = vsub.s32 0, %v2137
    %v2139 = vrot.slane %v1509, %v2138
    %v2141 = vadd.f32 %v2132, %v2139
    %v2143 = vlaneseq
    %v2144 = vshrl.u32 %v2143, 7
    %v2145 = vsub.s32 0, %v2144
    %v2146 = vrot.slane %v1510, %v2145
    %2148 = vmatprep.subr.mxu0 0.0
    %2149 = vmatpush1.msra.mxu0 %v1505
    %2150 = vmatprep.subr.mxu0 0.0
    %2151 = vmatpush1.msra.mxu0 %v1506
    %2152 = vmatprep.subr.mxu0 0.0
    %2153 = vmatpush1.msra.mxu0 %v1507
    %2154 = vmatprep.subr.mxu0 0.0
    %2155 = vmatpush1.msra.mxu0 %v1508
    %2156 = vmatprep.subr.mxu0 0.0
    %2157 = vmatpush1.msra.mxu0 0.0
    %2158 = vmatprep.subr.mxu0 0.0
    %2159 = vmatpush1.msra.mxu0 0.0
    %2160 = vmatprep.subr.mxu0 0.0
    %2161 = vmatpush1.msra.mxu0 0.0
    %2162 = vmatprep.subr.mxu0 0.0
    %2163 = vmatpush1.msra.mxu0 0.0
    %2164 = vmatprep.subr.mxu0 0.0
    %2165 = vmatpush1.msra.mxu0 0.0
    %2166 = vmatprep.subr.mxu0 0.0
    %2167 = vmatpush1.msra.mxu0 0.0
    %2168 = vmatprep.subr.mxu0 0.0
    %2169 = vmatpush1.msra.mxu0 0.0
    %2170 = vmatprep.subr.mxu0 0.0
    %2171 = vmatpush1.msra.mxu0 0.0
    %2172 = vmatprep.subr.mxu0 0.0
    %2173 = vmatpush1.msra.mxu0 0.0
    %2174 = vmatprep.subr.mxu0 0.0
    %2175 = vmatpush1.msra.mxu0 0.0
    %2176 = vmatprep.subr.mxu0 0.0
    %2177 = vmatpush1.msra.mxu0 0.0
    %2178 = vmatprep.subr.mxu0 0.0
    %2179 = vmatpush1.msra.mxu0 0.0
    %2180 = vmatprep.subr.mxu0 0.0
    %2181 = vmatpush1.msra.mxu0 0.0
    %2182 = vmatprep.subr.mxu0 0.0
    %2183 = vmatpush1.msra.mxu0 0.0
    %2184 = vmatprep.subr.mxu0 0.0
    %2185 = vmatpush1.msra.mxu0 0.0
    %2186 = vmatprep.subr.mxu0 0.0
    %2187 = vmatpush1.msra.mxu0 0.0
    %2188 = vmatprep.subr.mxu0 0.0
    %2189 = vmatpush1.msra.mxu0 0.0
    %2190 = vmatprep.subr.mxu0 0.0
    %2191 = vmatpush1.msra.mxu0 0.0
    %2192 = vmatprep.subr.mxu0 0.0
    %2193 = vmatpush1.msra.mxu0 0.0
    %2194 = vmatprep.subr.mxu0 0.0
    %2195 = vmatpush1.msra.mxu0 0.0
    %2196 = vmatprep.subr.mxu0 0.0
    %2197 = vmatpush1.msra.mxu0 0.0
    %2198 = vmatprep.subr.mxu0 0.0
    %2199 = vmatpush1.msra.mxu0 0.0
    %2200 = vmatprep.subr.mxu0 0.0
    %2201 = vmatpush1.msra.mxu0 0.0
    %2202 = vmatprep.subr.mxu0 0.0
    %2203 = vmatpush1.msra.mxu0 0.0
    %2204 = vmatprep.subr.mxu0 0.0
    %2205 = vmatpush1.msra.mxu0 0.0
    %2206 = vmatprep.subr.mxu0 0.0
    %2207 = vmatpush1.msra.mxu0 0.0
    %2208 = vmatprep.subr.mxu0 0.0
    %2209 = vmatpush1.msra.mxu0 0.0
    %2210 = vmatprep.subr.mxu0 0.0
    %2211 = vmatpush1.msra.mxu0 0.0
    %2212 = vmatprep.mubr.f32.mxu0 0.0
    %2213 = vmatmul.mubr.f32.gmra.mrb[0].mxu0 %v1601
    %v2214 = vpop.f32.mrb[0].mxu0
    %v2215 = vadd.f32 %v2146, %v2214
    %v2216 = vpop.f32.mrb[0].mxu0
    %2217 = vdwg.mxu0
    %v2218 = vadd.f32 %v2141, %v2215
    %v2219 = vxor.u32 %v2218, 2147483648
    %v2220 = vmul.f32 %v2219, 1.442695
    %v2221 = vpow.pop %v2220
    %v2222 = vadd.f32 %v2221, 1.0
    %v2223 = vrcp.pop %v2222
    %v2224 = vmul.f32 1.0, %v2223
    %2226 = vrot.lane.b32.xlu0 %v2215, 64
    %v2227 = vpop.permute.xlu0 %2226
    %v2229 = vmul.f32 %v2224, %v2227
    %2231 = vrot.lane.b32.xlu0 %v2229, 64
    %v2232 = vpop.permute.xlu0 %2231
    %v2234 = vadd.f32 %v2141, %v2232
    %v2235 = vtanh.pop %v2234
    %v2236 = vsub.f32 1.0, %v2224
    %2238 = vrot.lane.b32.xlu0 %v2235, 96
    %v2239 = vpop.permute.xlu0 %2238
    %v2241 = vmul.f32 %v2236, %v2239
    %v2243 = vmul.f32 %v2224, %v1598
    %v2244 = vadd.f32 %v2241, %v2243
    %2245 = vmatprep.subr.mxu0 0.0
    %2246 = vmatpush1.msra.mxu0 %v1515
    %2247 = vmatprep.subr.mxu0 0.0
    %2248 = vmatpush1.msra.mxu0 %v1516
    %2249 = vmatprep.subr.mxu0 0.0
    %2250 = vmatpush1.msra.mxu0 %v1517
    %2251 = vmatprep.subr.mxu0 0.0
    %2252 = vmatpush1.msra.mxu0 %v1518
    %2253 = vmatprep.subr.mxu0 0.0
    %2254 = vmatpush1.msra.mxu0 0.0
    %2255 = vmatprep.subr.mxu0 0.0
    %2256 = vmatpush1.msra.mxu0 0.0
    %2257 = vmatprep.subr.mxu0 0.0
    %2258 = vmatpush1.msra.mxu0 0.0
    %2259 = vmatprep.subr.mxu0 0.0
    %2260 = vmatpush1.msra.mxu0 0.0
    %2261 = vmatprep.subr.mxu0 0.0
    %2262 = vmatpush1.msra.mxu0 0.0
    %2263 = vmatprep.subr.mxu0 0.0
    %2264 = vmatpush1.msra.mxu0 0.0
    %2265 = vmatprep.subr.mxu0 0.0
    %2266 = vmatpush1.msra.mxu0 0.0
    %2267 = vmatprep.subr.mxu0 0.0
    %2268 = vmatpush1.msra.mxu0 0.0
    %2269 = vmatprep.subr.mxu0 0.0
    %2270 = vmatpush1.msra.mxu0 0.0
    %2271 = vmatprep.subr.mxu0 0.0
    %2272 = vmatpush1.msra.mxu0 0.0
    %2273 = vmatprep.subr.mxu0 0.0
    %2274 = vmatpush1.msra.mxu0 0.0
    %2275 = vmatprep.subr.mxu0 0.0
    %2276 = vmatpush1.msra.mxu0 0.0
    %2277 = vmatprep.subr.mxu0 0.0
    %2278 = vmatpush1.msra.mxu0 0.0
    %2279 = vmatprep.subr.mxu0 0.0
    %2280 = vmatpush1.msra.mxu0 0.0
    %2281 = vmatprep.subr.mxu0 0.0
    %2282 = vmatpush1.msra.mxu0 0.0
    %2283 = vmatprep.subr.mxu0 0.0
    %2284 = vmatpush1.msra.mxu0 0.0
    %2285 = vmatprep.subr.mxu0 0.0
    %2286 = vmatpush1.msra.mxu0 0.0
    %2287 = vmatprep.subr.mxu0 0.0
    %2288 = vmatpush1.msra.mxu0 0.0
    %2289 = vmatprep.subr.mxu0 0.0
    %2290 = vmatpush1.msra.mxu0 0.0
    %2291 = vmatprep.subr.mxu0 0.0
    %2292 = vmatpush1.msra.mxu0 0.0
    %2293 = vmatprep.subr.mxu0 0.0
    %2294 = vmatpush1.msra.mxu0 0.0
    %2295 = vmatprep.subr.mxu0 0.0
    %2296 = vmatpush1.msra.mxu0 0.0
    %2297 = vmatprep.subr.mxu0 0.0
    %2298 = vmatpush1.msra.mxu0 0.0
    %2299 = vmatprep.subr.mxu0 0.0
    %2300 = vmatpush1.msra.mxu0 0.0
    %2301 = vmatprep.subr.mxu0 0.0
    %2302 = vmatpush1.msra.mxu0 0.0
    %2303 = vmatprep.subr.mxu0 0.0
    %2304 = vmatpush1.msra.mxu0 0.0
    %2305 = vmatprep.subr.mxu0 0.0
    %2306 = vmatpush1.msra.mxu0 0.0
    %2307 = vmatprep.subr.mxu0 0.0
    %2308 = vmatpush1.msra.mxu0 0.0
    %2309 = vmatprep.mubr.f32.mxu0 0.0
    %2310 = vmatmul.mubr.f32.gmra.mrb[0].mxu0 %v1990
    %v2311 = vpop.f32.mrb[0].mxu0
    %v2312 = vadd.f32 0.0, %v2311
    %v2313 = vpop.f32.mrb[0].mxu0
    %2314 = vdwg.mxu0
    %2316 = vrot.lane.b32.xlu0 %v2244, 96
    %v2317 = vpop.permute.xlu0 %2316
    %v2318 = vsel %vm360, %v2317, 0
    %2320 = vmatprep.subr.mxu0 0.0
    %2321 = vmatpush1.msra.mxu0 %v1511
    %2322 = vmatprep.subr.mxu0 0.0
    %2323 = vmatpush1.msra.mxu0 %v1512
    %2324 = vmatprep.subr.mxu0 0.0
    %2325 = vmatpush1.msra.mxu0 %v1513
    %2326 = vmatprep.subr.mxu0 0.0
    %2327 = vmatpush1.msra.mxu0 %v1514
    %2328 = vmatprep.subr.mxu0 0.0
    %2329 = vmatpush1.msra.mxu0 0.0
    %2330 = vmatprep.subr.mxu0 0.0
    %2331 = vmatpush1.msra.mxu0 0.0
    %2332 = vmatprep.subr.mxu0 0.0
    %2333 = vmatpush1.msra.mxu0 0.0
    %2334 = vmatprep.subr.mxu0 0.0
    %2335 = vmatpush1.msra.mxu0 0.0
    %2336 = vmatprep.subr.mxu0 0.0
    %2337 = vmatpush1.msra.mxu0 0.0
    %2338 = vmatprep.subr.mxu0 0.0
    %2339 = vmatpush1.msra.mxu0 0.0
    %2340 = vmatprep.subr.mxu0 0.0
    %2341 = vmatpush1.msra.mxu0 0.0
    %2342 = vmatprep.subr.mxu0 0.0
    %2343 = vmatpush1.msra.mxu0 0.0
    %2344 = vmatprep.subr.mxu0 0.0
    %2345 = vmatpush1.msra.mxu0 0.0
    %2346 = vmatprep.subr.mxu0 0.0
    %2347 = vmatpush1.msra.mxu0 0.0
    %2348 = vmatprep.subr.mxu0 0.0
    %2349 = vmatpush1.msra.mxu0 0.0
    %2350 = vmatprep.subr.mxu0 0.0
    %2351 = vmatpush1.msra.mxu0 0.0
    %2352 = vmatprep.subr.mxu0 0.0
    %2353 = vmatpush1.msra.mxu0 0.0
    %2354 = vmatprep.subr.mxu0 0.0
    %2355 = vmatpush1.msra.mxu0 0.0
    %2356 = vmatprep.subr.mxu0 0.0
    %2357 = vmatpush1.msra.mxu0 0.0
    %2358 = vmatprep.subr.mxu0 0.0
    %2359 = vmatpush1.msra.mxu0 0.0
    %2360 = vmatprep.subr.mxu0 0.0
    %2361 = vmatpush1.msra.mxu0 0.0
    %2362 = vmatprep.subr.mxu0 0.0
    %2363 = vmatpush1.msra.mxu0 0.0
    %2364 = vmatprep.subr.mxu0 0.0
    %2365 = vmatpush1.msra.mxu0 0.0
    %2366 = vmatprep.subr.mxu0 0.0
    %2367 = vmatpush1.msra.mxu0 0.0
    %2368 = vmatprep.subr.mxu0 0.0
    %2369 = vmatpush1.msra.mxu0 0.0
    %2370 = vmatprep.subr.mxu0 0.0
    %2371 = vmatpush1.msra.mxu0 0.0
    %2372 = vmatprep.subr.mxu0 0.0
    %2373 = vmatpush1.msra.mxu0 0.0
    %2374 = vmatprep.subr.mxu0 0.0
    %2375 = vmatpush1.msra.mxu0 0.0
    %2376 = vmatprep.subr.mxu0 0.0
    %2377 = vmatpush1.msra.mxu0 0.0
    %2378 = vmatprep.subr.mxu0 0.0
    %2379 = vmatpush1.msra.mxu0 0.0
    %2380 = vmatprep.subr.mxu0 0.0
    %2381 = vmatpush1.msra.mxu0 0.0
    %2382 = vmatprep.subr.mxu0 0.0
    %2383 = vmatpush1.msra.mxu0 0.0
    %2384 = vmatprep.mubr.f32.mxu0 0.0
    %2385 = vmatmul.mubr.f32.gmra.mrb[0].mxu0 %v2318
    %v2386 = vpop.f32.mrb[0].mxu0
    %v2387 = vadd.f32 %v2312, %v2386
    %v2388 = vpop.f32.mrb[0].mxu0
    %2389 = vdwg.mxu0
    %v2391 = vlaneseq
    %v2392 = vshrl.u32 %v2391, 7
    %v2393 = vsub.s32 0, %v2392
    %v2394 = vrot.slane %v1519, %v2393
    %v2396 = vadd.f32 %v2387, %v2394
    %v2397 = vsel %vm1520, %v2396, -inf
    %2398 = vmax.xlane.f32.xlu0 %v2397
    %v2399 = vpop.xlane.xlu0 %2398
    %v2400 = vsub.f32 %v2396, %v2399
    %v2401 = vmul.f32 %v2400, 1.442695
    %v2402 = vpow.pop %v2401
    %v2403 = vsel %vm1520, %v2402, 0.0
    %2404 = vadd.xlane.f32.xlu0 %v2403
    %v2405 = vpop.xlane.xlu0 %2404
    %v2406 = vlog2.pop %v2405
    %v2407 = vmul.f32 %v2406, 0.6931472
    %v2408 = vsub.f32 %v2400, %v2407
    %s2409 = scalar_lea.vmem [#allocation17], 4
    %2410 = vst.msk [vmem:[%s2409] sm:$0xf] %vm1520, %v2408
    %v2411 = vsel %vm1520, %v2408, -inf
    %2412 = vmax.xlane.f32.xlu0 %v2411
    %v2413 = vpop.xlane.xlu0 %2412
    %vm2414 = vcmp.eq.f32.partialorder %v2408, %v2413
    %v2415 = vsel %vm2414, %v216, 16
    %v2416 = vsel %vm1520, %v2415, 2147483647
    %v2417 = vand.u32 %v2416, 65535
    %v2418 = vshra.s32 %v2416, 16
    %v2419 = vcvt.s32.f32 %v2417
    %v2420 = vcvt.s32.f32 %v2418
    %2421 = vmin.xlane.f32.xlu0 %v2420
    %v2422 = vpop.xlane.xlu0 %2421
    %vm2423 = vcmp.eq.f32.partialorder %v2420, %v2422
    %v2424 = vsel %vm2423, %v2419, inf
    %2425 = vmin.xlane.f32.xlu0 %v2424
    %v2426 = vpop.xlane.xlu0 %2425
    %v2427 = vcvt.f32.s32 %v2426
    %v2428 = vcvt.f32.s32 %v2422
    %v2429 = vshll.u32 %v2428, 16
    %v2430 = vadd.s32 %v2429, %v2427
    %vm2431 = vcmp.eq.s32.totalorder %v216, %v2430
    %v2432 = vsel %vm2431, 1, 0
    %v2433 = vcvt.s32.f32 %v2432
    %v2435 = vsel %vm255, %v2433, 0
    %2437 = vmatprep.subr.mxu0 0.0
    %2438 = vmatpush1.msra.mxu0 %v1495
    %2439 = vmatprep.subr.mxu0 0.0
    %2440 = vmatpush1.msra.mxu0 %v1496
    %2441 = vmatprep.subr.mxu0 0.0
    %2442 = vmatpush1.msra.mxu0 0.0
    %2443 = vmatprep.subr.mxu0 0.0
    %2444 = vmatpush1.msra.mxu0 0.0
    %2445 = vmatprep.subr.mxu0 0.0
    %2446 = vmatpush1.msra.mxu0 0.0
    %2447 = vmatprep.subr.mxu0 0.0
    %2448 = vmatpush1.msra.mxu0 0.0
    %2449 = vmatprep.subr.mxu0 0.0
    %2450 = vmatpush1.msra.mxu0 0.0
    %2451 = vmatprep.subr.mxu0 0.0
    %2452 = vmatpush1.msra.mxu0 0.0
    %2453 = vmatprep.subr.mxu0 0.0
    %2454 = vmatpush1.msra.mxu0 0.0
    %2455 = vmatprep.subr.mxu0 0.0
    %2456 = vmatpush1.msra.mxu0 0.0
    %2457 = vmatprep.subr.mxu0 0.0
    %2458 = vmatpush1.msra.mxu0 0.0
    %2459 = vmatprep.subr.mxu0 0.0
    %2460 = vmatpush1.msra.mxu0 0.0
    %2461 = vmatprep.subr.mxu0 0.0
    %2462 = vmatpush1.msra.mxu0 0.0
    %2463 = vmatprep.subr.mxu0 0.0
    %2464 = vmatpush1.msra.mxu0 0.0
    %2465 = vmatprep.subr.mxu0 0.0
    %2466 = vmatpush1.msra.mxu0 0.0
    %2467 = vmatprep.subr.mxu0 0.0
    %2468 = vmatpush1.msra.mxu0 0.0
    %2469 = vmatprep.subr.mxu0 0.0
    %2470 = vmatpush1.msra.mxu0 0.0
    %2471 = vmatprep.subr.mxu0 0.0
    %2472 = vmatpush1.msra.mxu0 0.0
    %2473 = vmatprep.subr.mxu0 0.0
    %2474 = vmatpush1.msra.mxu0 0.0
    %2475 = vmatprep.subr.mxu0 0.0
    %2476 = vmatpush1.msra.mxu0 0.0
    %2477 = vmatprep.subr.mxu0 0.0
    %2478 = vmatpush1.msra.mxu0 0.0
    %2479 = vmatprep.subr.mxu0 0.0
    %2480 = vmatpush1.msra.mxu0 0.0
    %2481 = vmatprep.subr.mxu0 0.0
    %2482 = vmatpush1.msra.mxu0 0.0
    %2483 = vmatprep.subr.mxu0 0.0
    %2484 = vmatpush1.msra.mxu0 0.0
    %2485 = vmatprep.subr.mxu0 0.0
    %2486 = vmatpush1.msra.mxu0 0.0
    %2487 = vmatprep.subr.mxu0 0.0
    %2488 = vmatpush1.msra.mxu0 0.0
    %2489 = vmatprep.subr.mxu0 0.0
    %2490 = vmatpush1.msra.mxu0 0.0
    %2491 = vmatprep.subr.mxu0 0.0
    %2492 = vmatpush1.msra.mxu0 0.0
    %2493 = vmatprep.subr.mxu0 0.0
    %2494 = vmatpush1.msra.mxu0 0.0
    %2495 = vmatprep.subr.mxu0 0.0
    %2496 = vmatpush1.msra.mxu0 0.0
    %2497 = vmatprep.subr.mxu0 0.0
    %2498 = vmatpush1.msra.mxu0 0.0
    %2499 = vmatprep.subr.mxu0 0.0
    %2500 = vmatpush1.msra.mxu0 0.0
    %2501 = vmatprep.mubr.f32.mxu0 0.0
    %2502 = vmatmul.mubr.f32.gmra.mrb[0].mxu0 %v2435
    %v2503 = vpop.f32.mrb[0].mxu0
    %v2504 = vadd.f32 0.0, %v2503
    %v2505 = vpop.f32.mrb[0].mxu0
    %2506 = vdwg.mxu0
    %2507 = vmatprep.subr.mxu0 0.0
    %2508 = vmatpush1.msra.mxu0 %v1491
    %2509 = vmatprep.subr.mxu0 0.0
    %2510 = vmatpush1.msra.mxu0 %v1492
    %2511 = vmatprep.subr.mxu0 0.0
    %2512 = vmatpush1.msra.mxu0 %v1493
    %2513 = vmatprep.subr.mxu0 0.0
    %2514 = vmatpush1.msra.mxu0 %v1494
    %2515 = vmatprep.subr.mxu0 0.0
    %2516 = vmatpush1.msra.mxu0 0.0
    %2517 = vmatprep.subr.mxu0 0.0
    %2518 = vmatpush1.msra.mxu0 0.0
    %2519 = vmatprep.subr.mxu0 0.0
    %2520 = vmatpush1.msra.mxu0 0.0
    %2521 = vmatprep.subr.mxu0 0.0
    %2522 = vmatpush1.msra.mxu0 0.0
    %2523 = vmatprep.subr.mxu0 0.0
    %2524 = vmatpush1.msra.mxu0 0.0
    %2525 = vmatprep.subr.mxu0 0.0
    %2526 = vmatpush1.msra.mxu0 0.0
    %2527 = vmatprep.subr.mxu0 0.0
    %2528 = vmatpush1.msra.mxu0 0.0
    %2529 = vmatprep.subr.mxu0 0.0
    %2530 = vmatpush1.msra.mxu0 0.0
    %2531 = vmatprep.subr.mxu0 0.0
    %2532 = vmatpush1.msra.mxu0 0.0
    %2533 = vmatprep.subr.mxu0 0.0
    %2534 = vmatpush1.msra.mxu0 0.0
    %2535 = vmatprep.subr.mxu0 0.0
    %2536 = vmatpush1.msra.mxu0 0.0
    %2537 = vmatprep.subr.mxu0 0.0
    %2538 = vmatpush1.msra.mxu0 0.0
    %2539 = vmatprep.subr.mxu0 0.0
    %2540 = vmatpush1.msra.mxu0 0.0
    %2541 = vmatprep.subr.mxu0 0.0
    %2542 = vmatpush1.msra.mxu0 0.0
    %2543 = vmatprep.subr.mxu0 0.0
    %2544 = vmatpush1.msra.mxu0 0.0
    %2545 = vmatprep.subr.mxu0 0.0
    %2546 = vmatpush1.msra.mxu0 0.0
    %2547 = vmatprep.subr.mxu0 0.0
    %2548 = vmatpush1.msra.mxu0 0.0
    %2549 = vmatprep.subr.mxu0 0.0
    %2550 = vmatpush1.msra.mxu0 0.0
    %2551 = vmatprep.subr.mxu0 0.0
    %2552 = vmatpush1.msra.mxu0 0.0
    %2553 = vmatprep.subr.mxu0 0.0
    %2554 = vmatpush1.msra.mxu0 0.0
    %2555 = vmatprep.subr.mxu0 0.0
    %2556 = vmatpush1.msra.mxu0 0.0
    %2557 = vmatprep.subr.mxu0 0.0
    %2558 = vmatpush1.msra.mxu0 0.0
    %2559 = vmatprep.subr.mxu0 0.0
    %2560 = vmatpush1.msra.mxu0 0.0
    %2561 = vmatprep.subr.mxu0 0.0
    %2562 = vmatpush1.msra.mxu0 0.0
    %2563 = vmatprep.subr.mxu0 0.0
    %2564 = vmatpush1.msra.mxu0 0.0
    %2565 = vmatprep.subr.mxu0 0.0
    %2566 = vmatpush1.msra.mxu0 0.0
    %2567 = vmatprep.subr.mxu0 0.0
    %2568 = vmatpush1.msra.mxu0 0.0
    %2569 = vmatprep.subr.mxu0 0.0
    %2570 = vmatpush1.msra.mxu0 0.0
    %2571 = vmatprep.mubr.f32.mxu0 0.0
    %2572 = vmatmul.mubr.f32.gmra.mrb[0].mxu0 %v2318
    %v2573 = vpop.f32.mrb[0].mxu0
    %v2574 = vadd.f32 0.0, %v2573
    %v2575 = vpop.f32.mrb[0].mxu0
    %2576 = vdwg.mxu0
    %v2577 = vadd.f32 %v2574, %v1437
    %v2578 = vadd.f32 %v2574, %v1459
    %v2579 = vadd.f32 %v2574, %v1442
    %v2580 = vadd.f32 %v2574, %v1460
    %v2581 = vadd.f32 %v2574, %v1447
    %v2582 = vadd.f32 %v2574, %v1461
    %v2583 = vadd.f32 %v2574, %v1452
    %v2584 = vadd.f32 %v2574, %v1462
    %v2585 = vmax.f32 %v2577, 0.0
    %v2586 = vmax.f32 %v2578, 0.0
    %v2587 = vmax.f32 %v2579, 0.0
    %v2588 = vmax.f32 %v2580, 0.0
    %v2589 = vmax.f32 %v2581, 0.0
    %v2590 = vmax.f32 %v2582, 0.0
    %v2591 = vmax.f32 %v2583, 0.0
    %v2592 = vmax.f32 %v2584, 0.0
    %v2601 = vcombine.low %v2585, %v2586
    %v2602 = vcombine.low %v2587, %v2588
    %v2603 = vcombine.low %v2589, %v2590
    %v2604 = vcombine.low %v2591, %v2592
    %v2605 = vsel %vm360, %v2601, 0
    %v2607 = vsel %vm360, %v2602, 0
    %v2609 = vsel %vm360, %v2603, 0
    %v2611 = vsel %vm360, %v2604, 0
    %2613 = vmatprep.subr.mxu0 0.0
    %2614 = vmatpush1.msra.mxu0 %v1474
    %2615 = vmatprep.subr.mxu0 0.0
    %2616 = vmatpush1.msra.mxu0 %v1479
    %2617 = vmatprep.subr.mxu0 0.0
    %2618 = vmatpush1.msra.mxu0 %v1484
    %2619 = vmatprep.subr.mxu0 0.0
    %2620 = vmatpush1.msra.mxu0 %v1489
    %2621 = vmatprep.subr.mxu0 0.0
    %2622 = vmatpush1.msra.mxu0 0.0
    %2623 = vmatprep.subr.mxu0 0.0
    %2624 = vmatpush1.msra.mxu0 0.0
    %2625 = vmatprep.subr.mxu0 0.0
    %2626 = vmatpush1.msra.mxu0 0.0
    %2627 = vmatprep.subr.mxu0 0.0
    %2628 = vmatpush1.msra.mxu0 0.0
    %2629 = vmatprep.subr.mxu0 0.0
    %2630 = vmatpush1.msra.mxu0 0.0
    %2631 = vmatprep.subr.mxu0 0.0
    %2632 = vmatpush1.msra.mxu0 0.0
    %2633 = vmatprep.subr.mxu0 0.0
    %2634 = vmatpush1.msra.mxu0 0.0
    %2635 = vmatprep.subr.mxu0 0.0
    %2636 = vmatpush1.msra.mxu0 0.0
    %2637 = vmatprep.subr.mxu0 0.0
    %2638 = vmatpush1.msra.mxu0 0.0
    %2639 = vmatprep.subr.mxu0 0.0
    %2640 = vmatpush1.msra.mxu0 0.0
    %2641 = vmatprep.subr.mxu0 0.0
    %2642 = vmatpush1.msra.mxu0 0.0
    %2643 = vmatprep.subr.mxu0 0.0
    %2644 = vmatpush1.msra.mxu0 0.0
    %2645 = vmatprep.subr.mxu0 0.0
    %2646 = vmatpush1.msra.mxu0 0.0
    %2647 = vmatprep.subr.mxu0 0.0
    %2648 = vmatpush1.msra.mxu0 0.0
    %2649 = vmatprep.subr.mxu0 0.0
    %2650 = vmatpush1.msra.mxu0 0.0
    %2651 = vmatprep.subr.mxu0 0.0
    %2652 = vmatpush1.msra.mxu0 0.0
    %2653 = vmatprep.subr.mxu0 0.0
    %2654 = vmatpush1.msra.mxu0 0.0
    %2655 = vmatprep.subr.mxu0 0.0
    %2656 = vmatpush1.msra.mxu0 0.0
    %2657 = vmatprep.subr.mxu0 0.0
    %2658 = vmatpush1.msra.mxu0 0.0
    %2659 = vmatprep.subr.mxu0 0.0
    %2660 = vmatpush1.msra.mxu0 0.0
    %2661 = vmatprep.subr.mxu0 0.0
    %2662 = vmatpush1.msra.mxu0 0.0
    %2663 = vmatprep.subr.mxu0 0.0
    %2664 = vmatpush1.msra.mxu0 0.0
    %2665 = vmatprep.subr.mxu0 0.0
    %2666 = vmatpush1.msra.mxu0 0.0
    %2667 = vmatprep.subr.mxu0 0.0
    %2668 = vmatpush1.msra.mxu0 0.0
    %2669 = vmatprep.subr.mxu0 0.0
    %2670 = vmatpush1.msra.mxu0 0.0
    %2671 = vmatprep.subr.mxu0 0.0
    %2672 = vmatpush1.msra.mxu0 0.0
    %2673 = vmatprep.subr.mxu0 0.0
    %2674 = vmatpush1.msra.mxu0 0.0
    %2675 = vmatprep.subr.mxu0 0.0
    %2676 = vmatpush1.msra.mxu0 0.0
    %2677 = vmatprep.mubr.f32.mxu0 0.0
    %2678 = vmatmul.mubr.f32.gmra.mrb[0].mxu0 %v2605
    %v2679 = vpop.f32.mrb[0].mxu0
    %v2680 = vadd.f32 0.0, %v2679
    %v2681 = vpop.f32.mrb[0].mxu0
    %2682 = vmatprep.mubr.f32.mxu0 0.0
    %2683 = vmatmul.mubr.f32.gmra.mrb[0].mxu0 %v2607
    %v2684 = vpop.f32.mrb[0].mxu0
    %v2685 = vadd.f32 0.0, %v2684
    %v2686 = vpop.f32.mrb[0].mxu0
    %2687 = vmatprep.mubr.f32.mxu0 0.0
    %2688 = vmatmul.mubr.f32.gmra.mrb[0].mxu0 %v2609
    %v2689 = vpop.f32.mrb[0].mxu0
    %v2690 = vadd.f32 0.0, %v2689
    %v2691 = vpop.f32.mrb[0].mxu0
    %2692 = vmatprep.mubr.f32.mxu0 0.0
    %2693 = vmatmul.mubr.f32.gmra.mrb[0].mxu0 %v2611
    %v2694 = vpop.f32.mrb[0].mxu0
    %v2695 = vadd.f32 0.0, %v2694
    %v2696 = vpop.f32.mrb[0].mxu0
    %2697 = vdwg.mxu0
    %v2702 = vcombine.high %v2680, %v2680
    %v2703 = vcombine.high %v2685, %v2685
    %v2704 = vcombine.high %v2690, %v2690
    %v2705 = vcombine.high %v2695, %v2695
    %v2710 = vsel %vm1806, %v2680, -inf
    %v2711 = vsel %vm1806, %v2702, -inf
    %v2712 = vsel %vm1806, %v2685, -inf
    %v2713 = vsel %vm1806, %v2703, -inf
    %v2714 = vsel %vm1806, %v2690, -inf
    %v2715 = vmax.f32 %v2710, %v2714
    %v2716 = vsel %vm1806, %v2704, -inf
    %v2717 = vmax.f32 %v2711, %v2716
    %v2718 = vsel %vm1806, %v2695, -inf
    %v2719 = vmax.f32 %v2712, %v2718
    %v2720 = vsel %vm1806, %v2705, -inf
    %v2721 = vmax.f32 %v2713, %v2720
    %v2722 = vmax.f32 %v2715, %v2717
    %v2723 = vmax.f32 %v2719, %v2721
    %v2724 = vmax.f32 %v2722, %v2723
    %v2725 = vsub.f32 %v2680, %v2724
    %v2726 = vsub.f32 %v2702, %v2724
    %v2727 = vsub.f32 %v2685, %v2724
    %v2728 = vsub.f32 %v2703, %v2724
    %v2729 = vsub.f32 %v2690, %v2724
    %v2730 = vsub.f32 %v2704, %v2724
    %v2731 = vsub.f32 %v2695, %v2724
    %v2732 = vsub.f32 %v2705, %v2724
    %v2733 = vmul.f32 %v2725, 1.442695
    %v2734 = vpow.pop %v2733
    %v2735 = vmul.f32 %v2726, 1.442695
    %v2736 = vpow.pop %v2735
    %v2737 = vmul.f32 %v2727, 1.442695
    %v2738 = vpow.pop %v2737
    %v2739 = vmul.f32 %v2728, 1.442695
    %v2740 = vpow.pop %v2739
    %v2741 = vmul.f32 %v2729, 1.442695
    %v2742 = vpow.pop %v2741
    %v2743 = vmul.f32 %v2730, 1.442695
    %v2744 = vpow.pop %v2743
    %v2745 = vmul.f32 %v2731, 1.442695
    %v2746 = vpow.pop %v2745
    %v2747 = vmul.f32 %v2732, 1.442695
    %v2748 = vpow.pop %v2747
    %v2749 = vsel %vm1806, %v2734, 0.0
    %v2750 = vsel %vm1806, %v2736, 0.0
    %v2751 = vadd.f32 %v2749, %v2750
    %v2752 = vsel %vm1806, %v2738, 0.0
    %v2753 = vadd.f32 %v2751, %v2752
    %v2754 = vsel %vm1806, %v2740, 0.0
    %v2755 = vadd.f32 %v2753, %v2754
    %v2756 = vsel %vm1806, %v2742, 0.0
    %v2757 = vadd.f32 %v2755, %v2756
    %v2758 = vsel %vm1806, %v2744, 0.0
    %v2759 = vadd.f32 %v2757, %v2758
    %v2760 = vsel %vm1806, %v2746, 0.0
    %v2761 = vadd.f32 %v2759, %v2760
    %v2762 = vsel %vm1806, %v2748, 0.0
    %v2763 = vadd.f32 %v2761, %v2762
    %v2764 = vrcp.pop %v2763
    %v2765 = vmul.f32 %v2734, %v2764
    %v2766 = vmul.f32 %v2736, %v2764
    %v2767 = vmul.f32 %v2738, %v2764
    %v2768 = vmul.f32 %v2740, %v2764
    %v2769 = vmul.f32 %v2742, %v2764
    %v2770 = vmul.f32 %v2744, %v2764
    %v2771 = vmul.f32 %v2746, %v2764
    %v2772 = vmul.f32 %v2748, %v2764
    %2774 = vset.pattern.permute.xlu0 0
    %2775 = vperm.xlu0 %2774, %v2765
    %v2776 = vpop.permute.xlu0 %2775
    %v2779 = vunpack.c.l.s4 839922192
    %v2780 = vunpack.c.0.s8 %v2779
    %v2781 = vlaneseq
    %v2782 = vshrl.u32 %v2781, 7
    %v2783 = vsub.s32 %v2780, %v2782
    %v2784 = vrot.slane %v2776, %v2783
    %2786 = vset.pattern.permute.xlu0 0
    %2787 = vperm.xlu0 %2786, %v2766
    %v2788 = vpop.permute.xlu0 %2787
    %v2791 = vunpack.c.l.s4 839922192
    %v2792 = vunpack.c.0.s8 %v2791
    %v2793 = vlaneseq
    %v2794 = vshrl.u32 %v2793, 7
    %v2795 = vsub.s32 %v2792, %v2794
    %v2796 = vrot.slane %v2788, %v2795
    %2798 = vset.pattern.permute.xlu0 0
    %2799 = vperm.xlu0 %2798, %v2767
    %v2800 = vpop.permute.xlu0 %2799
    %v2803 = vunpack.c.l.s4 839922192
    %v2804 = vunpack.c.0.s8 %v2803
    %v2805 = vlaneseq
    %v2806 = vshrl.u32 %v2805, 7
    %v2807 = vsub.s32 %v2804, %v2806
    %v2808 = vrot.slane %v2800, %v2807
    %2810 = vset.pattern.permute.xlu0 0
    %2811 = vperm.xlu0 %2810, %v2768
    %v2812 = vpop.permute.xlu0 %2811
    %v2815 = vunpack.c.l.s4 839922192
    %v2816 = vunpack.c.0.s8 %v2815
    %v2817 = vlaneseq
    %v2818 = vshrl.u32 %v2817, 7
    %v2819 = vsub.s32 %v2816, %v2818
    %v2820 = vrot.slane %v2812, %v2819
    %2822 = vset.pattern.permute.xlu0 0
    %2823 = vperm.xlu0 %2822, %v2769
    %v2824 = vpop.permute.xlu0 %2823
    %v2827 = vunpack.c.l.s4 839922192
    %v2828 = vunpack.c.0.s8 %v2827
    %v2829 = vlaneseq
    %v2830 = vshrl.u32 %v2829, 7
    %v2831 = vsub.s32 %v2828, %v2830
    %v2832 = vrot.slane %v2824, %v2831
    %2834 = vset.pattern.permute.xlu0 0
    %2835 = vperm.xlu0 %2834, %v2770
    %v2836 = vpop.permute.xlu0 %2835
    %v2839 = vunpack.c.l.s4 839922192
    %v2840 = vunpack.c.0.s8 %v2839
    %v2841 = vlaneseq
    %v2842 = vshrl.u32 %v2841, 7
    %v2843 = vsub.s32 %v2840, %v2842
    %v2844 = vrot.slane %v2836, %v2843
    %2846 = vset.pattern.permute.xlu0 0
    %2847 = vperm.xlu0 %2846, %v2771
    %v2848 = vpop.permute.xlu0 %2847
    %v2851 = vunpack.c.l.s4 839922192
    %v2852 = vunpack.c.0.s8 %v2851
    %v2853 = vlaneseq
    %v2854 = vshrl.u32 %v2853, 7
    %v2855 = vsub.s32 %v2852, %v2854
    %v2856 = vrot.slane %v2848, %v2855
    %2858 = vset.pattern.permute.xlu0 0
    %2859 = vperm.xlu0 %2858, %v2772
    %v2860 = vpop.permute.xlu0 %2859
    %v2863 = vunpack.c.l.s4 839922192
    %v2864 = vunpack.c.0.s8 %v2863
    %v2865 = vlaneseq
    %v2866 = vshrl.u32 %v2865, 7
    %v2867 = vsub.s32 %v2864, %v2866
    %v2868 = vrot.slane %v2860, %v2867
    %v2869 = vmul.f32 %v2784, %v1331
    %v2870 = vmul.f32 %v2796, %v1332
    %v2871 = vmul.f32 %v2808, %v1333
    %v2872 = vmul.f32 %v2820, %v1334
    %v2873 = vmul.f32 %v2832, %v1335
    %v2874 = vmul.f32 %v2844, %v1336
    %v2875 = vmul.f32 %v2856, %v1337
    %v2876 = vmul.f32 %v2868, %v1338
    %v2877 = vsel %vm572, %v2869, 0.0
    %v2878 = vsel %vm572, %v2870, 0.0
    %v2879 = vadd.f32 %v2877, %v2878
    %v2880 = vsel %vm572, %v2871, 0.0
    %v2881 = vadd.f32 %v2879, %v2880
    %v2882 = vsel %vm572, %v2872, 0.0
    %v2883 = vadd.f32 %v2881, %v2882
    %v2884 = vsel %vm572, %v2873, 0.0
    %v2885 = vadd.f32 %v2883, %v2884
    %v2886 = vsel %vm572, %v2874, 0.0
    %v2887 = vadd.f32 %v2885, %v2886
    %v2888 = vsel %vm572, %v2875, 0.0
    %v2889 = vadd.f32 %v2887, %v2888
    %v2890 = vsel %vm572, %v2876, 0.0
    %v2891 = vadd.f32 %v2889, %v2890
    %v2893 = vsel %vm360, %v2891, 0
    %2895 = vmatprep.subr.mxu0 0.0
    %2896 = vmatpush1.msra.mxu0 %v1501
    %2897 = vmatprep.subr.mxu0 0.0
    %2898 = vmatpush1.msra.mxu0 %v1502
    %2899 = vmatprep.subr.mxu0 0.0
    %2900 = vmatpush1.msra.mxu0 %v1503
    %2901 = vmatprep.subr.mxu0 0.0
    %2902 = vmatpush1.msra.mxu0 %v1504
    %2903 = vmatprep.subr.mxu0 0.0
    %2904 = vmatpush1.msra.mxu0 0.0
    %2905 = vmatprep.subr.mxu0 0.0
    %2906 = vmatpush1.msra.mxu0 0.0
    %2907 = vmatprep.subr.mxu0 0.0
    %2908 = vmatpush1.msra.mxu0 0.0
    %2909 = vmatprep.subr.mxu0 0.0
    %2910 = vmatpush1.msra.mxu0 0.0
    %2911 = vmatprep.subr.mxu0 0.0
    %2912 = vmatpush1.msra.mxu0 0.0
    %2913 = vmatprep.subr.mxu0 0.0
    %2914 = vmatpush1.msra.mxu0 0.0
    %2915 = vmatprep.subr.mxu0 0.0
    %2916 = vmatpush1.msra.mxu0 0.0
    %2917 = vmatprep.subr.mxu0 0.0
    %2918 = vmatpush1.msra.mxu0 0.0
    %2919 = vmatprep.subr.mxu0 0.0
    %2920 = vmatpush1.msra.mxu0 0.0
    %2921 = vmatprep.subr.mxu0 0.0
    %2922 = vmatpush1.msra.mxu0 0.0
    %2923 = vmatprep.subr.mxu0 0.0
    %2924 = vmatpush1.msra.mxu0 0.0
    %2925 = vmatprep.subr.mxu0 0.0
    %2926 = vmatpush1.msra.mxu0 0.0
    %2927 = vmatprep.subr.mxu0 0.0
    %2928 = vmatpush1.msra.mxu0 0.0
    %2929 = vmatprep.subr.mxu0 0.0
    %2930 = vmatpush1.msra.mxu0 0.0
    %2931 = vmatprep.subr.mxu0 0.0
    %2932 = vmatpush1.msra.mxu0 0.0
    %2933 = vmatprep.subr.mxu0 0.0
    %2934 = vmatpush1.msra.mxu0 0.0
    %2935 = vmatprep.subr.mxu0 0.0
    %2936 = vmatpush1.msra.mxu0 0.0
    %2937 = vmatprep.subr.mxu0 0.0
    %2938 = vmatpush1.msra.mxu0 0.0
    %2939 = vmatprep.subr.mxu0 0.0
    %2940 = vmatpush1.msra.mxu0 0.0
    %2941 = vmatprep.subr.mxu0 0.0
    %2942 = vmatpush1.msra.mxu0 0.0
    %2943 = vmatprep.subr.mxu0 0.0
    %2944 = vmatpush1.msra.mxu0 0.0
    %2945 = vmatprep.subr.mxu0 0.0
    %2946 = vmatpush1.msra.mxu0 0.0
    %2947 = vmatprep.subr.mxu0 0.0
    %2948 = vmatpush1.msra.mxu0 0.0
    %2949 = vmatprep.subr.mxu0 0.0
    %2950 = vmatpush1.msra.mxu0 0.0
    %2951 = vmatprep.subr.mxu0 0.0
    %2952 = vmatpush1.msra.mxu0 0.0
    %2953 = vmatprep.subr.mxu0 0.0
    %2954 = vmatpush1.msra.mxu0 0.0
    %2955 = vmatprep.subr.mxu0 0.0
    %2956 = vmatpush1.msra.mxu0 0.0
    %2957 = vmatprep.subr.mxu0 0.0
    %2958 = vmatpush1.msra.mxu0 0.0
    %2959 = vmatprep.mubr.f32.mxu0 0.0
    %2960 = vmatmul.mubr.f32.gmra.mrb[0].mxu0 %v2893
    %v2961 = vpop.f32.mrb[0].mxu0
    %v2962 = vadd.f32 0.0, %v2961
    %v2963 = vpop.f32.mrb[0].mxu0
    %2964 = vdwg.mxu0
    %v2966 = vsel %vm360, %v2504, 0
    %2968 = vmatprep.subr.mxu0 0.0
    %2969 = vmatpush1.msra.mxu0 %v1497
    %2970 = vmatprep.subr.mxu0 0.0
    %2971 = vmatpush1.msra.mxu0 %v1498
    %2972 = vmatprep.subr.mxu0 0.0
    %2973 = vmatpush1.msra.mxu0 %v1499
    %2974 = vmatprep.subr.mxu0 0.0
    %2975 = vmatpush1.msra.mxu0 %v1500
    %2976 = vmatprep.subr.mxu0 0.0
    %2977 = vmatpush1.msra.mxu0 0.0
    %2978 = vmatprep.subr.mxu0 0.0
    %2979 = vmatpush1.msra.mxu0 0.0
    %2980 = vmatprep.subr.mxu0 0.0
    %2981 = vmatpush1.msra.mxu0 0.0
    %2982 = vmatprep.subr.mxu0 0.0
    %2983 = vmatpush1.msra.mxu0 0.0
    %2984 = vmatprep.subr.mxu0 0.0
    %2985 = vmatpush1.msra.mxu0 0.0
    %2986 = vmatprep.subr.mxu0 0.0
    %2987 = vmatpush1.msra.mxu0 0.0
    %2988 = vmatprep.subr.mxu0 0.0
    %2989 = vmatpush1.msra.mxu0 0.0
    %2990 = vmatprep.subr.mxu0 0.0
    %2991 = vmatpush1.msra.mxu0 0.0
    %2992 = vmatprep.subr.mxu0 0.0
    %2993 = vmatpush1.msra.mxu0 0.0
    %2994 = vmatprep.subr.mxu0 0.0
    %2995 = vmatpush1.msra.mxu0 0.0
    %2996 = vmatprep.subr.mxu0 0.0
    %2997 = vmatpush1.msra.mxu0 0.0
    %2998 = vmatprep.subr.mxu0 0.0
    %2999 = vmatpush1.msra.mxu0 0.0
    %3000 = vmatprep.subr.mxu0 0.0
    %3001 = vmatpush1.msra.mxu0 0.0
    %3002 = vmatprep.subr.mxu0 0.0
    %3003 = vmatpush1.msra.mxu0 0.0
    %3004 = vmatprep.subr.mxu0 0.0
    %3005 = vmatpush1.msra.mxu0 0.0
    %3006 = vmatprep.subr.mxu0 0.0
    %3007 = vmatpush1.msra.mxu0 0.0
    %3008 = vmatprep.subr.mxu0 0.0
    %3009 = vmatpush1.msra.mxu0 0.0
    %3010 = vmatprep.subr.mxu0 0.0
    %3011 = vmatpush1.msra.mxu0 0.0
    %3012 = vmatprep.subr.mxu0 0.0
    %3013 = vmatpush1.msra.mxu0 0.0
    %3014 = vmatprep.subr.mxu0 0.0
    %3015 = vmatpush1.msra.mxu0 0.0
    %3016 = vmatprep.subr.mxu0 0.0
    %3017 = vmatpush1.msra.mxu0 0.0
    %3018 = vmatprep.subr.mxu0 0.0
    %3019 = vmatpush1.msra.mxu0 0.0
    %3020 = vmatprep.subr.mxu0 0.0
    %3021 = vmatpush1.msra.mxu0 0.0
    %3022 = vmatprep.subr.mxu0 0.0
    %3023 = vmatpush1.msra.mxu0 0.0
    %3024 = vmatprep.subr.mxu0 0.0
    %3025 = vmatpush1.msra.mxu0 0.0
    %3026 = vmatprep.subr.mxu0 0.0
    %3027 = vmatpush1.msra.mxu0 0.0
    %3028 = vmatprep.subr.mxu0 0.0
    %3029 = vmatpush1.msra.mxu0 0.0
    %3030 = vmatprep.subr.mxu0 0.0
    %3031 = vmatpush1.msra.mxu0 0.0
    %3032 = vmatprep.mubr.f32.mxu0 0.0
    %3033 = vmatmul.mubr.f32.gmra.mrb[0].mxu0 %v2966
    %v3034 = vpop.f32.mrb[0].mxu0
    %v3035 = vadd.f32 %v2962, %v3034
    %v3036 = vpop.f32.mrb[0].mxu0
    %3037 = vdwg.mxu0
    %v3038 = vadd.f32 %v3035, %v2139
    %3039 = vmatprep.subr.mxu0 0.0
    %3040 = vmatpush1.msra.mxu0 %v1505
    %3041 = vmatprep.subr.mxu0 0.0
    %3042 = vmatpush1.msra.mxu0 %v1506
    %3043 = vmatprep.subr.mxu0 0.0
    %3044 = vmatpush1.msra.mxu0 %v1507
    %3045 = vmatprep.subr.mxu0 0.0
    %3046 = vmatpush1.msra.mxu0 %v1508
    %3047 = vmatprep.subr.mxu0 0.0
    %3048 = vmatpush1.msra.mxu0 0.0
    %3049 = vmatprep.subr.mxu0 0.0
    %3050 = vmatpush1.msra.mxu0 0.0
    %3051 = vmatprep.subr.mxu0 0.0
    %3052 = vmatpush1.msra.mxu0 0.0
    %3053 = vmatprep.subr.mxu0 0.0
    %3054 = vmatpush1.msra.mxu0 0.0
    %3055 = vmatprep.subr.mxu0 0.0
    %3056 = vmatpush1.msra.mxu0 0.0
    %3057 = vmatprep.subr.mxu0 0.0
    %3058 = vmatpush1.msra.mxu0 0.0
    %3059 = vmatprep.subr.mxu0 0.0
    %3060 = vmatpush1.msra.mxu0 0.0
    %3061 = vmatprep.subr.mxu0 0.0
    %3062 = vmatpush1.msra.mxu0 0.0
    %3063 = vmatprep.subr.mxu0 0.0
    %3064 = vmatpush1.msra.mxu0 0.0
    %3065 = vmatprep.subr.mxu0 0.0
    %3066 = vmatpush1.msra.mxu0 0.0
    %3067 = vmatprep.subr.mxu0 0.0
    %3068 = vmatpush1.msra.mxu0 0.0
    %3069 = vmatprep.subr.mxu0 0.0
    %3070 = vmatpush1.msra.mxu0 0.0
    %3071 = vmatprep.subr.mxu0 0.0
    %3072 = vmatpush1.msra.mxu0 0.0
    %3073 = vmatprep.subr.mxu0 0.0
    %3074 = vmatpush1.msra.mxu0 0.0
    %3075 = vmatprep.subr.mxu0 0.0
    %3076 = vmatpush1.msra.mxu0 0.0
    %3077 = vmatprep.subr.mxu0 0.0
    %3078 = vmatpush1.msra.mxu0 0.0
    %3079 = vmatprep.subr.mxu0 0.0
    %3080 = vmatpush1.msra.mxu0 0.0
    %3081 = vmatprep.subr.mxu0 0.0
    %3082 = vmatpush1.msra.mxu0 0.0
    %3083 = vmatprep.subr.mxu0 0.0
    %3084 = vmatpush1.msra.mxu0 0.0
    %3085 = vmatprep.subr.mxu0 0.0
    %3086 = vmatpush1.msra.mxu0 0.0
    %3087 = vmatprep.subr.mxu0 0.0
    %3088 = vmatpush1.msra.mxu0 0.0
    %3089 = vmatprep.subr.mxu0 0.0
    %3090 = vmatpush1.msra.mxu0 0.0
    %3091 = vmatprep.subr.mxu0 0.0
    %3092 = vmatpush1.msra.mxu0 0.0
    %3093 = vmatprep.subr.mxu0 0.0
    %3094 = vmatpush1.msra.mxu0 0.0
    %3095 = vmatprep.subr.mxu0 0.0
    %3096 = vmatpush1.msra.mxu0 0.0
    %3097 = vmatprep.subr.mxu0 0.0
    %3098 = vmatpush1.msra.mxu0 0.0
    %3099 = vmatprep.subr.mxu0 0.0
    %3100 = vmatpush1.msra.mxu0 0.0
    %3101 = vmatprep.subr.mxu0 0.0
    %3102 = vmatpush1.msra.mxu0 0.0
    %3103 = vmatprep.mubr.f32.mxu0 0.0
    %3104 = vmatmul.mubr.f32.gmra.mrb[0].mxu0 %v2318
    %v3105 = vpop.f32.mrb[0].mxu0
    %v3106 = vadd.f32 %v2146, %v3105
    %v3107 = vpop.f32.mrb[0].mxu0
    %3108 = vdwg.mxu0
    %v3109 = vadd.f32 %v3038, %v3106
    %v3110 = vxor.u32 %v3109, 2147483648
    %v3111 = vmul.f32 %v3110, 1.442695
    %v3112 = vpow.pop %v3111
    %v3113 = vadd.f32 %v3112, 1.0
    %v3114 = vrcp.pop %v3113
    %v3115 = vmul.f32 1.0, %v3114
    %3117 = vrot.lane.b32.xlu0 %v3106, 64
    %v3118 = vpop.permute.xlu0 %3117
    %v3120 = vmul.f32 %v3115, %v3118
    %3122 = vrot.lane.b32.xlu0 %v3120, 64
    %v3123 = vpop.permute.xlu0 %3122
    %v3125 = vadd.f32 %v3038, %v3123
    %v3126 = vtanh.pop %v3125
    %v3127 = vsub.f32 1.0, %v3115
    %3129 = vrot.lane.b32.xlu0 %v3126, 96
    %v3130 = vpop.permute.xlu0 %3129
    %v3132 = vmul.f32 %v3127, %v3130
    %v3133 = vmul.f32 %v3115, %v2244
    %v3134 = vadd.f32 %v3132, %v3133
    %3135 = vmatprep.subr.mxu0 0.0
    %3136 = vmatpush1.msra.mxu0 %v1515
    %3137 = vmatprep.subr.mxu0 0.0
    %3138 = vmatpush1.msra.mxu0 %v1516
    %3139 = vmatprep.subr.mxu0 0.0
    %3140 = vmatpush1.msra.mxu0 %v1517
    %3141 = vmatprep.subr.mxu0 0.0
    %3142 = vmatpush1.msra.mxu0 %v1518
    %3143 = vmatprep.subr.mxu0 0.0
    %3144 = vmatpush1.msra.mxu0 0.0
    %3145 = vmatprep.subr.mxu0 0.0
    %3146 = vmatpush1.msra.mxu0 0.0
    %3147 = vmatprep.subr.mxu0 0.0
    %3148 = vmatpush1.msra.mxu0 0.0
    %3149 = vmatprep.subr.mxu0 0.0
    %3150 = vmatpush1.msra.mxu0 0.0
    %3151 = vmatprep.subr.mxu0 0.0
    %3152 = vmatpush1.msra.mxu0 0.0
    %3153 = vmatprep.subr.mxu0 0.0
    %3154 = vmatpush1.msra.mxu0 0.0
    %3155 = vmatprep.subr.mxu0 0.0
    %3156 = vmatpush1.msra.mxu0 0.0
    %3157 = vmatprep.subr.mxu0 0.0
    %3158 = vmatpush1.msra.mxu0 0.0
    %3159 = vmatprep.subr.mxu0 0.0
    %3160 = vmatpush1.msra.mxu0 0.0
    %3161 = vmatprep.subr.mxu0 0.0
    %3162 = vmatpush1.msra.mxu0 0.0
    %3163 = vmatprep.subr.mxu0 0.0
    %3164 = vmatpush1.msra.mxu0 0.0
    %3165 = vmatprep.subr.mxu0 0.0
    %3166 = vmatpush1.msra.mxu0 0.0
    %3167 = vmatprep.subr.mxu0 0.0
    %3168 = vmatpush1.msra.mxu0 0.0
    %3169 = vmatprep.subr.mxu0 0.0
    %3170 = vmatpush1.msra.mxu0 0.0
    %3171 = vmatprep.subr.mxu0 0.0
    %3172 = vmatpush1.msra.mxu0 0.0
    %3173 = vmatprep.subr.mxu0 0.0
    %3174 = vmatpush1.msra.mxu0 0.0
    %3175 = vmatprep.subr.mxu0 0.0
    %3176 = vmatpush1.msra.mxu0 0.0
    %3177 = vmatprep.subr.mxu0 0.0
    %3178 = vmatpush1.msra.mxu0 0.0
    %3179 = vmatprep.subr.mxu0 0.0
    %3180 = vmatpush1.msra.mxu0 0.0
    %3181 = vmatprep.subr.mxu0 0.0
    %3182 = vmatpush1.msra.mxu0 0.0
    %3183 = vmatprep.subr.mxu0 0.0
    %3184 = vmatpush1.msra.mxu0 0.0
    %3185 = vmatprep.subr.mxu0 0.0
    %3186 = vmatpush1.msra.mxu0 0.0
    %3187 = vmatprep.subr.mxu0 0.0
    %3188 = vmatpush1.msra.mxu0 0.0
    %3189 = vmatprep.subr.mxu0 0.0
    %3190 = vmatpush1.msra.mxu0 0.0
    %3191 = vmatprep.subr.mxu0 0.0
    %3192 = vmatpush1.msra.mxu0 0.0
    %3193 = vmatprep.subr.mxu0 0.0
    %3194 = vmatpush1.msra.mxu0 0.0
    %3195 = vmatprep.subr.mxu0 0.0
    %3196 = vmatpush1.msra.mxu0 0.0
    %3197 = vmatprep.subr.mxu0 0.0
    %3198 = vmatpush1.msra.mxu0 0.0
    %3199 = vmatprep.mubr.f32.mxu0 0.0
    %3200 = vmatmul.mubr.f32.gmra.mrb[0].mxu0 %v2893
    %v3201 = vpop.f32.mrb[0].mxu0
    %v3202 = vadd.f32 0.0, %v3201
    %v3203 = vpop.f32.mrb[0].mxu0
    %3204 = vdwg.mxu0
    %3206 = vrot.lane.b32.xlu0 %v3134, 96
    %v3207 = vpop.permute.xlu0 %3206
    %v3208 = vsel %vm360, %v3207, 0
    %3210 = vmatprep.subr.mxu0 0.0
    %3211 = vmatpush1.msra.mxu0 %v1511
    %3212 = vmatprep.subr.mxu0 0.0
    %3213 = vmatpush1.msra.mxu0 %v1512
    %3214 = vmatprep.subr.mxu0 0.0
    %3215 = vmatpush1.msra.mxu0 %v1513
    %3216 = vmatprep.subr.mxu0 0.0
    %3217 = vmatpush1.msra.mxu0 %v1514
    %3218 = vmatprep.subr.mxu0 0.0
    %3219 = vmatpush1.msra.mxu0 0.0
    %3220 = vmatprep.subr.mxu0 0.0
    %3221 = vmatpush1.msra.mxu0 0.0
    %3222 = vmatprep.subr.mxu0 0.0
    %3223 = vmatpush1.msra.mxu0 0.0
    %3224 = vmatprep.subr.mxu0 0.0
    %3225 = vmatpush1.msra.mxu0 0.0
    %3226 = vmatprep.subr.mxu0 0.0
    %3227 = vmatpush1.msra.mxu0 0.0
    %3228 = vmatprep.subr.mxu0 0.0
    %3229 = vmatpush1.msra.mxu0 0.0
    %3230 = vmatprep.subr.mxu0 0.0
    %3231 = vmatpush1.msra.mxu0 0.0
    %3232 = vmatprep.subr.mxu0 0.0
    %3233 = vmatpush1.msra.mxu0 0.0
    %3234 = vmatprep.subr.mxu0 0.0
    %3235 = vmatpush1.msra.mxu0 0.0
    %3236 = vmatprep.subr.mxu0 0.0
    %3237 = vmatpush1.msra.mxu0 0.0
    %3238 = vmatprep.subr.mxu0 0.0
    %3239 = vmatpush1.msra.mxu0 0.0
    %3240 = vmatprep.subr.mxu0 0.0
    %3241 = vmatpush1.msra.mxu0 0.0
    %3242 = vmatprep.subr.mxu0 0.0
    %3243 = vmatpush1.msra.mxu0 0.0
    %3244 = vmatprep.subr.mxu0 0.0
    %3245 = vmatpush1.msra.mxu0 0.0
    %3246 = vmatprep.subr.mxu0 0.0
    %3247 = vmatpush1.msra.mxu0 0.0
    %3248 = vmatprep.subr.mxu0 0.0
    %3249 = vmatpush1.msra.mxu0 0.0
    %3250 = vmatprep.subr.mxu0 0.0
    %3251 = vmatpush1.msra.mxu0 0.0
    %3252 = vmatprep.subr.mxu0 0.0
    %3253 = vmatpush1.msra.mxu0 0.0
    %3254 = vmatprep.subr.mxu0 0.0
    %3255 = vmatpush1.msra.mxu0 0.0
    %3256 = vmatprep.subr.mxu0 0.0
    %3257 = vmatpush1.msra.mxu0 0.0
    %3258 = vmatprep.subr.mxu0 0.0
    %3259 = vmatpush1.msra.mxu0 0.0
    %3260 = vmatprep.subr.mxu0 0.0
    %3261 = vmatpush1.msra.mxu0 0.0
    %3262 = vmatprep.subr.mxu0 0.0
    %3263 = vmatpush1.msra.mxu0 0.0
    %3264 = vmatprep.subr.mxu0 0.0
    %3265 = vmatpush1.msra.mxu0 0.0
    %3266 = vmatprep.subr.mxu0 0.0
    %3267 = vmatpush1.msra.mxu0 0.0
    %3268 = vmatprep.subr.mxu0 0.0
    %3269 = vmatpush1.msra.mxu0 0.0
    %3270 = vmatprep.subr.mxu0 0.0
    %3271 = vmatpush1.msra.mxu0 0.0
    %3272 = vmatprep.subr.mxu0 0.0
    %3273 = vmatpush1.msra.mxu0 0.0
    %3274 = vmatprep.mubr.f32.mxu0 0.0
    %3275 = vmatmul.mubr.f32.gmra.mrb[0].mxu0 %v3208
    %v3276 = vpop.f32.mrb[0].mxu0
    %v3277 = vadd.f32 %v3202, %v3276
    %v3278 = vpop.f32.mrb[0].mxu0
    %3279 = vdwg.mxu0
    %v3280 = vadd.f32 %v3277, %v2394
    %v3281 = vsel %vm1520, %v3280, -inf
    %3282 = vmax.xlane.f32.xlu0 %v3281
    %v3283 = vpop.xlane.xlu0 %3282
    %v3284 = vsub.f32 %v3280, %v3283
    %v3285 = vmul.f32 %v3284, 1.442695
    %v3286 = vpow.pop %v3285
    %v3287 = vsel %vm1520, %v3286, 0.0
    %3288 = vadd.xlane.f32.xlu0 %v3287
    %v3289 = vpop.xlane.xlu0 %3288
    %v3290 = vlog2.pop %v3289
    %v3291 = vmul.f32 %v3290, 0.6931472
    %v3292 = vsub.f32 %v3284, %v3291
    %s3293 = scalar_lea.vmem [#allocation17], 8
    %3294 = vst.msk [vmem:[%s3293] sm:$0xf] %vm1520, %v3292
    %v3295 = vsel %vm1520, %v3292, -inf
    %3296 = vmax.xlane.f32.xlu0 %v3295
    %v3297 = vpop.xlane.xlu0 %3296
    %vm3298 = vcmp.eq.f32.partialorder %v3292, %v3297
    %v3299 = vsel %vm3298, %v216, 16
    %v3300 = vsel %vm1520, %v3299, 2147483647
    %v3301 = vand.u32 %v3300, 65535
    %v3302 = vshra.s32 %v3300, 16
    %v3303 = vcvt.s32.f32 %v3301
    %v3304 = vcvt.s32.f32 %v3302
    %3305 = vmin.xlane.f32.xlu0 %v3304
    %v3306 = vpop.xlane.xlu0 %3305
    %vm3307 = vcmp.eq.f32.partialorder %v3304, %v3306
    %v3308 = vsel %vm3307, %v3303, inf
    %3309 = vmin.xlane.f32.xlu0 %v3308
    %v3310 = vpop.xlane.xlu0 %3309
    %v3311 = vcvt.f32.s32 %v3310
    %v3312 = vcvt.f32.s32 %v3306
    %v3313 = vshll.u32 %v3312, 16
    %v3314 = vadd.s32 %v3313, %v3311
    %vm3315 = vcmp.eq.s32.totalorder %v216, %v3314
    %v3316 = vsel %vm3315, 1, 0
    %v3317 = vcvt.s32.f32 %v3316
    %v3319 = vsel %vm255, %v3317, 0
    %3321 = vmatprep.subr.mxu0 0.0
    %3322 = vmatpush1.msra.mxu0 %v1495
    %3323 = vmatprep.subr.mxu0 0.0
    %3324 = vmatpush1.msra.mxu0 %v1496
    %3325 = vmatprep.subr.mxu0 0.0
    %3326 = vmatpush1.msra.mxu0 0.0
    %3327 = vmatprep.subr.mxu0 0.0
    %3328 = vmatpush1.msra.mxu0 0.0
    %3329 = vmatprep.subr.mxu0 0.0
    %3330 = vmatpush1.msra.mxu0 0.0
    %3331 = vmatprep.subr.mxu0 0.0
    %3332 = vmatpush1.msra.mxu0 0.0
    %3333 = vmatprep.subr.mxu0 0.0
    %3334 = vmatpush1.msra.mxu0 0.0
    %3335 = vmatprep.subr.mxu0 0.0
    %3336 = vmatpush1.msra.mxu0 0.0
    %3337 = vmatprep.subr.mxu0 0.0
    %3338 = vmatpush1.msra.mxu0 0.0
    %3339 = vmatprep.subr.mxu0 0.0
    %3340 = vmatpush1.msra.mxu0 0.0
    %3341 = vmatprep.subr.mxu0 0.0
    %3342 = vmatpush1.msra.mxu0 0.0
    %3343 = vmatprep.subr.mxu0 0.0
    %3344 = vmatpush1.msra.mxu0 0.0
    %3345 = vmatprep.subr.mxu0 0.0
    %3346 = vmatpush1.msra.mxu0 0.0
    %3347 = vmatprep.subr.mxu0 0.0
    %3348 = vmatpush1.msra.mxu0 0.0
    %3349 = vmatprep.subr.mxu0 0.0
    %3350 = vmatpush1.msra.mxu0 0.0
    %3351 = vmatprep.subr.mxu0 0.0
    %3352 = vmatpush1.msra.mxu0 0.0
    %3353 = vmatprep.subr.mxu0 0.0
    %3354 = vmatpush1.msra.mxu0 0.0
    %3355 = vmatprep.subr.mxu0 0.0
    %3356 = vmatpush1.msra.mxu0 0.0
    %3357 = vmatprep.subr.mxu0 0.0
    %3358 = vmatpush1.msra.mxu0 0.0
    %3359 = vmatprep.subr.mxu0 0.0
    %3360 = vmatpush1.msra.mxu0 0.0
    %3361 = vmatprep.subr.mxu0 0.0
    %3362 = vmatpush1.msra.mxu0 0.0
    %3363 = vmatprep.subr.mxu0 0.0
    %3364 = vmatpush1.msra.mxu0 0.0
    %3365 = vmatprep.subr.mxu0 0.0
    %3366 = vmatpush1.msra.mxu0 0.0
    %3367 = vmatprep.subr.mxu0 0.0
    %3368 = vmatpush1.msra.mxu0 0.0
    %3369 = vmatprep.subr.mxu0 0.0
    %3370 = vmatpush1.msra.mxu0 0.0
    %3371 = vmatprep.subr.mxu0 0.0
    %3372 = vmatpush1.msra.mxu0 0.0
    %3373 = vmatprep.subr.mxu0 0.0
    %3374 = vmatpush1.msra.mxu0 0.0
    %3375 = vmatprep.subr.mxu0 0.0
    %3376 = vmatpush1.msra.mxu0 0.0
    %3377 = vmatprep.subr.mxu0 0.0
    %3378 = vmatpush1.msra.mxu0 0.0
    %3379 = vmatprep.subr.mxu0 0.0
    %3380 = vmatpush1.msra.mxu0 0.0
    %3381 = vmatprep.subr.mxu0 0.0
    %3382 = vmatpush1.msra.mxu0 0.0
    %3383 = vmatprep.subr.mxu0 0.0
    %3384 = vmatpush1.msra.mxu0 0.0
    %3385 = vmatprep.mubr.f32.mxu0 0.0
    %3386 = vmatmul.mubr.f32.gmra.mrb[0].mxu0 %v3319
    %v3387 = vpop.f32.mrb[0].mxu0
    %v3388 = vadd.f32 0.0, %v3387
    %v3389 = vpop.f32.mrb[0].mxu0
    %3390 = vdwg.mxu0
    %3391 = vmatprep.subr.mxu0 0.0
    %3392 = vmatpush1.msra.mxu0 %v1491
    %3393 = vmatprep.subr.mxu0 0.0
    %3394 = vmatpush1.msra.mxu0 %v1492
    %3395 = vmatprep.subr.mxu0 0.0
    %3396 = vmatpush1.msra.mxu0 %v1493
    %3397 = vmatprep.subr.mxu0 0.0
    %3398 = vmatpush1.msra.mxu0 %v1494
    %3399 = vmatprep.subr.mxu0 0.0
    %3400 = vmatpush1.msra.mxu0 0.0
    %3401 = vmatprep.subr.mxu0 0.0
    %3402 = vmatpush1.msra.mxu0 0.0
    %3403 = vmatprep.subr.mxu0 0.0
    %3404 = vmatpush1.msra.mxu0 0.0
    %3405 = vmatprep.subr.mxu0 0.0
    %3406 = vmatpush1.msra.mxu0 0.0
    %3407 = vmatprep.subr.mxu0 0.0
    %3408 = vmatpush1.msra.mxu0 0.0
    %3409 = vmatprep.subr.mxu0 0.0
    %3410 = vmatpush1.msra.mxu0 0.0
    %3411 = vmatprep.subr.mxu0 0.0
    %3412 = vmatpush1.msra.mxu0 0.0
    %3413 = vmatprep.subr.mxu0 0.0
    %3414 = vmatpush1.msra.mxu0 0.0
    %3415 = vmatprep.subr.mxu0 0.0
    %3416 = vmatpush1.msra.mxu0 0.0
    %3417 = vmatprep.subr.mxu0 0.0
    %3418 = vmatpush1.msra.mxu0 0.0
    %3419 = vmatprep.subr.mxu0 0.0
    %3420 = vmatpush1.msra.mxu0 0.0
    %3421 = vmatprep.subr.mxu0 0.0
    %3422 = vmatpush1.msra.mxu0 0.0
    %3423 = vmatprep.subr.mxu0 0.0
    %3424 = vmatpush1.msra.mxu0 0.0
    %3425 = vmatprep.subr.mxu0 0.0
    %3426 = vmatpush1.msra.mxu0 0.0
    %3427 = vmatprep.subr.mxu0 0.0
    %3428 = vmatpush1.msra.mxu0 0.0
    %3429 = vmatprep.subr.mxu0 0.0
    %3430 = vmatpush1.msra.mxu0 0.0
    %3431 = vmatprep.subr.mxu0 0.0
    %3432 = vmatpush1.msra.mxu0 0.0
    %3433 = vmatprep.subr.mxu0 0.0
    %3434 = vmatpush1.msra.mxu0 0.0
    %3435 = vmatprep.subr.mxu0 0.0
    %3436 = vmatpush1.msra.mxu0 0.0
    %3437 = vmatprep.subr.mxu0 0.0
    %3438 = vmatpush1.msra.mxu0 0.0
    %3439 = vmatprep.subr.mxu0 0.0
    %3440 = vmatpush1.msra.mxu0 0.0
    %3441 = vmatprep.subr.mxu0 0.0
    %3442 = vmatpush1.msra.mxu0 0.0
    %3443 = vmatprep.subr.mxu0 0.0
    %3444 = vmatpush1.msra.mxu0 0.0
    %3445 = vmatprep.subr.mxu0 0.0
    %3446 = vmatpush1.msra.mxu0 0.0
    %3447 = vmatprep.subr.mxu0 0.0
    %3448 = vmatpush1.msra.mxu0 0.0
    %3449 = vmatprep.subr.mxu0 0.0
    %3450 = vmatpush1.msra.mxu0 0.0
    %3451 = vmatprep.subr.mxu0 0.0
    %3452 = vmatpush1.msra.mxu0 0.0
    %3453 = vmatprep.subr.mxu0 0.0
    %3454 = vmatpush1.msra.mxu0 0.0
    %3455 = vmatprep.mubr.f32.mxu0 0.0
    %3456 = vmatmul.mubr.f32.gmra.mrb[0].mxu0 %v3208
    %v3457 = vpop.f32.mrb[0].mxu0
    %v3458 = vadd.f32 0.0, %v3457
    %v3459 = vpop.f32.mrb[0].mxu0
    %3460 = vdwg.mxu0
    %v3461 = vadd.f32 %v3458, %v1437
    %v3462 = vadd.f32 %v3458, %v1459
    %v3463 = vadd.f32 %v3458, %v1442
    %v3464 = vadd.f32 %v3458, %v1460
    %v3465 = vadd.f32 %v3458, %v1447
    %v3466 = vadd.f32 %v3458, %v1461
    %v3467 = vadd.f32 %v3458, %v1452
    %v3468 = vadd.f32 %v3458, %v1462
    %v3469 = vmax.f32 %v3461, 0.0
    %v3470 = vmax.f32 %v3462, 0.0
    %v3471 = vmax.f32 %v3463, 0.0
    %v3472 = vmax.f32 %v3464, 0.0
    %v3473 = vmax.f32 %v3465, 0.0
    %v3474 = vmax.f32 %v3466, 0.0
    %v3475 = vmax.f32 %v3467, 0.0
    %v3476 = vmax.f32 %v3468, 0.0
    %v3485 = vcombine.low %v3469, %v3470
    %v3486 = vcombine.low %v3471, %v3472
    %v3487 = vcombine.low %v3473, %v3474
    %v3488 = vcombine.low %v3475, %v3476
    %v3489 = vsel %vm360, %v3485, 0
    %v3491 = vsel %vm360, %v3486, 0
    %v3493 = vsel %vm360, %v3487, 0
    %v3495 = vsel %vm360, %v3488, 0
    %3497 = vmatprep.subr.mxu0 0.0
    %3498 = vmatpush1.msra.mxu0 %v1474
    %3499 = vmatprep.subr.mxu0 0.0
    %3500 = vmatpush1.msra.mxu0 %v1479
    %3501 = vmatprep.subr.mxu0 0.0
    %3502 = vmatpush1.msra.mxu0 %v1484
    %3503 = vmatprep.subr.mxu0 0.0
    %3504 = vmatpush1.msra.mxu0 %v1489
    %3505 = vmatprep.subr.mxu0 0.0
    %3506 = vmatpush1.msra.mxu0 0.0
    %3507 = vmatprep.subr.mxu0 0.0
    %3508 = vmatpush1.msra.mxu0 0.0
    %3509 = vmatprep.subr.mxu0 0.0
    %3510 = vmatpush1.msra.mxu0 0.0
    %3511 = vmatprep.subr.mxu0 0.0
    %3512 = vmatpush1.msra.mxu0 0.0
    %3513 = vmatprep.subr.mxu0 0.0
    %3514 = vmatpush1.msra.mxu0 0.0
    %3515 = vmatprep.subr.mxu0 0.0
    %3516 = vmatpush1.msra.mxu0 0.0
    %3517 = vmatprep.subr.mxu0 0.0
    %3518 = vmatpush1.msra.mxu0 0.0
    %3519 = vmatprep.subr.mxu0 0.0
    %3520 = vmatpush1.msra.mxu0 0.0
    %3521 = vmatprep.subr.mxu0 0.0
    %3522 = vmatpush1.msra.mxu0 0.0
    %3523 = vmatprep.subr.mxu0 0.0
    %3524 = vmatpush1.msra.mxu0 0.0
    %3525 = vmatprep.subr.mxu0 0.0
    %3526 = vmatpush1.msra.mxu0 0.0
    %3527 = vmatprep.subr.mxu0 0.0
    %3528 = vmatpush1.msra.mxu0 0.0
    %3529 = vmatprep.subr.mxu0 0.0
    %3530 = vmatpush1.msra.mxu0 0.0
    %3531 = vmatprep.subr.mxu0 0.0
    %3532 = vmatpush1.msra.mxu0 0.0
    %3533 = vmatprep.subr.mxu0 0.0
    %3534 = vmatpush1.msra.mxu0 0.0
    %3535 = vmatprep.subr.mxu0 0.0
    %3536 = vmatpush1.msra.mxu0 0.0
    %3537 = vmatprep.subr.mxu0 0.0
    %3538 = vmatpush1.msra.mxu0 0.0
    %3539 = vmatprep.subr.mxu0 0.0
    %3540 = vmatpush1.msra.mxu0 0.0
    %3541 = vmatprep.subr.mxu0 0.0
    %3542 = vmatpush1.msra.mxu0 0.0
    %3543 = vmatprep.subr.mxu0 0.0
    %3544 = vmatpush1.msra.mxu0 0.0
    %3545 = vmatprep.subr.mxu0 0.0
    %3546 = vmatpush1.msra.mxu0 0.0
    %3547 = vmatprep.subr.mxu0 0.0
    %3548 = vmatpush1.msra.mxu0 0.0
    %3549 = vmatprep.subr.mxu0 0.0
    %3550 = vmatpush1.msra.mxu0 0.0
    %3551 = vmatprep.subr.mxu0 0.0
    %3552 = vmatpush1.msra.mxu0 0.0
    %3553 = vmatprep.subr.mxu0 0.0
    %3554 = vmatpush1.msra.mxu0 0.0
    %3555 = vmatprep.subr.mxu0 0.0
    %3556 = vmatpush1.msra.mxu0 0.0
    %3557 = vmatprep.subr.mxu0 0.0
    %3558 = vmatpush1.msra.mxu0 0.0
    %3559 = vmatprep.subr.mxu0 0.0
    %3560 = vmatpush1.msra.mxu0 0.0
    %3561 = vmatprep.mubr.f32.mxu0 0.0
    %3562 = vmatmul.mubr.f32.gmra.mrb[0].mxu0 %v3489
    %v3563 = vpop.f32.mrb[0].mxu0
    %v3564 = vadd.f32 0.0, %v3563
    %v3565 = vpop.f32.mrb[0].mxu0
    %3566 = vmatprep.mubr.f32.mxu0 0.0
    %3567 = vmatmul.mubr.f32.gmra.mrb[0].mxu0 %v3491
    %v3568 = vpop.f32.mrb[0].mxu0
    %v3569 = vadd.f32 0.0, %v3568
    %v3570 = vpop.f32.mrb[0].mxu0
    %3571 = vmatprep.mubr.f32.mxu0 0.0
    %3572 = vmatmul.mubr.f32.gmra.mrb[0].mxu0 %v3493
    %v3573 = vpop.f32.mrb[0].mxu0
    %v3574 = vadd.f32 0.0, %v3573
    %v3575 = vpop.f32.mrb[0].mxu0
    %3576 = vmatprep.mubr.f32.mxu0 0.0
    %3577 = vmatmul.mubr.f32.gmra.mrb[0].mxu0 %v3495
    %v3578 = vpop.f32.mrb[0].mxu0
    %v3579 = vadd.f32 0.0, %v3578
    %v3580 = vpop.f32.mrb[0].mxu0
    %3581 = vdwg.mxu0
    %v3586 = vcombine.high %v3564, %v3564
    %v3587 = vcombine.high %v3569, %v3569
    %v3588 = vcombine.high %v3574, %v3574
    %v3589 = vcombine.high %v3579, %v3579
    %v3594 = vsel %vm1806, %v3564, -inf
    %v3595 = vsel %vm1806, %v3586, -inf
    %v3596 = vsel %vm1806, %v3569, -inf
    %v3597 = vsel %vm1806, %v3587, -inf
    %v3598 = vsel %vm1806, %v3574, -inf
    %v3599 = vmax.f32 %v3594, %v3598
    %v3600 = vsel %vm1806, %v3588, -inf
    %v3601 = vmax.f32 %v3595, %v3600
    %v3602 = vsel %vm1806, %v3579, -inf
    %v3603 = vmax.f32 %v3596, %v3602
    %v3604 = vsel %vm1806, %v3589, -inf
    %v3605 = vmax.f32 %v3597, %v3604
    %v3606 = vmax.f32 %v3599, %v3601
    %v3607 = vmax.f32 %v3603, %v3605
    %v3608 = vmax.f32 %v3606, %v3607
    %v3609 = vsub.f32 %v3564, %v3608
    %v3610 = vsub.f32 %v3586, %v3608
    %v3611 = vsub.f32 %v3569, %v3608
    %v3612 = vsub.f32 %v3587, %v3608
    %v3613 = vsub.f32 %v3574, %v3608
    %v3614 = vsub.f32 %v3588, %v3608
    %v3615 = vsub.f32 %v3579, %v3608
    %v3616 = vsub.f32 %v3589, %v3608
    %v3617 = vmul.f32 %v3609, 1.442695
    %v3618 = vpow.pop %v3617
    %v3619 = vmul.f32 %v3610, 1.442695
    %v3620 = vpow.pop %v3619
    %v3621 = vmul.f32 %v3611, 1.442695
    %v3622 = vpow.pop %v3621
    %v3623 = vmul.f32 %v3612, 1.442695
    %v3624 = vpow.pop %v3623
    %v3625 = vmul.f32 %v3613, 1.442695
    %v3626 = vpow.pop %v3625
    %v3627 = vmul.f32 %v3614, 1.442695
    %v3628 = vpow.pop %v3627
    %v3629 = vmul.f32 %v3615, 1.442695
    %v3630 = vpow.pop %v3629
    %v3631 = vmul.f32 %v3616, 1.442695
    %v3632 = vpow.pop %v3631
    %v3633 = vsel %vm1806, %v3618, 0.0
    %v3634 = vsel %vm1806, %v3620, 0.0
    %v3635 = vadd.f32 %v3633, %v3634
    %v3636 = vsel %vm1806, %v3622, 0.0
    %v3637 = vadd.f32 %v3635, %v3636
    %v3638 = vsel %vm1806, %v3624, 0.0
    %v3639 = vadd.f32 %v3637, %v3638
    %v3640 = vsel %vm1806, %v3626, 0.0
    %v3641 = vadd.f32 %v3639, %v3640
    %v3642 = vsel %vm1806, %v3628, 0.0
    %v3643 = vadd.f32 %v3641, %v3642
    %v3644 = vsel %vm1806, %v3630, 0.0
    %v3645 = vadd.f32 %v3643, %v3644
    %v3646 = vsel %vm1806, %v3632, 0.0
    %v3647 = vadd.f32 %v3645, %v3646
    %v3648 = vrcp.pop %v3647
    %v3649 = vmul.f32 %v3618, %v3648
    %v3650 = vmul.f32 %v3620, %v3648
    %v3651 = vmul.f32 %v3622, %v3648
    %v3652 = vmul.f32 %v3624, %v3648
    %v3653 = vmul.f32 %v3626, %v3648
    %v3654 = vmul.f32 %v3628, %v3648
    %v3655 = vmul.f32 %v3630, %v3648
    %v3656 = vmul.f32 %v3632, %v3648
    %3658 = vset.pattern.permute.xlu0 0
    %3659 = vperm.xlu0 %3658, %v3649
    %v3660 = vpop.permute.xlu0 %3659
    %v3663 = vunpack.c.l.s4 839922192
    %v3664 = vunpack.c.0.s8 %v3663
    %v3665 = vlaneseq
    %v3666 = vshrl.u32 %v3665, 7
    %v3667 = vsub.s32 %v3664, %v3666
    %v3668 = vrot.slane %v3660, %v3667
    %3670 = vset.pattern.permute.xlu0 0
    %3671 = vperm.xlu0 %3670, %v3650
    %v3672 = vpop.permute.xlu0 %3671
    %v3675 = vunpack.c.l.s4 839922192
    %v3676 = vunpack.c.0.s8 %v3675
    %v3677 = vlaneseq
    %v3678 = vshrl.u32 %v3677, 7
    %v3679 = vsub.s32 %v3676, %v3678
    %v3680 = vrot.slane %v3672, %v3679
    %3682 = vset.pattern.permute.xlu0 0
    %3683 = vperm.xlu0 %3682, %v3651
    %v3684 = vpop.permute.xlu0 %3683
    %v3687 = vunpack.c.l.s4 839922192
    %v3688 = vunpack.c.0.s8 %v3687
    %v3689 = vlaneseq
    %v3690 = vshrl.u32 %v3689, 7
    %v3691 = vsub.s32 %v3688, %v3690
    %v3692 = vrot.slane %v3684, %v3691
    %3694 = vset.pattern.permute.xlu0 0
    %3695 = vperm.xlu0 %3694, %v3652
    %v3696 = vpop.permute.xlu0 %3695
    %v3699 = vunpack.c.l.s4 839922192
    %v3700 = vunpack.c.0.s8 %v3699
    %v3701 = vlaneseq
    %v3702 = vshrl.u32 %v3701, 7
    %v3703 = vsub.s32 %v3700, %v3702
    %v3704 = vrot.slane %v3696, %v3703
    %3706 = vset.pattern.permute.xlu0 0
    %3707 = vperm.xlu0 %3706, %v3653
    %v3708 = vpop.permute.xlu0 %3707
    %v3711 = vunpack.c.l.s4 839922192
    %v3712 = vunpack.c.0.s8 %v3711
    %v3713 = vlaneseq
    %v3714 = vshrl.u32 %v3713, 7
    %v3715 = vsub.s32 %v3712, %v3714
    %v3716 = vrot.slane %v3708, %v3715
    %3718 = vset.pattern.permute.xlu0 0
    %3719 = vperm.xlu0 %3718, %v3654
    %v3720 = vpop.permute.xlu0 %3719
    %v3723 = vunpack.c.l.s4 839922192
    %v3724 = vunpack.c.0.s8 %v3723
    %v3725 = vlaneseq
    %v3726 = vshrl.u32 %v3725, 7
    %v3727 = vsub.s32 %v3724, %v3726
    %v3728 = vrot.slane %v3720, %v3727
    %3730 = vset.pattern.permute.xlu0 0
    %3731 = vperm.xlu0 %3730, %v3655
    %v3732 = vpop.permute.xlu0 %3731
    %v3735 = vunpack.c.l.s4 839922192
    %v3736 = vunpack.c.0.s8 %v3735
    %v3737 = vlaneseq
    %v3738 = vshrl.u32 %v3737, 7
    %v3739 = vsub.s32 %v3736, %v3738
    %v3740 = vrot.slane %v3732, %v3739
    %3742 = vset.pattern.permute.xlu0 0
    %3743 = vperm.xlu0 %3742, %v3656
    %v3744 = vpop.permute.xlu0 %3743
    %v3747 = vunpack.c.l.s4 839922192
    %v3748 = vunpack.c.0.s8 %v3747
    %v3749 = vlaneseq
    %v3750 = vshrl.u32 %v3749, 7
    %v3751 = vsub.s32 %v3748, %v3750
    %v3752 = vrot.slane %v3744, %v3751
    %v3753 = vmul.f32 %v3668, %v1331
    %v3754 = vmul.f32 %v3680, %v1332
    %v3755 = vmul.f32 %v3692, %v1333
    %v3756 = vmul.f32 %v3704, %v1334
    %v3757 = vmul.f32 %v3716, %v1335
    %v3758 = vmul.f32 %v3728, %v1336
    %v3759 = vmul.f32 %v3740, %v1337
    %v3760 = vmul.f32 %v3752, %v1338
    %v3761 = vsel %vm572, %v3753, 0.0
    %v3762 = vsel %vm572, %v3754, 0.0
    %v3763 = vadd.f32 %v3761, %v3762
    %v3764 = vsel %vm572, %v3755, 0.0
    %v3765 = vadd.f32 %v3763, %v3764
    %v3766 = vsel %vm572, %v3756, 0.0
    %v3767 = vadd.f32 %v3765, %v3766
    %v3768 = vsel %vm572, %v3757, 0.0
    %v3769 = vadd.f32 %v3767, %v3768
    %v3770 = vsel %vm572, %v3758, 0.0
    %v3771 = vadd.f32 %v3769, %v3770
    %v3772 = vsel %vm572, %v3759, 0.0
    %v3773 = vadd.f32 %v3771, %v3772
    %v3774 = vsel %vm572, %v3760, 0.0
    %v3775 = vadd.f32 %v3773, %v3774
    %v3777 = vsel %vm360, %v3775, 0
    %3779 = vmatprep.subr.mxu0 0.0
    %3780 = vmatpush1.msra.mxu0 %v1501
    %3781 = vmatprep.subr.mxu0 0.0
    %3782 = vmatpush1.msra.mxu0 %v1502
    %3783 = vmatprep.subr.mxu0 0.0
    %3784 = vmatpush1.msra.mxu0 %v1503
    %3785 = vmatprep.subr.mxu0 0.0
    %3786 = vmatpush1.msra.mxu0 %v1504
    %3787 = vmatprep.subr.mxu0 0.0
    %3788 = vmatpush1.msra.mxu0 0.0
    %3789 = vmatprep.subr.mxu0 0.0
    %3790 = vmatpush1.msra.mxu0 0.0
    %3791 = vmatprep.subr.mxu0 0.0
    %3792 = vmatpush1.msra.mxu0 0.0
    %3793 = vmatprep.subr.mxu0 0.0
    %3794 = vmatpush1.msra.mxu0 0.0
    %3795 = vmatprep.subr.mxu0 0.0
    %3796 = vmatpush1.msra.mxu0 0.0
    %3797 = vmatprep.subr.mxu0 0.0
    %3798 = vmatpush1.msra.mxu0 0.0
    %3799 = vmatprep.subr.mxu0 0.0
    %3800 = vmatpush1.msra.mxu0 0.0
    %3801 = vmatprep.subr.mxu0 0.0
    %3802 = vmatpush1.msra.mxu0 0.0
    %3803 = vmatprep.subr.mxu0 0.0
    %3804 = vmatpush1.msra.mxu0 0.0
    %3805 = vmatprep.subr.mxu0 0.0
    %3806 = vmatpush1.msra.mxu0 0.0
    %3807 = vmatprep.subr.mxu0 0.0
    %3808 = vmatpush1.msra.mxu0 0.0
    %3809 = vmatprep.subr.mxu0 0.0
    %3810 = vmatpush1.msra.mxu0 0.0
    %3811 = vmatprep.subr.mxu0 0.0
    %3812 = vmatpush1.msra.mxu0 0.0
    %3813 = vmatprep.subr.mxu0 0.0
    %3814 = vmatpush1.msra.mxu0 0.0
    %3815 = vmatprep.subr.mxu0 0.0
    %3816 = vmatpush1.msra.mxu0 0.0
    %3817 = vmatprep.subr.mxu0 0.0
    %3818 = vmatpush1.msra.mxu0 0.0
    %3819 = vmatprep.subr.mxu0 0.0
    %3820 = vmatpush1.msra.mxu0 0.0
    %3821 = vmatprep.subr.mxu0 0.0
    %3822 = vmatpush1.msra.mxu0 0.0
    %3823 = vmatprep.subr.mxu0 0.0
    %3824 = vmatpush1.msra.mxu0 0.0
    %3825 = vmatprep.subr.mxu0 0.0
    %3826 = vmatpush1.msra.mxu0 0.0
    %3827 = vmatprep.subr.mxu0 0.0
    %3828 = vmatpush1.msra.mxu0 0.0
    %3829 = vmatprep.subr.mxu0 0.0
    %3830 = vmatpush1.msra.mxu0 0.0
    %3831 = vmatprep.subr.mxu0 0.0
    %3832 = vmatpush1.msra.mxu0 0.0
    %3833 = vmatprep.subr.mxu0 0.0
    %3834 = vmatpush1.msra.mxu0 0.0
    %3835 = vmatprep.subr.mxu0 0.0
    %3836 = vmatpush1.msra.mxu0 0.0
    %3837 = vmatprep.subr.mxu0 0.0
    %3838 = vmatpush1.msra.mxu0 0.0
    %3839 = vmatprep.subr.mxu0 0.0
    %3840 = vmatpush1.msra.mxu0 0.0
    %3841 = vmatprep.subr.mxu0 0.0
    %3842 = vmatpush1.msra.mxu0 0.0
    %3843 = vmatprep.mubr.f32.mxu0 0.0
    %3844 = vmatmul.mubr.f32.gmra.mrb[0].mxu0 %v3777
    %v3845 = vpop.f32.mrb[0].mxu0
    %v3846 = vadd.f32 0.0, %v3845
    %v3847 = vpop.f32.mrb[0].mxu0
    %3848 = vdwg.mxu0
    %v3850 = vsel %vm360, %v3388, 0
    %3852 = vmatprep.subr.mxu0 0.0
    %3853 = vmatpush1.msra.mxu0 %v1497
    %3854 = vmatprep.subr.mxu0 0.0
    %3855 = vmatpush1.msra.mxu0 %v1498
    %3856 = vmatprep.subr.mxu0 0.0
    %3857 = vmatpush1.msra.mxu0 %v1499
    %3858 = vmatprep.subr.mxu0 0.0
    %3859 = vmatpush1.msra.mxu0 %v1500
    %3860 = vmatprep.subr.mxu0 0.0
    %3861 = vmatpush1.msra.mxu0 0.0
    %3862 = vmatprep.subr.mxu0 0.0
    %3863 = vmatpush1.msra.mxu0 0.0
    %3864 = vmatprep.subr.mxu0 0.0
    %3865 = vmatpush1.msra.mxu0 0.0
    %3866 = vmatprep.subr.mxu0 0.0
    %3867 = vmatpush1.msra.mxu0 0.0
    %3868 = vmatprep.subr.mxu0 0.0
    %3869 = vmatpush1.msra.mxu0 0.0
    %3870 = vmatprep.subr.mxu0 0.0
    %3871 = vmatpush1.msra.mxu0 0.0
    %3872 = vmatprep.subr.mxu0 0.0
    %3873 = vmatpush1.msra.mxu0 0.0
    %3874 = vmatprep.subr.mxu0 0.0
    %3875 = vmatpush1.msra.mxu0 0.0
    %3876 = vmatprep.subr.mxu0 0.0
    %3877 = vmatpush1.msra.mxu0 0.0
    %3878 = vmatprep.subr.mxu0 0.0
    %3879 = vmatpush1.msra.mxu0 0.0
    %3880 = vmatprep.subr.mxu0 0.0
    %3881 = vmatpush1.msra.mxu0 0.0
    %3882 = vmatprep.subr.mxu0 0.0
    %3883 = vmatpush1.msra.mxu0 0.0
    %3884 = vmatprep.subr.mxu0 0.0
    %3885 = vmatpush1.msra.mxu0 0.0
    %3886 = vmatprep.subr.mxu0 0.0
    %3887 = vmatpush1.msra.mxu0 0.0
    %3888 = vmatprep.subr.mxu0 0.0
    %3889 = vmatpush1.msra.mxu0 0.0
    %3890 = vmatprep.subr.mxu0 0.0
    %3891 = vmatpush1.msra.mxu0 0.0
    %3892 = vmatprep.subr.mxu0 0.0
    %3893 = vmatpush1.msra.mxu0 0.0
    %3894 = vmatprep.subr.mxu0 0.0
    %3895 = vmatpush1.msra.mxu0 0.0
    %3896 = vmatprep.subr.mxu0 0.0
    %3897 = vmatpush1.msra.mxu0 0.0
    %3898 = vmatprep.subr.mxu0 0.0
    %3899 = vmatpush1.msra.mxu0 0.0
    %3900 = vmatprep.subr.mxu0 0.0
    %3901 = vmatpush1.msra.mxu0 0.0
    %3902 = vmatprep.subr.mxu0 0.0
    %3903 = vmatpush1.msra.mxu0 0.0
    %3904 = vmatprep.subr.mxu0 0.0
    %3905 = vmatpush1.msra.mxu0 0.0
    %3906 = vmatprep.subr.mxu0 0.0
    %3907 = vmatpush1.msra.mxu0 0.0
    %3908 = vmatprep.subr.mxu0 0.0
    %3909 = vmatpush1.msra.mxu0 0.0
    %3910 = vmatprep.subr.mxu0 0.0
    %3911 = vmatpush1.msra.mxu0 0.0
    %3912 = vmatprep.subr.mxu0 0.0
    %3913 = vmatpush1.msra.mxu0 0.0
    %3914 = vmatprep.subr.mxu0 0.0
    %3915 = vmatpush1.msra.mxu0 0.0
    %3916 = vmatprep.mubr.f32.mxu0 0.0
    %3917 = vmatmul.mubr.f32.gmra.mrb[0].mxu0 %v3850
    %v3918 = vpop.f32.mrb[0].mxu0
    %v3919 = vadd.f32 %v3846, %v3918
    %v3920 = vpop.f32.mrb[0].mxu0
    %3921 = vdwg.mxu0
    %v3922 = vadd.f32 %v3919, %v2139
    %3923 = vmatprep.subr.mxu0 0.0
    %3924 = vmatpush1.msra.mxu0 %v1505
    %3925 = vmatprep.subr.mxu0 0.0
    %3926 = vmatpush1.msra.mxu0 %v1506
    %3927 = vmatprep.subr.mxu0 0.0
    %3928 = vmatpush1.msra.mxu0 %v1507
    %3929 = vmatprep.subr.mxu0 0.0
    %3930 = vmatpush1.msra.mxu0 %v1508
    %3931 = vmatprep.subr.mxu0 0.0
    %3932 = vmatpush1.msra.mxu0 0.0
    %3933 = vmatprep.subr.mxu0 0.0
    %3934 = vmatpush1.msra.mxu0 0.0
    %3935 = vmatprep.subr.mxu0 0.0
    %3936 = vmatpush1.msra.mxu0 0.0
    %3937 = vmatprep.subr.mxu0 0.0
    %3938 = vmatpush1.msra.mxu0 0.0
    %3939 = vmatprep.subr.mxu0 0.0
    %3940 = vmatpush1.msra.mxu0 0.0
    %3941 = vmatprep.subr.mxu0 0.0
    %3942 = vmatpush1.msra.mxu0 0.0
    %3943 = vmatprep.subr.mxu0 0.0
    %3944 = vmatpush1.msra.mxu0 0.0
    %3945 = vmatprep.subr.mxu0 0.0
    %3946 = vmatpush1.msra.mxu0 0.0
    %3947 = vmatprep.subr.mxu0 0.0
    %3948 = vmatpush1.msra.mxu0 0.0
    %3949 = vmatprep.subr.mxu0 0.0
    %3950 = vmatpush1.msra.mxu0 0.0
    %3951 = vmatprep.subr.mxu0 0.0
    %3952 = vmatpush1.msra.mxu0 0.0
    %3953 = vmatprep.subr.mxu0 0.0
    %3954 = vmatpush1.msra.mxu0 0.0
    %3955 = vmatprep.subr.mxu0 0.0
    %3956 = vmatpush1.msra.mxu0 0.0
    %3957 = vmatprep.subr.mxu0 0.0
    %3958 = vmatpush1.msra.mxu0 0.0
    %3959 = vmatprep.subr.mxu0 0.0
    %3960 = vmatpush1.msra.mxu0 0.0
    %3961 = vmatprep.subr.mxu0 0.0
    %3962 = vmatpush1.msra.mxu0 0.0
    %3963 = vmatprep.subr.mxu0 0.0
    %3964 = vmatpush1.msra.mxu0 0.0
    %3965 = vmatprep.subr.mxu0 0.0
    %3966 = vmatpush1.msra.mxu0 0.0
    %3967 = vmatprep.subr.mxu0 0.0
    %3968 = vmatpush1.msra.mxu0 0.0
    %3969 = vmatprep.subr.mxu0 0.0
    %3970 = vmatpush1.msra.mxu0 0.0
    %3971 = vmatprep.subr.mxu0 0.0
    %3972 = vmatpush1.msra.mxu0 0.0
    %3973 = vmatprep.subr.mxu0 0.0
    %3974 = vmatpush1.msra.mxu0 0.0
    %3975 = vmatprep.subr.mxu0 0.0
    %3976 = vmatpush1.msra.mxu0 0.0
    %3977 = vmatprep.subr.mxu0 0.0
    %3978 = vmatpush1.msra.mxu0 0.0
    %3979 = vmatprep.subr.mxu0 0.0
    %3980 = vmatpush1.msra.mxu0 0.0
    %3981 = vmatprep.subr.mxu0 0.0
    %3982 = vmatpush1.msra.mxu0 0.0
    %3983 = vmatprep.subr.mxu0 0.0
    %3984 = vmatpush1.msra.mxu0 0.0
    %3985 = vmatprep.subr.mxu0 0.0
    %3986 = vmatpush1.msra.mxu0 0.0
    %3987 = vmatprep.mubr.f32.mxu0 0.0
    %3988 = vmatmul.mubr.f32.gmra.mrb[0].mxu0 %v3208
    %v3989 = vpop.f32.mrb[0].mxu0
    %v3990 = vadd.f32 %v2146, %v3989
    %v3991 = vpop.f32.mrb[0].mxu0
    %3992 = vdwg.mxu0
    %v3993 = vadd.f32 %v3922, %v3990
    %v3994 = vxor.u32 %v3993, 2147483648
    %v3995 = vmul.f32 %v3994, 1.442695
    %v3996 = vpow.pop %v3995
    %v3997 = vadd.f32 %v3996, 1.0
    %v3998 = vrcp.pop %v3997
    %v3999 = vmul.f32 1.0, %v3998
    %4001 = vrot.lane.b32.xlu0 %v3990, 64
    %v4002 = vpop.permute.xlu0 %4001
    %v4004 = vmul.f32 %v3999, %v4002
    %4006 = vrot.lane.b32.xlu0 %v4004, 64
    %v4007 = vpop.permute.xlu0 %4006
    %v4009 = vadd.f32 %v3922, %v4007
    %v4010 = vtanh.pop %v4009
    %v4011 = vsub.f32 1.0, %v3999
    %4013 = vrot.lane.b32.xlu0 %v4010, 96
    %v4014 = vpop.permute.xlu0 %4013
    %v4016 = vmul.f32 %v4011, %v4014
    %v4017 = vmul.f32 %v3999, %v3134
    %v4018 = vadd.f32 %v4016, %v4017
    %4019 = vmatprep.subr.mxu0 0.0
    %4020 = vmatpush1.msra.mxu0 %v1515
    %4021 = vmatprep.subr.mxu0 0.0
    %4022 = vmatpush1.msra.mxu0 %v1516
    %4023 = vmatprep.subr.mxu0 0.0
    %4024 = vmatpush1.msra.mxu0 %v1517
    %4025 = vmatprep.subr.mxu0 0.0
    %4026 = vmatpush1.msra.mxu0 %v1518
    %4027 = vmatprep.subr.mxu0 0.0
    %4028 = vmatpush1.msra.mxu0 0.0
    %4029 = vmatprep.subr.mxu0 0.0
    %4030 = vmatpush1.msra.mxu0 0.0
    %4031 = vmatprep.subr.mxu0 0.0
    %4032 = vmatpush1.msra.mxu0 0.0
    %4033 = vmatprep.subr.mxu0 0.0
    %4034 = vmatpush1.msra.mxu0 0.0
    %4035 = vmatprep.subr.mxu0 0.0
    %4036 = vmatpush1.msra.mxu0 0.0
    %4037 = vmatprep.subr.mxu0 0.0
    %4038 = vmatpush1.msra.mxu0 0.0
    %4039 = vmatprep.subr.mxu0 0.0
    %4040 = vmatpush1.msra.mxu0 0.0
    %4041 = vmatprep.subr.mxu0 0.0
    %4042 = vmatpush1.msra.mxu0 0.0
    %4043 = vmatprep.subr.mxu0 0.0
    %4044 = vmatpush1.msra.mxu0 0.0
    %4045 = vmatprep.subr.mxu0 0.0
    %4046 = vmatpush1.msra.mxu0 0.0
    %4047 = vmatprep.subr.mxu0 0.0
    %4048 = vmatpush1.msra.mxu0 0.0
    %4049 = vmatprep.subr.mxu0 0.0
    %4050 = vmatpush1.msra.mxu0 0.0
    %4051 = vmatprep.subr.mxu0 0.0
    %4052 = vmatpush1.msra.mxu0 0.0
    %4053 = vmatprep.subr.mxu0 0.0
    %4054 = vmatpush1.msra.mxu0 0.0
    %4055 = vmatprep.subr.mxu0 0.0
    %4056 = vmatpush1.msra.mxu0 0.0
    %4057 = vmatprep.subr.mxu0 0.0
    %4058 = vmatpush1.msra.mxu0 0.0
    %4059 = vmatprep.subr.mxu0 0.0
    %4060 = vmatpush1.msra.mxu0 0.0
    %4061 = vmatprep.subr.mxu0 0.0
    %4062 = vmatpush1.msra.mxu0 0.0
    %4063 = vmatprep.subr.mxu0 0.0
    %4064 = vmatpush1.msra.mxu0 0.0
    %4065 = vmatprep.subr.mxu0 0.0
    %4066 = vmatpush1.msra.mxu0 0.0
    %4067 = vmatprep.subr.mxu0 0.0
    %4068 = vmatpush1.msra.mxu0 0.0
    %4069 = vmatprep.subr.mxu0 0.0
    %4070 = vmatpush1.msra.mxu0 0.0
    %4071 = vmatprep.subr.mxu0 0.0
    %4072 = vmatpush1.msra.mxu0 0.0
    %4073 = vmatprep.subr.mxu0 0.0
    %4074 = vmatpush1.msra.mxu0 0.0
    %4075 = vmatprep.subr.mxu0 0.0
    %4076 = vmatpush1.msra.mxu0 0.0
    %4077 = vmatprep.subr.mxu0 0.0
    %4078 = vmatpush1.msra.mxu0 0.0
    %4079 = vmatprep.subr.mxu0 0.0
    %4080 = vmatpush1.msra.mxu0 0.0
    %4081 = vmatprep.subr.mxu0 0.0
    %4082 = vmatpush1.msra.mxu0 0.0
    %4083 = vmatprep.mubr.f32.mxu0 0.0
    %4084 = vmatmul.mubr.f32.gmra.mrb[0].mxu0 %v3777
    %v4085 = vpop.f32.mrb[0].mxu0
    %v4086 = vadd.f32 0.0, %v4085
    %v4087 = vpop.f32.mrb[0].mxu0
    %4088 = vdwg.mxu0
    %4090 = vrot.lane.b32.xlu0 %v4018, 96
    %v4091 = vpop.permute.xlu0 %4090
    %v4092 = vsel %vm360, %v4091, 0
    %4094 = vmatprep.subr.mxu0 0.0
    %4095 = vmatpush1.msra.mxu0 %v1511
    %4096 = vmatprep.subr.mxu0 0.0
    %4097 = vmatpush1.msra.mxu0 %v1512
    %4098 = vmatprep.subr.mxu0 0.0
    %4099 = vmatpush1.msra.mxu0 %v1513
    %4100 = vmatprep.subr.mxu0 0.0
    %4101 = vmatpush1.msra.mxu0 %v1514
    %4102 = vmatprep.subr.mxu0 0.0
    %4103 = vmatpush1.msra.mxu0 0.0
    %4104 = vmatprep.subr.mxu0 0.0
    %4105 = vmatpush1.msra.mxu0 0.0
    %4106 = vmatprep.subr.mxu0 0.0
    %4107 = vmatpush1.msra.mxu0 0.0
    %4108 = vmatprep.subr.mxu0 0.0
    %4109 = vmatpush1.msra.mxu0 0.0
    %4110 = vmatprep.subr.mxu0 0.0
    %4111 = vmatpush1.msra.mxu0 0.0
    %4112 = vmatprep.subr.mxu0 0.0
    %4113 = vmatpush1.msra.mxu0 0.0
    %4114 = vmatprep.subr.mxu0 0.0
    %4115 = vmatpush1.msra.mxu0 0.0
    %4116 = vmatprep.subr.mxu0 0.0
    %4117 = vmatpush1.msra.mxu0 0.0
    %4118 = vmatprep.subr.mxu0 0.0
    %4119 = vmatpush1.msra.mxu0 0.0
    %4120 = vmatprep.subr.mxu0 0.0
    %4121 = vmatpush1.msra.mxu0 0.0
    %4122 = vmatprep.subr.mxu0 0.0
    %4123 = vmatpush1.msra.mxu0 0.0
    %4124 = vmatprep.subr.mxu0 0.0
    %4125 = vmatpush1.msra.mxu0 0.0
    %4126 = vmatprep.subr.mxu0 0.0
    %4127 = vmatpush1.msra.mxu0 0.0
    %4128 = vmatprep.subr.mxu0 0.0
    %4129 = vmatpush1.msra.mxu0 0.0
    %4130 = vmatprep.subr.mxu0 0.0
    %4131 = vmatpush1.msra.mxu0 0.0
    %4132 = vmatprep.subr.mxu0 0.0
    %4133 = vmatpush1.msra.mxu0 0.0
    %4134 = vmatprep.subr.mxu0 0.0
    %4135 = vmatpush1.msra.mxu0 0.0
    %4136 = vmatprep.subr.mxu0 0.0
    %4137 = vmatpush1.msra.mxu0 0.0
    %4138 = vmatprep.subr.mxu0 0.0
    %4139 = vmatpush1.msra.mxu0 0.0
    %4140 = vmatprep.subr.mxu0 0.0
    %4141 = vmatpush1.msra.mxu0 0.0
    %4142 = vmatprep.subr.mxu0 0.0
    %4143 = vmatpush1.msra.mxu0 0.0
    %4144 = vmatprep.subr.mxu0 0.0
    %4145 = vmatpush1.msra.mxu0 0.0
    %4146 = vmatprep.subr.mxu0 0.0
    %4147 = vmatpush1.msra.mxu0 0.0
    %4148 = vmatprep.subr.mxu0 0.0
    %4149 = vmatpush1.msra.mxu0 0.0
    %4150 = vmatprep.subr.mxu0 0.0
    %4151 = vmatpush1.msra.mxu0 0.0
    %4152 = vmatprep.subr.mxu0 0.0
    %4153 = vmatpush1.msra.mxu0 0.0
    %4154 = vmatprep.subr.mxu0 0.0
    %4155 = vmatpush1.msra.mxu0 0.0
    %4156 = vmatprep.subr.mxu0 0.0
    %4157 = vmatpush1.msra.mxu0 0.0
    %4158 = vmatprep.mubr.f32.mxu0 0.0
    %4159 = vmatmul.mubr.f32.gmra.mrb[0].mxu0 %v4092
    %v4160 = vpop.f32.mrb[0].mxu0
    %v4161 = vadd.f32 %v4086, %v4160
    %v4162 = vpop.f32.mrb[0].mxu0
    %4163 = vdwg.mxu0
    %v4164 = vadd.f32 %v4161, %v2394
    %v4165 = vsel %vm1520, %v4164, -inf
    %4166 = vmax.xlane.f32.xlu0 %v4165
    %v4167 = vpop.xlane.xlu0 %4166
    %v4168 = vsub.f32 %v4164, %v4167
    %v4169 = vmul.f32 %v4168, 1.442695
    %v4170 = vpow.pop %v4169
    %v4171 = vsel %vm1520, %v4170, 0.0
    %4172 = vadd.xlane.f32.xlu0 %v4171
    %v4173 = vpop.xlane.xlu0 %4172
    %v4174 = vlog2.pop %v4173
    %v4175 = vmul.f32 %v4174, 0.6931472
    %v4176 = vsub.f32 %v4168, %v4175
    %s4177 = scalar_lea.vmem [#allocation17], 12
    %4178 = vst.msk [vmem:[%s4177] sm:$0xf] %vm1520, %v4176
    %v4179 = vsel %vm1520, %v4176, -inf
    %4180 = vmax.xlane.f32.xlu0 %v4179
    %v4181 = vpop.xlane.xlu0 %4180
    %vm4182 = vcmp.eq.f32.partialorder %v4176, %v4181
    %v4183 = vsel %vm4182, %v216, 16
    %v4184 = vsel %vm1520, %v4183, 2147483647
    %v4185 = vand.u32 %v4184, 65535
    %v4186 = vshra.s32 %v4184, 16
    %v4187 = vcvt.s32.f32 %v4185
    %v4188 = vcvt.s32.f32 %v4186
    %4189 = vmin.xlane.f32.xlu0 %v4188
    %v4190 = vpop.xlane.xlu0 %4189
    %vm4191 = vcmp.eq.f32.partialorder %v4188, %v4190
    %v4192 = vsel %vm4191, %v4187, inf
    %4193 = vmin.xlane.f32.xlu0 %v4192
    %v4194 = vpop.xlane.xlu0 %4193
    %v4195 = vcvt.f32.s32 %v4194
    %v4196 = vcvt.f32.s32 %v4190
    %v4197 = vshll.u32 %v4196, 16
    %v4198 = vadd.s32 %v4197, %v4195
    %vm4199 = vcmp.eq.s32.totalorder %v216, %v4198
    %v4200 = vsel %vm4199, 1, 0
    %v4201 = vcvt.s32.f32 %v4200
    %v4203 = vsel %vm255, %v4201, 0
    %4205 = vmatprep.subr.mxu0 0.0
    %4206 = vmatpush1.msra.mxu0 %v1495
    %4207 = vmatprep.subr.mxu0 0.0
    %4208 = vmatpush1.msra.mxu0 %v1496
    %4209 = vmatprep.subr.mxu0 0.0
    %4210 = vmatpush1.msra.mxu0 0.0
    %4211 = vmatprep.subr.mxu0 0.0
    %4212 = vmatpush1.msra.mxu0 0.0
    %4213 = vmatprep.subr.mxu0 0.0
    %4214 = vmatpush1.msra.mxu0 0.0
    %4215 = vmatprep.subr.mxu0 0.0
    %4216 = vmatpush1.msra.mxu0 0.0
    %4217 = vmatprep.subr.mxu0 0.0
    %4218 = vmatpush1.msra.mxu0 0.0
    %4219 = vmatprep.subr.mxu0 0.0
    %4220 = vmatpush1.msra.mxu0 0.0
    %4221 = vmatprep.subr.mxu0 0.0
    %4222 = vmatpush1.msra.mxu0 0.0
    %4223 = vmatprep.subr.mxu0 0.0
    %4224 = vmatpush1.msra.mxu0 0.0
    %4225 = vmatprep.subr.mxu0 0.0
    %4226 = vmatpush1.msra.mxu0 0.0
    %4227 = vmatprep.subr.mxu0 0.0
    %4228 = vmatpush1.msra.mxu0 0.0
    %4229 = vmatprep.subr.mxu0 0.0
    %4230 = vmatpush1.msra.mxu0 0.0
    %4231 = vmatprep.subr.mxu0 0.0
    %4232 = vmatpush1.msra.mxu0 0.0
    %4233 = vmatprep.subr.mxu0 0.0
    %4234 = vmatpush1.msra.mxu0 0.0
    %4235 = vmatprep.subr.mxu0 0.0
    %4236 = vmatpush1.msra.mxu0 0.0
    %4237 = vmatprep.subr.mxu0 0.0
    %4238 = vmatpush1.msra.mxu0 0.0
    %4239 = vmatprep.subr.mxu0 0.0
    %4240 = vmatpush1.msra.mxu0 0.0
    %4241 = vmatprep.subr.mxu0 0.0
    %4242 = vmatpush1.msra.mxu0 0.0
    %4243 = vmatprep.subr.mxu0 0.0
    %4244 = vmatpush1.msra.mxu0 0.0
    %4245 = vmatprep.subr.mxu0 0.0
    %4246 = vmatpush1.msra.mxu0 0.0
    %4247 = vmatprep.subr.mxu0 0.0
    %4248 = vmatpush1.msra.mxu0 0.0
    %4249 = vmatprep.subr.mxu0 0.0
    %4250 = vmatpush1.msra.mxu0 0.0
    %4251 = vmatprep.subr.mxu0 0.0
    %4252 = vmatpush1.msra.mxu0 0.0
    %4253 = vmatprep.subr.mxu0 0.0
    %4254 = vmatpush1.msra.mxu0 0.0
    %4255 = vmatprep.subr.mxu0 0.0
    %4256 = vmatpush1.msra.mxu0 0.0
    %4257 = vmatprep.subr.mxu0 0.0
    %4258 = vmatpush1.msra.mxu0 0.0
    %4259 = vmatprep.subr.mxu0 0.0
    %4260 = vmatpush1.msra.mxu0 0.0
    %4261 = vmatprep.subr.mxu0 0.0
    %4262 = vmatpush1.msra.mxu0 0.0
    %4263 = vmatprep.subr.mxu0 0.0
    %4264 = vmatpush1.msra.mxu0 0.0
    %4265 = vmatprep.subr.mxu0 0.0
    %4266 = vmatpush1.msra.mxu0 0.0
    %4267 = vmatprep.subr.mxu0 0.0
    %4268 = vmatpush1.msra.mxu0 0.0
    %4269 = vmatprep.mubr.f32.mxu0 0.0
    %4270 = vmatmul.mubr.f32.gmra.mrb[0].mxu0 %v4203
    %v4271 = vpop.f32.mrb[0].mxu0
    %v4272 = vadd.f32 0.0, %v4271
    %v4273 = vpop.f32.mrb[0].mxu0
    %4274 = vdwg.mxu0
    %4275 = vmatprep.subr.mxu0 0.0
    %4276 = vmatpush1.msra.mxu0 %v1491
    %4277 = vmatprep.subr.mxu0 0.0
    %4278 = vmatpush1.msra.mxu0 %v1492
    %4279 = vmatprep.subr.mxu0 0.0
    %4280 = vmatpush1.msra.mxu0 %v1493
    %4281 = vmatprep.subr.mxu0 0.0
    %4282 = vmatpush1.msra.mxu0 %v1494
    %4283 = vmatprep.subr.mxu0 0.0
    %4284 = vmatpush1.msra.mxu0 0.0
    %4285 = vmatprep.subr.mxu0 0.0
    %4286 = vmatpush1.msra.mxu0 0.0
    %4287 = vmatprep.subr.mxu0 0.0
    %4288 = vmatpush1.msra.mxu0 0.0
    %4289 = vmatprep.subr.mxu0 0.0
    %4290 = vmatpush1.msra.mxu0 0.0
    %4291 = vmatprep.subr.mxu0 0.0
    %4292 = vmatpush1.msra.mxu0 0.0
    %4293 = vmatprep.subr.mxu0 0.0
    %4294 = vmatpush1.msra.mxu0 0.0
    %4295 = vmatprep.subr.mxu0 0.0
    %4296 = vmatpush1.msra.mxu0 0.0
    %4297 = vmatprep.subr.mxu0 0.0
    %4298 = vmatpush1.msra.mxu0 0.0
    %4299 = vmatprep.subr.mxu0 0.0
    %4300 = vmatpush1.msra.mxu0 0.0
    %4301 = vmatprep.subr.mxu0 0.0
    %4302 = vmatpush1.msra.mxu0 0.0
    %4303 = vmatprep.subr.mxu0 0.0
    %4304 = vmatpush1.msra.mxu0 0.0
    %4305 = vmatprep.subr.mxu0 0.0
    %4306 = vmatpush1.msra.mxu0 0.0
    %4307 = vmatprep.subr.mxu0 0.0
    %4308 = vmatpush1.msra.mxu0 0.0
    %4309 = vmatprep.subr.mxu0 0.0
    %4310 = vmatpush1.msra.mxu0 0.0
    %4311 = vmatprep.subr.mxu0 0.0
    %4312 = vmatpush1.msra.mxu0 0.0
    %4313 = vmatprep.subr.mxu0 0.0
    %4314 = vmatpush1.msra.mxu0 0.0
    %4315 = vmatprep.subr.mxu0 0.0
    %4316 = vmatpush1.msra.mxu0 0.0
    %4317 = vmatprep.subr.mxu0 0.0
    %4318 = vmatpush1.msra.mxu0 0.0
    %4319 = vmatprep.subr.mxu0 0.0
    %4320 = vmatpush1.msra.mxu0 0.0
    %4321 = vmatprep.subr.mxu0 0.0
    %4322 = vmatpush1.msra.mxu0 0.0
    %4323 = vmatprep.subr.mxu0 0.0
    %4324 = vmatpush1.msra.mxu0 0.0
    %4325 = vmatprep.subr.mxu0 0.0
    %4326 = vmatpush1.msra.mxu0 0.0
    %4327 = vmatprep.subr.mxu0 0.0
    %4328 = vmatpush1.msra.mxu0 0.0
    %4329 = vmatprep.subr.mxu0 0.0
    %4330 = vmatpush1.msra.mxu0 0.0
    %4331 = vmatprep.subr.mxu0 0.0
    %4332 = vmatpush1.msra.mxu0 0.0
    %4333 = vmatprep.subr.mxu0 0.0
    %4334 = vmatpush1.msra.mxu0 0.0
    %4335 = vmatprep.subr.mxu0 0.0
    %4336 = vmatpush1.msra.mxu0 0.0
    %4337 = vmatprep.subr.mxu0 0.0
    %4338 = vmatpush1.msra.mxu0 0.0
    %4339 = vmatprep.mubr.f32.mxu0 0.0
    %4340 = vmatmul.mubr.f32.gmra.mrb[0].mxu0 %v4092
    %v4341 = vpop.f32.mrb[0].mxu0
    %v4342 = vadd.f32 0.0, %v4341
    %v4343 = vpop.f32.mrb[0].mxu0
    %4344 = vdwg.mxu0
    %v4345 = vadd.f32 %v4342, %v1437
    %v4346 = vadd.f32 %v4342, %v1459
    %v4347 = vadd.f32 %v4342, %v1442
    %v4348 = vadd.f32 %v4342, %v1460
    %v4349 = vadd.f32 %v4342, %v1447
    %v4350 = vadd.f32 %v4342, %v1461
    %v4351 = vadd.f32 %v4342, %v1452
    %v4352 = vadd.f32 %v4342, %v1462
    %v4353 = vmax.f32 %v4345, 0.0
    %v4354 = vmax.f32 %v4346, 0.0
    %v4355 = vmax.f32 %v4347, 0.0
    %v4356 = vmax.f32 %v4348, 0.0
    %v4357 = vmax.f32 %v4349, 0.0
    %v4358 = vmax.f32 %v4350, 0.0
    %v4359 = vmax.f32 %v4351, 0.0
    %v4360 = vmax.f32 %v4352, 0.0
    %v4369 = vcombine.low %v4353, %v4354
    %v4370 = vcombine.low %v4355, %v4356
    %v4371 = vcombine.low %v4357, %v4358
    %v4372 = vcombine.low %v4359, %v4360
    %v4373 = vsel %vm360, %v4369, 0
    %v4375 = vsel %vm360, %v4370, 0
    %v4377 = vsel %vm360, %v4371, 0
    %v4379 = vsel %vm360, %v4372, 0
    %4381 = vmatprep.subr.mxu0 0.0
    %4382 = vmatpush1.msra.mxu0 %v1474
    %4383 = vmatprep.subr.mxu0 0.0
    %4384 = vmatpush1.msra.mxu0 %v1479
    %4385 = vmatprep.subr.mxu0 0.0
    %4386 = vmatpush1.msra.mxu0 %v1484
    %4387 = vmatprep.subr.mxu0 0.0
    %4388 = vmatpush1.msra.mxu0 %v1489
    %4389 = vmatprep.subr.mxu0 0.0
    %4390 = vmatpush1.msra.mxu0 0.0
    %4391 = vmatprep.subr.mxu0 0.0
    %4392 = vmatpush1.msra.mxu0 0.0
    %4393 = vmatprep.subr.mxu0 0.0
    %4394 = vmatpush1.msra.mxu0 0.0
    %4395 = vmatprep.subr.mxu0 0.0
    %4396 = vmatpush1.msra.mxu0 0.0
    %4397 = vmatprep.subr.mxu0 0.0
    %4398 = vmatpush1.msra.mxu0 0.0
    %4399 = vmatprep.subr.mxu0 0.0
    %4400 = vmatpush1.msra.mxu0 0.0
    %4401 = vmatprep.subr.mxu0 0.0
    %4402 = vmatpush1.msra.mxu0 0.0
    %4403 = vmatprep.subr.mxu0 0.0
    %4404 = vmatpush1.msra.mxu0 0.0
    %4405 = vmatprep.subr.mxu0 0.0
    %4406 = vmatpush1.msra.mxu0 0.0
    %4407 = vmatprep.subr.mxu0 0.0
    %4408 = vmatpush1.msra.mxu0 0.0
    %4409 = vmatprep.subr.mxu0 0.0
    %4410 = vmatpush1.msra.mxu0 0.0
    %4411 = vmatprep.subr.mxu0 0.0
    %4412 = vmatpush1.msra.mxu0 0.0
    %4413 = vmatprep.subr.mxu0 0.0
    %4414 = vmatpush1.msra.mxu0 0.0
    %4415 = vmatprep.subr.mxu0 0.0
    %4416 = vmatpush1.msra.mxu0 0.0
    %4417 = vmatprep.subr.mxu0 0.0
    %4418 = vmatpush1.msra.mxu0 0.0
    %4419 = vmatprep.subr.mxu0 0.0
    %4420 = vmatpush1.msra.mxu0 0.0
    %4421 = vmatprep.subr.mxu0 0.0
    %4422 = vmatpush1.msra.mxu0 0.0
    %4423 = vmatprep.subr.mxu0 0.0
    %4424 = vmatpush1.msra.mxu0 0.0
    %4425 = vmatprep.subr.mxu0 0.0
    %4426 = vmatpush1.msra.mxu0 0.0
    %4427 = vmatprep.subr.mxu0 0.0
    %4428 = vmatpush1.msra.mxu0 0.0
    %4429 = vmatprep.subr.mxu0 0.0
    %4430 = vmatpush1.msra.mxu0 0.0
    %4431 = vmatprep.subr.mxu0 0.0
    %4432 = vmatpush1.msra.mxu0 0.0
    %4433 = vmatprep.subr.mxu0 0.0
    %4434 = vmatpush1.msra.mxu0 0.0
    %4435 = vmatprep.subr.mxu0 0.0
    %4436 = vmatpush1.msra.mxu0 0.0
    %4437 = vmatprep.subr.mxu0 0.0
    %4438 = vmatpush1.msra.mxu0 0.0
    %4439 = vmatprep.subr.mxu0 0.0
    %4440 = vmatpush1.msra.mxu0 0.0
    %4441 = vmatprep.subr.mxu0 0.0
    %4442 = vmatpush1.msra.mxu0 0.0
    %4443 = vmatprep.subr.mxu0 0.0
    %4444 = vmatpush1.msra.mxu0 0.0
    %4445 = vmatprep.mubr.f32.mxu0 0.0
    %4446 = vmatmul.mubr.f32.gmra.mrb[0].mxu0 %v4373
    %v4447 = vpop.f32.mrb[0].mxu0
    %v4448 = vadd.f32 0.0, %v4447
    %v4449 = vpop.f32.mrb[0].mxu0
    %4450 = vmatprep.mubr.f32.mxu0 0.0
    %4451 = vmatmul.mubr.f32.gmra.mrb[0].mxu0 %v4375
    %v4452 = vpop.f32.mrb[0].mxu0
    %v4453 = vadd.f32 0.0, %v4452
    %v4454 = vpop.f32.mrb[0].mxu0
    %4455 = vmatprep.mubr.f32.mxu0 0.0
    %4456 = vmatmul.mubr.f32.gmra.mrb[0].mxu0 %v4377
    %v4457 = vpop.f32.mrb[0].mxu0
    %v4458 = vadd.f32 0.0, %v4457
    %v4459 = vpop.f32.mrb[0].mxu0
    %4460 = vmatprep.mubr.f32.mxu0 0.0
    %4461 = vmatmul.mubr.f32.gmra.mrb[0].mxu0 %v4379
    %v4462 = vpop.f32.mrb[0].mxu0
    %v4463 = vadd.f32 0.0, %v4462
    %v4464 = vpop.f32.mrb[0].mxu0
    %4465 = vdwg.mxu0
    %v4470 = vcombine.high %v4448, %v4448
    %v4471 = vcombine.high %v4453, %v4453
    %v4472 = vcombine.high %v4458, %v4458
    %v4473 = vcombine.high %v4463, %v4463
    %v4478 = vsel %vm1806, %v4448, -inf
    %v4479 = vsel %vm1806, %v4470, -inf
    %v4480 = vsel %vm1806, %v4453, -inf
    %v4481 = vsel %vm1806, %v4471, -inf
    %v4482 = vsel %vm1806, %v4458, -inf
    %v4483 = vmax.f32 %v4478, %v4482
    %v4484 = vsel %vm1806, %v4472, -inf
    %v4485 = vmax.f32 %v4479, %v4484
    %v4486 = vsel %vm1806, %v4463, -inf
    %v4487 = vmax.f32 %v4480, %v4486
    %v4488 = vsel %vm1806, %v4473, -inf
    %v4489 = vmax.f32 %v4481, %v4488
    %v4490 = vmax.f32 %v4483, %v4485
    %v4491 = vmax.f32 %v4487, %v4489
    %v4492 = vmax.f32 %v4490, %v4491
    %v4493 = vsub.f32 %v4448, %v4492
    %v4494 = vsub.f32 %v4470, %v4492
    %v4495 = vsub.f32 %v4453, %v4492
    %v4496 = vsub.f32 %v4471, %v4492
    %v4497 = vsub.f32 %v4458, %v4492
    %v4498 = vsub.f32 %v4472, %v4492
    %v4499 = vsub.f32 %v4463, %v4492
    %v4500 = vsub.f32 %v4473, %v4492
    %v4501 = vmul.f32 %v4493, 1.442695
    %v4502 = vpow.pop %v4501
    %v4503 = vmul.f32 %v4494, 1.442695
    %v4504 = vpow.pop %v4503
    %v4505 = vmul.f32 %v4495, 1.442695
    %v4506 = vpow.pop %v4505
    %v4507 = vmul.f32 %v4496, 1.442695
    %v4508 = vpow.pop %v4507
    %v4509 = vmul.f32 %v4497, 1.442695
    %v4510 = vpow.pop %v4509
    %v4511 = vmul.f32 %v4498, 1.442695
    %v4512 = vpow.pop %v4511
    %v4513 = vmul.f32 %v4499, 1.442695
    %v4514 = vpow.pop %v4513
    %v4515 = vmul.f32 %v4500, 1.442695
    %v4516 = vpow.pop %v4515
    %v4517 = vsel %vm1806, %v4502, 0.0
    %v4518 = vsel %vm1806, %v4504, 0.0
    %v4519 = vadd.f32 %v4517, %v4518
    %v4520 = vsel %vm1806, %v4506, 0.0
    %v4521 = vadd.f32 %v4519, %v4520
    %v4522 = vsel %vm1806, %v4508, 0.0
    %v4523 = vadd.f32 %v4521, %v4522
    %v4524 = vsel %vm1806, %v4510, 0.0
    %v4525 = vadd.f32 %v4523, %v4524
    %v4526 = vsel %vm1806, %v4512, 0.0
    %v4527 = vadd.f32 %v4525, %v4526
    %v4528 = vsel %vm1806, %v4514, 0.0
    %v4529 = vadd.f32 %v4527, %v4528
    %v4530 = vsel %vm1806, %v4516, 0.0
    %v4531 = vadd.f32 %v4529, %v4530
    %v4532 = vrcp.pop %v4531
    %v4533 = vmul.f32 %v4502, %v4532
    %v4534 = vmul.f32 %v4504, %v4532
    %v4535 = vmul.f32 %v4506, %v4532
    %v4536 = vmul.f32 %v4508, %v4532
    %v4537 = vmul.f32 %v4510, %v4532
    %v4538 = vmul.f32 %v4512, %v4532
    %v4539 = vmul.f32 %v4514, %v4532
    %v4540 = vmul.f32 %v4516, %v4532
    %4542 = vset.pattern.permute.xlu0 0
    %4543 = vperm.xlu0 %4542, %v4533
    %v4544 = vpop.permute.xlu0 %4543
    %v4547 = vunpack.c.l.s4 839922192
    %v4548 = vunpack.c.0.s8 %v4547
    %v4549 = vlaneseq
    %v4550 = vshrl.u32 %v4549, 7
    %v4551 = vsub.s32 %v4548, %v4550
    %v4552 = vrot.slane %v4544, %v4551
    %4554 = vset.pattern.permute.xlu0 0
    %4555 = vperm.xlu0 %4554, %v4534
    %v4556 = vpop.permute.xlu0 %4555
    %v4559 = vunpack.c.l.s4 839922192
    %v4560 = vunpack.c.0.s8 %v4559
    %v4561 = vlaneseq
    %v4562 = vshrl.u32 %v4561, 7
    %v4563 = vsub.s32 %v4560, %v4562
    %v4564 = vrot.slane %v4556, %v4563
    %4566 = vset.pattern.permute.xlu0 0
    %4567 = vperm.xlu0 %4566, %v4535
    %v4568 = vpop.permute.xlu0 %4567
    %v4571 = vunpack.c.l.s4 839922192
    %v4572 = vunpack.c.0.s8 %v4571
    %v4573 = vlaneseq
    %v4574 = vshrl.u32 %v4573, 7
    %v4575 = vsub.s32 %v4572, %v4574
    %v4576 = vrot.slane %v4568, %v4575
    %4578 = vset.pattern.permute.xlu0 0
    %4579 = vperm.xlu0 %4578, %v4536
    %v4580 = vpop.permute.xlu0 %4579
    %v4583 = vunpack.c.l.s4 839922192
    %v4584 = vunpack.c.0.s8 %v4583
    %v4585 = vlaneseq
    %v4586 = vshrl.u32 %v4585, 7
    %v4587 = vsub.s32 %v4584, %v4586
    %v4588 = vrot.slane %v4580, %v4587
    %4590 = vset.pattern.permute.xlu0 0
    %4591 = vperm.xlu0 %4590, %v4537
    %v4592 = vpop.permute.xlu0 %4591
    %v4595 = vunpack.c.l.s4 839922192
    %v4596 = vunpack.c.0.s8 %v4595
    %v4597 = vlaneseq
    %v4598 = vshrl.u32 %v4597, 7
    %v4599 = vsub.s32 %v4596, %v4598
    %v4600 = vrot.slane %v4592, %v4599
    %4602 = vset.pattern.permute.xlu0 0
    %4603 = vperm.xlu0 %4602, %v4538
    %v4604 = vpop.permute.xlu0 %4603
    %v4607 = vunpack.c.l.s4 839922192
    %v4608 = vunpack.c.0.s8 %v4607
    %v4609 = vlaneseq
    %v4610 = vshrl.u32 %v4609, 7
    %v4611 = vsub.s32 %v4608, %v4610
    %v4612 = vrot.slane %v4604, %v4611
    %4614 = vset.pattern.permute.xlu0 0
    %4615 = vperm.xlu0 %4614, %v4539
    %v4616 = vpop.permute.xlu0 %4615
    %v4619 = vunpack.c.l.s4 839922192
    %v4620 = vunpack.c.0.s8 %v4619
    %v4621 = vlaneseq
    %v4622 = vshrl.u32 %v4621, 7
    %v4623 = vsub.s32 %v4620, %v4622
    %v4624 = vrot.slane %v4616, %v4623
    %4626 = vset.pattern.permute.xlu0 0
    %4627 = vperm.xlu0 %4626, %v4540
    %v4628 = vpop.permute.xlu0 %4627
    %v4631 = vunpack.c.l.s4 839922192
    %v4632 = vunpack.c.0.s8 %v4631
    %v4633 = vlaneseq
    %v4634 = vshrl.u32 %v4633, 7
    %v4635 = vsub.s32 %v4632, %v4634
    %v4636 = vrot.slane %v4628, %v4635
    %v4637 = vmul.f32 %v4552, %v1331
    %v4638 = vmul.f32 %v4564, %v1332
    %v4639 = vmul.f32 %v4576, %v1333
    %v4640 = vmul.f32 %v4588, %v1334
    %v4641 = vmul.f32 %v4600, %v1335
    %v4642 = vmul.f32 %v4612, %v1336
    %v4643 = vmul.f32 %v4624, %v1337
    %v4644 = vmul.f32 %v4636, %v1338
    %v4645 = vsel %vm572, %v4637, 0.0
    %v4646 = vsel %vm572, %v4638, 0.0
    %v4647 = vadd.f32 %v4645, %v4646
    %v4648 = vsel %vm572, %v4639, 0.0
    %v4649 = vadd.f32 %v4647, %v4648
    %v4650 = vsel %vm572, %v4640, 0.0
    %v4651 = vadd.f32 %v4649, %v4650
    %v4652 = vsel %vm572, %v4641, 0.0
    %v4653 = vadd.f32 %v4651, %v4652
    %v4654 = vsel %vm572, %v4642, 0.0
    %v4655 = vadd.f32 %v4653, %v4654
    %v4656 = vsel %vm572, %v4643, 0.0
    %v4657 = vadd.f32 %v4655, %v4656
    %v4658 = vsel %vm572, %v4644, 0.0
    %v4659 = vadd.f32 %v4657, %v4658
    %v4661 = vsel %vm360, %v4659, 0
    %4663 = vmatprep.subr.mxu0 0.0
    %4664 = vmatpush1.msra.mxu0 %v1501
    %4665 = vmatprep.subr.mxu0 0.0
    %4666 = vmatpush1.msra.mxu0 %v1502
    %4667 = vmatprep.subr.mxu0 0.0
    %4668 = vmatpush1.msra.mxu0 %v1503
    %4669 = vmatprep.subr.mxu0 0.0
    %4670 = vmatpush1.msra.mxu0 %v1504
    %4671 = vmatprep.subr.mxu0 0.0
    %4672 = vmatpush1.msra.mxu0 0.0
    %4673 = vmatprep.subr.mxu0 0.0
    %4674 = vmatpush1.msra.mxu0 0.0
    %4675 = vmatprep.subr.mxu0 0.0
    %4676 = vmatpush1.msra.mxu0 0.0
    %4677 = vmatprep.subr.mxu0 0.0
    %4678 = vmatpush1.msra.mxu0 0.0
    %4679 = vmatprep.subr.mxu0 0.0
    %4680 = vmatpush1.msra.mxu0 0.0
    %4681 = vmatprep.subr.mxu0 0.0
    %4682 = vmatpush1.msra.mxu0 0.0
    %4683 = vmatprep.subr.mxu0 0.0
    %4684 = vmatpush1.msra.mxu0 0.0
    %4685 = vmatprep.subr.mxu0 0.0
    %4686 = vmatpush1.msra.mxu0 0.0
    %4687 = vmatprep.subr.mxu0 0.0
    %4688 = vmatpush1.msra.mxu0 0.0
    %4689 = vmatprep.subr.mxu0 0.0
    %4690 = vmatpush1.msra.mxu0 0.0
    %4691 = vmatprep.subr.mxu0 0.0
    %4692 = vmatpush1.msra.mxu0 0.0
    %4693 = vmatprep.subr.mxu0 0.0
    %4694 = vmatpush1.msra.mxu0 0.0
    %4695 = vmatprep.subr.mxu0 0.0
    %4696 = vmatpush1.msra.mxu0 0.0
    %4697 = vmatprep.subr.mxu0 0.0
    %4698 = vmatpush1.msra.mxu0 0.0
    %4699 = vmatprep.subr.mxu0 0.0
    %4700 = vmatpush1.msra.mxu0 0.0
    %4701 = vmatprep.subr.mxu0 0.0
    %4702 = vmatpush1.msra.mxu0 0.0
    %4703 = vmatprep.subr.mxu0 0.0
    %4704 = vmatpush1.msra.mxu0 0.0
    %4705 = vmatprep.subr.mxu0 0.0
    %4706 = vmatpush1.msra.mxu0 0.0
    %4707 = vmatprep.subr.mxu0 0.0
    %4708 = vmatpush1.msra.mxu0 0.0
    %4709 = vmatprep.subr.mxu0 0.0
    %4710 = vmatpush1.msra.mxu0 0.0
    %4711 = vmatprep.subr.mxu0 0.0
    %4712 = vmatpush1.msra.mxu0 0.0
    %4713 = vmatprep.subr.mxu0 0.0
    %4714 = vmatpush1.msra.mxu0 0.0
    %4715 = vmatprep.subr.mxu0 0.0
    %4716 = vmatpush1.msra.mxu0 0.0
    %4717 = vmatprep.subr.mxu0 0.0
    %4718 = vmatpush1.msra.mxu0 0.0
    %4719 = vmatprep.subr.mxu0 0.0
    %4720 = vmatpush1.msra.mxu0 0.0
    %4721 = vmatprep.subr.mxu0 0.0
    %4722 = vmatpush1.msra.mxu0 0.0
    %4723 = vmatprep.subr.mxu0 0.0
    %4724 = vmatpush1.msra.mxu0 0.0
    %4725 = vmatprep.subr.mxu0 0.0
    %4726 = vmatpush1.msra.mxu0 0.0
    %4727 = vmatprep.mubr.f32.mxu0 0.0
    %4728 = vmatmul.mubr.f32.gmra.mrb[0].mxu0 %v4661
    %v4729 = vpop.f32.mrb[0].mxu0
    %v4730 = vadd.f32 0.0, %v4729
    %v4731 = vpop.f32.mrb[0].mxu0
    %4732 = vdwg.mxu0
    %v4734 = vsel %vm360, %v4272, 0
    %4736 = vmatprep.subr.mxu0 0.0
    %4737 = vmatpush1.msra.mxu0 %v1497
    %4738 = vmatprep.subr.mxu0 0.0
    %4739 = vmatpush1.msra.mxu0 %v1498
    %4740 = vmatprep.subr.mxu0 0.0
    %4741 = vmatpush1.msra.mxu0 %v1499
    %4742 = vmatprep.subr.mxu0 0.0
    %4743 = vmatpush1.msra.mxu0 %v1500
    %4744 = vmatprep.subr.mxu0 0.0
    %4745 = vmatpush1.msra.mxu0 0.0
    %4746 = vmatprep.subr.mxu0 0.0
    %4747 = vmatpush1.msra.mxu0 0.0
    %4748 = vmatprep.subr.mxu0 0.0
    %4749 = vmatpush1.msra.mxu0 0.0
    %4750 = vmatprep.subr.mxu0 0.0
    %4751 = vmatpush1.msra.mxu0 0.0
    %4752 = vmatprep.subr.mxu0 0.0
    %4753 = vmatpush1.msra.mxu0 0.0
    %4754 = vmatprep.subr.mxu0 0.0
    %4755 = vmatpush1.msra.mxu0 0.0
    %4756 = vmatprep.subr.mxu0 0.0
    %4757 = vmatpush1.msra.mxu0 0.0
    %4758 = vmatprep.subr.mxu0 0.0
    %4759 = vmatpush1.msra.mxu0 0.0
    %4760 = vmatprep.subr.mxu0 0.0
    %4761 = vmatpush1.msra.mxu0 0.0
    %4762 = vmatprep.subr.mxu0 0.0
    %4763 = vmatpush1.msra.mxu0 0.0
    %4764 = vmatprep.subr.mxu0 0.0
    %4765 = vmatpush1.msra.mxu0 0.0
    %4766 = vmatprep.subr.mxu0 0.0
    %4767 = vmatpush1.msra.mxu0 0.0
    %4768 = vmatprep.subr.mxu0 0.0
    %4769 = vmatpush1.msra.mxu0 0.0
    %4770 = vmatprep.subr.mxu0 0.0
    %4771 = vmatpush1.msra.mxu0 0.0
    %4772 = vmatprep.subr.mxu0 0.0
    %4773 = vmatpush1.msra.mxu0 0.0
    %4774 = vmatprep.subr.mxu0 0.0
    %4775 = vmatpush1.msra.mxu0 0.0
    %4776 = vmatprep.subr.mxu0 0.0
    %4777 = vmatpush1.msra.mxu0 0.0
    %4778 = vmatprep.subr.mxu0 0.0
    %4779 = vmatpush1.msra.mxu0 0.0
    %4780 = vmatprep.subr.mxu0 0.0
    %4781 = vmatpush1.msra.mxu0 0.0
    %4782 = vmatprep.subr.mxu0 0.0
    %4783 = vmatpush1.msra.mxu0 0.0
    %4784 = vmatprep.subr.mxu0 0.0
    %4785 = vmatpush1.msra.mxu0 0.0
    %4786 = vmatprep.subr.mxu0 0.0
    %4787 = vmatpush1.msra.mxu0 0.0
    %4788 = vmatprep.subr.mxu0 0.0
    %4789 = vmatpush1.msra.mxu0 0.0
    %4790 = vmatprep.subr.mxu0 0.0
    %4791 = vmatpush1.msra.mxu0 0.0
    %4792 = vmatprep.subr.mxu0 0.0
    %4793 = vmatpush1.msra.mxu0 0.0
    %4794 = vmatprep.subr.mxu0 0.0
    %4795 = vmatpush1.msra.mxu0 0.0
    %4796 = vmatprep.subr.mxu0 0.0
    %4797 = vmatpush1.msra.mxu0 0.0
    %4798 = vmatprep.subr.mxu0 0.0
    %4799 = vmatpush1.msra.mxu0 0.0
    %4800 = vmatprep.mubr.f32.mxu0 0.0
    %4801 = vmatmul.mubr.f32.gmra.mrb[0].mxu0 %v4734
    %v4802 = vpop.f32.mrb[0].mxu0
    %v4803 = vadd.f32 %v4730, %v4802
    %v4804 = vpop.f32.mrb[0].mxu0
    %4805 = vdwg.mxu0
    %v4806 = vadd.f32 %v4803, %v2139
    %4807 = vmatprep.subr.mxu0 0.0
    %4808 = vmatpush1.msra.mxu0 %v1505
    %4809 = vmatprep.subr.mxu0 0.0
    %4810 = vmatpush1.msra.mxu0 %v1506
    %4811 = vmatprep.subr.mxu0 0.0
    %4812 = vmatpush1.msra.mxu0 %v1507
    %4813 = vmatprep.subr.mxu0 0.0
    %4814 = vmatpush1.msra.mxu0 %v1508
    %4815 = vmatprep.subr.mxu0 0.0
    %4816 = vmatpush1.msra.mxu0 0.0
    %4817 = vmatprep.subr.mxu0 0.0
    %4818 = vmatpush1.msra.mxu0 0.0
    %4819 = vmatprep.subr.mxu0 0.0
    %4820 = vmatpush1.msra.mxu0 0.0
    %4821 = vmatprep.subr.mxu0 0.0
    %4822 = vmatpush1.msra.mxu0 0.0
    %4823 = vmatprep.subr.mxu0 0.0
    %4824 = vmatpush1.msra.mxu0 0.0
    %4825 = vmatprep.subr.mxu0 0.0
    %4826 = vmatpush1.msra.mxu0 0.0
    %4827 = vmatprep.subr.mxu0 0.0
    %4828 = vmatpush1.msra.mxu0 0.0
    %4829 = vmatprep.subr.mxu0 0.0
    %4830 = vmatpush1.msra.mxu0 0.0
    %4831 = vmatprep.subr.mxu0 0.0
    %4832 = vmatpush1.msra.mxu0 0.0
    %4833 = vmatprep.subr.mxu0 0.0
    %4834 = vmatpush1.msra.mxu0 0.0
    %4835 = vmatprep.subr.mxu0 0.0
    %4836 = vmatpush1.msra.mxu0 0.0
    %4837 = vmatprep.subr.mxu0 0.0
    %4838 = vmatpush1.msra.mxu0 0.0
    %4839 = vmatprep.subr.mxu0 0.0
    %4840 = vmatpush1.msra.mxu0 0.0
    %4841 = vmatprep.subr.mxu0 0.0
    %4842 = vmatpush1.msra.mxu0 0.0
    %4843 = vmatprep.subr.mxu0 0.0
    %4844 = vmatpush1.msra.mxu0 0.0
    %4845 = vmatprep.subr.mxu0 0.0
    %4846 = vmatpush1.msra.mxu0 0.0
    %4847 = vmatprep.subr.mxu0 0.0
    %4848 = vmatpush1.msra.mxu0 0.0
    %4849 = vmatprep.subr.mxu0 0.0
    %4850 = vmatpush1.msra.mxu0 0.0
    %4851 = vmatprep.subr.mxu0 0.0
    %4852 = vmatpush1.msra.mxu0 0.0
    %4853 = vmatprep.subr.mxu0 0.0
    %4854 = vmatpush1.msra.mxu0 0.0
    %4855 = vmatprep.subr.mxu0 0.0
    %4856 = vmatpush1.msra.mxu0 0.0
    %4857 = vmatprep.subr.mxu0 0.0
    %4858 = vmatpush1.msra.mxu0 0.0
    %4859 = vmatprep.subr.mxu0 0.0
    %4860 = vmatpush1.msra.mxu0 0.0
    %4861 = vmatprep.subr.mxu0 0.0
    %4862 = vmatpush1.msra.mxu0 0.0
    %4863 = vmatprep.subr.mxu0 0.0
    %4864 = vmatpush1.msra.mxu0 0.0
    %4865 = vmatprep.subr.mxu0 0.0
    %4866 = vmatpush1.msra.mxu0 0.0
    %4867 = vmatprep.subr.mxu0 0.0
    %4868 = vmatpush1.msra.mxu0 0.0
    %4869 = vmatprep.subr.mxu0 0.0
    %4870 = vmatpush1.msra.mxu0 0.0
    %4871 = vmatprep.mubr.f32.mxu0 0.0
    %4872 = vmatmul.mubr.f32.gmra.mrb[0].mxu0 %v4092
    %v4873 = vpop.f32.mrb[0].mxu0
    %v4874 = vadd.f32 %v2146, %v4873
    %v4875 = vpop.f32.mrb[0].mxu0
    %4876 = vdwg.mxu0
    %v4877 = vadd.f32 %v4806, %v4874
    %v4878 = vxor.u32 %v4877, 2147483648
    %v4879 = vmul.f32 %v4878, 1.442695
    %v4880 = vpow.pop %v4879
    %v4881 = vadd.f32 %v4880, 1.0
    %v4882 = vrcp.pop %v4881
    %v4883 = vmul.f32 1.0, %v4882
    %4885 = vrot.lane.b32.xlu0 %v4874, 64
    %v4886 = vpop.permute.xlu0 %4885
    %v4888 = vmul.f32 %v4883, %v4886
    %4890 = vrot.lane.b32.xlu0 %v4888, 64
    %v4891 = vpop.permute.xlu0 %4890
    %v4893 = vadd.f32 %v4806, %v4891
    %v4894 = vtanh.pop %v4893
    %v4895 = vsub.f32 1.0, %v4883
    %4897 = vrot.lane.b32.xlu0 %v4894, 96
    %v4898 = vpop.permute.xlu0 %4897
    %v4900 = vmul.f32 %v4895, %v4898
    %v4901 = vmul.f32 %v4883, %v4018
    %v4902 = vadd.f32 %v4900, %v4901
    %4903 = vmatprep.subr.mxu0 0.0
    %4904 = vmatpush1.msra.mxu0 %v1515
    %4905 = vmatprep.subr.mxu0 0.0
    %4906 = vmatpush1.msra.mxu0 %v1516
    %4907 = vmatprep.subr.mxu0 0.0
    %4908 = vmatpush1.msra.mxu0 %v1517
    %4909 = vmatprep.subr.mxu0 0.0
    %4910 = vmatpush1.msra.mxu0 %v1518
    %4911 = vmatprep.subr.mxu0 0.0
    %4912 = vmatpush1.msra.mxu0 0.0
    %4913 = vmatprep.subr.mxu0 0.0
    %4914 = vmatpush1.msra.mxu0 0.0
    %4915 = vmatprep.subr.mxu0 0.0
    %4916 = vmatpush1.msra.mxu0 0.0
    %4917 = vmatprep.subr.mxu0 0.0
    %4918 = vmatpush1.msra.mxu0 0.0
    %4919 = vmatprep.subr.mxu0 0.0
    %4920 = vmatpush1.msra.mxu0 0.0
    %4921 = vmatprep.subr.mxu0 0.0
    %4922 = vmatpush1.msra.mxu0 0.0
    %4923 = vmatprep.subr.mxu0 0.0
    %4924 = vmatpush1.msra.mxu0 0.0
    %4925 = vmatprep.subr.mxu0 0.0
    %4926 = vmatpush1.msra.mxu0 0.0
    %4927 = vmatprep.subr.mxu0 0.0
    %4928 = vmatpush1.msra.mxu0 0.0
    %4929 = vmatprep.subr.mxu0 0.0
    %4930 = vmatpush1.msra.mxu0 0.0
    %4931 = vmatprep.subr.mxu0 0.0
    %4932 = vmatpush1.msra.mxu0 0.0
    %4933 = vmatprep.subr.mxu0 0.0
    %4934 = vmatpush1.msra.mxu0 0.0
    %4935 = vmatprep.subr.mxu0 0.0
    %4936 = vmatpush1.msra.mxu0 0.0
    %4937 = vmatprep.subr.mxu0 0.0
    %4938 = vmatpush1.msra.mxu0 0.0
    %4939 = vmatprep.subr.mxu0 0.0
    %4940 = vmatpush1.msra.mxu0 0.0
    %4941 = vmatprep.subr.mxu0 0.0
    %4942 = vmatpush1.msra.mxu0 0.0
    %4943 = vmatprep.subr.mxu0 0.0
    %4944 = vmatpush1.msra.mxu0 0.0
    %4945 = vmatprep.subr.mxu0 0.0
    %4946 = vmatpush1.msra.mxu0 0.0
    %4947 = vmatprep.subr.mxu0 0.0
    %4948 = vmatpush1.msra.mxu0 0.0
    %4949 = vmatprep.subr.mxu0 0.0
    %4950 = vmatpush1.msra.mxu0 0.0
    %4951 = vmatprep.subr.mxu0 0.0
    %4952 = vmatpush1.msra.mxu0 0.0
    %4953 = vmatprep.subr.mxu0 0.0
    %4954 = vmatpush1.msra.mxu0 0.0
    %4955 = vmatprep.subr.mxu0 0.0
    %4956 = vmatpush1.msra.mxu0 0.0
    %4957 = vmatprep.subr.mxu0 0.0
    %4958 = vmatpush1.msra.mxu0 0.0
    %4959 = vmatprep.subr.mxu0 0.0
    %4960 = vmatpush1.msra.mxu0 0.0
    %4961 = vmatprep.subr.mxu0 0.0
    %4962 = vmatpush1.msra.mxu0 0.0
    %4963 = vmatprep.subr.mxu0 0.0
    %4964 = vmatpush1.msra.mxu0 0.0
    %4965 = vmatprep.subr.mxu0 0.0
    %4966 = vmatpush1.msra.mxu0 0.0
    %4967 = vmatprep.mubr.f32.mxu0 0.0
    %4968 = vmatmul.mubr.f32.gmra.mrb[0].mxu0 %v4661
    %v4969 = vpop.f32.mrb[0].mxu0
    %v4970 = vadd.f32 0.0, %v4969
    %v4971 = vpop.f32.mrb[0].mxu0
    %4972 = vdwg.mxu0
    %4974 = vrot.lane.b32.xlu0 %v4902, 96
    %v4975 = vpop.permute.xlu0 %4974
    %v4976 = vsel %vm360, %v4975, 0
    %4978 = vmatprep.subr.mxu0 0.0
    %4979 = vmatpush1.msra.mxu0 %v1511
    %4980 = vmatprep.subr.mxu0 0.0
    %4981 = vmatpush1.msra.mxu0 %v1512
    %4982 = vmatprep.subr.mxu0 0.0
    %4983 = vmatpush1.msra.mxu0 %v1513
    %4984 = vmatprep.subr.mxu0 0.0
    %4985 = vmatpush1.msra.mxu0 %v1514
    %4986 = vmatprep.subr.mxu0 0.0
    %4987 = vmatpush1.msra.mxu0 0.0
    %4988 = vmatprep.subr.mxu0 0.0
    %4989 = vmatpush1.msra.mxu0 0.0
    %4990 = vmatprep.subr.mxu0 0.0
    %4991 = vmatpush1.msra.mxu0 0.0
    %4992 = vmatprep.subr.mxu0 0.0
    %4993 = vmatpush1.msra.mxu0 0.0
    %4994 = vmatprep.subr.mxu0 0.0
    %4995 = vmatpush1.msra.mxu0 0.0
    %4996 = vmatprep.subr.mxu0 0.0
    %4997 = vmatpush1.msra.mxu0 0.0
    %4998 = vmatprep.subr.mxu0 0.0
    %4999 = vmatpush1.msra.mxu0 0.0
    %5000 = vmatprep.subr.mxu0 0.0
    %5001 = vmatpush1.msra.mxu0 0.0
    %5002 = vmatprep.subr.mxu0 0.0
    %5003 = vmatpush1.msra.mxu0 0.0
    %5004 = vmatprep.subr.mxu0 0.0
    %5005 = vmatpush1.msra.mxu0 0.0
    %5006 = vmatprep.subr.mxu0 0.0
    %5007 = vmatpush1.msra.mxu0 0.0
    %5008 = vmatprep.subr.mxu0 0.0
    %5009 = vmatpush1.msra.mxu0 0.0
    %5010 = vmatprep.subr.mxu0 0.0
    %5011 = vmatpush1.msra.mxu0 0.0
    %5012 = vmatprep.subr.mxu0 0.0
    %5013 = vmatpush1.msra.mxu0 0.0
    %5014 = vmatprep.subr.mxu0 0.0
    %5015 = vmatpush1.msra.mxu0 0.0
    %5016 = vmatprep.subr.mxu0 0.0
    %5017 = vmatpush1.msra.mxu0 0.0
    %5018 = vmatprep.subr.mxu0 0.0
    %5019 = vmatpush1.msra.mxu0 0.0
    %5020 = vmatprep.subr.mxu0 0.0
    %5021 = vmatpush1.msra.mxu0 0.0
    %5022 = vmatprep.subr.mxu0 0.0
    %5023 = vmatpush1.msra.mxu0 0.0
    %5024 = vmatprep.subr.mxu0 0.0
    %5025 = vmatpush1.msra.mxu0 0.0
    %5026 = vmatprep.subr.mxu0 0.0
    %5027 = vmatpush1.msra.mxu0 0.0
    %5028 = vmatprep.subr.mxu0 0.0
    %5029 = vmatpush1.msra.mxu0 0.0
    %5030 = vmatprep.subr.mxu0 0.0
    %5031 = vmatpush1.msra.mxu0 0.0
    %5032 = vmatprep.subr.mxu0 0.0
    %5033 = vmatpush1.msra.mxu0 0.0
    %5034 = vmatprep.subr.mxu0 0.0
    %5035 = vmatpush1.msra.mxu0 0.0
    %5036 = vmatprep.subr.mxu0 0.0
    %5037 = vmatpush1.msra.mxu0 0.0
    %5038 = vmatprep.subr.mxu0 0.0
    %5039 = vmatpush1.msra.mxu0 0.0
    %5040 = vmatprep.subr.mxu0 0.0
    %5041 = vmatpush1.msra.mxu0 0.0
    %5042 = vmatprep.mubr.f32.mxu0 0.0
    %5043 = vmatmul.mubr.f32.gmra.mrb[0].mxu0 %v4976
    %v5044 = vpop.f32.mrb[0].mxu0
    %v5045 = vadd.f32 %v4970, %v5044
    %v5046 = vpop.f32.mrb[0].mxu0
    %5047 = vdwg.mxu0
    %v5048 = vadd.f32 %v5045, %v2394
    %v5049 = vsel %vm1520, %v5048, -inf
    %5050 = vmax.xlane.f32.xlu0 %v5049
    %v5051 = vpop.xlane.xlu0 %5050
    %v5052 = vsub.f32 %v5048, %v5051
    %v5053 = vmul.f32 %v5052, 1.442695
    %v5054 = vpow.pop %v5053
    %v5055 = vsel %vm1520, %v5054, 0.0
    %5056 = vadd.xlane.f32.xlu0 %v5055
    %v5057 = vpop.xlane.xlu0 %5056
    %v5058 = vlog2.pop %v5057
    %v5059 = vmul.f32 %v5058, 0.6931472
    %v5060 = vsub.f32 %v5052, %v5059
    %s5061 = scalar_lea.vmem [#allocation17], 16
    %5062 = vst.msk [vmem:[%s5061] sm:$0xf] %vm1520, %v5060
    %v5063 = vsel %vm1520, %v5060, -inf
    %5064 = vmax.xlane.f32.xlu0 %v5063
    %v5065 = vpop.xlane.xlu0 %5064
    %vm5066 = vcmp.eq.f32.partialorder %v5060, %v5065
    %v5067 = vsel %vm5066, %v216, 16
    %v5068 = vsel %vm1520, %v5067, 2147483647
    %v5069 = vand.u32 %v5068, 65535
    %v5070 = vshra.s32 %v5068, 16
    %v5071 = vcvt.s32.f32 %v5069
    %v5072 = vcvt.s32.f32 %v5070
    %5073 = vmin.xlane.f32.xlu0 %v5072
    %v5074 = vpop.xlane.xlu0 %5073
    %vm5075 = vcmp.eq.f32.partialorder %v5072, %v5074
    %v5076 = vsel %vm5075, %v5071, inf
    %5077 = vmin.xlane.f32.xlu0 %v5076
    %v5078 = vpop.xlane.xlu0 %5077
    %v5079 = vcvt.f32.s32 %v5078
    %v5080 = vcvt.f32.s32 %v5074
    %v5081 = vshll.u32 %v5080, 16
    %v5082 = vadd.s32 %v5081, %v5079
    %vm5083 = vcmp.eq.s32.totalorder %v216, %v5082
    %v5084 = vsel %vm5083, 1, 0
    %v5085 = vcvt.s32.f32 %v5084
    %v5087 = vsel %vm255, %v5085, 0
    %5089 = vmatprep.subr.mxu0 0.0
    %5090 = vmatpush1.msra.mxu0 %v1495
    %5091 = vmatprep.subr.mxu0 0.0
    %5092 = vmatpush1.msra.mxu0 %v1496
    %5093 = vmatprep.subr.mxu0 0.0
    %5094 = vmatpush1.msra.mxu0 0.0
    %5095 = vmatprep.subr.mxu0 0.0
    %5096 = vmatpush1.msra.mxu0 0.0
    %5097 = vmatprep.subr.mxu0 0.0
    %5098 = vmatpush1.msra.mxu0 0.0
    %5099 = vmatprep.subr.mxu0 0.0
    %5100 = vmatpush1.msra.mxu0 0.0
    %5101 = vmatprep.subr.mxu0 0.0
    %5102 = vmatpush1.msra.mxu0 0.0
    %5103 = vmatprep.subr.mxu0 0.0
    %5104 = vmatpush1.msra.mxu0 0.0
    %5105 = vmatprep.subr.mxu0 0.0
    %5106 = vmatpush1.msra.mxu0 0.0
    %5107 = vmatprep.subr.mxu0 0.0
    %5108 = vmatpush1.msra.mxu0 0.0
    %5109 = vmatprep.subr.mxu0 0.0
    %5110 = vmatpush1.msra.mxu0 0.0
    %5111 = vmatprep.subr.mxu0 0.0
    %5112 = vmatpush1.msra.mxu0 0.0
    %5113 = vmatprep.subr.mxu0 0.0
    %5114 = vmatpush1.msra.mxu0 0.0
    %5115 = vmatprep.subr.mxu0 0.0
    %5116 = vmatpush1.msra.mxu0 0.0
    %5117 = vmatprep.subr.mxu0 0.0
    %5118 = vmatpush1.msra.mxu0 0.0
    %5119 = vmatprep.subr.mxu0 0.0
    %5120 = vmatpush1.msra.mxu0 0.0
    %5121 = vmatprep.subr.mxu0 0.0
    %5122 = vmatpush1.msra.mxu0 0.0
    %5123 = vmatprep.subr.mxu0 0.0
    %5124 = vmatpush1.msra.mxu0 0.0
    %5125 = vmatprep.subr.mxu0 0.0
    %5126 = vmatpush1.msra.mxu0 0.0
    %5127 = vmatprep.subr.mxu0 0.0
    %5128 = vmatpush1.msra.mxu0 0.0
    %5129 = vmatprep.subr.mxu0 0.0
    %5130 = vmatpush1.msra.mxu0 0.0
    %5131 = vmatprep.subr.mxu0 0.0
    %5132 = vmatpush1.msra.mxu0 0.0
    %5133 = vmatprep.subr.mxu0 0.0
    %5134 = vmatpush1.msra.mxu0 0.0
    %5135 = vmatprep.subr.mxu0 0.0
    %5136 = vmatpush1.msra.mxu0 0.0
    %5137 = vmatprep.subr.mxu0 0.0
    %5138 = vmatpush1.msra.mxu0 0.0
    %5139 = vmatprep.subr.mxu0 0.0
    %5140 = vmatpush1.msra.mxu0 0.0
    %5141 = vmatprep.subr.mxu0 0.0
    %5142 = vmatpush1.msra.mxu0 0.0
    %5143 = vmatprep.subr.mxu0 0.0
    %5144 = vmatpush1.msra.mxu0 0.0
    %5145 = vmatprep.subr.mxu0 0.0
    %5146 = vmatpush1.msra.mxu0 0.0
    %5147 = vmatprep.subr.mxu0 0.0
    %5148 = vmatpush1.msra.mxu0 0.0
    %5149 = vmatprep.subr.mxu0 0.0
    %5150 = vmatpush1.msra.mxu0 0.0
    %5151 = vmatprep.subr.mxu0 0.0
    %5152 = vmatpush1.msra.mxu0 0.0
    %5153 = vmatprep.mubr.f32.mxu0 0.0
    %5154 = vmatmul.mubr.f32.gmra.mrb[0].mxu0 %v5087
    %v5155 = vpop.f32.mrb[0].mxu0
    %v5156 = vadd.f32 0.0, %v5155
    %v5157 = vpop.f32.mrb[0].mxu0
    %5158 = vdwg.mxu0
    %5159 = vmatprep.subr.mxu0 0.0
    %5160 = vmatpush1.msra.mxu0 %v1491
    %5161 = vmatprep.subr.mxu0 0.0
    %5162 = vmatpush1.msra.mxu0 %v1492
    %5163 = vmatprep.subr.mxu0 0.0
    %5164 = vmatpush1.msra.mxu0 %v1493
    %5165 = vmatprep.subr.mxu0 0.0
    %5166 = vmatpush1.msra.mxu0 %v1494
    %5167 = vmatprep.subr.mxu0 0.0
    %5168 = vmatpush1.msra.mxu0 0.0
    %5169 = vmatprep.subr.mxu0 0.0
    %5170 = vmatpush1.msra.mxu0 0.0
    %5171 = vmatprep.subr.mxu0 0.0
    %5172 = vmatpush1.msra.mxu0 0.0
    %5173 = vmatprep.subr.mxu0 0.0
    %5174 = vmatpush1.msra.mxu0 0.0
    %5175 = vmatprep.subr.mxu0 0.0
    %5176 = vmatpush1.msra.mxu0 0.0
    %5177 = vmatprep.subr.mxu0 0.0
    %5178 = vmatpush1.msra.mxu0 0.0
    %5179 = vmatprep.subr.mxu0 0.0
    %5180 = vmatpush1.msra.mxu0 0.0
    %5181 = vmatprep.subr.mxu0 0.0
    %5182 = vmatpush1.msra.mxu0 0.0
    %5183 = vmatprep.subr.mxu0 0.0
    %5184 = vmatpush1.msra.mxu0 0.0
    %5185 = vmatprep.subr.mxu0 0.0
    %5186 = vmatpush1.msra.mxu0 0.0
    %5187 = vmatprep.subr.mxu0 0.0
    %5188 = vmatpush1.msra.mxu0 0.0
    %5189 = vmatprep.subr.mxu0 0.0
    %5190 = vmatpush1.msra.mxu0 0.0
    %5191 = vmatprep.subr.mxu0 0.0
    %5192 = vmatpush1.msra.mxu0 0.0
    %5193 = vmatprep.subr.mxu0 0.0
    %5194 = vmatpush1.msra.mxu0 0.0
    %5195 = vmatprep.subr.mxu0 0.0
    %5196 = vmatpush1.msra.mxu0 0.0
    %5197 = vmatprep.subr.mxu0 0.0
    %5198 = vmatpush1.msra.mxu0 0.0
    %5199 = vmatprep.subr.mxu0 0.0
    %5200 = vmatpush1.msra.mxu0 0.0
    %5201 = vmatprep.subr.mxu0 0.0
    %5202 = vmatpush1.msra.mxu0 0.0
    %5203 = vmatprep.subr.mxu0 0.0
    %5204 = vmatpush1.msra.mxu0 0.0
    %5205 = vmatprep.subr.mxu0 0.0
    %5206 = vmatpush1.msra.mxu0 0.0
    %5207 = vmatprep.subr.mxu0 0.0
    %5208 = vmatpush1.msra.mxu0 0.0
    %5209 = vmatprep.subr.mxu0 0.0
    %5210 = vmatpush1.msra.mxu0 0.0
    %5211 = vmatprep.subr.mxu0 0.0
    %5212 = vmatpush1.msra.mxu0 0.0
    %5213 = vmatprep.subr.mxu0 0.0
    %5214 = vmatpush1.msra.mxu0 0.0
    %5215 = vmatprep.subr.mxu0 0.0
    %5216 = vmatpush1.msra.mxu0 0.0
    %5217 = vmatprep.subr.mxu0 0.0
    %5218 = vmatpush1.msra.mxu0 0.0
    %5219 = vmatprep.subr.mxu0 0.0
    %5220 = vmatpush1.msra.mxu0 0.0
    %5221 = vmatprep.subr.mxu0 0.0
    %5222 = vmatpush1.msra.mxu0 0.0
    %5223 = vmatprep.mubr.f32.mxu0 0.0
    %5224 = vmatmul.mubr.f32.gmra.mrb[0].mxu0 %v4976
    %v5225 = vpop.f32.mrb[0].mxu0
    %v5226 = vadd.f32 0.0, %v5225
    %v5227 = vpop.f32.mrb[0].mxu0
    %5228 = vdwg.mxu0
    %v5229 = vadd.f32 %v5226, %v1437
    %v5230 = vadd.f32 %v5226, %v1459
    %v5231 = vadd.f32 %v5226, %v1442
    %v5232 = vadd.f32 %v5226, %v1460
    %v5233 = vadd.f32 %v5226, %v1447
    %v5234 = vadd.f32 %v5226, %v1461
    %v5235 = vadd.f32 %v5226, %v1452
    %v5236 = vadd.f32 %v5226, %v1462
    %v5237 = vmax.f32 %v5229, 0.0
    %v5238 = vmax.f32 %v5230, 0.0
    %v5239 = vmax.f32 %v5231, 0.0
    %v5240 = vmax.f32 %v5232, 0.0
    %v5241 = vmax.f32 %v5233, 0.0
    %v5242 = vmax.f32 %v5234, 0.0
    %v5243 = vmax.f32 %v5235, 0.0
    %v5244 = vmax.f32 %v5236, 0.0
    %v5253 = vcombine.low %v5237, %v5238
    %v5254 = vcombine.low %v5239, %v5240
    %v5255 = vcombine.low %v5241, %v5242
    %v5256 = vcombine.low %v5243, %v5244
    %v5257 = vsel %vm360, %v5253, 0
    %v5259 = vsel %vm360, %v5254, 0
    %v5261 = vsel %vm360, %v5255, 0
    %v5263 = vsel %vm360, %v5256, 0
    %5265 = vmatprep.subr.mxu0 0.0
    %5266 = vmatpush1.msra.mxu0 %v1474
    %5267 = vmatprep.subr.mxu0 0.0
    %5268 = vmatpush1.msra.mxu0 %v1479
    %5269 = vmatprep.subr.mxu0 0.0
    %5270 = vmatpush1.msra.mxu0 %v1484
    %5271 = vmatprep.subr.mxu0 0.0
    %5272 = vmatpush1.msra.mxu0 %v1489
    %5273 = vmatprep.subr.mxu0 0.0
    %5274 = vmatpush1.msra.mxu0 0.0
    %5275 = vmatprep.subr.mxu0 0.0
    %5276 = vmatpush1.msra.mxu0 0.0
    %5277 = vmatprep.subr.mxu0 0.0
    %5278 = vmatpush1.msra.mxu0 0.0
    %5279 = vmatprep.subr.mxu0 0.0
    %5280 = vmatpush1.msra.mxu0 0.0
    %5281 = vmatprep.subr.mxu0 0.0
    %5282 = vmatpush1.msra.mxu0 0.0
    %5283 = vmatprep.subr.mxu0 0.0
    %5284 = vmatpush1.msra.mxu0 0.0
    %5285 = vmatprep.subr.mxu0 0.0
    %5286 = vmatpush1.msra.mxu0 0.0
    %5287 = vmatprep.subr.mxu0 0.0
    %5288 = vmatpush1.msra.mxu0 0.0
    %5289 = vmatprep.subr.mxu0 0.0
    %5290 = vmatpush1.msra.mxu0 0.0
    %5291 = vmatprep.subr.mxu0 0.0
    %5292 = vmatpush1.msra.mxu0 0.0
    %5293 = vmatprep.subr.mxu0 0.0
    %5294 = vmatpush1.msra.mxu0 0.0
    %5295 = vmatprep.subr.mxu0 0.0
    %5296 = vmatpush1.msra.mxu0 0.0
    %5297 = vmatprep.subr.mxu0 0.0
    %5298 = vmatpush1.msra.mxu0 0.0
    %5299 = vmatprep.subr.mxu0 0.0
    %5300 = vmatpush1.msra.mxu0 0.0
    %5301 = vmatprep.subr.mxu0 0.0
    %5302 = vmatpush1.msra.mxu0 0.0
    %5303 = vmatprep.subr.mxu0 0.0
    %5304 = vmatpush1.msra.mxu0 0.0
    %5305 = vmatprep.subr.mxu0 0.0
    %5306 = vmatpush1.msra.mxu0 0.0
    %5307 = vmatprep.subr.mxu0 0.0
    %5308 = vmatpush1.msra.mxu0 0.0
    %5309 = vmatprep.subr.mxu0 0.0
    %5310 = vmatpush1.msra.mxu0 0.0
    %5311 = vmatprep.subr.mxu0 0.0
    %5312 = vmatpush1.msra.mxu0 0.0
    %5313 = vmatprep.subr.mxu0 0.0
    %5314 = vmatpush1.msra.mxu0 0.0
    %5315 = vmatprep.subr.mxu0 0.0
    %5316 = vmatpush1.msra.mxu0 0.0
    %5317 = vmatprep.subr.mxu0 0.0
    %5318 = vmatpush1.msra.mxu0 0.0
    %5319 = vmatprep.subr.mxu0 0.0
    %5320 = vmatpush1.msra.mxu0 0.0
    %5321 = vmatprep.subr.mxu0 0.0
    %5322 = vmatpush1.msra.mxu0 0.0
    %5323 = vmatprep.subr.mxu0 0.0
    %5324 = vmatpush1.msra.mxu0 0.0
    %5325 = vmatprep.subr.mxu0 0.0
    %5326 = vmatpush1.msra.mxu0 0.0
    %5327 = vmatprep.subr.mxu0 0.0
    %5328 = vmatpush1.msra.mxu0 0.0
    %5329 = vmatprep.mubr.f32.mxu0 0.0
    %5330 = vmatmul.mubr.f32.gmra.mrb[0].mxu0 %v5257
    %v5331 = vpop.f32.mrb[0].mxu0
    %v5332 = vadd.f32 0.0, %v5331
    %v5333 = vpop.f32.mrb[0].mxu0
    %5334 = vmatprep.mubr.f32.mxu0 0.0
    %5335 = vmatmul.mubr.f32.gmra.mrb[0].mxu0 %v5259
    %v5336 = vpop.f32.mrb[0].mxu0
    %v5337 = vadd.f32 0.0, %v5336
    %v5338 = vpop.f32.mrb[0].mxu0
    %5339 = vmatprep.mubr.f32.mxu0 0.0
    %5340 = vmatmul.mubr.f32.gmra.mrb[0].mxu0 %v5261
    %v5341 = vpop.f32.mrb[0].mxu0
    %v5342 = vadd.f32 0.0, %v5341
    %v5343 = vpop.f32.mrb[0].mxu0
    %5344 = vmatprep.mubr.f32.mxu0 0.0
    %5345 = vmatmul.mubr.f32.gmra.mrb[0].mxu0 %v5263
    %v5346 = vpop.f32.mrb[0].mxu0
    %v5347 = vadd.f32 0.0, %v5346
    %v5348 = vpop.f32.mrb[0].mxu0
    %5349 = vdwg.mxu0
    %v5354 = vcombine.high %v5332, %v5332
    %v5355 = vcombine.high %v5337, %v5337
    %v5356 = vcombine.high %v5342, %v5342
    %v5357 = vcombine.high %v5347, %v5347
    %v5362 = vsel %vm1806, %v5332, -inf
    %v5363 = vsel %vm1806, %v5354, -inf
    %v5364 = vsel %vm1806, %v5337, -inf
    %v5365 = vsel %vm1806, %v5355, -inf
    %v5366 = vsel %vm1806, %v5342, -inf
    %v5367 = vmax.f32 %v5362, %v5366
    %v5368 = vsel %vm1806, %v5356, -inf
    %v5369 = vmax.f32 %v5363, %v5368
    %v5370 = vsel %vm1806, %v5347, -inf
    %v5371 = vmax.f32 %v5364, %v5370
    %v5372 = vsel %vm1806, %v5357, -inf
    %v5373 = vmax.f32 %v5365, %v5372
    %v5374 = vmax.f32 %v5367, %v5369
    %v5375 = vmax.f32 %v5371, %v5373
    %v5376 = vmax.f32 %v5374, %v5375
    %v5377 = vsub.f32 %v5332, %v5376
    %v5378 = vsub.f32 %v5354, %v5376
    %v5379 = vsub.f32 %v5337, %v5376
    %v5380 = vsub.f32 %v5355, %v5376
    %v5381 = vsub.f32 %v5342, %v5376
    %v5382 = vsub.f32 %v5356, %v5376
    %v5383 = vsub.f32 %v5347, %v5376
    %v5384 = vsub.f32 %v5357, %v5376
    %v5385 = vmul.f32 %v5377, 1.442695
    %v5386 = vpow.pop %v5385
    %v5387 = vmul.f32 %v5378, 1.442695
    %v5388 = vpow.pop %v5387
    %v5389 = vmul.f32 %v5379, 1.442695
    %v5390 = vpow.pop %v5389
    %v5391 = vmul.f32 %v5380, 1.442695
    %v5392 = vpow.pop %v5391
    %v5393 = vmul.f32 %v5381, 1.442695
    %v5394 = vpow.pop %v5393
    %v5395 = vmul.f32 %v5382, 1.442695
    %v5396 = vpow.pop %v5395
    %v5397 = vmul.f32 %v5383, 1.442695
    %v5398 = vpow.pop %v5397
    %v5399 = vmul.f32 %v5384, 1.442695
    %v5400 = vpow.pop %v5399
    %v5401 = vsel %vm1806, %v5386, 0.0
    %v5402 = vsel %vm1806, %v5388, 0.0
    %v5403 = vadd.f32 %v5401, %v5402
    %v5404 = vsel %vm1806, %v5390, 0.0
    %v5405 = vadd.f32 %v5403, %v5404
    %v5406 = vsel %vm1806, %v5392, 0.0
    %v5407 = vadd.f32 %v5405, %v5406
    %v5408 = vsel %vm1806, %v5394, 0.0
    %v5409 = vadd.f32 %v5407, %v5408
    %v5410 = vsel %vm1806, %v5396, 0.0
    %v5411 = vadd.f32 %v5409, %v5410
    %v5412 = vsel %vm1806, %v5398, 0.0
    %v5413 = vadd.f32 %v5411, %v5412
    %v5414 = vsel %vm1806, %v5400, 0.0
    %v5415 = vadd.f32 %v5413, %v5414
    %v5416 = vrcp.pop %v5415
    %v5417 = vmul.f32 %v5386, %v5416
    %v5418 = vmul.f32 %v5388, %v5416
    %v5419 = vmul.f32 %v5390, %v5416
    %v5420 = vmul.f32 %v5392, %v5416
    %v5421 = vmul.f32 %v5394, %v5416
    %v5422 = vmul.f32 %v5396, %v5416
    %v5423 = vmul.f32 %v5398, %v5416
    %v5424 = vmul.f32 %v5400, %v5416
    %5426 = vset.pattern.permute.xlu0 0
    %5427 = vperm.xlu0 %5426, %v5417
    %v5428 = vpop.permute.xlu0 %5427
    %v5431 = vunpack.c.l.s4 839922192
    %v5432 = vunpack.c.0.s8 %v5431
    %v5433 = vlaneseq
    %v5434 = vshrl.u32 %v5433, 7
    %v5435 = vsub.s32 %v5432, %v5434
    %v5436 = vrot.slane %v5428, %v5435
    %5438 = vset.pattern.permute.xlu0 0
    %5439 = vperm.xlu0 %5438, %v5418
    %v5440 = vpop.permute.xlu0 %5439
    %v5443 = vunpack.c.l.s4 839922192
    %v5444 = vunpack.c.0.s8 %v5443
    %v5445 = vlaneseq
    %v5446 = vshrl.u32 %v5445, 7
    %v5447 = vsub.s32 %v5444, %v5446
    %v5448 = vrot.slane %v5440, %v5447
    %5450 = vset.pattern.permute.xlu0 0
    %5451 = vperm.xlu0 %5450, %v5419
    %v5452 = vpop.permute.xlu0 %5451
    %v5455 = vunpack.c.l.s4 839922192
    %v5456 = vunpack.c.0.s8 %v5455
    %v5457 = vlaneseq
    %v5458 = vshrl.u32 %v5457, 7
    %v5459 = vsub.s32 %v5456, %v5458
    %v5460 = vrot.slane %v5452, %v5459
    %5462 = vset.pattern.permute.xlu0 0
    %5463 = vperm.xlu0 %5462, %v5420
    %v5464 = vpop.permute.xlu0 %5463
    %v5467 = vunpack.c.l.s4 839922192
    %v5468 = vunpack.c.0.s8 %v5467
    %v5469 = vlaneseq
    %v5470 = vshrl.u32 %v5469, 7
    %v5471 = vsub.s32 %v5468, %v5470
    %v5472 = vrot.slane %v5464, %v5471
    %5474 = vset.pattern.permute.xlu0 0
    %5475 = vperm.xlu0 %5474, %v5421
    %v5476 = vpop.permute.xlu0 %5475
    %v5479 = vunpack.c.l.s4 839922192
    %v5480 = vunpack.c.0.s8 %v5479
    %v5481 = vlaneseq
    %v5482 = vshrl.u32 %v5481, 7
    %v5483 = vsub.s32 %v5480, %v5482
    %v5484 = vrot.slane %v5476, %v5483
    %5486 = vset.pattern.permute.xlu0 0
    %5487 = vperm.xlu0 %5486, %v5422
    %v5488 = vpop.permute.xlu0 %5487
    %v5491 = vunpack.c.l.s4 839922192
    %v5492 = vunpack.c.0.s8 %v5491
    %v5493 = vlaneseq
    %v5494 = vshrl.u32 %v5493, 7
    %v5495 = vsub.s32 %v5492, %v5494
    %v5496 = vrot.slane %v5488, %v5495
    %5498 = vset.pattern.permute.xlu0 0
    %5499 = vperm.xlu0 %5498, %v5423
    %v5500 = vpop.permute.xlu0 %5499
    %v5503 = vunpack.c.l.s4 839922192
    %v5504 = vunpack.c.0.s8 %v5503
    %v5505 = vlaneseq
    %v5506 = vshrl.u32 %v5505, 7
    %v5507 = vsub.s32 %v5504, %v5506
    %v5508 = vrot.slane %v5500, %v5507
    %5510 = vset.pattern.permute.xlu0 0
    %5511 = vperm.xlu0 %5510, %v5424
    %v5512 = vpop.permute.xlu0 %5511
    %v5515 = vunpack.c.l.s4 839922192
    %v5516 = vunpack.c.0.s8 %v5515
    %v5517 = vlaneseq
    %v5518 = vshrl.u32 %v5517, 7
    %v5519 = vsub.s32 %v5516, %v5518
    %v5520 = vrot.slane %v5512, %v5519
    %v5521 = vmul.f32 %v5436, %v1331
    %v5522 = vmul.f32 %v5448, %v1332
    %v5523 = vmul.f32 %v5460, %v1333
    %v5524 = vmul.f32 %v5472, %v1334
    %v5525 = vmul.f32 %v5484, %v1335
    %v5526 = vmul.f32 %v5496, %v1336
    %v5527 = vmul.f32 %v5508, %v1337
    %v5528 = vmul.f32 %v5520, %v1338
    %v5529 = vsel %vm572, %v5521, 0.0
    %v5530 = vsel %vm572, %v5522, 0.0
    %v5531 = vadd.f32 %v5529, %v5530
    %v5532 = vsel %vm572, %v5523, 0.0
    %v5533 = vadd.f32 %v5531, %v5532
    %v5534 = vsel %vm572, %v5524, 0.0
    %v5535 = vadd.f32 %v5533, %v5534
    %v5536 = vsel %vm572, %v5525, 0.0
    %v5537 = vadd.f32 %v5535, %v5536
    %v5538 = vsel %vm572, %v5526, 0.0
    %v5539 = vadd.f32 %v5537, %v5538
    %v5540 = vsel %vm572, %v5527, 0.0
    %v5541 = vadd.f32 %v5539, %v5540
    %v5542 = vsel %vm572, %v5528, 0.0
    %v5543 = vadd.f32 %v5541, %v5542
    %v5545 = vsel %vm360, %v5543, 0
    %5547 = vmatprep.subr.mxu0 0.0
    %5548 = vmatpush1.msra.mxu0 %v1501
    %5549 = vmatprep.subr.mxu0 0.0
    %5550 = vmatpush1.msra.mxu0 %v1502
    %5551 = vmatprep.subr.mxu0 0.0
    %5552 = vmatpush1.msra.mxu0 %v1503
    %5553 = vmatprep.subr.mxu0 0.0
    %5554 = vmatpush1.msra.mxu0 %v1504
    %5555 = vmatprep.subr.mxu0 0.0
    %5556 = vmatpush1.msra.mxu0 0.0
    %5557 = vmatprep.subr.mxu0 0.0
    %5558 = vmatpush1.msra.mxu0 0.0
    %5559 = vmatprep.subr.mxu0 0.0
    %5560 = vmatpush1.msra.mxu0 0.0
    %5561 = vmatprep.subr.mxu0 0.0
    %5562 = vmatpush1.msra.mxu0 0.0
    %5563 = vmatprep.subr.mxu0 0.0
    %5564 = vmatpush1.msra.mxu0 0.0
    %5565 = vmatprep.subr.mxu0 0.0
    %5566 = vmatpush1.msra.mxu0 0.0
    %5567 = vmatprep.subr.mxu0 0.0
    %5568 = vmatpush1.msra.mxu0 0.0
    %5569 = vmatprep.subr.mxu0 0.0
    %5570 = vmatpush1.msra.mxu0 0.0
    %5571 = vmatprep.subr.mxu0 0.0
    %5572 = vmatpush1.msra.mxu0 0.0
    %5573 = vmatprep.subr.mxu0 0.0
    %5574 = vmatpush1.msra.mxu0 0.0
    %5575 = vmatprep.subr.mxu0 0.0
    %5576 = vmatpush1.msra.mxu0 0.0
    %5577 = vmatprep.subr.mxu0 0.0
    %5578 = vmatpush1.msra.mxu0 0.0
    %5579 = vmatprep.subr.mxu0 0.0
    %5580 = vmatpush1.msra.mxu0 0.0
    %5581 = vmatprep.subr.mxu0 0.0
    %5582 = vmatpush1.msra.mxu0 0.0
    %5583 = vmatprep.subr.mxu0 0.0
    %5584 = vmatpush1.msra.mxu0 0.0
    %5585 = vmatprep.subr.mxu0 0.0
    %5586 = vmatpush1.msra.mxu0 0.0
    %5587 = vmatprep.subr.mxu0 0.0
    %5588 = vmatpush1.msra.mxu0 0.0
    %5589 = vmatprep.subr.mxu0 0.0
    %5590 = vmatpush1.msra.mxu0 0.0
    %5591 = vmatprep.subr.mxu0 0.0
    %5592 = vmatpush1.msra.mxu0 0.0
    %5593 = vmatprep.subr.mxu0 0.0
    %5594 = vmatpush1.msra.mxu0 0.0
    %5595 = vmatprep.subr.mxu0 0.0
    %5596 = vmatpush1.msra.mxu0 0.0
    %5597 = vmatprep.subr.mxu0 0.0
    %5598 = vmatpush1.msra.mxu0 0.0
    %5599 = vmatprep.subr.mxu0 0.0
    %5600 = vmatpush1.msra.mxu0 0.0
    %5601 = vmatprep.subr.mxu0 0.0
    %5602 = vmatpush1.msra.mxu0 0.0
    %5603 = vmatprep.subr.mxu0 0.0
    %5604 = vmatpush1.msra.mxu0 0.0
    %5605 = vmatprep.subr.mxu0 0.0
    %5606 = vmatpush1.msra.mxu0 0.0
    %5607 = vmatprep.subr.mxu0 0.0
    %5608 = vmatpush1.msra.mxu0 0.0
    %5609 = vmatprep.subr.mxu0 0.0
    %5610 = vmatpush1.msra.mxu0 0.0
    %5611 = vmatprep.mubr.f32.mxu0 0.0
    %5612 = vmatmul.mubr.f32.gmra.mrb[0].mxu0 %v5545
    %v5613 = vpop.f32.mrb[0].mxu0
    %v5614 = vadd.f32 0.0, %v5613
    %v5615 = vpop.f32.mrb[0].mxu0
    %5616 = vdwg.mxu0
    %v5618 = vsel %vm360, %v5156, 0
    %5620 = vmatprep.subr.mxu0 0.0
    %5621 = vmatpush1.msra.mxu0 %v1497
    %5622 = vmatprep.subr.mxu0 0.0
    %5623 = vmatpush1.msra.mxu0 %v1498
    %5624 = vmatprep.subr.mxu0 0.0
    %5625 = vmatpush1.msra.mxu0 %v1499
    %5626 = vmatprep.subr.mxu0 0.0
    %5627 = vmatpush1.msra.mxu0 %v1500
    %5628 = vmatprep.subr.mxu0 0.0
    %5629 = vmatpush1.msra.mxu0 0.0
    %5630 = vmatprep.subr.mxu0 0.0
    %5631 = vmatpush1.msra.mxu0 0.0
    %5632 = vmatprep.subr.mxu0 0.0
    %5633 = vmatpush1.msra.mxu0 0.0
    %5634 = vmatprep.subr.mxu0 0.0
    %5635 = vmatpush1.msra.mxu0 0.0
    %5636 = vmatprep.subr.mxu0 0.0
    %5637 = vmatpush1.msra.mxu0 0.0
    %5638 = vmatprep.subr.mxu0 0.0
    %5639 = vmatpush1.msra.mxu0 0.0
    %5640 = vmatprep.subr.mxu0 0.0
    %5641 = vmatpush1.msra.mxu0 0.0
    %5642 = vmatprep.subr.mxu0 0.0
    %5643 = vmatpush1.msra.mxu0 0.0
    %5644 = vmatprep.subr.mxu0 0.0
    %5645 = vmatpush1.msra.mxu0 0.0
    %5646 = vmatprep.subr.mxu0 0.0
    %5647 = vmatpush1.msra.mxu0 0.0
    %5648 = vmatprep.subr.mxu0 0.0
    %5649 = vmatpush1.msra.mxu0 0.0
    %5650 = vmatprep.subr.mxu0 0.0
    %5651 = vmatpush1.msra.mxu0 0.0
    %5652 = vmatprep.subr.mxu0 0.0
    %5653 = vmatpush1.msra.mxu0 0.0
    %5654 = vmatprep.subr.mxu0 0.0
    %5655 = vmatpush1.msra.mxu0 0.0
    %5656 = vmatprep.subr.mxu0 0.0
    %5657 = vmatpush1.msra.mxu0 0.0
    %5658 = vmatprep.subr.mxu0 0.0
    %5659 = vmatpush1.msra.mxu0 0.0
    %5660 = vmatprep.subr.mxu0 0.0
    %5661 = vmatpush1.msra.mxu0 0.0
    %5662 = vmatprep.subr.mxu0 0.0
    %5663 = vmatpush1.msra.mxu0 0.0
    %5664 = vmatprep.subr.mxu0 0.0
    %5665 = vmatpush1.msra.mxu0 0.0
    %5666 = vmatprep.subr.mxu0 0.0
    %5667 = vmatpush1.msra.mxu0 0.0
    %5668 = vmatprep.subr.mxu0 0.0
    %5669 = vmatpush1.msra.mxu0 0.0
    %5670 = vmatprep.subr.mxu0 0.0
    %5671 = vmatpush1.msra.mxu0 0.0
    %5672 = vmatprep.subr.mxu0 0.0
    %5673 = vmatpush1.msra.mxu0 0.0
    %5674 = vmatprep.subr.mxu0 0.0
    %5675 = vmatpush1.msra.mxu0 0.0
    %5676 = vmatprep.subr.mxu0 0.0
    %5677 = vmatpush1.msra.mxu0 0.0
    %5678 = vmatprep.subr.mxu0 0.0
    %5679 = vmatpush1.msra.mxu0 0.0
    %5680 = vmatprep.subr.mxu0 0.0
    %5681 = vmatpush1.msra.mxu0 0.0
    %5682 = vmatprep.subr.mxu0 0.0
    %5683 = vmatpush1.msra.mxu0 0.0
    %5684 = vmatprep.mubr.f32.mxu0 0.0
    %5685 = vmatmul.mubr.f32.gmra.mrb[0].mxu0 %v5618
    %v5686 = vpop.f32.mrb[0].mxu0
    %v5687 = vadd.f32 %v5614, %v5686
    %v5688 = vpop.f32.mrb[0].mxu0
    %5689 = vdwg.mxu0
    %v5690 = vadd.f32 %v5687, %v2139
    %5691 = vmatprep.subr.mxu0 0.0
    %5692 = vmatpush1.msra.mxu0 %v1505
    %5693 = vmatprep.subr.mxu0 0.0
    %5694 = vmatpush1.msra.mxu0 %v1506
    %5695 = vmatprep.subr.mxu0 0.0
    %5696 = vmatpush1.msra.mxu0 %v1507
    %5697 = vmatprep.subr.mxu0 0.0
    %5698 = vmatpush1.msra.mxu0 %v1508
    %5699 = vmatprep.subr.mxu0 0.0
    %5700 = vmatpush1.msra.mxu0 0.0
    %5701 = vmatprep.subr.mxu0 0.0
    %5702 = vmatpush1.msra.mxu0 0.0
    %5703 = vmatprep.subr.mxu0 0.0
    %5704 = vmatpush1.msra.mxu0 0.0
    %5705 = vmatprep.subr.mxu0 0.0
    %5706 = vmatpush1.msra.mxu0 0.0
    %5707 = vmatprep.subr.mxu0 0.0
    %5708 = vmatpush1.msra.mxu0 0.0
    %5709 = vmatprep.subr.mxu0 0.0
    %5710 = vmatpush1.msra.mxu0 0.0
    %5711 = vmatprep.subr.mxu0 0.0
    %5712 = vmatpush1.msra.mxu0 0.0
    %5713 = vmatprep.subr.mxu0 0.0
    %5714 = vmatpush1.msra.mxu0 0.0
    %5715 = vmatprep.subr.mxu0 0.0
    %5716 = vmatpush1.msra.mxu0 0.0
    %5717 = vmatprep.subr.mxu0 0.0
    %5718 = vmatpush1.msra.mxu0 0.0
    %5719 = vmatprep.subr.mxu0 0.0
    %5720 = vmatpush1.msra.mxu0 0.0
    %5721 = vmatprep.subr.mxu0 0.0
    %5722 = vmatpush1.msra.mxu0 0.0
    %5723 = vmatprep.subr.mxu0 0.0
    %5724 = vmatpush1.msra.mxu0 0.0
    %5725 = vmatprep.subr.mxu0 0.0
    %5726 = vmatpush1.msra.mxu0 0.0
    %5727 = vmatprep.subr.mxu0 0.0
    %5728 = vmatpush1.msra.mxu0 0.0
    %5729 = vmatprep.subr.mxu0 0.0
    %5730 = vmatpush1.msra.mxu0 0.0
    %5731 = vmatprep.subr.mxu0 0.0
    %5732 = vmatpush1.msra.mxu0 0.0
    %5733 = vmatprep.subr.mxu0 0.0
    %5734 = vmatpush1.msra.mxu0 0.0
    %5735 = vmatprep.subr.mxu0 0.0
    %5736 = vmatpush1.msra.mxu0 0.0
    %5737 = vmatprep.subr.mxu0 0.0
    %5738 = vmatpush1.msra.mxu0 0.0
    %5739 = vmatprep.subr.mxu0 0.0
    %5740 = vmatpush1.msra.mxu0 0.0
    %5741 = vmatprep.subr.mxu0 0.0
    %5742 = vmatpush1.msra.mxu0 0.0
    %5743 = vmatprep.subr.mxu0 0.0
    %5744 = vmatpush1.msra.mxu0 0.0
    %5745 = vmatprep.subr.mxu0 0.0
    %5746 = vmatpush1.msra.mxu0 0.0
    %5747 = vmatprep.subr.mxu0 0.0
    %5748 = vmatpush1.msra.mxu0 0.0
    %5749 = vmatprep.subr.mxu0 0.0
    %5750 = vmatpush1.msra.mxu0 0.0
    %5751 = vmatprep.subr.mxu0 0.0
    %5752 = vmatpush1.msra.mxu0 0.0
    %5753 = vmatprep.subr.mxu0 0.0
    %5754 = vmatpush1.msra.mxu0 0.0
    %5755 = vmatprep.mubr.f32.mxu0 0.0
    %5756 = vmatmul.mubr.f32.gmra.mrb[0].mxu0 %v4976
    %v5757 = vpop.f32.mrb[0].mxu0
    %v5758 = vadd.f32 %v2146, %v5757
    %v5759 = vpop.f32.mrb[0].mxu0
    %5760 = vdwg.mxu0
    %v5761 = vadd.f32 %v5690, %v5758
    %v5762 = vxor.u32 %v5761, 2147483648
    %v5763 = vmul.f32 %v5762, 1.442695
    %v5764 = vpow.pop %v5763
    %v5765 = vadd.f32 %v5764, 1.0
    %v5766 = vrcp.pop %v5765
    %v5767 = vmul.f32 1.0, %v5766
    %5769 = vrot.lane.b32.xlu0 %v5758, 64
    %v5770 = vpop.permute.xlu0 %5769
    %v5772 = vmul.f32 %v5767, %v5770
    %5774 = vrot.lane.b32.xlu0 %v5772, 64
    %v5775 = vpop.permute.xlu0 %5774
    %v5777 = vadd.f32 %v5690, %v5775
    %v5778 = vtanh.pop %v5777
    %v5779 = vsub.f32 1.0, %v5767
    %5781 = vrot.lane.b32.xlu0 %v5778, 96
    %v5782 = vpop.permute.xlu0 %5781
    %v5784 = vmul.f32 %v5779, %v5782
    %v5785 = vmul.f32 %v5767, %v4902
    %v5786 = vadd.f32 %v5784, %v5785
    %5787 = vmatprep.subr.mxu0 0.0
    %5788 = vmatpush1.msra.mxu0 %v1515
    %5789 = vmatprep.subr.mxu0 0.0
    %5790 = vmatpush1.msra.mxu0 %v1516
    %5791 = vmatprep.subr.mxu0 0.0
    %5792 = vmatpush1.msra.mxu0 %v1517
    %5793 = vmatprep.subr.mxu0 0.0
    %5794 = vmatpush1.msra.mxu0 %v1518
    %5795 = vmatprep.subr.mxu0 0.0
    %5796 = vmatpush1.msra.mxu0 0.0
    %5797 = vmatprep.subr.mxu0 0.0
    %5798 = vmatpush1.msra.mxu0 0.0
    %5799 = vmatprep.subr.mxu0 0.0
    %5800 = vmatpush1.msra.mxu0 0.0
    %5801 = vmatprep.subr.mxu0 0.0
    %5802 = vmatpush1.msra.mxu0 0.0
    %5803 = vmatprep.subr.mxu0 0.0
    %5804 = vmatpush1.msra.mxu0 0.0
    %5805 = vmatprep.subr.mxu0 0.0
    %5806 = vmatpush1.msra.mxu0 0.0
    %5807 = vmatprep.subr.mxu0 0.0
    %5808 = vmatpush1.msra.mxu0 0.0
    %5809 = vmatprep.subr.mxu0 0.0
    %5810 = vmatpush1.msra.mxu0 0.0
    %5811 = vmatprep.subr.mxu0 0.0
    %5812 = vmatpush1.msra.mxu0 0.0
    %5813 = vmatprep.subr.mxu0 0.0
    %5814 = vmatpush1.msra.mxu0 0.0
    %5815 = vmatprep.subr.mxu0 0.0
    %5816 = vmatpush1.msra.mxu0 0.0
    %5817 = vmatprep.subr.mxu0 0.0
    %5818 = vmatpush1.msra.mxu0 0.0
    %5819 = vmatprep.subr.mxu0 0.0
    %5820 = vmatpush1.msra.mxu0 0.0
    %5821 = vmatprep.subr.mxu0 0.0
    %5822 = vmatpush1.msra.mxu0 0.0
    %5823 = vmatprep.subr.mxu0 0.0
    %5824 = vmatpush1.msra.mxu0 0.0
    %5825 = vmatprep.subr.mxu0 0.0
    %5826 = vmatpush1.msra.mxu0 0.0
    %5827 = vmatprep.subr.mxu0 0.0
    %5828 = vmatpush1.msra.mxu0 0.0
    %5829 = vmatprep.subr.mxu0 0.0
    %5830 = vmatpush1.msra.mxu0 0.0
    %5831 = vmatprep.subr.mxu0 0.0
    %5832 = vmatpush1.msra.mxu0 0.0
    %5833 = vmatprep.subr.mxu0 0.0
    %5834 = vmatpush1.msra.mxu0 0.0
    %5835 = vmatprep.subr.mxu0 0.0
    %5836 = vmatpush1.msra.mxu0 0.0
    %5837 = vmatprep.subr.mxu0 0.0
    %5838 = vmatpush1.msra.mxu0 0.0
    %5839 = vmatprep.subr.mxu0 0.0
    %5840 = vmatpush1.msra.mxu0 0.0
    %5841 = vmatprep.subr.mxu0 0.0
    %5842 = vmatpush1.msra.mxu0 0.0
    %5843 = vmatprep.subr.mxu0 0.0
    %5844 = vmatpush1.msra.mxu0 0.0
    %5845 = vmatprep.subr.mxu0 0.0
    %5846 = vmatpush1.msra.mxu0 0.0
    %5847 = vmatprep.subr.mxu0 0.0
    %5848 = vmatpush1.msra.mxu0 0.0
    %5849 = vmatprep.subr.mxu0 0.0
    %5850 = vmatpush1.msra.mxu0 0.0
    %5851 = vmatprep.mubr.f32.mxu0 0.0
    %5852 = vmatmul.mubr.f32.gmra.mrb[0].mxu0 %v5545
    %v5853 = vpop.f32.mrb[0].mxu0
    %v5854 = vadd.f32 0.0, %v5853
    %v5855 = vpop.f32.mrb[0].mxu0
    %5856 = vdwg.mxu0
    %5858 = vrot.lane.b32.xlu0 %v5786, 96
    %v5859 = vpop.permute.xlu0 %5858
    %v5860 = vsel %vm360, %v5859, 0
    %5862 = vmatprep.subr.mxu0 0.0
    %5863 = vmatpush1.msra.mxu0 %v1511
    %5864 = vmatprep.subr.mxu0 0.0
    %5865 = vmatpush1.msra.mxu0 %v1512
    %5866 = vmatprep.subr.mxu0 0.0
    %5867 = vmatpush1.msra.mxu0 %v1513
    %5868 = vmatprep.subr.mxu0 0.0
    %5869 = vmatpush1.msra.mxu0 %v1514
    %5870 = vmatprep.subr.mxu0 0.0
    %5871 = vmatpush1.msra.mxu0 0.0
    %5872 = vmatprep.subr.mxu0 0.0
    %5873 = vmatpush1.msra.mxu0 0.0
    %5874 = vmatprep.subr.mxu0 0.0
    %5875 = vmatpush1.msra.mxu0 0.0
    %5876 = vmatprep.subr.mxu0 0.0
    %5877 = vmatpush1.msra.mxu0 0.0
    %5878 = vmatprep.subr.mxu0 0.0
    %5879 = vmatpush1.msra.mxu0 0.0
    %5880 = vmatprep.subr.mxu0 0.0
    %5881 = vmatpush1.msra.mxu0 0.0
    %5882 = vmatprep.subr.mxu0 0.0
    %5883 = vmatpush1.msra.mxu0 0.0
    %5884 = vmatprep.subr.mxu0 0.0
    %5885 = vmatpush1.msra.mxu0 0.0
    %5886 = vmatprep.subr.mxu0 0.0
    %5887 = vmatpush1.msra.mxu0 0.0
    %5888 = vmatprep.subr.mxu0 0.0
    %5889 = vmatpush1.msra.mxu0 0.0
    %5890 = vmatprep.subr.mxu0 0.0
    %5891 = vmatpush1.msra.mxu0 0.0
    %5892 = vmatprep.subr.mxu0 0.0
    %5893 = vmatpush1.msra.mxu0 0.0
    %5894 = vmatprep.subr.mxu0 0.0
    %5895 = vmatpush1.msra.mxu0 0.0
    %5896 = vmatprep.subr.mxu0 0.0
    %5897 = vmatpush1.msra.mxu0 0.0
    %5898 = vmatprep.subr.mxu0 0.0
    %5899 = vmatpush1.msra.mxu0 0.0
    %5900 = vmatprep.subr.mxu0 0.0
    %5901 = vmatpush1.msra.mxu0 0.0
    %5902 = vmatprep.subr.mxu0 0.0
    %5903 = vmatpush1.msra.mxu0 0.0
    %5904 = vmatprep.subr.mxu0 0.0
    %5905 = vmatpush1.msra.mxu0 0.0
    %5906 = vmatprep.subr.mxu0 0.0
    %5907 = vmatpush1.msra.mxu0 0.0
    %5908 = vmatprep.subr.mxu0 0.0
    %5909 = vmatpush1.msra.mxu0 0.0
    %5910 = vmatprep.subr.mxu0 0.0
    %5911 = vmatpush1.msra.mxu0 0.0
    %5912 = vmatprep.subr.mxu0 0.0
    %5913 = vmatpush1.msra.mxu0 0.0
    %5914 = vmatprep.subr.mxu0 0.0
    %5915 = vmatpush1.msra.mxu0 0.0
    %5916 = vmatprep.subr.mxu0 0.0
    %5917 = vmatpush1.msra.mxu0 0.0
    %5918 = vmatprep.subr.mxu0 0.0
    %5919 = vmatpush1.msra.mxu0 0.0
    %5920 = vmatprep.subr.mxu0 0.0
    %5921 = vmatpush1.msra.mxu0 0.0
    %5922 = vmatprep.subr.mxu0 0.0
    %5923 = vmatpush1.msra.mxu0 0.0
    %5924 = vmatprep.subr.mxu0 0.0
    %5925 = vmatpush1.msra.mxu0 0.0
    %5926 = vmatprep.mubr.f32.mxu0 0.0
    %5927 = vmatmul.mubr.f32.gmra.mrb[0].mxu0 %v5860
    %v5928 = vpop.f32.mrb[0].mxu0
    %v5929 = vadd.f32 %v5854, %v5928
    %v5930 = vpop.f32.mrb[0].mxu0
    %5931 = vdwg.mxu0
    %v5932 = vadd.f32 %v5929, %v2394
    %v5933 = vsel %vm1520, %v5932, -inf
    %5934 = vmax.xlane.f32.xlu0 %v5933
    %v5935 = vpop.xlane.xlu0 %5934
    %v5936 = vsub.f32 %v5932, %v5935
    %v5937 = vmul.f32 %v5936, 1.442695
    %v5938 = vpow.pop %v5937
    %v5939 = vsel %vm1520, %v5938, 0.0
    %5940 = vadd.xlane.f32.xlu0 %v5939
    %v5941 = vpop.xlane.xlu0 %5940
    %v5942 = vlog2.pop %v5941
    %v5943 = vmul.f32 %v5942, 0.6931472
    %v5944 = vsub.f32 %v5936, %v5943
    %s5945 = scalar_lea.vmem [#allocation17], 20
    %5946 = vst.msk [vmem:[%s5945] sm:$0xf] %vm1520, %v5944
    %v5947 = vsel %vm1520, %v5944, -inf
    %5948 = vmax.xlane.f32.xlu0 %v5947
    %v5949 = vpop.xlane.xlu0 %5948
    %vm5950 = vcmp.eq.f32.partialorder %v5944, %v5949
    %v5951 = vsel %vm5950, %v216, 16
    %v5952 = vsel %vm1520, %v5951, 2147483647
    %v5953 = vand.u32 %v5952, 65535
    %v5954 = vshra.s32 %v5952, 16
    %v5955 = vcvt.s32.f32 %v5953
    %v5956 = vcvt.s32.f32 %v5954
    %5957 = vmin.xlane.f32.xlu0 %v5956
    %v5958 = vpop.xlane.xlu0 %5957
    %vm5959 = vcmp.eq.f32.partialorder %v5956, %v5958
    %v5960 = vsel %vm5959, %v5955, inf
    %5961 = vmin.xlane.f32.xlu0 %v5960
    %v5962 = vpop.xlane.xlu0 %5961
    %v5963 = vcvt.f32.s32 %v5962
    %v5964 = vcvt.f32.s32 %v5958
    %v5965 = vshll.u32 %v5964, 16
    %v5966 = vadd.s32 %v5965, %v5963
    %vm5967 = vcmp.eq.s32.totalorder %v216, %v5966
    %v5968 = vsel %vm5967, 1, 0
    %v5969 = vcvt.s32.f32 %v5968
    %v5971 = vsel %vm255, %v5969, 0
    %5973 = vmatprep.subr.mxu0 0.0
    %5974 = vmatpush1.msra.mxu0 %v1495
    %5975 = vmatprep.subr.mxu0 0.0
    %5976 = vmatpush1.msra.mxu0 %v1496
    %5977 = vmatprep.subr.mxu0 0.0
    %5978 = vmatpush1.msra.mxu0 0.0
    %5979 = vmatprep.subr.mxu0 0.0
    %5980 = vmatpush1.msra.mxu0 0.0
    %5981 = vmatprep.subr.mxu0 0.0
    %5982 = vmatpush1.msra.mxu0 0.0
    %5983 = vmatprep.subr.mxu0 0.0
    %5984 = vmatpush1.msra.mxu0 0.0
    %5985 = vmatprep.subr.mxu0 0.0
    %5986 = vmatpush1.msra.mxu0 0.0
    %5987 = vmatprep.subr.mxu0 0.0
    %5988 = vmatpush1.msra.mxu0 0.0
    %5989 = vmatprep.subr.mxu0 0.0
    %5990 = vmatpush1.msra.mxu0 0.0
    %5991 = vmatprep.subr.mxu0 0.0
    %5992 = vmatpush1.msra.mxu0 0.0
    %5993 = vmatprep.subr.mxu0 0.0
    %5994 = vmatpush1.msra.mxu0 0.0
    %5995 = vmatprep.subr.mxu0 0.0
    %5996 = vmatpush1.msra.mxu0 0.0
    %5997 = vmatprep.subr.mxu0 0.0
    %5998 = vmatpush1.msra.mxu0 0.0
    %5999 = vmatprep.subr.mxu0 0.0
    %6000 = vmatpush1.msra.mxu0 0.0
    %6001 = vmatprep.subr.mxu0 0.0
    %6002 = vmatpush1.msra.mxu0 0.0
    %6003 = vmatprep.subr.mxu0 0.0
    %6004 = vmatpush1.msra.mxu0 0.0
    %6005 = vmatprep.subr.mxu0 0.0
    %6006 = vmatpush1.msra.mxu0 0.0
    %6007 = vmatprep.subr.mxu0 0.0
    %6008 = vmatpush1.msra.mxu0 0.0
    %6009 = vmatprep.subr.mxu0 0.0
    %6010 = vmatpush1.msra.mxu0 0.0
    %6011 = vmatprep.subr.mxu0 0.0
    %6012 = vmatpush1.msra.mxu0 0.0
    %6013 = vmatprep.subr.mxu0 0.0
    %6014 = vmatpush1.msra.mxu0 0.0
    %6015 = vmatprep.subr.mxu0 0.0
    %6016 = vmatpush1.msra.mxu0 0.0
    %6017 = vmatprep.subr.mxu0 0.0
    %6018 = vmatpush1.msra.mxu0 0.0
    %6019 = vmatprep.subr.mxu0 0.0
    %6020 = vmatpush1.msra.mxu0 0.0
    %6021 = vmatprep.subr.mxu0 0.0
    %6022 = vmatpush1.msra.mxu0 0.0
    %6023 = vmatprep.subr.mxu0 0.0
    %6024 = vmatpush1.msra.mxu0 0.0
    %6025 = vmatprep.subr.mxu0 0.0
    %6026 = vmatpush1.msra.mxu0 0.0
    %6027 = vmatprep.subr.mxu0 0.0
    %6028 = vmatpush1.msra.mxu0 0.0
    %6029 = vmatprep.subr.mxu0 0.0
    %6030 = vmatpush1.msra.mxu0 0.0
    %6031 = vmatprep.subr.mxu0 0.0
    %6032 = vmatpush1.msra.mxu0 0.0
    %6033 = vmatprep.subr.mxu0 0.0
    %6034 = vmatpush1.msra.mxu0 0.0
    %6035 = vmatprep.subr.mxu0 0.0
    %6036 = vmatpush1.msra.mxu0 0.0
    %6037 = vmatprep.mubr.f32.mxu0 0.0
    %6038 = vmatmul.mubr.f32.gmra.mrb[0].mxu0 %v5971
    %v6039 = vpop.f32.mrb[0].mxu0
    %v6040 = vadd.f32 0.0, %v6039
    %v6041 = vpop.f32.mrb[0].mxu0
    %6042 = vdwg.mxu0
    %6043 = vmatprep.subr.mxu0 0.0
    %6044 = vmatpush1.msra.mxu0 %v1491
    %6045 = vmatprep.subr.mxu0 0.0
    %6046 = vmatpush1.msra.mxu0 %v1492
    %6047 = vmatprep.subr.mxu0 0.0
    %6048 = vmatpush1.msra.mxu0 %v1493
    %6049 = vmatprep.subr.mxu0 0.0
    %6050 = vmatpush1.msra.mxu0 %v1494
    %6051 = vmatprep.subr.mxu0 0.0
    %6052 = vmatpush1.msra.mxu0 0.0
    %6053 = vmatprep.subr.mxu0 0.0
    %6054 = vmatpush1.msra.mxu0 0.0
    %6055 = vmatprep.subr.mxu0 0.0
    %6056 = vmatpush1.msra.mxu0 0.0
    %6057 = vmatprep.subr.mxu0 0.0
    %6058 = vmatpush1.msra.mxu0 0.0
    %6059 = vmatprep.subr.mxu0 0.0
    %6060 = vmatpush1.msra.mxu0 0.0
    %6061 = vmatprep.subr.mxu0 0.0
    %6062 = vmatpush1.msra.mxu0 0.0
    %6063 = vmatprep.subr.mxu0 0.0
    %6064 = vmatpush1.msra.mxu0 0.0
    %6065 = vmatprep.subr.mxu0 0.0
    %6066 = vmatpush1.msra.mxu0 0.0
    %6067 = vmatprep.subr.mxu0 0.0
    %6068 = vmatpush1.msra.mxu0 0.0
    %6069 = vmatprep.subr.mxu0 0.0
    %6070 = vmatpush1.msra.mxu0 0.0
    %6071 = vmatprep.subr.mxu0 0.0
    %6072 = vmatpush1.msra.mxu0 0.0
    %6073 = vmatprep.subr.mxu0 0.0
    %6074 = vmatpush1.msra.mxu0 0.0
    %6075 = vmatprep.subr.mxu0 0.0
    %6076 = vmatpush1.msra.mxu0 0.0
    %6077 = vmatprep.subr.mxu0 0.0
    %6078 = vmatpush1.msra.mxu0 0.0
    %6079 = vmatprep.subr.mxu0 0.0
    %6080 = vmatpush1.msra.mxu0 0.0
    %6081 = vmatprep.subr.mxu0 0.0
    %6082 = vmatpush1.msra.mxu0 0.0
    %6083 = vmatprep.subr.mxu0 0.0
    %6084 = vmatpush1.msra.mxu0 0.0
    %6085 = vmatprep.subr.mxu0 0.0
    %6086 = vmatpush1.msra.mxu0 0.0
    %6087 = vmatprep.subr.mxu0 0.0
    %6088 = vmatpush1.msra.mxu0 0.0
    %6089 = vmatprep.subr.mxu0 0.0
    %6090 = vmatpush1.msra.mxu0 0.0
    %6091 = vmatprep.subr.mxu0 0.0
    %6092 = vmatpush1.msra.mxu0 0.0
    %6093 = vmatprep.subr.mxu0 0.0
    %6094 = vmatpush1.msra.mxu0 0.0
    %6095 = vmatprep.subr.mxu0 0.0
    %6096 = vmatpush1.msra.mxu0 0.0
    %6097 = vmatprep.subr.mxu0 0.0
    %6098 = vmatpush1.msra.mxu0 0.0
    %6099 = vmatprep.subr.mxu0 0.0
    %6100 = vmatpush1.msra.mxu0 0.0
    %6101 = vmatprep.subr.mxu0 0.0
    %6102 = vmatpush1.msra.mxu0 0.0
    %6103 = vmatprep.subr.mxu0 0.0
    %6104 = vmatpush1.msra.mxu0 0.0
    %6105 = vmatprep.subr.mxu0 0.0
    %6106 = vmatpush1.msra.mxu0 0.0
    %6107 = vmatprep.mubr.f32.mxu0 0.0
    %6108 = vmatmul.mubr.f32.gmra.mrb[0].mxu0 %v5860
    %v6109 = vpop.f32.mrb[0].mxu0
    %v6110 = vadd.f32 0.0, %v6109
    %v6111 = vpop.f32.mrb[0].mxu0
    %6112 = vdwg.mxu0
    %v6113 = vadd.f32 %v6110, %v1437
    %v6114 = vadd.f32 %v6110, %v1459
    %v6115 = vadd.f32 %v6110, %v1442
    %v6116 = vadd.f32 %v6110, %v1460
    %v6117 = vadd.f32 %v6110, %v1447
    %v6118 = vadd.f32 %v6110, %v1461
    %v6119 = vadd.f32 %v6110, %v1452
    %v6120 = vadd.f32 %v6110, %v1462
    %v6121 = vmax.f32 %v6113, 0.0
    %v6122 = vmax.f32 %v6114, 0.0
    %v6123 = vmax.f32 %v6115, 0.0
    %v6124 = vmax.f32 %v6116, 0.0
    %v6125 = vmax.f32 %v6117, 0.0
    %v6126 = vmax.f32 %v6118, 0.0
    %v6127 = vmax.f32 %v6119, 0.0
    %v6128 = vmax.f32 %v6120, 0.0
    %v6137 = vcombine.low %v6121, %v6122
    %v6138 = vcombine.low %v6123, %v6124
    %v6139 = vcombine.low %v6125, %v6126
    %v6140 = vcombine.low %v6127, %v6128
    %v6141 = vsel %vm360, %v6137, 0
    %v6143 = vsel %vm360, %v6138, 0
    %v6145 = vsel %vm360, %v6139, 0
    %v6147 = vsel %vm360, %v6140, 0
    %6149 = vmatprep.subr.mxu0 0.0
    %6150 = vmatpush1.msra.mxu0 %v1474
    %6151 = vmatprep.subr.mxu0 0.0
    %6152 = vmatpush1.msra.mxu0 %v1479
    %6153 = vmatprep.subr.mxu0 0.0
    %6154 = vmatpush1.msra.mxu0 %v1484
    %6155 = vmatprep.subr.mxu0 0.0
    %6156 = vmatpush1.msra.mxu0 %v1489
    %6157 = vmatprep.subr.mxu0 0.0
    %6158 = vmatpush1.msra.mxu0 0.0
    %6159 = vmatprep.subr.mxu0 0.0
    %6160 = vmatpush1.msra.mxu0 0.0
    %6161 = vmatprep.subr.mxu0 0.0
    %6162 = vmatpush1.msra.mxu0 0.0
    %6163 = vmatprep.subr.mxu0 0.0
    %6164 = vmatpush1.msra.mxu0 0.0
    %6165 = vmatprep.subr.mxu0 0.0
    %6166 = vmatpush1.msra.mxu0 0.0
    %6167 = vmatprep.subr.mxu0 0.0
    %6168 = vmatpush1.msra.mxu0 0.0
    %6169 = vmatprep.subr.mxu0 0.0
    %6170 = vmatpush1.msra.mxu0 0.0
    %6171 = vmatprep.subr.mxu0 0.0
    %6172 = vmatpush1.msra.mxu0 0.0
    %6173 = vmatprep.subr.mxu0 0.0
    %6174 = vmatpush1.msra.mxu0 0.0
    %6175 = vmatprep.subr.mxu0 0.0
    %6176 = vmatpush1.msra.mxu0 0.0
    %6177 = vmatprep.subr.mxu0 0.0
    %6178 = vmatpush1.msra.mxu0 0.0
    %6179 = vmatprep.subr.mxu0 0.0
    %6180 = vmatpush1.msra.mxu0 0.0
    %6181 = vmatprep.subr.mxu0 0.0
    %6182 = vmatpush1.msra.mxu0 0.0
    %6183 = vmatprep.subr.mxu0 0.0
    %6184 = vmatpush1.msra.mxu0 0.0
    %6185 = vmatprep.subr.mxu0 0.0
    %6186 = vmatpush1.msra.mxu0 0.0
    %6187 = vmatprep.subr.mxu0 0.0
    %6188 = vmatpush1.msra.mxu0 0.0
    %6189 = vmatprep.subr.mxu0 0.0
    %6190 = vmatpush1.msra.mxu0 0.0
    %6191 = vmatprep.subr.mxu0 0.0
    %6192 = vmatpush1.msra.mxu0 0.0
    %6193 = vmatprep.subr.mxu0 0.0
    %6194 = vmatpush1.msra.mxu0 0.0
    %6195 = vmatprep.subr.mxu0 0.0
    %6196 = vmatpush1.msra.mxu0 0.0
    %6197 = vmatprep.subr.mxu0 0.0
    %6198 = vmatpush1.msra.mxu0 0.0
    %6199 = vmatprep.subr.mxu0 0.0
    %6200 = vmatpush1.msra.mxu0 0.0
    %6201 = vmatprep.subr.mxu0 0.0
    %6202 = vmatpush1.msra.mxu0 0.0
    %6203 = vmatprep.subr.mxu0 0.0
    %6204 = vmatpush1.msra.mxu0 0.0
    %6205 = vmatprep.subr.mxu0 0.0
    %6206 = vmatpush1.msra.mxu0 0.0
    %6207 = vmatprep.subr.mxu0 0.0
    %6208 = vmatpush1.msra.mxu0 0.0
    %6209 = vmatprep.subr.mxu0 0.0
    %6210 = vmatpush1.msra.mxu0 0.0
    %6211 = vmatprep.subr.mxu0 0.0
    %6212 = vmatpush1.msra.mxu0 0.0
    %6213 = vmatprep.mubr.f32.mxu0 0.0
    %6214 = vmatmul.mubr.f32.gmra.mrb[0].mxu0 %v6141
    %v6215 = vpop.f32.mrb[0].mxu0
    %v6216 = vadd.f32 0.0, %v6215
    %v6217 = vpop.f32.mrb[0].mxu0
    %6218 = vmatprep.mubr.f32.mxu0 0.0
    %6219 = vmatmul.mubr.f32.gmra.mrb[0].mxu0 %v6143
    %v6220 = vpop.f32.mrb[0].mxu0
    %v6221 = vadd.f32 0.0, %v6220
    %v6222 = vpop.f32.mrb[0].mxu0
    %6223 = vmatprep.mubr.f32.mxu0 0.0
    %6224 = vmatmul.mubr.f32.gmra.mrb[0].mxu0 %v6145
    %v6225 = vpop.f32.mrb[0].mxu0
    %v6226 = vadd.f32 0.0, %v6225
    %v6227 = vpop.f32.mrb[0].mxu0
    %6228 = vmatprep.mubr.f32.mxu0 0.0
    %6229 = vmatmul.mubr.f32.gmra.mrb[0].mxu0 %v6147
    %v6230 = vpop.f32.mrb[0].mxu0
    %v6231 = vadd.f32 0.0, %v6230
    %v6232 = vpop.f32.mrb[0].mxu0
    %6233 = vdwg.mxu0
    %v6238 = vcombine.high %v6216, %v6216
    %v6239 = vcombine.high %v6221, %v6221
    %v6240 = vcombine.high %v6226, %v6226
    %v6241 = vcombine.high %v6231, %v6231
    %v6246 = vsel %vm1806, %v6216, -inf
    %v6247 = vsel %vm1806, %v6238, -inf
    %v6248 = vsel %vm1806, %v6221, -inf
    %v6249 = vsel %vm1806, %v6239, -inf
    %v6250 = vsel %vm1806, %v6226, -inf
    %v6251 = vmax.f32 %v6246, %v6250
    %v6252 = vsel %vm1806, %v6240, -inf
    %v6253 = vmax.f32 %v6247, %v6252
    %v6254 = vsel %vm1806, %v6231, -inf
    %v6255 = vmax.f32 %v6248, %v6254
    %v6256 = vsel %vm1806, %v6241, -inf
    %v6257 = vmax.f32 %v6249, %v6256
    %v6258 = vmax.f32 %v6251, %v6253
    %v6259 = vmax.f32 %v6255, %v6257
    %v6260 = vmax.f32 %v6258, %v6259
    %v6261 = vsub.f32 %v6216, %v6260
    %v6262 = vsub.f32 %v6238, %v6260
    %v6263 = vsub.f32 %v6221, %v6260
    %v6264 = vsub.f32 %v6239, %v6260
    %v6265 = vsub.f32 %v6226, %v6260
    %v6266 = vsub.f32 %v6240, %v6260
    %v6267 = vsub.f32 %v6231, %v6260
    %v6268 = vsub.f32 %v6241, %v6260
    %v6269 = vmul.f32 %v6261, 1.442695
    %v6270 = vpow.pop %v6269
    %v6271 = vmul.f32 %v6262, 1.442695
    %v6272 = vpow.pop %v6271
    %v6273 = vmul.f32 %v6263, 1.442695
    %v6274 = vpow.pop %v6273
    %v6275 = vmul.f32 %v6264, 1.442695
    %v6276 = vpow.pop %v6275
    %v6277 = vmul.f32 %v6265, 1.442695
    %v6278 = vpow.pop %v6277
    %v6279 = vmul.f32 %v6266, 1.442695
    %v6280 = vpow.pop %v6279
    %v6281 = vmul.f32 %v6267, 1.442695
    %v6282 = vpow.pop %v6281
    %v6283 = vmul.f32 %v6268, 1.442695
    %v6284 = vpow.pop %v6283
    %v6285 = vsel %vm1806, %v6270, 0.0
    %v6286 = vsel %vm1806, %v6272, 0.0
    %v6287 = vadd.f32 %v6285, %v6286
    %v6288 = vsel %vm1806, %v6274, 0.0
    %v6289 = vadd.f32 %v6287, %v6288
    %v6290 = vsel %vm1806, %v6276, 0.0
    %v6291 = vadd.f32 %v6289, %v6290
    %v6292 = vsel %vm1806, %v6278, 0.0
    %v6293 = vadd.f32 %v6291, %v6292
    %v6294 = vsel %vm1806, %v6280, 0.0
    %v6295 = vadd.f32 %v6293, %v6294
    %v6296 = vsel %vm1806, %v6282, 0.0
    %v6297 = vadd.f32 %v6295, %v6296
    %v6298 = vsel %vm1806, %v6284, 0.0
    %v6299 = vadd.f32 %v6297, %v6298
    %v6300 = vrcp.pop %v6299
    %v6301 = vmul.f32 %v6270, %v6300
    %v6302 = vmul.f32 %v6272, %v6300
    %v6303 = vmul.f32 %v6274, %v6300
    %v6304 = vmul.f32 %v6276, %v6300
    %v6305 = vmul.f32 %v6278, %v6300
    %v6306 = vmul.f32 %v6280, %v6300
    %v6307 = vmul.f32 %v6282, %v6300
    %v6308 = vmul.f32 %v6284, %v6300
    %6310 = vset.pattern.permute.xlu0 0
    %6311 = vperm.xlu0 %6310, %v6301
    %v6312 = vpop.permute.xlu0 %6311
    %v6315 = vunpack.c.l.s4 839922192
    %v6316 = vunpack.c.0.s8 %v6315
    %v6317 = vlaneseq
    %v6318 = vshrl.u32 %v6317, 7
    %v6319 = vsub.s32 %v6316, %v6318
    %v6320 = vrot.slane %v6312, %v6319
    %6322 = vset.pattern.permute.xlu0 0
    %6323 = vperm.xlu0 %6322, %v6302
    %v6324 = vpop.permute.xlu0 %6323
    %v6327 = vunpack.c.l.s4 839922192
    %v6328 = vunpack.c.0.s8 %v6327
    %v6329 = vlaneseq
    %v6330 = vshrl.u32 %v6329, 7
    %v6331 = vsub.s32 %v6328, %v6330
    %v6332 = vrot.slane %v6324, %v6331
    %6334 = vset.pattern.permute.xlu0 0
    %6335 = vperm.xlu0 %6334, %v6303
    %v6336 = vpop.permute.xlu0 %6335
    %v6339 = vunpack.c.l.s4 839922192
    %v6340 = vunpack.c.0.s8 %v6339
    %v6341 = vlaneseq
    %v6342 = vshrl.u32 %v6341, 7
    %v6343 = vsub.s32 %v6340, %v6342
    %v6344 = vrot.slane %v6336, %v6343
    %6346 = vset.pattern.permute.xlu0 0
    %6347 = vperm.xlu0 %6346, %v6304
    %v6348 = vpop.permute.xlu0 %6347
    %v6351 = vunpack.c.l.s4 839922192
    %v6352 = vunpack.c.0.s8 %v6351
    %v6353 = vlaneseq
    %v6354 = vshrl.u32 %v6353, 7
    %v6355 = vsub.s32 %v6352, %v6354
    %v6356 = vrot.slane %v6348, %v6355
    %6358 = vset.pattern.permute.xlu0 0
    %6359 = vperm.xlu0 %6358, %v6305
    %v6360 = vpop.permute.xlu0 %6359
    %v6363 = vunpack.c.l.s4 839922192
    %v6364 = vunpack.c.0.s8 %v6363
    %v6365 = vlaneseq
    %v6366 = vshrl.u32 %v6365, 7
    %v6367 = vsub.s32 %v6364, %v6366
    %v6368 = vrot.slane %v6360, %v6367
    %6370 = vset.pattern.permute.xlu0 0
    %6371 = vperm.xlu0 %6370, %v6306
    %v6372 = vpop.permute.xlu0 %6371
    %v6375 = vunpack.c.l.s4 839922192
    %v6376 = vunpack.c.0.s8 %v6375
    %v6377 = vlaneseq
    %v6378 = vshrl.u32 %v6377, 7
    %v6379 = vsub.s32 %v6376, %v6378
    %v6380 = vrot.slane %v6372, %v6379
    %6382 = vset.pattern.permute.xlu0 0
    %6383 = vperm.xlu0 %6382, %v6307
    %v6384 = vpop.permute.xlu0 %6383
    %v6387 = vunpack.c.l.s4 839922192
    %v6388 = vunpack.c.0.s8 %v6387
    %v6389 = vlaneseq
    %v6390 = vshrl.u32 %v6389, 7
    %v6391 = vsub.s32 %v6388, %v6390
    %v6392 = vrot.slane %v6384, %v6391
    %6394 = vset.pattern.permute.xlu0 0
    %6395 = vperm.xlu0 %6394, %v6308
    %v6396 = vpop.permute.xlu0 %6395
    %v6399 = vunpack.c.l.s4 839922192
    %v6400 = vunpack.c.0.s8 %v6399
    %v6401 = vlaneseq
    %v6402 = vshrl.u32 %v6401, 7
    %v6403 = vsub.s32 %v6400, %v6402
    %v6404 = vrot.slane %v6396, %v6403
    %v6405 = vmul.f32 %v6320, %v1331
    %v6406 = vmul.f32 %v6332, %v1332
    %v6407 = vmul.f32 %v6344, %v1333
    %v6408 = vmul.f32 %v6356, %v1334
    %v6409 = vmul.f32 %v6368, %v1335
    %v6410 = vmul.f32 %v6380, %v1336
    %v6411 = vmul.f32 %v6392, %v1337
    %v6412 = vmul.f32 %v6404, %v1338
    %v6413 = vsel %vm572, %v6405, 0.0
    %v6414 = vsel %vm572, %v6406, 0.0
    %v6415 = vadd.f32 %v6413, %v6414
    %v6416 = vsel %vm572, %v6407, 0.0
    %v6417 = vadd.f32 %v6415, %v6416
    %v6418 = vsel %vm572, %v6408, 0.0
    %v6419 = vadd.f32 %v6417, %v6418
    %v6420 = vsel %vm572, %v6409, 0.0
    %v6421 = vadd.f32 %v6419, %v6420
    %v6422 = vsel %vm572, %v6410, 0.0
    %v6423 = vadd.f32 %v6421, %v6422
    %v6424 = vsel %vm572, %v6411, 0.0
    %v6425 = vadd.f32 %v6423, %v6424
    %v6426 = vsel %vm572, %v6412, 0.0
    %v6427 = vadd.f32 %v6425, %v6426
    %v6429 = vsel %vm360, %v6427, 0
    %6431 = vmatprep.subr.mxu0 0.0
    %6432 = vmatpush1.msra.mxu0 %v1501
    %6433 = vmatprep.subr.mxu0 0.0
    %6434 = vmatpush1.msra.mxu0 %v1502
    %6435 = vmatprep.subr.mxu0 0.0
    %6436 = vmatpush1.msra.mxu0 %v1503
    %6437 = vmatprep.subr.mxu0 0.0
    %6438 = vmatpush1.msra.mxu0 %v1504
    %6439 = vmatprep.subr.mxu0 0.0
    %6440 = vmatpush1.msra.mxu0 0.0
    %6441 = vmatprep.subr.mxu0 0.0
    %6442 = vmatpush1.msra.mxu0 0.0
    %6443 = vmatprep.subr.mxu0 0.0
    %6444 = vmatpush1.msra.mxu0 0.0
    %6445 = vmatprep.subr.mxu0 0.0
    %6446 = vmatpush1.msra.mxu0 0.0
    %6447 = vmatprep.subr.mxu0 0.0
    %6448 = vmatpush1.msra.mxu0 0.0
    %6449 = vmatprep.subr.mxu0 0.0
    %6450 = vmatpush1.msra.mxu0 0.0
    %6451 = vmatprep.subr.mxu0 0.0
    %6452 = vmatpush1.msra.mxu0 0.0
    %6453 = vmatprep.subr.mxu0 0.0
    %6454 = vmatpush1.msra.mxu0 0.0
    %6455 = vmatprep.subr.mxu0 0.0
    %6456 = vmatpush1.msra.mxu0 0.0
    %6457 = vmatprep.subr.mxu0 0.0
    %6458 = vmatpush1.msra.mxu0 0.0
    %6459 = vmatprep.subr.mxu0 0.0
    %6460 = vmatpush1.msra.mxu0 0.0
    %6461 = vmatprep.subr.mxu0 0.0
    %6462 = vmatpush1.msra.mxu0 0.0
    %6463 = vmatprep.subr.mxu0 0.0
    %6464 = vmatpush1.msra.mxu0 0.0
    %6465 = vmatprep.subr.mxu0 0.0
    %6466 = vmatpush1.msra.mxu0 0.0
    %6467 = vmatprep.subr.mxu0 0.0
    %6468 = vmatpush1.msra.mxu0 0.0
    %6469 = vmatprep.subr.mxu0 0.0
    %6470 = vmatpush1.msra.mxu0 0.0
    %6471 = vmatprep.subr.mxu0 0.0
    %6472 = vmatpush1.msra.mxu0 0.0
    %6473 = vmatprep.subr.mxu0 0.0
    %6474 = vmatpush1.msra.mxu0 0.0
    %6475 = vmatprep.subr.mxu0 0.0
    %6476 = vmatpush1.msra.mxu0 0.0
    %6477 = vmatprep.subr.mxu0 0.0
    %6478 = vmatpush1.msra.mxu0 0.0
    %6479 = vmatprep.subr.mxu0 0.0
    %6480 = vmatpush1.msra.mxu0 0.0
    %6481 = vmatprep.subr.mxu0 0.0
    %6482 = vmatpush1.msra.mxu0 0.0
    %6483 = vmatprep.subr.mxu0 0.0
    %6484 = vmatpush1.msra.mxu0 0.0
    %6485 = vmatprep.subr.mxu0 0.0
    %6486 = vmatpush1.msra.mxu0 0.0
    %6487 = vmatprep.subr.mxu0 0.0
    %6488 = vmatpush1.msra.mxu0 0.0
    %6489 = vmatprep.subr.mxu0 0.0
    %6490 = vmatpush1.msra.mxu0 0.0
    %6491 = vmatprep.subr.mxu0 0.0
    %6492 = vmatpush1.msra.mxu0 0.0
    %6493 = vmatprep.subr.mxu0 0.0
    %6494 = vmatpush1.msra.mxu0 0.0
    %6495 = vmatprep.mubr.f32.mxu0 0.0
    %6496 = vmatmul.mubr.f32.gmra.mrb[0].mxu0 %v6429
    %v6497 = vpop.f32.mrb[0].mxu0
    %v6498 = vadd.f32 0.0, %v6497
    %v6499 = vpop.f32.mrb[0].mxu0
    %6500 = vdwg.mxu0
    %v6502 = vsel %vm360, %v6040, 0
    %6504 = vmatprep.subr.mxu0 0.0
    %6505 = vmatpush1.msra.mxu0 %v1497
    %6506 = vmatprep.subr.mxu0 0.0
    %6507 = vmatpush1.msra.mxu0 %v1498
    %6508 = vmatprep.subr.mxu0 0.0
    %6509 = vmatpush1.msra.mxu0 %v1499
    %6510 = vmatprep.subr.mxu0 0.0
    %6511 = vmatpush1.msra.mxu0 %v1500
    %6512 = vmatprep.subr.mxu0 0.0
    %6513 = vmatpush1.msra.mxu0 0.0
    %6514 = vmatprep.subr.mxu0 0.0
    %6515 = vmatpush1.msra.mxu0 0.0
    %6516 = vmatprep.subr.mxu0 0.0
    %6517 = vmatpush1.msra.mxu0 0.0
    %6518 = vmatprep.subr.mxu0 0.0
    %6519 = vmatpush1.msra.mxu0 0.0
    %6520 = vmatprep.subr.mxu0 0.0
    %6521 = vmatpush1.msra.mxu0 0.0
    %6522 = vmatprep.subr.mxu0 0.0
    %6523 = vmatpush1.msra.mxu0 0.0
    %6524 = vmatprep.subr.mxu0 0.0
    %6525 = vmatpush1.msra.mxu0 0.0
    %6526 = vmatprep.subr.mxu0 0.0
    %6527 = vmatpush1.msra.mxu0 0.0
    %6528 = vmatprep.subr.mxu0 0.0
    %6529 = vmatpush1.msra.mxu0 0.0
    %6530 = vmatprep.subr.mxu0 0.0
    %6531 = vmatpush1.msra.mxu0 0.0
    %6532 = vmatprep.subr.mxu0 0.0
    %6533 = vmatpush1.msra.mxu0 0.0
    %6534 = vmatprep.subr.mxu0 0.0
    %6535 = vmatpush1.msra.mxu0 0.0
    %6536 = vmatprep.subr.mxu0 0.0
    %6537 = vmatpush1.msra.mxu0 0.0
    %6538 = vmatprep.subr.mxu0 0.0
    %6539 = vmatpush1.msra.mxu0 0.0
    %6540 = vmatprep.subr.mxu0 0.0
    %6541 = vmatpush1.msra.mxu0 0.0
    %6542 = vmatprep.subr.mxu0 0.0
    %6543 = vmatpush1.msra.mxu0 0.0
    %6544 = vmatprep.subr.mxu0 0.0
    %6545 = vmatpush1.msra.mxu0 0.0
    %6546 = vmatprep.subr.mxu0 0.0
    %6547 = vmatpush1.msra.mxu0 0.0
    %6548 = vmatprep.subr.mxu0 0.0
    %6549 = vmatpush1.msra.mxu0 0.0
    %6550 = vmatprep.subr.mxu0 0.0
    %6551 = vmatpush1.msra.mxu0 0.0
    %6552 = vmatprep.subr.mxu0 0.0
    %6553 = vmatpush1.msra.mxu0 0.0
    %6554 = vmatprep.subr.mxu0 0.0
    %6555 = vmatpush1.msra.mxu0 0.0
    %6556 = vmatprep.subr.mxu0 0.0
    %6557 = vmatpush1.msra.mxu0 0.0
    %6558 = vmatprep.subr.mxu0 0.0
    %6559 = vmatpush1.msra.mxu0 0.0
    %6560 = vmatprep.subr.mxu0 0.0
    %6561 = vmatpush1.msra.mxu0 0.0
    %6562 = vmatprep.subr.mxu0 0.0
    %6563 = vmatpush1.msra.mxu0 0.0
    %6564 = vmatprep.subr.mxu0 0.0
    %6565 = vmatpush1.msra.mxu0 0.0
    %6566 = vmatprep.subr.mxu0 0.0
    %6567 = vmatpush1.msra.mxu0 0.0
    %6568 = vmatprep.mubr.f32.mxu0 0.0
    %6569 = vmatmul.mubr.f32.gmra.mrb[0].mxu0 %v6502
    %v6570 = vpop.f32.mrb[0].mxu0
    %v6571 = vadd.f32 %v6498, %v6570
    %v6572 = vpop.f32.mrb[0].mxu0
    %6573 = vdwg.mxu0
    %v6574 = vadd.f32 %v6571, %v2139
    %6575 = vmatprep.subr.mxu0 0.0
    %6576 = vmatpush1.msra.mxu0 %v1505
    %6577 = vmatprep.subr.mxu0 0.0
    %6578 = vmatpush1.msra.mxu0 %v1506
    %6579 = vmatprep.subr.mxu0 0.0
    %6580 = vmatpush1.msra.mxu0 %v1507
    %6581 = vmatprep.subr.mxu0 0.0
    %6582 = vmatpush1.msra.mxu0 %v1508
    %6583 = vmatprep.subr.mxu0 0.0
    %6584 = vmatpush1.msra.mxu0 0.0
    %6585 = vmatprep.subr.mxu0 0.0
    %6586 = vmatpush1.msra.mxu0 0.0
    %6587 = vmatprep.subr.mxu0 0.0
    %6588 = vmatpush1.msra.mxu0 0.0
    %6589 = vmatprep.subr.mxu0 0.0
    %6590 = vmatpush1.msra.mxu0 0.0
    %6591 = vmatprep.subr.mxu0 0.0
    %6592 = vmatpush1.msra.mxu0 0.0
    %6593 = vmatprep.subr.mxu0 0.0
    %6594 = vmatpush1.msra.mxu0 0.0
    %6595 = vmatprep.subr.mxu0 0.0
    %6596 = vmatpush1.msra.mxu0 0.0
    %6597 = vmatprep.subr.mxu0 0.0
    %6598 = vmatpush1.msra.mxu0 0.0
    %6599 = vmatprep.subr.mxu0 0.0
    %6600 = vmatpush1.msra.mxu0 0.0
    %6601 = vmatprep.subr.mxu0 0.0
    %6602 = vmatpush1.msra.mxu0 0.0
    %6603 = vmatprep.subr.mxu0 0.0
    %6604 = vmatpush1.msra.mxu0 0.0
    %6605 = vmatprep.subr.mxu0 0.0
    %6606 = vmatpush1.msra.mxu0 0.0
    %6607 = vmatprep.subr.mxu0 0.0
    %6608 = vmatpush1.msra.mxu0 0.0
    %6609 = vmatprep.subr.mxu0 0.0
    %6610 = vmatpush1.msra.mxu0 0.0
    %6611 = vmatprep.subr.mxu0 0.0
    %6612 = vmatpush1.msra.mxu0 0.0
    %6613 = vmatprep.subr.mxu0 0.0
    %6614 = vmatpush1.msra.mxu0 0.0
    %6615 = vmatprep.subr.mxu0 0.0
    %6616 = vmatpush1.msra.mxu0 0.0
    %6617 = vmatprep.subr.mxu0 0.0
    %6618 = vmatpush1.msra.mxu0 0.0
    %6619 = vmatprep.subr.mxu0 0.0
    %6620 = vmatpush1.msra.mxu0 0.0
    %6621 = vmatprep.subr.mxu0 0.0
    %6622 = vmatpush1.msra.mxu0 0.0
    %6623 = vmatprep.subr.mxu0 0.0
    %6624 = vmatpush1.msra.mxu0 0.0
    %6625 = vmatprep.subr.mxu0 0.0
    %6626 = vmatpush1.msra.mxu0 0.0
    %6627 = vmatprep.subr.mxu0 0.0
    %6628 = vmatpush1.msra.mxu0 0.0
    %6629 = vmatprep.subr.mxu0 0.0
    %6630 = vmatpush1.msra.mxu0 0.0
    %6631 = vmatprep.subr.mxu0 0.0
    %6632 = vmatpush1.msra.mxu0 0.0
    %6633 = vmatprep.subr.mxu0 0.0
    %6634 = vmatpush1.msra.mxu0 0.0
    %6635 = vmatprep.subr.mxu0 0.0
    %6636 = vmatpush1.msra.mxu0 0.0
    %6637 = vmatprep.subr.mxu0 0.0
    %6638 = vmatpush1.msra.mxu0 0.0
    %6639 = vmatprep.mubr.f32.mxu0 0.0
    %6640 = vmatmul.mubr.f32.gmra.mrb[0].mxu0 %v5860
    %v6641 = vpop.f32.mrb[0].mxu0
    %v6642 = vadd.f32 %v2146, %v6641
    %v6643 = vpop.f32.mrb[0].mxu0
    %6644 = vdwg.mxu0
    %v6645 = vadd.f32 %v6574, %v6642
    %v6646 = vxor.u32 %v6645, 2147483648
    %v6647 = vmul.f32 %v6646, 1.442695
    %v6648 = vpow.pop %v6647
    %v6649 = vadd.f32 %v6648, 1.0
    %v6650 = vrcp.pop %v6649
    %v6651 = vmul.f32 1.0, %v6650
    %6653 = vrot.lane.b32.xlu0 %v6642, 64
    %v6654 = vpop.permute.xlu0 %6653
    %v6656 = vmul.f32 %v6651, %v6654
    %6658 = vrot.lane.b32.xlu0 %v6656, 64
    %v6659 = vpop.permute.xlu0 %6658
    %v6661 = vadd.f32 %v6574, %v6659
    %v6662 = vtanh.pop %v6661
    %v6663 = vsub.f32 1.0, %v6651
    %6665 = vrot.lane.b32.xlu0 %v6662, 96
    %v6666 = vpop.permute.xlu0 %6665
    %v6668 = vmul.f32 %v6663, %v6666
    %v6669 = vmul.f32 %v6651, %v5786
    %v6670 = vadd.f32 %v6668, %v6669
    %6671 = vmatprep.subr.mxu0 0.0
    %6672 = vmatpush1.msra.mxu0 %v1515
    %6673 = vmatprep.subr.mxu0 0.0
    %6674 = vmatpush1.msra.mxu0 %v1516
    %6675 = vmatprep.subr.mxu0 0.0
    %6676 = vmatpush1.msra.mxu0 %v1517
    %6677 = vmatprep.subr.mxu0 0.0
    %6678 = vmatpush1.msra.mxu0 %v1518
    %6679 = vmatprep.subr.mxu0 0.0
    %6680 = vmatpush1.msra.mxu0 0.0
    %6681 = vmatprep.subr.mxu0 0.0
    %6682 = vmatpush1.msra.mxu0 0.0
    %6683 = vmatprep.subr.mxu0 0.0
    %6684 = vmatpush1.msra.mxu0 0.0
    %6685 = vmatprep.subr.mxu0 0.0
    %6686 = vmatpush1.msra.mxu0 0.0
    %6687 = vmatprep.subr.mxu0 0.0
    %6688 = vmatpush1.msra.mxu0 0.0
    %6689 = vmatprep.subr.mxu0 0.0
    %6690 = vmatpush1.msra.mxu0 0.0
    %6691 = vmatprep.subr.mxu0 0.0
    %6692 = vmatpush1.msra.mxu0 0.0
    %6693 = vmatprep.subr.mxu0 0.0
    %6694 = vmatpush1.msra.mxu0 0.0
    %6695 = vmatprep.subr.mxu0 0.0
    %6696 = vmatpush1.msra.mxu0 0.0
    %6697 = vmatprep.subr.mxu0 0.0
    %6698 = vmatpush1.msra.mxu0 0.0
    %6699 = vmatprep.subr.mxu0 0.0
    %6700 = vmatpush1.msra.mxu0 0.0
    %6701 = vmatprep.subr.mxu0 0.0
    %6702 = vmatpush1.msra.mxu0 0.0
    %6703 = vmatprep.subr.mxu0 0.0
    %6704 = vmatpush1.msra.mxu0 0.0
    %6705 = vmatprep.subr.mxu0 0.0
    %6706 = vmatpush1.msra.mxu0 0.0
    %6707 = vmatprep.subr.mxu0 0.0
    %6708 = vmatpush1.msra.mxu0 0.0
    %6709 = vmatprep.subr.mxu0 0.0
    %6710 = vmatpush1.msra.mxu0 0.0
    %6711 = vmatprep.subr.mxu0 0.0
    %6712 = vmatpush1.msra.mxu0 0.0
    %6713 = vmatprep.subr.mxu0 0.0
    %6714 = vmatpush1.msra.mxu0 0.0
    %6715 = vmatprep.subr.mxu0 0.0
    %6716 = vmatpush1.msra.mxu0 0.0
    %6717 = vmatprep.subr.mxu0 0.0
    %6718 = vmatpush1.msra.mxu0 0.0
    %6719 = vmatprep.subr.mxu0 0.0
    %6720 = vmatpush1.msra.mxu0 0.0
    %6721 = vmatprep.subr.mxu0 0.0
    %6722 = vmatpush1.msra.mxu0 0.0
    %6723 = vmatprep.subr.mxu0 0.0
    %6724 = vmatpush1.msra.mxu0 0.0
    %6725 = vmatprep.subr.mxu0 0.0
    %6726 = vmatpush1.msra.mxu0 0.0
    %6727 = vmatprep.subr.mxu0 0.0
    %6728 = vmatpush1.msra.mxu0 0.0
    %6729 = vmatprep.subr.mxu0 0.0
    %6730 = vmatpush1.msra.mxu0 0.0
    %6731 = vmatprep.subr.mxu0 0.0
    %6732 = vmatpush1.msra.mxu0 0.0
    %6733 = vmatprep.subr.mxu0 0.0
    %6734 = vmatpush1.msra.mxu0 0.0
    %6735 = vmatprep.mubr.f32.mxu0 0.0
    %6736 = vmatmul.mubr.f32.gmra.mrb[0].mxu0 %v6429
    %v6737 = vpop.f32.mrb[0].mxu0
    %v6738 = vadd.f32 0.0, %v6737
    %v6739 = vpop.f32.mrb[0].mxu0
    %6740 = vdwg.mxu0
    %6742 = vrot.lane.b32.xlu0 %v6670, 96
    %v6743 = vpop.permute.xlu0 %6742
    %v6744 = vsel %vm360, %v6743, 0
    %6746 = vmatprep.subr.mxu0 0.0
    %6747 = vmatpush1.msra.mxu0 %v1511
    %6748 = vmatprep.subr.mxu0 0.0
    %6749 = vmatpush1.msra.mxu0 %v1512
    %6750 = vmatprep.subr.mxu0 0.0
    %6751 = vmatpush1.msra.mxu0 %v1513
    %6752 = vmatprep.subr.mxu0 0.0
    %6753 = vmatpush1.msra.mxu0 %v1514
    %6754 = vmatprep.subr.mxu0 0.0
    %6755 = vmatpush1.msra.mxu0 0.0
    %6756 = vmatprep.subr.mxu0 0.0
    %6757 = vmatpush1.msra.mxu0 0.0
    %6758 = vmatprep.subr.mxu0 0.0
    %6759 = vmatpush1.msra.mxu0 0.0
    %6760 = vmatprep.subr.mxu0 0.0
    %6761 = vmatpush1.msra.mxu0 0.0
    %6762 = vmatprep.subr.mxu0 0.0
    %6763 = vmatpush1.msra.mxu0 0.0
    %6764 = vmatprep.subr.mxu0 0.0
    %6765 = vmatpush1.msra.mxu0 0.0
    %6766 = vmatprep.subr.mxu0 0.0
    %6767 = vmatpush1.msra.mxu0 0.0
    %6768 = vmatprep.subr.mxu0 0.0
    %6769 = vmatpush1.msra.mxu0 0.0
    %6770 = vmatprep.subr.mxu0 0.0
    %6771 = vmatpush1.msra.mxu0 0.0
    %6772 = vmatprep.subr.mxu0 0.0
    %6773 = vmatpush1.msra.mxu0 0.0
    %6774 = vmatprep.subr.mxu0 0.0
    %6775 = vmatpush1.msra.mxu0 0.0
    %6776 = vmatprep.subr.mxu0 0.0
    %6777 = vmatpush1.msra.mxu0 0.0
    %6778 = vmatprep.subr.mxu0 0.0
    %6779 = vmatpush1.msra.mxu0 0.0
    %6780 = vmatprep.subr.mxu0 0.0
    %6781 = vmatpush1.msra.mxu0 0.0
    %6782 = vmatprep.subr.mxu0 0.0
    %6783 = vmatpush1.msra.mxu0 0.0
    %6784 = vmatprep.subr.mxu0 0.0
    %6785 = vmatpush1.msra.mxu0 0.0
    %6786 = vmatprep.subr.mxu0 0.0
    %6787 = vmatpush1.msra.mxu0 0.0
    %6788 = vmatprep.subr.mxu0 0.0
    %6789 = vmatpush1.msra.mxu0 0.0
    %6790 = vmatprep.subr.mxu0 0.0
    %6791 = vmatpush1.msra.mxu0 0.0
    %6792 = vmatprep.subr.mxu0 0.0
    %6793 = vmatpush1.msra.mxu0 0.0
    %6794 = vmatprep.subr.mxu0 0.0
    %6795 = vmatpush1.msra.mxu0 0.0
    %6796 = vmatprep.subr.mxu0 0.0
    %6797 = vmatpush1.msra.mxu0 0.0
    %6798 = vmatprep.subr.mxu0 0.0
    %6799 = vmatpush1.msra.mxu0 0.0
    %6800 = vmatprep.subr.mxu0 0.0
    %6801 = vmatpush1.msra.mxu0 0.0
    %6802 = vmatprep.subr.mxu0 0.0
    %6803 = vmatpush1.msra.mxu0 0.0
    %6804 = vmatprep.subr.mxu0 0.0
    %6805 = vmatpush1.msra.mxu0 0.0
    %6806 = vmatprep.subr.mxu0 0.0
    %6807 = vmatpush1.msra.mxu0 0.0
    %6808 = vmatprep.subr.mxu0 0.0
    %6809 = vmatpush1.msra.mxu0 0.0
    %6810 = vmatprep.mubr.f32.mxu0 0.0
    %6811 = vmatmul.mubr.f32.gmra.mrb[0].mxu0 %v6744
    %v6812 = vpop.f32.mrb[0].mxu0
    %v6813 = vadd.f32 %v6738, %v6812
    %v6814 = vpop.f32.mrb[0].mxu0
    %6815 = vdwg.mxu0
    %v6816 = vadd.f32 %v6813, %v2394
    %v6817 = vsel %vm1520, %v6816, -inf
    %6818 = vmax.xlane.f32.xlu0 %v6817
    %v6819 = vpop.xlane.xlu0 %6818
    %v6820 = vsub.f32 %v6816, %v6819
    %v6821 = vmul.f32 %v6820, 1.442695
    %v6822 = vpow.pop %v6821
    %v6823 = vsel %vm1520, %v6822, 0.0
    %6824 = vadd.xlane.f32.xlu0 %v6823
    %v6825 = vpop.xlane.xlu0 %6824
    %v6826 = vlog2.pop %v6825
    %v6827 = vmul.f32 %v6826, 0.6931472
    %v6828 = vsub.f32 %v6820, %v6827
    %s6829 = scalar_lea.vmem [#allocation17], 24
    %6830 = vst.msk [vmem:[%s6829] sm:$0xf] %vm1520, %v6828
    %v6831 = vsel %vm1520, %v6828, -inf
    %6832 = vmax.xlane.f32.xlu0 %v6831
    %v6833 = vpop.xlane.xlu0 %6832
    %vm6834 = vcmp.eq.f32.partialorder %v6828, %v6833
    %v6835 = vsel %vm6834, %v216, 16
    %v6836 = vsel %vm1520, %v6835, 2147483647
    %v6837 = vand.u32 %v6836, 65535
    %v6838 = vshra.s32 %v6836, 16
    %v6839 = vcvt.s32.f32 %v6837
    %v6840 = vcvt.s32.f32 %v6838
    %6841 = vmin.xlane.f32.xlu0 %v6840
    %v6842 = vpop.xlane.xlu0 %6841
    %vm6843 = vcmp.eq.f32.partialorder %v6840, %v6842
    %v6844 = vsel %vm6843, %v6839, inf
    %6845 = vmin.xlane.f32.xlu0 %v6844
    %v6846 = vpop.xlane.xlu0 %6845
    %v6847 = vcvt.f32.s32 %v6846
    %v6848 = vcvt.f32.s32 %v6842
    %v6849 = vshll.u32 %v6848, 16
    %v6850 = vadd.s32 %v6849, %v6847
    %vm6851 = vcmp.eq.s32.totalorder %v216, %v6850
    %v6852 = vsel %vm6851, 1, 0
    %v6853 = vcvt.s32.f32 %v6852
    %v6855 = vsel %vm255, %v6853, 0
    %6857 = vmatprep.subr.mxu0 0.0
    %6858 = vmatpush1.msra.mxu0 %v1495
    %6859 = vmatprep.subr.mxu0 0.0
    %6860 = vmatpush1.msra.mxu0 %v1496
    %6861 = vmatprep.subr.mxu0 0.0
    %6862 = vmatpush1.msra.mxu0 0.0
    %6863 = vmatprep.subr.mxu0 0.0
    %6864 = vmatpush1.msra.mxu0 0.0
    %6865 = vmatprep.subr.mxu0 0.0
    %6866 = vmatpush1.msra.mxu0 0.0
    %6867 = vmatprep.subr.mxu0 0.0
    %6868 = vmatpush1.msra.mxu0 0.0
    %6869 = vmatprep.subr.mxu0 0.0
    %6870 = vmatpush1.msra.mxu0 0.0
    %6871 = vmatprep.subr.mxu0 0.0
    %6872 = vmatpush1.msra.mxu0 0.0
    %6873 = vmatprep.subr.mxu0 0.0
    %6874 = vmatpush1.msra.mxu0 0.0
    %6875 = vmatprep.subr.mxu0 0.0
    %6876 = vmatpush1.msra.mxu0 0.0
    %6877 = vmatprep.subr.mxu0 0.0
    %6878 = vmatpush1.msra.mxu0 0.0
    %6879 = vmatprep.subr.mxu0 0.0
    %6880 = vmatpush1.msra.mxu0 0.0
    %6881 = vmatprep.subr.mxu0 0.0
    %6882 = vmatpush1.msra.mxu0 0.0
    %6883 = vmatprep.subr.mxu0 0.0
    %6884 = vmatpush1.msra.mxu0 0.0
    %6885 = vmatprep.subr.mxu0 0.0
    %6886 = vmatpush1.msra.mxu0 0.0
    %6887 = vmatprep.subr.mxu0 0.0
    %6888 = vmatpush1.msra.mxu0 0.0
    %6889 = vmatprep.subr.mxu0 0.0
    %6890 = vmatpush1.msra.mxu0 0.0
    %6891 = vmatprep.subr.mxu0 0.0
    %6892 = vmatpush1.msra.mxu0 0.0
    %6893 = vmatprep.subr.mxu0 0.0
    %6894 = vmatpush1.msra.mxu0 0.0
    %6895 = vmatprep.subr.mxu0 0.0
    %6896 = vmatpush1.msra.mxu0 0.0
    %6897 = vmatprep.subr.mxu0 0.0
    %6898 = vmatpush1.msra.mxu0 0.0
    %6899 = vmatprep.subr.mxu0 0.0
    %6900 = vmatpush1.msra.mxu0 0.0
    %6901 = vmatprep.subr.mxu0 0.0
    %6902 = vmatpush1.msra.mxu0 0.0
    %6903 = vmatprep.subr.mxu0 0.0
    %6904 = vmatpush1.msra.mxu0 0.0
    %6905 = vmatprep.subr.mxu0 0.0
    %6906 = vmatpush1.msra.mxu0 0.0
    %6907 = vmatprep.subr.mxu0 0.0
    %6908 = vmatpush1.msra.mxu0 0.0
    %6909 = vmatprep.subr.mxu0 0.0
    %6910 = vmatpush1.msra.mxu0 0.0
    %6911 = vmatprep.subr.mxu0 0.0
    %6912 = vmatpush1.msra.mxu0 0.0
    %6913 = vmatprep.subr.mxu0 0.0
    %6914 = vmatpush1.msra.mxu0 0.0
    %6915 = vmatprep.subr.mxu0 0.0
    %6916 = vmatpush1.msra.mxu0 0.0
    %6917 = vmatprep.subr.mxu0 0.0
    %6918 = vmatpush1.msra.mxu0 0.0
    %6919 = vmatprep.subr.mxu0 0.0
    %6920 = vmatpush1.msra.mxu0 0.0
    %6921 = vmatprep.mubr.f32.mxu0 0.0
    %6922 = vmatmul.mubr.f32.gmra.mrb[0].mxu0 %v6855
    %v6923 = vpop.f32.mrb[0].mxu0
    %v6924 = vadd.f32 0.0, %v6923
    %v6925 = vpop.f32.mrb[0].mxu0
    %6926 = vdwg.mxu0
    %6927 = vmatprep.subr.mxu0 0.0
    %6928 = vmatpush1.msra.mxu0 %v1491
    %6929 = vmatprep.subr.mxu0 0.0
    %6930 = vmatpush1.msra.mxu0 %v1492
    %6931 = vmatprep.subr.mxu0 0.0
    %6932 = vmatpush1.msra.mxu0 %v1493
    %6933 = vmatprep.subr.mxu0 0.0
    %6934 = vmatpush1.msra.mxu0 %v1494
    %6935 = vmatprep.subr.mxu0 0.0
    %6936 = vmatpush1.msra.mxu0 0.0
    %6937 = vmatprep.subr.mxu0 0.0
    %6938 = vmatpush1.msra.mxu0 0.0
    %6939 = vmatprep.subr.mxu0 0.0
    %6940 = vmatpush1.msra.mxu0 0.0
    %6941 = vmatprep.subr.mxu0 0.0
    %6942 = vmatpush1.msra.mxu0 0.0
    %6943 = vmatprep.subr.mxu0 0.0
    %6944 = vmatpush1.msra.mxu0 0.0
    %6945 = vmatprep.subr.mxu0 0.0
    %6946 = vmatpush1.msra.mxu0 0.0
    %6947 = vmatprep.subr.mxu0 0.0
    %6948 = vmatpush1.msra.mxu0 0.0
    %6949 = vmatprep.subr.mxu0 0.0
    %6950 = vmatpush1.msra.mxu0 0.0
    %6951 = vmatprep.subr.mxu0 0.0
    %6952 = vmatpush1.msra.mxu0 0.0
    %6953 = vmatprep.subr.mxu0 0.0
    %6954 = vmatpush1.msra.mxu0 0.0
    %6955 = vmatprep.subr.mxu0 0.0
    %6956 = vmatpush1.msra.mxu0 0.0
    %6957 = vmatprep.subr.mxu0 0.0
    %6958 = vmatpush1.msra.mxu0 0.0
    %6959 = vmatprep.subr.mxu0 0.0
    %6960 = vmatpush1.msra.mxu0 0.0
    %6961 = vmatprep.subr.mxu0 0.0
    %6962 = vmatpush1.msra.mxu0 0.0
    %6963 = vmatprep.subr.mxu0 0.0
    %6964 = vmatpush1.msra.mxu0 0.0
    %6965 = vmatprep.subr.mxu0 0.0
    %6966 = vmatpush1.msra.mxu0 0.0
    %6967 = vmatprep.subr.mxu0 0.0
    %6968 = vmatpush1.msra.mxu0 0.0
    %6969 = vmatprep.subr.mxu0 0.0
    %6970 = vmatpush1.msra.mxu0 0.0
    %6971 = vmatprep.subr.mxu0 0.0
    %6972 = vmatpush1.msra.mxu0 0.0
    %6973 = vmatprep.subr.mxu0 0.0
    %6974 = vmatpush1.msra.mxu0 0.0
    %6975 = vmatprep.subr.mxu0 0.0
    %6976 = vmatpush1.msra.mxu0 0.0
    %6977 = vmatprep.subr.mxu0 0.0
    %6978 = vmatpush1.msra.mxu0 0.0
    %6979 = vmatprep.subr.mxu0 0.0
    %6980 = vmatpush1.msra.mxu0 0.0
    %6981 = vmatprep.subr.mxu0 0.0
    %6982 = vmatpush1.msra.mxu0 0.0
    %6983 = vmatprep.subr.mxu0 0.0
    %6984 = vmatpush1.msra.mxu0 0.0
    %6985 = vmatprep.subr.mxu0 0.0
    %6986 = vmatpush1.msra.mxu0 0.0
    %6987 = vmatprep.subr.mxu0 0.0
    %6988 = vmatpush1.msra.mxu0 0.0
    %6989 = vmatprep.subr.mxu0 0.0
    %6990 = vmatpush1.msra.mxu0 0.0
    %6991 = vmatprep.mubr.f32.mxu0 0.0
    %6992 = vmatmul.mubr.f32.gmra.mrb[0].mxu0 %v6744
    %v6993 = vpop.f32.mrb[0].mxu0
    %v6994 = vadd.f32 0.0, %v6993
    %v6995 = vpop.f32.mrb[0].mxu0
    %6996 = vdwg.mxu0
    %v6997 = vadd.f32 %v6994, %v1437
    %v6998 = vadd.f32 %v6994, %v1459
    %v6999 = vadd.f32 %v6994, %v1442
    %v7000 = vadd.f32 %v6994, %v1460
    %v7001 = vadd.f32 %v6994, %v1447
    %v7002 = vadd.f32 %v6994, %v1461
    %v7003 = vadd.f32 %v6994, %v1452
    %v7004 = vadd.f32 %v6994, %v1462
    %v7005 = vmax.f32 %v6997, 0.0
    %v7006 = vmax.f32 %v6998, 0.0
    %v7007 = vmax.f32 %v6999, 0.0
    %v7008 = vmax.f32 %v7000, 0.0
    %v7009 = vmax.f32 %v7001, 0.0
    %v7010 = vmax.f32 %v7002, 0.0
    %v7011 = vmax.f32 %v7003, 0.0
    %v7012 = vmax.f32 %v7004, 0.0
    %v7021 = vcombine.low %v7005, %v7006
    %v7022 = vcombine.low %v7007, %v7008
    %v7023 = vcombine.low %v7009, %v7010
    %v7024 = vcombine.low %v7011, %v7012
    %v7025 = vsel %vm360, %v7021, 0
    %v7027 = vsel %vm360, %v7022, 0
    %v7029 = vsel %vm360, %v7023, 0
    %v7031 = vsel %vm360, %v7024, 0
    %7033 = vmatprep.subr.mxu0 0.0
    %7034 = vmatpush1.msra.mxu0 %v1474
    %7035 = vmatprep.subr.mxu0 0.0
    %7036 = vmatpush1.msra.mxu0 %v1479
    %7037 = vmatprep.subr.mxu0 0.0
    %7038 = vmatpush1.msra.mxu0 %v1484
    %7039 = vmatprep.subr.mxu0 0.0
    %7040 = vmatpush1.msra.mxu0 %v1489
    %7041 = vmatprep.subr.mxu0 0.0
    %7042 = vmatpush1.msra.mxu0 0.0
    %7043 = vmatprep.subr.mxu0 0.0
    %7044 = vmatpush1.msra.mxu0 0.0
    %7045 = vmatprep.subr.mxu0 0.0
    %7046 = vmatpush1.msra.mxu0 0.0
    %7047 = vmatprep.subr.mxu0 0.0
    %7048 = vmatpush1.msra.mxu0 0.0
    %7049 = vmatprep.subr.mxu0 0.0
    %7050 = vmatpush1.msra.mxu0 0.0
    %7051 = vmatprep.subr.mxu0 0.0
    %7052 = vmatpush1.msra.mxu0 0.0
    %7053 = vmatprep.subr.mxu0 0.0
    %7054 = vmatpush1.msra.mxu0 0.0
    %7055 = vmatprep.subr.mxu0 0.0
    %7056 = vmatpush1.msra.mxu0 0.0
    %7057 = vmatprep.subr.mxu0 0.0
    %7058 = vmatpush1.msra.mxu0 0.0
    %7059 = vmatprep.subr.mxu0 0.0
    %7060 = vmatpush1.msra.mxu0 0.0
    %7061 = vmatprep.subr.mxu0 0.0
    %7062 = vmatpush1.msra.mxu0 0.0
    %7063 = vmatprep.subr.mxu0 0.0
    %7064 = vmatpush1.msra.mxu0 0.0
    %7065 = vmatprep.subr.mxu0 0.0
    %7066 = vmatpush1.msra.mxu0 0.0
    %7067 = vmatprep.subr.mxu0 0.0
    %7068 = vmatpush1.msra.mxu0 0.0
    %7069 = vmatprep.subr.mxu0 0.0
    %7070 = vmatpush1.msra.mxu0 0.0
    %7071 = vmatprep.subr.mxu0 0.0
    %7072 = vmatpush1.msra.mxu0 0.0
    %7073 = vmatprep.subr.mxu0 0.0
    %7074 = vmatpush1.msra.mxu0 0.0
    %7075 = vmatprep.subr.mxu0 0.0
    %7076 = vmatpush1.msra.mxu0 0.0
    %7077 = vmatprep.subr.mxu0 0.0
    %7078 = vmatpush1.msra.mxu0 0.0
    %7079 = vmatprep.subr.mxu0 0.0
    %7080 = vmatpush1.msra.mxu0 0.0
    %7081 = vmatprep.subr.mxu0 0.0
    %7082 = vmatpush1.msra.mxu0 0.0
    %7083 = vmatprep.subr.mxu0 0.0
    %7084 = vmatpush1.msra.mxu0 0.0
    %7085 = vmatprep.subr.mxu0 0.0
    %7086 = vmatpush1.msra.mxu0 0.0
    %7087 = vmatprep.subr.mxu0 0.0
    %7088 = vmatpush1.msra.mxu0 0.0
    %7089 = vmatprep.subr.mxu0 0.0
    %7090 = vmatpush1.msra.mxu0 0.0
    %7091 = vmatprep.subr.mxu0 0.0
    %7092 = vmatpush1.msra.mxu0 0.0
    %7093 = vmatprep.subr.mxu0 0.0
    %7094 = vmatpush1.msra.mxu0 0.0
    %7095 = vmatprep.subr.mxu0 0.0
    %7096 = vmatpush1.msra.mxu0 0.0
    %7097 = vmatprep.mubr.f32.mxu0 0.0
    %7098 = vmatmul.mubr.f32.gmra.mrb[0].mxu0 %v7025
    %v7099 = vpop.f32.mrb[0].mxu0
    %v7100 = vadd.f32 0.0, %v7099
    %v7101 = vpop.f32.mrb[0].mxu0
    %7102 = vmatprep.mubr.f32.mxu0 0.0
    %7103 = vmatmul.mubr.f32.gmra.mrb[0].mxu0 %v7027
    %v7104 = vpop.f32.mrb[0].mxu0
    %v7105 = vadd.f32 0.0, %v7104
    %v7106 = vpop.f32.mrb[0].mxu0
    %7107 = vmatprep.mubr.f32.mxu0 0.0
    %7108 = vmatmul.mubr.f32.gmra.mrb[0].mxu0 %v7029
    %v7109 = vpop.f32.mrb[0].mxu0
    %v7110 = vadd.f32 0.0, %v7109
    %v7111 = vpop.f32.mrb[0].mxu0
    %7112 = vmatprep.mubr.f32.mxu0 0.0
    %7113 = vmatmul.mubr.f32.gmra.mrb[0].mxu0 %v7031
    %v7114 = vpop.f32.mrb[0].mxu0
    %v7115 = vadd.f32 0.0, %v7114
    %v7116 = vpop.f32.mrb[0].mxu0
    %7117 = vdwg.mxu0
    %v7122 = vcombine.high %v7100, %v7100
    %v7123 = vcombine.high %v7105, %v7105
    %v7124 = vcombine.high %v7110, %v7110
    %v7125 = vcombine.high %v7115, %v7115
    %v7130 = vsel %vm1806, %v7100, -inf
    %v7131 = vsel %vm1806, %v7122, -inf
    %v7132 = vsel %vm1806, %v7105, -inf
    %v7133 = vsel %vm1806, %v7123, -inf
    %v7134 = vsel %vm1806, %v7110, -inf
    %v7135 = vmax.f32 %v7130, %v7134
    %v7136 = vsel %vm1806, %v7124, -inf
    %v7137 = vmax.f32 %v7131, %v7136
    %v7138 = vsel %vm1806, %v7115, -inf
    %v7139 = vmax.f32 %v7132, %v7138
    %v7140 = vsel %vm1806, %v7125, -inf
    %v7141 = vmax.f32 %v7133, %v7140
    %v7142 = vmax.f32 %v7135, %v7137
    %v7143 = vmax.f32 %v7139, %v7141
    %v7144 = vmax.f32 %v7142, %v7143
    %v7145 = vsub.f32 %v7100, %v7144
    %v7146 = vsub.f32 %v7122, %v7144
    %v7147 = vsub.f32 %v7105, %v7144
    %v7148 = vsub.f32 %v7123, %v7144
    %v7149 = vsub.f32 %v7110, %v7144
    %v7150 = vsub.f32 %v7124, %v7144
    %v7151 = vsub.f32 %v7115, %v7144
    %v7152 = vsub.f32 %v7125, %v7144
    %v7153 = vmul.f32 %v7145, 1.442695
    %v7154 = vpow.pop %v7153
    %v7155 = vmul.f32 %v7146, 1.442695
    %v7156 = vpow.pop %v7155
    %v7157 = vmul.f32 %v7147, 1.442695
    %v7158 = vpow.pop %v7157
    %v7159 = vmul.f32 %v7148, 1.442695
    %v7160 = vpow.pop %v7159
    %v7161 = vmul.f32 %v7149, 1.442695
    %v7162 = vpow.pop %v7161
    %v7163 = vmul.f32 %v7150, 1.442695
    %v7164 = vpow.pop %v7163
    %v7165 = vmul.f32 %v7151, 1.442695
    %v7166 = vpow.pop %v7165
    %v7167 = vmul.f32 %v7152, 1.442695
    %v7168 = vpow.pop %v7167
    %v7169 = vsel %vm1806, %v7154, 0.0
    %v7170 = vsel %vm1806, %v7156, 0.0
    %v7171 = vadd.f32 %v7169, %v7170
    %v7172 = vsel %vm1806, %v7158, 0.0
    %v7173 = vadd.f32 %v7171, %v7172
    %v7174 = vsel %vm1806, %v7160, 0.0
    %v7175 = vadd.f32 %v7173, %v7174
    %v7176 = vsel %vm1806, %v7162, 0.0
    %v7177 = vadd.f32 %v7175, %v7176
    %v7178 = vsel %vm1806, %v7164, 0.0
    %v7179 = vadd.f32 %v7177, %v7178
    %v7180 = vsel %vm1806, %v7166, 0.0
    %v7181 = vadd.f32 %v7179, %v7180
    %v7182 = vsel %vm1806, %v7168, 0.0
    %v7183 = vadd.f32 %v7181, %v7182
    %v7184 = vrcp.pop %v7183
    %v7185 = vmul.f32 %v7154, %v7184
    %v7186 = vmul.f32 %v7156, %v7184
    %v7187 = vmul.f32 %v7158, %v7184
    %v7188 = vmul.f32 %v7160, %v7184
    %v7189 = vmul.f32 %v7162, %v7184
    %v7190 = vmul.f32 %v7164, %v7184
    %v7191 = vmul.f32 %v7166, %v7184
    %v7192 = vmul.f32 %v7168, %v7184
    %7194 = vset.pattern.permute.xlu0 0
    %7195 = vperm.xlu0 %7194, %v7185
    %v7196 = vpop.permute.xlu0 %7195
    %v7199 = vunpack.c.l.s4 839922192
    %v7200 = vunpack.c.0.s8 %v7199
    %v7201 = vlaneseq
    %v7202 = vshrl.u32 %v7201, 7
    %v7203 = vsub.s32 %v7200, %v7202
    %v7204 = vrot.slane %v7196, %v7203
    %7206 = vset.pattern.permute.xlu0 0
    %7207 = vperm.xlu0 %7206, %v7186
    %v7208 = vpop.permute.xlu0 %7207
    %v7211 = vunpack.c.l.s4 839922192
    %v7212 = vunpack.c.0.s8 %v7211
    %v7213 = vlaneseq
    %v7214 = vshrl.u32 %v7213, 7
    %v7215 = vsub.s32 %v7212, %v7214
    %v7216 = vrot.slane %v7208, %v7215
    %7218 = vset.pattern.permute.xlu0 0
    %7219 = vperm.xlu0 %7218, %v7187
    %v7220 = vpop.permute.xlu0 %7219
    %v7223 = vunpack.c.l.s4 839922192
    %v7224 = vunpack.c.0.s8 %v7223
    %v7225 = vlaneseq
    %v7226 = vshrl.u32 %v7225, 7
    %v7227 = vsub.s32 %v7224, %v7226
    %v7228 = vrot.slane %v7220, %v7227
    %7230 = vset.pattern.permute.xlu0 0
    %7231 = vperm.xlu0 %7230, %v7188
    %v7232 = vpop.permute.xlu0 %7231
    %v7235 = vunpack.c.l.s4 839922192
    %v7236 = vunpack.c.0.s8 %v7235
    %v7237 = vlaneseq
    %v7238 = vshrl.u32 %v7237, 7
    %v7239 = vsub.s32 %v7236, %v7238
    %v7240 = vrot.slane %v7232, %v7239
    %7242 = vset.pattern.permute.xlu0 0
    %7243 = vperm.xlu0 %7242, %v7189
    %v7244 = vpop.permute.xlu0 %7243
    %v7247 = vunpack.c.l.s4 839922192
    %v7248 = vunpack.c.0.s8 %v7247
    %v7249 = vlaneseq
    %v7250 = vshrl.u32 %v7249, 7
    %v7251 = vsub.s32 %v7248, %v7250
    %v7252 = vrot.slane %v7244, %v7251
    %7254 = vset.pattern.permute.xlu0 0
    %7255 = vperm.xlu0 %7254, %v7190
    %v7256 = vpop.permute.xlu0 %7255
    %v7259 = vunpack.c.l.s4 839922192
    %v7260 = vunpack.c.0.s8 %v7259
    %v7261 = vlaneseq
    %v7262 = vshrl.u32 %v7261, 7
    %v7263 = vsub.s32 %v7260, %v7262
    %v7264 = vrot.slane %v7256, %v7263
    %7266 = vset.pattern.permute.xlu0 0
    %7267 = vperm.xlu0 %7266, %v7191
    %v7268 = vpop.permute.xlu0 %7267
    %v7271 = vunpack.c.l.s4 839922192
    %v7272 = vunpack.c.0.s8 %v7271
    %v7273 = vlaneseq
    %v7274 = vshrl.u32 %v7273, 7
    %v7275 = vsub.s32 %v7272, %v7274
    %v7276 = vrot.slane %v7268, %v7275
    %7278 = vset.pattern.permute.xlu0 0
    %7279 = vperm.xlu0 %7278, %v7192
    %v7280 = vpop.permute.xlu0 %7279
    %v7283 = vunpack.c.l.s4 839922192
    %v7284 = vunpack.c.0.s8 %v7283
    %v7285 = vlaneseq
    %v7286 = vshrl.u32 %v7285, 7
    %v7287 = vsub.s32 %v7284, %v7286
    %v7288 = vrot.slane %v7280, %v7287
    %v7289 = vmul.f32 %v7204, %v1331
    %v7290 = vmul.f32 %v7216, %v1332
    %v7291 = vmul.f32 %v7228, %v1333
    %v7292 = vmul.f32 %v7240, %v1334
    %v7293 = vmul.f32 %v7252, %v1335
    %v7294 = vmul.f32 %v7264, %v1336
    %v7295 = vmul.f32 %v7276, %v1337
    %v7296 = vmul.f32 %v7288, %v1338
    %v7297 = vsel %vm572, %v7289, 0.0
    %v7298 = vsel %vm572, %v7290, 0.0
    %v7299 = vadd.f32 %v7297, %v7298
    %v7300 = vsel %vm572, %v7291, 0.0
    %v7301 = vadd.f32 %v7299, %v7300
    %v7302 = vsel %vm572, %v7292, 0.0
    %v7303 = vadd.f32 %v7301, %v7302
    %v7304 = vsel %vm572, %v7293, 0.0
    %v7305 = vadd.f32 %v7303, %v7304
    %v7306 = vsel %vm572, %v7294, 0.0
    %v7307 = vadd.f32 %v7305, %v7306
    %v7308 = vsel %vm572, %v7295, 0.0
    %v7309 = vadd.f32 %v7307, %v7308
    %v7310 = vsel %vm572, %v7296, 0.0
    %v7311 = vadd.f32 %v7309, %v7310
    %v7313 = vsel %vm360, %v7311, 0
    %7315 = vmatprep.subr.mxu0 0.0
    %7316 = vmatpush1.msra.mxu0 %v1501
    %7317 = vmatprep.subr.mxu0 0.0
    %7318 = vmatpush1.msra.mxu0 %v1502
    %7319 = vmatprep.subr.mxu0 0.0
    %7320 = vmatpush1.msra.mxu0 %v1503
    %7321 = vmatprep.subr.mxu0 0.0
    %7322 = vmatpush1.msra.mxu0 %v1504
    %7323 = vmatprep.subr.mxu0 0.0
    %7324 = vmatpush1.msra.mxu0 0.0
    %7325 = vmatprep.subr.mxu0 0.0
    %7326 = vmatpush1.msra.mxu0 0.0
    %7327 = vmatprep.subr.mxu0 0.0
    %7328 = vmatpush1.msra.mxu0 0.0
    %7329 = vmatprep.subr.mxu0 0.0
    %7330 = vmatpush1.msra.mxu0 0.0
    %7331 = vmatprep.subr.mxu0 0.0
    %7332 = vmatpush1.msra.mxu0 0.0
    %7333 = vmatprep.subr.mxu0 0.0
    %7334 = vmatpush1.msra.mxu0 0.0
    %7335 = vmatprep.subr.mxu0 0.0
    %7336 = vmatpush1.msra.mxu0 0.0
    %7337 = vmatprep.subr.mxu0 0.0
    %7338 = vmatpush1.msra.mxu0 0.0
    %7339 = vmatprep.subr.mxu0 0.0
    %7340 = vmatpush1.msra.mxu0 0.0
    %7341 = vmatprep.subr.mxu0 0.0
    %7342 = vmatpush1.msra.mxu0 0.0
    %7343 = vmatprep.subr.mxu0 0.0
    %7344 = vmatpush1.msra.mxu0 0.0
    %7345 = vmatprep.subr.mxu0 0.0
    %7346 = vmatpush1.msra.mxu0 0.0
    %7347 = vmatprep.subr.mxu0 0.0
    %7348 = vmatpush1.msra.mxu0 0.0
    %7349 = vmatprep.subr.mxu0 0.0
    %7350 = vmatpush1.msra.mxu0 0.0
    %7351 = vmatprep.subr.mxu0 0.0
    %7352 = vmatpush1.msra.mxu0 0.0
    %7353 = vmatprep.subr.mxu0 0.0
    %7354 = vmatpush1.msra.mxu0 0.0
    %7355 = vmatprep.subr.mxu0 0.0
    %7356 = vmatpush1.msra.mxu0 0.0
    %7357 = vmatprep.subr.mxu0 0.0
    %7358 = vmatpush1.msra.mxu0 0.0
    %7359 = vmatprep.subr.mxu0 0.0
    %7360 = vmatpush1.msra.mxu0 0.0
    %7361 = vmatprep.subr.mxu0 0.0
    %7362 = vmatpush1.msra.mxu0 0.0
    %7363 = vmatprep.subr.mxu0 0.0
    %7364 = vmatpush1.msra.mxu0 0.0
    %7365 = vmatprep.subr.mxu0 0.0
    %7366 = vmatpush1.msra.mxu0 0.0
    %7367 = vmatprep.subr.mxu0 0.0
    %7368 = vmatpush1.msra.mxu0 0.0
    %7369 = vmatprep.subr.mxu0 0.0
    %7370 = vmatpush1.msra.mxu0 0.0
    %7371 = vmatprep.subr.mxu0 0.0
    %7372 = vmatpush1.msra.mxu0 0.0
    %7373 = vmatprep.subr.mxu0 0.0
    %7374 = vmatpush1.msra.mxu0 0.0
    %7375 = vmatprep.subr.mxu0 0.0
    %7376 = vmatpush1.msra.mxu0 0.0
    %7377 = vmatprep.subr.mxu0 0.0
    %7378 = vmatpush1.msra.mxu0 0.0
    %7379 = vmatprep.mubr.f32.mxu0 0.0
    %7380 = vmatmul.mubr.f32.gmra.mrb[0].mxu0 %v7313
    %v7381 = vpop.f32.mrb[0].mxu0
    %v7382 = vadd.f32 0.0, %v7381
    %v7383 = vpop.f32.mrb[0].mxu0
    %7384 = vdwg.mxu0
    %v7386 = vsel %vm360, %v6924, 0
    %7388 = vmatprep.subr.mxu0 0.0
    %7389 = vmatpush1.msra.mxu0 %v1497
    %7390 = vmatprep.subr.mxu0 0.0
    %7391 = vmatpush1.msra.mxu0 %v1498
    %7392 = vmatprep.subr.mxu0 0.0
    %7393 = vmatpush1.msra.mxu0 %v1499
    %7394 = vmatprep.subr.mxu0 0.0
    %7395 = vmatpush1.msra.mxu0 %v1500
    %7396 = vmatprep.subr.mxu0 0.0
    %7397 = vmatpush1.msra.mxu0 0.0
    %7398 = vmatprep.subr.mxu0 0.0
    %7399 = vmatpush1.msra.mxu0 0.0
    %7400 = vmatprep.subr.mxu0 0.0
    %7401 = vmatpush1.msra.mxu0 0.0
    %7402 = vmatprep.subr.mxu0 0.0
    %7403 = vmatpush1.msra.mxu0 0.0
    %7404 = vmatprep.subr.mxu0 0.0
    %7405 = vmatpush1.msra.mxu0 0.0
    %7406 = vmatprep.subr.mxu0 0.0
    %7407 = vmatpush1.msra.mxu0 0.0
    %7408 = vmatprep.subr.mxu0 0.0
    %7409 = vmatpush1.msra.mxu0 0.0
    %7410 = vmatprep.subr.mxu0 0.0
    %7411 = vmatpush1.msra.mxu0 0.0
    %7412 = vmatprep.subr.mxu0 0.0
    %7413 = vmatpush1.msra.mxu0 0.0
    %7414 = vmatprep.subr.mxu0 0.0
    %7415 = vmatpush1.msra.mxu0 0.0
    %7416 = vmatprep.subr.mxu0 0.0
    %7417 = vmatpush1.msra.mxu0 0.0
    %7418 = vmatprep.subr.mxu0 0.0
    %7419 = vmatpush1.msra.mxu0 0.0
    %7420 = vmatprep.subr.mxu0 0.0
    %7421 = vmatpush1.msra.mxu0 0.0
    %7422 = vmatprep.subr.mxu0 0.0
    %7423 = vmatpush1.msra.mxu0 0.0
    %7424 = vmatprep.subr.mxu0 0.0
    %7425 = vmatpush1.msra.mxu0 0.0
    %7426 = vmatprep.subr.mxu0 0.0
    %7427 = vmatpush1.msra.mxu0 0.0
    %7428 = vmatprep.subr.mxu0 0.0
    %7429 = vmatpush1.msra.mxu0 0.0
    %7430 = vmatprep.subr.mxu0 0.0
    %7431 = vmatpush1.msra.mxu0 0.0
    %7432 = vmatprep.subr.mxu0 0.0
    %7433 = vmatpush1.msra.mxu0 0.0
    %7434 = vmatprep.subr.mxu0 0.0
    %7435 = vmatpush1.msra.mxu0 0.0
    %7436 = vmatprep.subr.mxu0 0.0
    %7437 = vmatpush1.msra.mxu0 0.0
    %7438 = vmatprep.subr.mxu0 0.0
    %7439 = vmatpush1.msra.mxu0 0.0
    %7440 = vmatprep.subr.mxu0 0.0
    %7441 = vmatpush1.msra.mxu0 0.0
    %7442 = vmatprep.subr.mxu0 0.0
    %7443 = vmatpush1.msra.mxu0 0.0
    %7444 = vmatprep.subr.mxu0 0.0
    %7445 = vmatpush1.msra.mxu0 0.0
    %7446 = vmatprep.subr.mxu0 0.0
    %7447 = vmatpush1.msra.mxu0 0.0
    %7448 = vmatprep.subr.mxu0 0.0
    %7449 = vmatpush1.msra.mxu0 0.0
    %7450 = vmatprep.subr.mxu0 0.0
    %7451 = vmatpush1.msra.mxu0 0.0
    %7452 = vmatprep.mubr.f32.mxu0 0.0
    %7453 = vmatmul.mubr.f32.gmra.mrb[0].mxu0 %v7386
    %v7454 = vpop.f32.mrb[0].mxu0
    %v7455 = vadd.f32 %v7382, %v7454
    %v7456 = vpop.f32.mrb[0].mxu0
    %7457 = vdwg.mxu0
    %v7458 = vadd.f32 %v7455, %v2139
    %7459 = vmatprep.subr.mxu0 0.0
    %7460 = vmatpush1.msra.mxu0 %v1505
    %7461 = vmatprep.subr.mxu0 0.0
    %7462 = vmatpush1.msra.mxu0 %v1506
    %7463 = vmatprep.subr.mxu0 0.0
    %7464 = vmatpush1.msra.mxu0 %v1507
    %7465 = vmatprep.subr.mxu0 0.0
    %7466 = vmatpush1.msra.mxu0 %v1508
    %7467 = vmatprep.subr.mxu0 0.0
    %7468 = vmatpush1.msra.mxu0 0.0
    %7469 = vmatprep.subr.mxu0 0.0
    %7470 = vmatpush1.msra.mxu0 0.0
    %7471 = vmatprep.subr.mxu0 0.0
    %7472 = vmatpush1.msra.mxu0 0.0
    %7473 = vmatprep.subr.mxu0 0.0
    %7474 = vmatpush1.msra.mxu0 0.0
    %7475 = vmatprep.subr.mxu0 0.0
    %7476 = vmatpush1.msra.mxu0 0.0
    %7477 = vmatprep.subr.mxu0 0.0
    %7478 = vmatpush1.msra.mxu0 0.0
    %7479 = vmatprep.subr.mxu0 0.0
    %7480 = vmatpush1.msra.mxu0 0.0
    %7481 = vmatprep.subr.mxu0 0.0
    %7482 = vmatpush1.msra.mxu0 0.0
    %7483 = vmatprep.subr.mxu0 0.0
    %7484 = vmatpush1.msra.mxu0 0.0
    %7485 = vmatprep.subr.mxu0 0.0
    %7486 = vmatpush1.msra.mxu0 0.0
    %7487 = vmatprep.subr.mxu0 0.0
    %7488 = vmatpush1.msra.mxu0 0.0
    %7489 = vmatprep.subr.mxu0 0.0
    %7490 = vmatpush1.msra.mxu0 0.0
    %7491 = vmatprep.subr.mxu0 0.0
    %7492 = vmatpush1.msra.mxu0 0.0
    %7493 = vmatprep.subr.mxu0 0.0
    %7494 = vmatpush1.msra.mxu0 0.0
    %7495 = vmatprep.subr.mxu0 0.0
    %7496 = vmatpush1.msra.mxu0 0.0
    %7497 = vmatprep.subr.mxu0 0.0
    %7498 = vmatpush1.msra.mxu0 0.0
    %7499 = vmatprep.subr.mxu0 0.0
    %7500 = vmatpush1.msra.mxu0 0.0
    %7501 = vmatprep.subr.mxu0 0.0
    %7502 = vmatpush1.msra.mxu0 0.0
    %7503 = vmatprep.subr.mxu0 0.0
    %7504 = vmatpush1.msra.mxu0 0.0
    %7505 = vmatprep.subr.mxu0 0.0
    %7506 = vmatpush1.msra.mxu0 0.0
    %7507 = vmatprep.subr.mxu0 0.0
    %7508 = vmatpush1.msra.mxu0 0.0
    %7509 = vmatprep.subr.mxu0 0.0
    %7510 = vmatpush1.msra.mxu0 0.0
    %7511 = vmatprep.subr.mxu0 0.0
    %7512 = vmatpush1.msra.mxu0 0.0
    %7513 = vmatprep.subr.mxu0 0.0
    %7514 = vmatpush1.msra.mxu0 0.0
    %7515 = vmatprep.subr.mxu0 0.0
    %7516 = vmatpush1.msra.mxu0 0.0
    %7517 = vmatprep.subr.mxu0 0.0
    %7518 = vmatpush1.msra.mxu0 0.0
    %7519 = vmatprep.subr.mxu0 0.0
    %7520 = vmatpush1.msra.mxu0 0.0
    %7521 = vmatprep.subr.mxu0 0.0
    %7522 = vmatpush1.msra.mxu0 0.0
    %7523 = vmatprep.mubr.f32.mxu0 0.0
    %7524 = vmatmul.mubr.f32.gmra.mrb[0].mxu0 %v6744
    %v7525 = vpop.f32.mrb[0].mxu0
    %v7526 = vadd.f32 %v2146, %v7525
    %v7527 = vpop.f32.mrb[0].mxu0
    %7528 = vdwg.mxu0
    %v7529 = vadd.f32 %v7458, %v7526
    %v7530 = vxor.u32 %v7529, 2147483648
    %v7531 = vmul.f32 %v7530, 1.442695
    %v7532 = vpow.pop %v7531
    %v7533 = vadd.f32 %v7532, 1.0
    %v7534 = vrcp.pop %v7533
    %v7535 = vmul.f32 1.0, %v7534
    %7537 = vrot.lane.b32.xlu0 %v7526, 64
    %v7538 = vpop.permute.xlu0 %7537
    %v7540 = vmul.f32 %v7535, %v7538
    %7542 = vrot.lane.b32.xlu0 %v7540, 64
    %v7543 = vpop.permute.xlu0 %7542
    %v7545 = vadd.f32 %v7458, %v7543
    %v7546 = vtanh.pop %v7545
    %v7547 = vsub.f32 1.0, %v7535
    %7549 = vrot.lane.b32.xlu0 %v7546, 96
    %v7550 = vpop.permute.xlu0 %7549
    %v7552 = vmul.f32 %v7547, %v7550
    %v7553 = vmul.f32 %v7535, %v6670
    %v7554 = vadd.f32 %v7552, %v7553
    %7555 = vmatprep.subr.mxu0 0.0
    %7556 = vmatpush1.msra.mxu0 %v1515
    %7557 = vmatprep.subr.mxu0 0.0
    %7558 = vmatpush1.msra.mxu0 %v1516
    %7559 = vmatprep.subr.mxu0 0.0
    %7560 = vmatpush1.msra.mxu0 %v1517
    %7561 = vmatprep.subr.mxu0 0.0
    %7562 = vmatpush1.msra.mxu0 %v1518
    %7563 = vmatprep.subr.mxu0 0.0
    %7564 = vmatpush1.msra.mxu0 0.0
    %7565 = vmatprep.subr.mxu0 0.0
    %7566 = vmatpush1.msra.mxu0 0.0
    %7567 = vmatprep.subr.mxu0 0.0
    %7568 = vmatpush1.msra.mxu0 0.0
    %7569 = vmatprep.subr.mxu0 0.0
    %7570 = vmatpush1.msra.mxu0 0.0
    %7571 = vmatprep.subr.mxu0 0.0
    %7572 = vmatpush1.msra.mxu0 0.0
    %7573 = vmatprep.subr.mxu0 0.0
    %7574 = vmatpush1.msra.mxu0 0.0
    %7575 = vmatprep.subr.mxu0 0.0
    %7576 = vmatpush1.msra.mxu0 0.0
    %7577 = vmatprep.subr.mxu0 0.0
    %7578 = vmatpush1.msra.mxu0 0.0
    %7579 = vmatprep.subr.mxu0 0.0
    %7580 = vmatpush1.msra.mxu0 0.0
    %7581 = vmatprep.subr.mxu0 0.0
    %7582 = vmatpush1.msra.mxu0 0.0
    %7583 = vmatprep.subr.mxu0 0.0
    %7584 = vmatpush1.msra.mxu0 0.0
    %7585 = vmatprep.subr.mxu0 0.0
    %7586 = vmatpush1.msra.mxu0 0.0
    %7587 = vmatprep.subr.mxu0 0.0
    %7588 = vmatpush1.msra.mxu0 0.0
    %7589 = vmatprep.subr.mxu0 0.0
    %7590 = vmatpush1.msra.mxu0 0.0
    %7591 = vmatprep.subr.mxu0 0.0
    %7592 = vmatpush1.msra.mxu0 0.0
    %7593 = vmatprep.subr.mxu0 0.0
    %7594 = vmatpush1.msra.mxu0 0.0
    %7595 = vmatprep.subr.mxu0 0.0
    %7596 = vmatpush1.msra.mxu0 0.0
    %7597 = vmatprep.subr.mxu0 0.0
    %7598 = vmatpush1.msra.mxu0 0.0
    %7599 = vmatprep.subr.mxu0 0.0
    %7600 = vmatpush1.msra.mxu0 0.0
    %7601 = vmatprep.subr.mxu0 0.0
    %7602 = vmatpush1.msra.mxu0 0.0
    %7603 = vmatprep.subr.mxu0 0.0
    %7604 = vmatpush1.msra.mxu0 0.0
    %7605 = vmatprep.subr.mxu0 0.0
    %7606 = vmatpush1.msra.mxu0 0.0
    %7607 = vmatprep.subr.mxu0 0.0
    %7608 = vmatpush1.msra.mxu0 0.0
    %7609 = vmatprep.subr.mxu0 0.0
    %7610 = vmatpush1.msra.mxu0 0.0
    %7611 = vmatprep.subr.mxu0 0.0
    %7612 = vmatpush1.msra.mxu0 0.0
    %7613 = vmatprep.subr.mxu0 0.0
    %7614 = vmatpush1.msra.mxu0 0.0
    %7615 = vmatprep.subr.mxu0 0.0
    %7616 = vmatpush1.msra.mxu0 0.0
    %7617 = vmatprep.subr.mxu0 0.0
    %7618 = vmatpush1.msra.mxu0 0.0
    %7619 = vmatprep.mubr.f32.mxu0 0.0
    %7620 = vmatmul.mubr.f32.gmra.mrb[0].mxu0 %v7313
    %v7621 = vpop.f32.mrb[0].mxu0
    %v7622 = vadd.f32 0.0, %v7621
    %v7623 = vpop.f32.mrb[0].mxu0
    %7624 = vdwg.mxu0
    %7626 = vrot.lane.b32.xlu0 %v7554, 96
    %v7627 = vpop.permute.xlu0 %7626
    %v7628 = vsel %vm360, %v7627, 0
    %7630 = vmatprep.subr.mxu0 0.0
    %7631 = vmatpush1.msra.mxu0 %v1511
    %7632 = vmatprep.subr.mxu0 0.0
    %7633 = vmatpush1.msra.mxu0 %v1512
    %7634 = vmatprep.subr.mxu0 0.0
    %7635 = vmatpush1.msra.mxu0 %v1513
    %7636 = vmatprep.subr.mxu0 0.0
    %7637 = vmatpush1.msra.mxu0 %v1514
    %7638 = vmatprep.subr.mxu0 0.0
    %7639 = vmatpush1.msra.mxu0 0.0
    %7640 = vmatprep.subr.mxu0 0.0
    %7641 = vmatpush1.msra.mxu0 0.0
    %7642 = vmatprep.subr.mxu0 0.0
    %7643 = vmatpush1.msra.mxu0 0.0
    %7644 = vmatprep.subr.mxu0 0.0
    %7645 = vmatpush1.msra.mxu0 0.0
    %7646 = vmatprep.subr.mxu0 0.0
    %7647 = vmatpush1.msra.mxu0 0.0
    %7648 = vmatprep.subr.mxu0 0.0
    %7649 = vmatpush1.msra.mxu0 0.0
    %7650 = vmatprep.subr.mxu0 0.0
    %7651 = vmatpush1.msra.mxu0 0.0
    %7652 = vmatprep.subr.mxu0 0.0
    %7653 = vmatpush1.msra.mxu0 0.0
    %7654 = vmatprep.subr.mxu0 0.0
    %7655 = vmatpush1.msra.mxu0 0.0
    %7656 = vmatprep.subr.mxu0 0.0
    %7657 = vmatpush1.msra.mxu0 0.0
    %7658 = vmatprep.subr.mxu0 0.0
    %7659 = vmatpush1.msra.mxu0 0.0
    %7660 = vmatprep.subr.mxu0 0.0
    %7661 = vmatpush1.msra.mxu0 0.0
    %7662 = vmatprep.subr.mxu0 0.0
    %7663 = vmatpush1.msra.mxu0 0.0
    %7664 = vmatprep.subr.mxu0 0.0
    %7665 = vmatpush1.msra.mxu0 0.0
    %7666 = vmatprep.subr.mxu0 0.0
    %7667 = vmatpush1.msra.mxu0 0.0
    %7668 = vmatprep.subr.mxu0 0.0
    %7669 = vmatpush1.msra.mxu0 0.0
    %7670 = vmatprep.subr.mxu0 0.0
    %7671 = vmatpush1.msra.mxu0 0.0
    %7672 = vmatprep.subr.mxu0 0.0
    %7673 = vmatpush1.msra.mxu0 0.0
    %7674 = vmatprep.subr.mxu0 0.0
    %7675 = vmatpush1.msra.mxu0 0.0
    %7676 = vmatprep.subr.mxu0 0.0
    %7677 = vmatpush1.msra.mxu0 0.0
    %7678 = vmatprep.subr.mxu0 0.0
    %7679 = vmatpush1.msra.mxu0 0.0
    %7680 = vmatprep.subr.mxu0 0.0
    %7681 = vmatpush1.msra.mxu0 0.0
    %7682 = vmatprep.subr.mxu0 0.0
    %7683 = vmatpush1.msra.mxu0 0.0
    %7684 = vmatprep.subr.mxu0 0.0
    %7685 = vmatpush1.msra.mxu0 0.0
    %7686 = vmatprep.subr.mxu0 0.0
    %7687 = vmatpush1.msra.mxu0 0.0
    %7688 = vmatprep.subr.mxu0 0.0
    %7689 = vmatpush1.msra.mxu0 0.0
    %7690 = vmatprep.subr.mxu0 0.0
    %7691 = vmatpush1.msra.mxu0 0.0
    %7692 = vmatprep.subr.mxu0 0.0
    %7693 = vmatpush1.msra.mxu0 0.0
    %7694 = vmatprep.mubr.f32.mxu0 0.0
    %7695 = vmatmul.mubr.f32.gmra.mrb[0].mxu0 %v7628
    %v7696 = vpop.f32.mrb[0].mxu0
    %v7697 = vadd.f32 %v7622, %v7696
    %v7698 = vpop.f32.mrb[0].mxu0
    %7699 = vdwg.mxu0
    %v7700 = vadd.f32 %v7697, %v2394
    %v7701 = vsel %vm1520, %v7700, -inf
    %7702 = vmax.xlane.f32.xlu0 %v7701
    %v7703 = vpop.xlane.xlu0 %7702
    %v7704 = vsub.f32 %v7700, %v7703
    %v7705 = vmul.f32 %v7704, 1.442695
    %v7706 = vpow.pop %v7705
    %v7707 = vsel %vm1520, %v7706, 0.0
    %7708 = vadd.xlane.f32.xlu0 %v7707
    %v7709 = vpop.xlane.xlu0 %7708
    %v7710 = vlog2.pop %v7709
    %v7711 = vmul.f32 %v7710, 0.6931472
    %v7712 = vsub.f32 %v7704, %v7711
    %s7713 = scalar_lea.vmem [#allocation17], 28
    %7714 = vst.msk [vmem:[%s7713] sm:$0xf] %vm1520, %v7712
    // Predicated region
    $region102: #{seq2seq_forward.1} parent=1 // pred_check
      _
    $region103: #{seq2seq_forward.1} parent=1 // pred_check_branch
      %7716 = sbr.rel (0) target = $region105
    $region104: #{seq2seq_forward.1} parent=1 // pred_region
      %s7718 = ssub.s32 512, 512
      %7719 = vsyncadd [#allocation5], %s7718
      %s7720 = sshll.u32 [#allocation17], 4
      %s7721 = int_to_ptr.vmem [resolvable:$true] %s7720
      %7726 = dma.vmem_to_hbm [thread:$0]  %s7721, 512, %s17, [#allocation5], 64, 64, 4
    $region105: #{seq2seq_forward.1} parent=1 // pred_fallthru
      _
    // Predicated region
    $region106: #{seq2seq_forward.1} parent=1 // pred_check
      _
    $region107: #{seq2seq_forward.1} parent=1 // pred_check_branch
      %7728 = sbr.rel (0) target = $region109
    $region108: #{seq2seq_forward.1} parent=1 // pred_region
      %7729 = dma.done [#allocation5], 512
    $region109: #{seq2seq_forward.1} parent=1 // pred_fallthru
      _
    %7730 = vsyncpa [#allocation4], 1
    %7731 = vsyncpa [#allocation7], 1
    %7732 = vsyncpa [#allocation10], 1
    %7733 = vsyncpa [#allocation13], 1
    %7734 = vsyncpa [#allocation16], 1
    %7735 = vsyncpa [#allocation5], 1

</llo_original>
